<compile_context>
chip_gen: v5e
topology: v5e:2x2
jax: 0.10.0
libtpu: 0.0.40
codegen_flags: <defaults>
</compile_context>

<pallas_src>
import math

import jax
import jax.numpy as jnp
from jax.experimental import pallas as pl
from jax.experimental.pallas import tpu as pltpu

# ---------------- synthetic "dinov2-small"-style config (shrunk depth) -------
HIDDEN = 384          # dinov2-small hidden size (lane-dense: 3 x 128)
N_HEADS = 6
HEAD_DIM = HIDDEN // N_HEADS
INTERMEDIATE = 1536   # 4 * HIDDEN
N_LAYERS = 2          # dinov2-small: 12 (shrunk)
PATCH = 4             # dinov2-small: 14 (shrunk)
LN_EPS = 1e-6


# ------------------------------ fused Pallas kernel --------------------------
def _make_dinov2_kernel(Bblk, S_real, S_pad, n_patches):
    """Build the fused kernel with the static shape constants baked in."""
    M = Bblk * S_pad
    scale = 1.0 / math.sqrt(HEAD_DIM)

    def kernel(patch_ref, w_eff_ref, cls_ref, pos_ref,
               ln1_g, ln1_b, wqkv, bqkv, wo, bo, ls1,
               ln2_g, ln2_b, w1, b1, w2, b2, ls2,
               lnf_g, lnf_b,
               out_ref, hs_ref):
        l = pl.program_id(1)
        n_l = pl.num_programs(1)

        # ---- layer step 0: patch-embed + CLS + pos-emb into the resident hs ----
        @pl.when(l == 0)
        def _init():
            hs_ref[...] = jnp.zeros_like(hs_ref)        # zero padding rows too
            out_ref[...] = jnp.zeros_like(out_ref)
            for b in range(Bblk):
                pe = jnp.dot(patch_ref[b].astype(jnp.bfloat16), w_eff_ref[...],
                             preferred_element_type=jnp.float32)
                hs_ref[b, 0:1, :] = cls_ref[...]                       # CLS + pos[0]
                hs_ref[b, 1:1 + n_patches, :] = pe + pos_ref[...]      # patches

        # ---- one transformer layer on the flattened (Bblk*S_pad) token rows ----
        xf = hs_ref[...].reshape(M, HIDDEN)             # f32 residual stream

        def ln(v, g_ref, b_ref):
            mu = jnp.mean(v, axis=-1, keepdims=True)
            var = jnp.mean((v - mu) ** 2, axis=-1, keepdims=True)
            return (v - mu) * jax.lax.rsqrt(var + LN_EPS) * g_ref[0] + b_ref[0]

        h = ln(xf, ln1_g, ln1_b)
        # fused QKV matmul; keep only the bf16 copy live after the bias add
        qkv = (jnp.dot(h.astype(jnp.bfloat16), wqkv[0],
                       preferred_element_type=jnp.float32)
               + bqkv[0]).astype(jnp.bfloat16)          # (M, 3*HIDDEN)

        # key-padding mask (0..S_real-1 valid, S_real..S_pad-1 padded)
        kmask = jax.lax.broadcasted_iota(jnp.int32, (S_pad, S_pad), 1) < S_real

        # TODO(synk): head-batched (single 3-D dot_general over heads) attention
        # needs an in-kernel (S, H, D)->(H, S, D) relayout; kept as a small
        # unrolled per-head loop for Mosaic-lowering safety. The per-head
        # context is accumulated directly into the output projection, so the
        # old lane-offset concat is gone.
        attn_rows = []
        for b in range(Bblk):
            qkv_b = qkv[b * S_pad:(b + 1) * S_pad, :]
            acc_b = jnp.zeros((S_pad, HIDDEN), jnp.float32)
            for hd in range(N_HEADS):
                lo = hd * HEAD_DIM
                q = qkv_b[:, lo:lo + HEAD_DIM]
                k = qkv_b[:, HIDDEN + lo:HIDDEN + lo + HEAD_DIM]
                v = qkv_b[:, 2 * HIDDEN + lo:2 * HIDDEN + lo + HEAD_DIM]
                s = jax.lax.dot_general(q, k, (((1,), (1,)), ((), ())),
                                        preferred_element_type=jnp.float32) * scale
                s = jnp.where(kmask, s, -1e30)
                s = s - jnp.max(s, axis=-1, keepdims=True)
                p = jnp.exp(s)
                p = p / jnp.sum(p, axis=-1, keepdims=True)   # exact softmax divide
                ctx = jnp.dot(p.astype(jnp.bfloat16), v,
                              preferred_element_type=jnp.float32)  # (S_pad, HEAD_DIM)
                # accumulate out-projection per head (sublane-aligned wo rows)
                acc_b = acc_b + jnp.dot(ctx.astype(jnp.bfloat16),
                                        wo[0, lo:lo + HEAD_DIM, :],
                                        preferred_element_type=jnp.float32)
            attn_rows.append(acc_b)
        attn = attn_rows[0] if Bblk == 1 else jnp.concatenate(attn_rows, axis=0)

        x2 = xf + (attn + bo[0]) * ls1[0]               # LayerScale + residual

        # ---- MLP block (intermediate never leaves VMEM / vregs) ----
        # TODO(synk): at real S (257 tokens) tile this over 128-256 row chunks.
        h2 = ln(x2, ln2_g, ln2_b)
        m = jnp.dot(h2.astype(jnp.bfloat16), w1[0],
                    preferred_element_type=jnp.float32) + b1[0]
        # TODO(synk): HF Dinov2 uses exact (erf) GELU; tanh approximation kept
        # for Mosaic-safe transcendentals.
        m = jax.nn.gelu(m, approximate=True)
        m = jnp.dot(m.astype(jnp.bfloat16), w2[0],
                    preferred_element_type=jnp.float32) + b2[0]
        x3 = x2 + m * ls2[0]

        hs_ref[...] = x3.reshape(Bblk, S_pad, HIDDEN)

        # ---- last layer: final LayerNorm applied to the CLS rows only ----
        @pl.when(l == n_l - 1)
        def _final():
            if Bblk == 1:
                cls = x3[0:1, :]
            else:
                cls = jnp.concatenate(
                    [x3[b * S_pad:b * S_pad + 1, :] for b in range(Bblk)], axis=0)
            mu = jnp.mean(cls, axis=-1, keepdims=True)
            var = jnp.mean((cls - mu) ** 2, axis=-1, keepdims=True)
            y = (cls - mu) * jax.lax.rsqrt(var + LN_EPS)
            out_ref[...] = (y * lnf_g[...] + lnf_b[...]
                            ).reshape(Bblk, 1, HIDDEN).astype(out_ref.dtype)

    return kernel


# ------------------------------ parameter init --------------------------------
def init_params(key, img_hw):
    pooled = img_hw // 2
    n_side = pooled // PATCH
    n_patches = n_side * n_side
    seq = n_patches + 1  # + CLS token

    keys = iter(jax.random.split(key, 8 + 16 * N_LAYERS))

    def nrm(shape, scale=0.02):
        return scale * jax.random.normal(next(keys), shape, dtype=jnp.float32)

    # Base Conv2d(3, HIDDEN, PATCH, stride=PATCH) weight. Depth channel is
    # replicated 3x -> sum over channels; AvgPool2d(2) is linear -> fold into
    # the conv by replicating each kernel pixel over a 2x2 raw block * 1/4.
    w_conv = nrm((3, PATCH, PATCH, HIDDEN))
    w_sum = jnp.sum(w_conv, axis=0)                              # (P, P, HIDDEN)
    w_eff = 0.25 * jnp.repeat(jnp.repeat(w_sum, 2, axis=0), 2, axis=1)
    w_eff = w_eff.reshape(4 * PATCH * PATCH, HIDDEN).astype(jnp.bfloat16)

    patch_b = nrm((1, HIDDEN))
    cls_token = nrm((1, HIDDEN))
    pos_emb = nrm((seq, HIDDEN))

    layers = []
    for _ in range(N_LAYERS):
        wq, wk, wv = nrm((HIDDEN, HIDDEN)), nrm((HIDDEN, HIDDEN)), nrm((HIDDEN, HIDDEN))
        bq, bk, bv = nrm((1, HIDDEN)), nrm((1, HIDDEN)), nrm((1, HIDDEN))
        layers.append(dict(
            ln1_g=1.0 + nrm((1, HIDDEN)),
            ln1_b=nrm((1, HIDDEN)),
            wqkv=jnp.concatenate([wq, wk, wv], axis=1).astype(jnp.bfloat16),
            bqkv=jnp.concatenate([bq, bk, bv], axis=1),
            wo=nrm((HIDDEN, HIDDEN)).astype(jnp.bfloat16),
            bo=nrm((1, HIDDEN)),
            # real DINOv2 LayerScale init is ~1e-5; 1.0 keeps synthetic layers active.
            ls1=jnp.full((1, HIDDEN), 1.0, dtype=jnp.float32),
            ln2_g=1.0 + nrm((1, HIDDEN)),
            ln2_b=nrm((1, HIDDEN)),
            w1=nrm((HIDDEN, INTERMEDIATE)).astype(jnp.bfloat16),
            b1=nrm((1, INTERMEDIATE)),
            w2=nrm((INTERMEDIATE, HIDDEN)).astype(jnp.bfloat16),
            b2=nrm((1, HIDDEN)),
            ls2=jnp.full((1, HIDDEN), 1.0, dtype=jnp.float32),
        ))
    # stack per-layer params along a leading layer axis (streamed via the grid)
    stacked = {k: jnp.stack([lay[k] for lay in layers], axis=0) for k in layers[0]}

    params = dict(
        w_eff=w_eff,
        cls_row=cls_token + pos_emb[0:1],        # fused CLS token + pos_emb[0]
        pos_patch=pos_emb[1:] + patch_b,         # fused pos_emb[1:] + conv bias
        ln_f_g=1.0 + nrm((1, HIDDEN)),
        ln_f_b=nrm((1, HIDDEN)),
        **stacked,
    )
    return params


# --------------------------------- forward ------------------------------------
def dinov2_encoder_forward(observations, params):
    depth = observations["depth"]                                # (B, H, W, 1) f32
    B, H, W, _ = depth.shape
    PP = 2 * PATCH                                               # pool(2) * patch
    nh, nw = H // PP, W // PP
    n_patches = nh * nw
    pp2 = PP * PP
    S_real = n_patches + 1
    S_pad = ((S_real + 7) // 8) * 8                              # sublane-aligned seq
    assert params["pos_patch"].shape[0] == n_patches

    # v7x: 2-way "parallel" batch-block axis keeps both TensorCores busy;
    # on single-TC chips it is just two sequential steps.
    batch_blocks = 2 if (B >= 2 and B % 2 == 0) else 1
    Bblk = B // batch_blocks

    # cat x3 / permute / AvgPool2d(2) / patch conv are folded into w_eff; only
    # the one-time unfold of non-overlapping 2P x 2P raw-depth patches is XLA.
    img = depth[..., 0]
    patches = (
        img.reshape(B, nh, PP, nw, PP)
        .transpose(0, 1, 3, 2, 4)
        .reshape(B, n_patches, pp2)
    )

    L = params["wqkv"].shape[0]
    kernel = _make_dinov2_kernel(Bblk, S_real, S_pad, n_patches)

    lmap = lambda p, l: (l, 0, 0)        # layer-streamed params
    cmap2 = lambda p, l: (0, 0)          # constant 2-D params
    pmap = lambda p, l: (p, 0, 0)        # per-batch-block arrays

    in_specs = [
        pl.BlockSpec((Bblk, n_patches, pp2), pmap),            # raw patches
        pl.BlockSpec((pp2, HIDDEN), cmap2),                    # effective patch weight
        pl.BlockSpec((1, HIDDEN), cmap2),                      # cls + pos[0]
        pl.BlockSpec((n_patches, HIDDEN), cmap2),              # pos[1:] + conv bias
        pl.BlockSpec((1, 1, HIDDEN), lmap),                    # ln1_g
        pl.BlockSpec((1, 1, HIDDEN), lmap),                    # ln1_b
        pl.BlockSpec((1, HIDDEN, 3 * HIDDEN), lmap),           # wqkv
        pl.BlockSpec((1, 1, 3 * HIDDEN), lmap),                # bqkv
        pl.BlockSpec((1, HIDDEN, HIDDEN), lmap),               # wo
        pl.BlockSpec((1, 1, HIDDEN), lmap),                    # bo
        pl.BlockSpec((1, 1, HIDDEN), lmap),                    # ls1
        pl.BlockSpec((1, 1, HIDDEN), lmap),                    # ln2_g
        pl.BlockSpec((1, 1, HIDDEN), lmap),                    # ln2_b
        pl.BlockSpec((1, HIDDEN, INTERMEDIATE), lmap),         # w1
        pl.BlockSpec((1, 1, INTERMEDIATE), lmap),              # b1
        pl.BlockSpec((1, INTERMEDIATE, HIDDEN), lmap),         # w2
        pl.BlockSpec((1, 1, HIDDEN), lmap),                    # b2
        pl.BlockSpec((1, 1, HIDDEN), lmap),                    # ls2
        pl.BlockSpec((1, HIDDEN), cmap2),                      # final LN gamma
        pl.BlockSpec((1, HIDDEN), cmap2),                      # final LN beta
    ]

    out = pl.pallas_call(
        kernel,
        grid=(batch_blocks, L),
        in_specs=in_specs,
        out_specs=pl.BlockSpec((Bblk, 1, HIDDEN), pmap),
        out_shape=jax.ShapeDtypeStruct((B, 1, HIDDEN), jnp.float32),
        scratch_shapes=[pltpu.VMEM((Bblk, S_pad, HIDDEN), jnp.float32)],
        compiler_params=pltpu.CompilerParams(
            dimension_semantics=("parallel", "arbitrary"),
            vmem_limit_bytes=32 * 1024 * 1024),
    )(patches, params["w_eff"], params["cls_row"], params["pos_patch"],
      params["ln1_g"], params["ln1_b"], params["wqkv"], params["bqkv"],
      params["wo"], params["bo"], params["ls1"], params["ln2_g"], params["ln2_b"],
      params["w1"], params["b1"], params["w2"], params["b2"], params["ls2"],
      params["ln_f_g"], params["ln_f_b"])

    return out[:, 0, :]                                          # (B, HIDDEN)


# ----------------------------------- main --------------------------------------
if __name__ == "__main__":
    key = jax.random.PRNGKey(0)
    k_obs, k_par = jax.random.split(key)

    B, H, W = 2, 32, 32          # pooled 16x16, patch 4 -> 16 patches + CLS = 17 tokens
    depth = jax.random.uniform(k_obs, (B, H, W, 1), dtype=jnp.float32)
    observations = {"depth": depth}

    params = init_params(k_par, img_hw=H)

    cls_token = dinov2_encoder_forward(observations, params)
    cls_token = jax.block_until_ready(cls_token)

    assert cls_token.shape == (B, HIDDEN), cls_token.shape
    assert bool(jnp.all(jnp.isfinite(cls_token)))
    print("KERNEL_OK")
</pallas_src>

<mosaic_0001>
module attributes {stable_mosaic.version = 11 : i64} {
  func.func @kernel(%arg0: i32, %arg1: i32, %arg2: memref<1x16x64xf32, #tpu.memory_space<vmem>>, %arg3: memref<64x384xbf16, #tpu.memory_space<vmem>>, %arg4: memref<1x384xf32, #tpu.memory_space<vmem>>, %arg5: memref<16x384xf32, #tpu.memory_space<vmem>>, %arg6: memref<1x1x384xf32, #tpu.memory_space<vmem>>, %arg7: memref<1x1x384xf32, #tpu.memory_space<vmem>>, %arg8: memref<1x384x1152xbf16, #tpu.memory_space<vmem>>, %arg9: memref<1x1x1152xf32, #tpu.memory_space<vmem>>, %arg10: memref<1x384x384xbf16, #tpu.memory_space<vmem>>, %arg11: memref<1x1x384xf32, #tpu.memory_space<vmem>>, %arg12: memref<1x1x384xf32, #tpu.memory_space<vmem>>, %arg13: memref<1x1x384xf32, #tpu.memory_space<vmem>>, %arg14: memref<1x1x384xf32, #tpu.memory_space<vmem>>, %arg15: memref<1x384x1536xbf16, #tpu.memory_space<vmem>>, %arg16: memref<1x1x1536xf32, #tpu.memory_space<vmem>>, %arg17: memref<1x1536x384xbf16, #tpu.memory_space<vmem>>, %arg18: memref<1x1x384xf32, #tpu.memory_space<vmem>>, %arg19: memref<1x1x384xf32, #tpu.memory_space<vmem>>, %arg20: memref<1x384xf32, #tpu.memory_space<vmem>>, %arg21: memref<1x384xf32, #tpu.memory_space<vmem>>, %arg22: memref<1x1x384xf32, #tpu.memory_space<vmem>>, %arg23: memref<1x24x384xf32, #tpu.memory_space<vmem>>) attributes {dimension_semantics = [#tpu.dimension_semantics<parallel>, #tpu.dimension_semantics<arbitrary>], iteration_bounds = array<i64: 2, 2>, scalar_prefetch = 0 : i64, scratch_operands = 1 : i64, tpu.core_type = #tpu.core_type<tc>, window_params = [{transform_indices = @transform_0, window_bounds = array<i64: 1, 16, 64>}, {pipeline_mode = #tpu.pipeline_mode<synchronous>, transform_indices = @transform_1, window_bounds = array<i64: 64, 384>}, {pipeline_mode = #tpu.pipeline_mode<synchronous>, transform_indices = @transform_2, window_bounds = array<i64: 1, 384>}, {pipeline_mode = #tpu.pipeline_mode<synchronous>, transform_indices = @transform_3, window_bounds = array<i64: 16, 384>}, {transform_indices = @transform_4, window_bounds = array<i64: 1, 1, 384>}, {transform_indices = @transform_5, window_bounds = array<i64: 1, 1, 384>}, {transform_indices = @transform_6, window_bounds = array<i64: 1, 384, 1152>}, {transform_indices = @transform_7, window_bounds = array<i64: 1, 1, 1152>}, {transform_indices = @transform_8, window_bounds = array<i64: 1, 384, 384>}, {transform_indices = @transform_9, window_bounds = array<i64: 1, 1, 384>}, {transform_indices = @transform_10, window_bounds = array<i64: 1, 1, 384>}, {transform_indices = @transform_11, window_bounds = array<i64: 1, 1, 384>}, {transform_indices = @transform_12, window_bounds = array<i64: 1, 1, 384>}, {transform_indices = @transform_13, window_bounds = array<i64: 1, 384, 1536>}, {transform_indices = @transform_14, window_bounds = array<i64: 1, 1, 1536>}, {transform_indices = @transform_15, window_bounds = array<i64: 1, 1536, 384>}, {transform_indices = @transform_16, window_bounds = array<i64: 1, 1, 384>}, {transform_indices = @transform_17, window_bounds = array<i64: 1, 1, 384>}, {pipeline_mode = #tpu.pipeline_mode<synchronous>, transform_indices = @transform_18, window_bounds = array<i64: 1, 384>}, {pipeline_mode = #tpu.pipeline_mode<synchronous>, transform_indices = @transform_19, window_bounds = array<i64: 1, 384>}, {transform_indices = @transform_20, window_bounds = array<i64: 1, 1, 384>}]} {
    %c0_i32 = arith.constant 0 : i32
    %0 = arith.cmpi eq, %arg1, %c0_i32 : i32
    %1 = arith.extui %0 : i1 to i32
    %c0_i32_0 = arith.constant 0 : i32
    %2 = arith.cmpi ne, %1, %c0_i32_0 : i32
    scf.if %2 {
      %cst_118 = arith.constant 0.000000e+00 : f32
      %262 = vector.broadcast %cst_118 : f32 to vector<1x24x384xf32>
      %c0_119 = arith.constant 0 : index
      %c0_120 = arith.constant 0 : index
      %c0_121 = arith.constant 0 : index
      %263 = vector.load %arg23[%c0_119, %c0_120, %c0_121] : memref<1x24x384xf32, #tpu.memory_space<vmem>>, vector<1x24x384xf32>
      tpu.vector_store %arg23[%c0_119, %c0_120, %c0_121], %262 {strides = array<i32>} : memref<1x24x384xf32, #tpu.memory_space<vmem>>, vector<1x24x384xf32>,
      %cst_122 = arith.constant 0.000000e+00 : f32
      %264 = vector.broadcast %cst_122 : f32 to vector<1x1x384xf32>
      %c0_123 = arith.constant 0 : index
      %c0_124 = arith.constant 0 : index
      %c0_125 = arith.constant 0 : index
      %265 = vector.load %arg22[%c0_123, %c0_124, %c0_125] : memref<1x1x384xf32, #tpu.memory_space<vmem>>, vector<1x1x384xf32>
      tpu.vector_store %arg22[%c0_123, %c0_124, %c0_125], %264 {strides = array<i32>} : memref<1x1x384xf32, #tpu.memory_space<vmem>>, vector<1x1x384xf32>,
      %c0_126 = arith.constant 0 : index
      %c0_127 = arith.constant 0 : index
      %c0_128 = arith.constant 0 : index
      %266 = vector.load %arg2[%c0_126, %c0_127, %c0_128] : memref<1x16x64xf32, #tpu.memory_space<vmem>>, vector<1x16x64xf32>
      %267 = vector.shape_cast %266 : vector<1x16x64xf32> to vector<16x64xf32>
      %268 = arith.truncf %267 : vector<16x64xf32> to vector<16x64xbf16>
      %c0_129 = arith.constant 0 : index
      %c0_130 = arith.constant 0 : index
      %269 = vector.load %arg3[%c0_129, %c0_130] : memref<64x384xbf16, #tpu.memory_space<vmem>>, vector<64x384xbf16>
      %cst_131 = arith.constant dense<0.000000e+00> : vector<16x384xf32>
      %270 = tpu.matmul %268, %269, %cst_131 {dimension_numbers = #tpu.dot_dimension_numbers<[1], [0], [0], [1], [0, 0, 1, 1], [], []>} : vector<16x64xbf16>, vector<64x384xbf16>, vector<16x384xf32> -> vector<16x384xf32>
      %c0_132 = arith.constant 0 : index
      %c0_133 = arith.constant 0 : index
      %271 = vector.load %arg4[%c0_132, %c0_133] : memref<1x384xf32, #tpu.memory_space<vmem>>, vector<1x384xf32>
      %c0_134 = arith.constant 0 : index
      %c0_135 = arith.constant 0 : index
      %c0_136 = arith.constant 0 : index
      %272 = vector.load %arg23[%c0_134, %c0_135, %c0_136] : memref<1x24x384xf32, #tpu.memory_space<vmem>>, vector<1x1x384xf32>
      %273 = vector.shape_cast %272 : vector<1x1x384xf32> to vector<1x384xf32>
      %274 = vector.shape_cast %271 : vector<1x384xf32> to vector<1x1x384xf32>
      tpu.vector_store %arg23[%c0_134, %c0_135, %c0_136], %274 {strides = array<i32>} : memref<1x24x384xf32, #tpu.memory_space<vmem>>, vector<1x1x384xf32>,
      %c0_137 = arith.constant 0 : index
      %c0_138 = arith.constant 0 : index
      %275 = vector.load %arg5[%c0_137, %c0_138] : memref<16x384xf32, #tpu.memory_space<vmem>>, vector<16x384xf32>
      %276 = arith.addf %270, %275 : vector<16x384xf32>
      %c0_139 = arith.constant 0 : index
      %c1 = arith.constant 1 : index
      %c0_140 = arith.constant 0 : index
      %277 = vector.load %arg23[%c0_139, %c1, %c0_140] : memref<1x24x384xf32, #tpu.memory_space<vmem>>, vector<1x16x384xf32>
      %278 = vector.shape_cast %277 : vector<1x16x384xf32> to vector<16x384xf32>
      %279 = vector.shape_cast %276 : vector<16x384xf32> to vector<1x16x384xf32>
      tpu.vector_store %arg23[%c0_139, %c1, %c0_140], %279 {strides = array<i32>} : memref<1x24x384xf32, #tpu.memory_space<vmem>>, vector<1x16x384xf32>,
    } else {
    }
    %c0 = arith.constant 0 : index
    %c0_1 = arith.constant 0 : index
    %c0_2 = arith.constant 0 : index
    %3 = vector.load %arg23[%c0, %c0_1, %c0_2] : memref<1x24x384xf32, #tpu.memory_space<vmem>>, vector<1x24x384xf32>
    %4 = vector.shape_cast %3 : vector<1x24x384xf32> to vector<24x384xf32>
    %cst = arith.constant dense<0.000000e+00> : vector<24xf32>
    %5 = vector.multi_reduction <add>, %4, %cst [1] : vector<24x384xf32> to vector<24xf32>
    %6 = vector.shape_cast %5 : vector<24xf32> to vector<24x1xf32>
    %cst_3 = arith.constant 3.840000e+02 : f32
    %7 = vector.broadcast %cst_3 : f32 to vector<24x1xf32>
    %8 = arith.divf %6, %7 : vector<24x1xf32>
    %9 = vector.broadcast %8 : vector<24x1xf32> to vector<24x384xf32>
    %10 = arith.subf %4, %9 : vector<24x384xf32>
    %11 = arith.mulf %10, %10 : vector<24x384xf32>
    %cst_4 = arith.constant dense<0.000000e+00> : vector<24xf32>
    %12 = vector.multi_reduction <add>, %11, %cst_4 [1] : vector<24x384xf32> to vector<24xf32>
    %13 = vector.shape_cast %12 : vector<24xf32> to vector<24x1xf32>
    %cst_5 = arith.constant 3.840000e+02 : f32
    %14 = vector.broadcast %cst_5 : f32 to vector<24x1xf32>
    %15 = arith.divf %13, %14 : vector<24x1xf32>
    %16 = vector.broadcast %8 : vector<24x1xf32> to vector<24x384xf32>
    %17 = arith.subf %4, %16 : vector<24x384xf32>
    %cst_6 = arith.constant 9.99999997E-7 : f32
    %18 = vector.broadcast %cst_6 : f32 to vector<24x1xf32>
    %19 = arith.addf %15, %18 : vector<24x1xf32>
    %20 = math.rsqrt %19 : vector<24x1xf32>
    %21 = vector.broadcast %20 : vector<24x1xf32> to vector<24x384xf32>
    %22 = arith.mulf %17, %21 : vector<24x384xf32>
    %c0_7 = arith.constant 0 : index
    %c0_8 = arith.constant 0 : index
    %c0_9 = arith.constant 0 : index
    %23 = vector.load %arg6[%c0_7, %c0_8, %c0_9] : memref<1x1x384xf32, #tpu.memory_space<vmem>>, vector<1x1x384xf32>
    %24 = vector.shape_cast %23 : vector<1x1x384xf32> to vector<1x384xf32>
    %25 = vector.broadcast %24 : vector<1x384xf32> to vector<24x384xf32>
    %26 = arith.mulf %22, %25 : vector<24x384xf32>
    %c0_10 = arith.constant 0 : index
    %c0_11 = arith.constant 0 : index
    %c0_12 = arith.constant 0 : index
    %27 = vector.load %arg7[%c0_10, %c0_11, %c0_12] : memref<1x1x384xf32, #tpu.memory_space<vmem>>, vector<1x1x384xf32>
    %28 = vector.shape_cast %27 : vector<1x1x384xf32> to vector<1x384xf32>
    %29 = vector.broadcast %28 : vector<1x384xf32> to vector<24x384xf32>
    %30 = arith.addf %26, %29 : vector<24x384xf32>
    %31 = arith.truncf %30 : vector<24x384xf32> to vector<24x384xbf16>
    %c0_13 = arith.constant 0 : index
    %c0_14 = arith.constant 0 : index
    %c0_15 = arith.constant 0 : index
    %32 = vector.load %arg8[%c0_13, %c0_14, %c0_15] : memref<1x384x1152xbf16, #tpu.memory_space<vmem>>, vector<1x384x1152xbf16>
    %33 = vector.shape_cast %32 : vector<1x384x1152xbf16> to vector<384x1152xbf16>
    %cst_16 = arith.constant dense<0.000000e+00> : vector<24x1152xf32>
    %34 = tpu.matmul %31, %33, %cst_16 {dimension_numbers = #tpu.dot_dimension_numbers<[1], [0], [0], [1], [0, 0, 1, 1], [], []>} : vector<24x384xbf16>, vector<384x1152xbf16>, vector<24x1152xf32> -> vector<24x1152xf32>
    %c0_17 = arith.constant 0 : index
    %c0_18 = arith.constant 0 : index
    %c0_19 = arith.constant 0 : index
    %35 = vector.load %arg9[%c0_17, %c0_18, %c0_19] : memref<1x1x1152xf32, #tpu.memory_space<vmem>>, vector<1x1x1152xf32>
    %36 = vector.shape_cast %35 : vector<1x1x1152xf32> to vector<1x1152xf32>
    %37 = vector.broadcast %36 : vector<1x1152xf32> to vector<24x1152xf32>
    %38 = arith.addf %34, %37 : vector<24x1152xf32>
    %39 = arith.truncf %38 : vector<24x1152xf32> to vector<24x1152xbf16>
    %40 = tpu.iota {dimensions = array<i32: 1>} : vector<24x24xi32>
    %c17_i32 = arith.constant 17 : i32
    %41 = vector.broadcast %c17_i32 : i32 to vector<24x24xi32>
    %42 = arith.cmpi slt, %40, %41 : vector<24x24xi32>
    %cst_20 = arith.constant 0.000000e+00 : f32
    %43 = vector.broadcast %cst_20 : f32 to vector<24x384xf32>
    %44 = vector.extract_strided_slice %39 {offsets = [0, 0], sizes = [24, 64], strides = [1, 1]} : vector<24x1152xbf16> to vector<24x64xbf16>
    %45 = vector.extract_strided_slice %39 {offsets = [0, 384], sizes = [24, 64], strides = [1, 1]} : vector<24x1152xbf16> to vector<24x64xbf16>
    %46 = vector.extract_strided_slice %39 {offsets = [0, 768], sizes = [24, 64], strides = [1, 1]} : vector<24x1152xbf16> to vector<24x64xbf16>
    %cst_21 = arith.constant dense<0.000000e+00> : vector<24x24xf32>
    %47 = tpu.matmul %44, %45, %cst_21 {dimension_numbers = #tpu.dot_dimension_numbers<[1], [1], [0], [0], [0, 0, 1, 0], [], []>} : vector<24x64xbf16>, vector<24x64xbf16>, vector<24x24xf32> -> vector<24x24xf32>
    %cst_22 = arith.constant 1.250000e-01 : f32
    %48 = vector.broadcast %cst_22 : f32 to vector<24x24xf32>
    %49 = arith.mulf %47, %48 : vector<24x24xf32>
    %cst_23 = arith.constant -1.000000e+30 : f32
    %50 = vector.broadcast %cst_23 : f32 to vector<24x24xf32>
    %51 = arith.select %42, %49, %50 : vector<24x24xi1>, vector<24x24xf32>
    %cst_24 = arith.constant dense<0xFF800000> : vector<24xf32>
    %52 = vector.multi_reduction <maximumf>, %51, %cst_24 [1] : vector<24x24xf32> to vector<24xf32>
    %53 = vector.shape_cast %52 : vector<24xf32> to vector<24x1xf32>
    %54 = vector.broadcast %53 : vector<24x1xf32> to vector<24x24xf32>
    %55 = arith.subf %51, %54 : vector<24x24xf32>
    %56 = math.exp %55 : vector<24x24xf32>
    %cst_25 = arith.constant dense<0.000000e+00> : vector<24xf32>
    %57 = vector.multi_reduction <add>, %56, %cst_25 [1] : vector<24x24xf32> to vector<24xf32>
    %58 = vector.shape_cast %57 : vector<24xf32> to vector<24x1xf32>
    %59 = vector.broadcast %58 : vector<24x1xf32> to vector<24x24xf32>
    %60 = arith.divf %56, %59 : vector<24x24xf32>
    %61 = arith.truncf %60 : vector<24x24xf32> to vector<24x24xbf16>
    %cst_26 = arith.constant dense<0.000000e+00> : vector<24x64xf32>
    %62 = tpu.matmul %61, %46, %cst_26 {dimension_numbers = #tpu.dot_dimension_numbers<[1], [0], [0], [1], [0, 0, 1, 1], [], []>} : vector<24x24xbf16>, vector<24x64xbf16>, vector<24x64xf32> -> vector<24x64xf32>
    %63 = arith.truncf %62 : vector<24x64xf32> to vector<24x64xbf16>
    %c0_27 = arith.constant 0 : index
    %c0_28 = arith.constant 0 : index
    %c0_29 = arith.constant 0 : index
    %64 = vector.load %arg10[%c0_27, %c0_28, %c0_29] : memref<1x384x384xbf16, #tpu.memory_space<vmem>>, vector<1x64x384xbf16>
    %65 = vector.shape_cast %64 : vector<1x64x384xbf16> to vector<64x384xbf16>
    %cst_30 = arith.constant dense<0.000000e+00> : vector<24x384xf32>
    %66 = tpu.matmul %63, %65, %cst_30 {dimension_numbers = #tpu.dot_dimension_numbers<[1], [0], [0], [1], [0, 0, 1, 1], [], []>} : vector<24x64xbf16>, vector<64x384xbf16>, vector<24x384xf32> -> vector<24x384xf32>
    %67 = arith.addf %43, %66 : vector<24x384xf32>
    %68 = vector.extract_strided_slice %39 {offsets = [0, 64], sizes = [24, 64], strides = [1, 1]} : vector<24x1152xbf16> to vector<24x64xbf16>
    %69 = vector.extract_strided_slice %39 {offsets = [0, 448], sizes = [24, 64], strides = [1, 1]} : vector<24x1152xbf16> to vector<24x64xbf16>
    %70 = vector.extract_strided_slice %39 {offsets = [0, 832], sizes = [24, 64], strides = [1, 1]} : vector<24x1152xbf16> to vector<24x64xbf16>
    %cst_31 = arith.constant dense<0.000000e+00> : vector<24x24xf32>
    %71 = tpu.matmul %68, %69, %cst_31 {dimension_numbers = #tpu.dot_dimension_numbers<[1], [1], [0], [0], [0, 0, 1, 0], [], []>} : vector<24x64xbf16>, vector<24x64xbf16>, vector<24x24xf32> -> vector<24x24xf32>
    %cst_32 = arith.constant 1.250000e-01 : f32
    %72 = vector.broadcast %cst_32 : f32 to vector<24x24xf32>
    %73 = arith.mulf %71, %72 : vector<24x24xf32>
    %cst_33 = arith.constant -1.000000e+30 : f32
    %74 = vector.broadcast %cst_33 : f32 to vector<24x24xf32>
    %75 = arith.select %42, %73, %74 : vector<24x24xi1>, vector<24x24xf32>
    %cst_34 = arith.constant dense<0xFF800000> : vector<24xf32>
    %76 = vector.multi_reduction <maximumf>, %75, %cst_34 [1] : vector<24x24xf32> to vector<24xf32>
    %77 = vector.shape_cast %76 : vector<24xf32> to vector<24x1xf32>
    %78 = vector.broadcast %77 : vector<24x1xf32> to vector<24x24xf32>
    %79 = arith.subf %75, %78 : vector<24x24xf32>
    %80 = math.exp %79 : vector<24x24xf32>
    %cst_35 = arith.constant dense<0.000000e+00> : vector<24xf32>
    %81 = vector.multi_reduction <add>, %80, %cst_35 [1] : vector<24x24xf32> to vector<24xf32>
    %82 = vector.shape_cast %81 : vector<24xf32> to vector<24x1xf32>
    %83 = vector.broadcast %82 : vector<24x1xf32> to vector<24x24xf32>
    %84 = arith.divf %80, %83 : vector<24x24xf32>
    %85 = arith.truncf %84 : vector<24x24xf32> to vector<24x24xbf16>
    %cst_36 = arith.constant dense<0.000000e+00> : vector<24x64xf32>
    %86 = tpu.matmul %85, %70, %cst_36 {dimension_numbers = #tpu.dot_dimension_numbers<[1], [0], [0], [1], [0, 0, 1, 1], [], []>} : vector<24x24xbf16>, vector<24x64xbf16>, vector<24x64xf32> -> vector<24x64xf32>
    %87 = arith.truncf %86 : vector<24x64xf32> to vector<24x64xbf16>
    %c0_37 = arith.constant 0 : index
    %c64 = arith.constant 64 : index
    %c0_38 = arith.constant 0 : index
    %88 = vector.load %arg10[%c0_37, %c64, %c0_38] : memref<1x384x384xbf16, #tpu.memory_space<vmem>>, vector<1x64x384xbf16>
    %89 = vector.shape_cast %88 : vector<1x64x384xbf16> to vector<64x384xbf16>
    %cst_39 = arith.constant dense<0.000000e+00> : vector<24x384xf32>
    %90 = tpu.matmul %87, %89, %cst_39 {dimension_numbers = #tpu.dot_dimension_numbers<[1], [0], [0], [1], [0, 0, 1, 1], [], []>} : vector<24x64xbf16>, vector<64x384xbf16>, vector<24x384xf32> -> vector<24x384xf32>
    %91 = arith.addf %67, %90 : vector<24x384xf32>
    %92 = vector.extract_strided_slice %39 {offsets = [0, 128], sizes = [24, 64], strides = [1, 1]} : vector<24x1152xbf16> to vector<24x64xbf16>
    %93 = vector.extract_strided_slice %39 {offsets = [0, 512], sizes = [24, 64], strides = [1, 1]} : vector<24x1152xbf16> to vector<24x64xbf16>
    %94 = vector.extract_strided_slice %39 {offsets = [0, 896], sizes = [24, 64], strides = [1, 1]} : vector<24x1152xbf16> to vector<24x64xbf16>
    %cst_40 = arith.constant dense<0.000000e+00> : vector<24x24xf32>
    %95 = tpu.matmul %92, %93, %cst_40 {dimension_numbers = #tpu.dot_dimension_numbers<[1], [1], [0], [0], [0, 0, 1, 0], [], []>} : vector<24x64xbf16>, vector<24x64xbf16>, vector<24x24xf32> -> vector<24x24xf32>
    %cst_41 = arith.constant 1.250000e-01 : f32
    %96 = vector.broadcast %cst_41 : f32 to vector<24x24xf32>
    %97 = arith.mulf %95, %96 : vector<24x24xf32>
    %cst_42 = arith.constant -1.000000e+30 : f32
    %98 = vector.broadcast %cst_42 : f32 to vector<24x24xf32>
    %99 = arith.select %42, %97, %98 : vector<24x24xi1>, vector<24x24xf32>
    %cst_43 = arith.constant dense<0xFF800000> : vector<24xf32>
    %100 = vector.multi_reduction <maximumf>, %99, %cst_43 [1] : vector<24x24xf32> to vector<24xf32>
    %101 = vector.shape_cast %100 : vector<24xf32> to vector<24x1xf32>
    %102 = vector.broadcast %101 : vector<24x1xf32> to vector<24x24xf32>
    %103 = arith.subf %99, %102 : vector<24x24xf32>
    %104 = math.exp %103 : vector<24x24xf32>
    %cst_44 = arith.constant dense<0.000000e+00> : vector<24xf32>
    %105 = vector.multi_reduction <add>, %104, %cst_44 [1] : vector<24x24xf32> to vector<24xf32>
    %106 = vector.shape_cast %105 : vector<24xf32> to vector<24x1xf32>
    %107 = vector.broadcast %106 : vector<24x1xf32> to vector<24x24xf32>
    %108 = arith.divf %104, %107 : vector<24x24xf32>
    %109 = arith.truncf %108 : vector<24x24xf32> to vector<24x24xbf16>
    %cst_45 = arith.constant dense<0.000000e+00> : vector<24x64xf32>
    %110 = tpu.matmul %109, %94, %cst_45 {dimension_numbers = #tpu.dot_dimension_numbers<[1], [0], [0], [1], [0, 0, 1, 1], [], []>} : vector<24x24xbf16>, vector<24x64xbf16>, vector<24x64xf32> -> vector<24x64xf32>
    %111 = arith.truncf %110 : vector<24x64xf32> to vector<24x64xbf16>
    %c0_46 = arith.constant 0 : index
    %c128 = arith.constant 128 : index
    %c0_47 = arith.constant 0 : index
    %112 = vector.load %arg10[%c0_46, %c128, %c0_47] : memref<1x384x384xbf16, #tpu.memory_space<vmem>>, vector<1x64x384xbf16>
    %113 = vector.shape_cast %112 : vector<1x64x384xbf16> to vector<64x384xbf16>
    %cst_48 = arith.constant dense<0.000000e+00> : vector<24x384xf32>
    %114 = tpu.matmul %111, %113, %cst_48 {dimension_numbers = #tpu.dot_dimension_numbers<[1], [0], [0], [1], [0, 0, 1, 1], [], []>} : vector<24x64xbf16>, vector<64x384xbf16>, vector<24x384xf32> -> vector<24x384xf32>
    %115 = arith.addf %91, %114 : vector<24x384xf32>
    %116 = vector.extract_strided_slice %39 {offsets = [0, 192], sizes = [24, 64], strides = [1, 1]} : vector<24x1152xbf16> to vector<24x64xbf16>
    %117 = vector.extract_strided_slice %39 {offsets = [0, 576], sizes = [24, 64], strides = [1, 1]} : vector<24x1152xbf16> to vector<24x64xbf16>
    %118 = vector.extract_strided_slice %39 {offsets = [0, 960], sizes = [24, 64], strides = [1, 1]} : vector<24x1152xbf16> to vector<24x64xbf16>
    %cst_49 = arith.constant dense<0.000000e+00> : vector<24x24xf32>
    %119 = tpu.matmul %116, %117, %cst_49 {dimension_numbers = #tpu.dot_dimension_numbers<[1], [1], [0], [0], [0, 0, 1, 0], [], []>} : vector<24x64xbf16>, vector<24x64xbf16>, vector<24x24xf32> -> vector<24x24xf32>
    %cst_50 = arith.constant 1.250000e-01 : f32
    %120 = vector.broadcast %cst_50 : f32 to vector<24x24xf32>
    %121 = arith.mulf %119, %120 : vector<24x24xf32>
    %cst_51 = arith.constant -1.000000e+30 : f32
    %122 = vector.broadcast %cst_51 : f32 to vector<24x24xf32>
    %123 = arith.select %42, %121, %122 : vector<24x24xi1>, vector<24x24xf32>
    %cst_52 = arith.constant dense<0xFF800000> : vector<24xf32>
    %124 = vector.multi_reduction <maximumf>, %123, %cst_52 [1] : vector<24x24xf32> to vector<24xf32>
    %125 = vector.shape_cast %124 : vector<24xf32> to vector<24x1xf32>
    %126 = vector.broadcast %125 : vector<24x1xf32> to vector<24x24xf32>
    %127 = arith.subf %123, %126 : vector<24x24xf32>
    %128 = math.exp %127 : vector<24x24xf32>
    %cst_53 = arith.constant dense<0.000000e+00> : vector<24xf32>
    %129 = vector.multi_reduction <add>, %128, %cst_53 [1] : vector<24x24xf32> to vector<24xf32>
    %130 = vector.shape_cast %129 : vector<24xf32> to vector<24x1xf32>
    %131 = vector.broadcast %130 : vector<24x1xf32> to vector<24x24xf32>
    %132 = arith.divf %128, %131 : vector<24x24xf32>
    %133 = arith.truncf %132 : vector<24x24xf32> to vector<24x24xbf16>
    %cst_54 = arith.constant dense<0.000000e+00> : vector<24x64xf32>
    %134 = tpu.matmul %133, %118, %cst_54 {dimension_numbers = #tpu.dot_dimension_numbers<[1], [0], [0], [1], [0, 0, 1, 1], [], []>} : vector<24x24xbf16>, vector<24x64xbf16>, vector<24x64xf32> -> vector<24x64xf32>
    %135 = arith.truncf %134 : vector<24x64xf32> to vector<24x64xbf16>
    %c0_55 = arith.constant 0 : index
    %c192 = arith.constant 192 : index
    %c0_56 = arith.constant 0 : index
    %136 = vector.load %arg10[%c0_55, %c192, %c0_56] : memref<1x384x384xbf16, #tpu.memory_space<vmem>>, vector<1x64x384xbf16>
    %137 = vector.shape_cast %136 : vector<1x64x384xbf16> to vector<64x384xbf16>
    %cst_57 = arith.constant dense<0.000000e+00> : vector<24x384xf32>
    %138 = tpu.matmul %135, %137, %cst_57 {dimension_numbers = #tpu.dot_dimension_numbers<[1], [0], [0], [1], [0, 0, 1, 1], [], []>} : vector<24x64xbf16>, vector<64x384xbf16>, vector<24x384xf32> -> vector<24x384xf32>
    %139 = arith.addf %115, %138 : vector<24x384xf32>
    %140 = vector.extract_strided_slice %39 {offsets = [0, 256], sizes = [24, 64], strides = [1, 1]} : vector<24x1152xbf16> to vector<24x64xbf16>
    %141 = vector.extract_strided_slice %39 {offsets = [0, 640], sizes = [24, 64], strides = [1, 1]} : vector<24x1152xbf16> to vector<24x64xbf16>
    %142 = vector.extract_strided_slice %39 {offsets = [0, 1024], sizes = [24, 64], strides = [1, 1]} : vector<24x1152xbf16> to vector<24x64xbf16>
    %cst_58 = arith.constant dense<0.000000e+00> : vector<24x24xf32>
    %143 = tpu.matmul %140, %141, %cst_58 {dimension_numbers = #tpu.dot_dimension_numbers<[1], [1], [0], [0], [0, 0, 1, 0], [], []>} : vector<24x64xbf16>, vector<24x64xbf16>, vector<24x24xf32> -> vector<24x24xf32>
    %cst_59 = arith.constant 1.250000e-01 : f32
    %144 = vector.broadcast %cst_59 : f32 to vector<24x24xf32>
    %145 = arith.mulf %143, %144 : vector<24x24xf32>
    %cst_60 = arith.constant -1.000000e+30 : f32
    %146 = vector.broadcast %cst_60 : f32 to vector<24x24xf32>
    %147 = arith.select %42, %145, %146 : vector<24x24xi1>, vector<24x24xf32>
    %cst_61 = arith.constant dense<0xFF800000> : vector<24xf32>
    %148 = vector.multi_reduction <maximumf>, %147, %cst_61 [1] : vector<24x24xf32> to vector<24xf32>
    %149 = vector.shape_cast %148 : vector<24xf32> to vector<24x1xf32>
    %150 = vector.broadcast %149 : vector<24x1xf32> to vector<24x24xf32>
    %151 = arith.subf %147, %150 : vector<24x24xf32>
    %152 = math.exp %151 : vector<24x24xf32>
    %cst_62 = arith.constant dense<0.000000e+00> : vector<24xf32>
    %153 = vector.multi_reduction <add>, %152, %cst_62 [1] : vector<24x24xf32> to vector<24xf32>
    %154 = vector.shape_cast %153 : vector<24xf32> to vector<24x1xf32>
    %155 = vector.broadcast %154 : vector<24x1xf32> to vector<24x24xf32>
    %156 = arith.divf %152, %155 : vector<24x24xf32>
    %157 = arith.truncf %156 : vector<24x24xf32> to vector<24x24xbf16>
    %cst_63 = arith.constant dense<0.000000e+00> : vector<24x64xf32>
    %158 = tpu.matmul %157, %142, %cst_63 {dimension_numbers = #tpu.dot_dimension_numbers<[1], [0], [0], [1], [0, 0, 1, 1], [], []>} : vector<24x24xbf16>, vector<24x64xbf16>, vector<24x64xf32> -> vector<24x64xf32>
    %159 = arith.truncf %158 : vector<24x64xf32> to vector<24x64xbf16>
    %c0_64 = arith.constant 0 : index
    %c256 = arith.constant 256 : index
    %c0_65 = arith.constant 0 : index
    %160 = vector.load %arg10[%c0_64, %c256, %c0_65] : memref<1x384x384xbf16, #tpu.memory_space<vmem>>, vector<1x64x384xbf16>
    %161 = vector.shape_cast %160 : vector<1x64x384xbf16> to vector<64x384xbf16>
    %cst_66 = arith.constant dense<0.000000e+00> : vector<24x384xf32>
    %162 = tpu.matmul %159, %161, %cst_66 {dimension_numbers = #tpu.dot_dimension_numbers<[1], [0], [0], [1], [0, 0, 1, 1], [], []>} : vector<24x64xbf16>, vector<64x384xbf16>, vector<24x384xf32> -> vector<24x384xf32>
    %163 = arith.addf %139, %162 : vector<24x384xf32>
    %164 = vector.extract_strided_slice %39 {offsets = [0, 320], sizes = [24, 64], strides = [1, 1]} : vector<24x1152xbf16> to vector<24x64xbf16>
    %165 = vector.extract_strided_slice %39 {offsets = [0, 704], sizes = [24, 64], strides = [1, 1]} : vector<24x1152xbf16> to vector<24x64xbf16>
    %166 = vector.extract_strided_slice %39 {offsets = [0, 1088], sizes = [24, 64], strides = [1, 1]} : vector<24x1152xbf16> to vector<24x64xbf16>
    %cst_67 = arith.constant dense<0.000000e+00> : vector<24x24xf32>
    %167 = tpu.matmul %164, %165, %cst_67 {dimension_numbers = #tpu.dot_dimension_numbers<[1], [1], [0], [0], [0, 0, 1, 0], [], []>} : vector<24x64xbf16>, vector<24x64xbf16>, vector<24x24xf32> -> vector<24x24xf32>
    %cst_68 = arith.constant 1.250000e-01 : f32
    %168 = vector.broadcast %cst_68 : f32 to vector<24x24xf32>
    %169 = arith.mulf %167, %168 : vector<24x24xf32>
    %cst_69 = arith.constant -1.000000e+30 : f32
    %170 = vector.broadcast %cst_69 : f32 to vector<24x24xf32>
    %171 = arith.select %42, %169, %170 : vector<24x24xi1>, vector<24x24xf32>
    %cst_70 = arith.constant dense<0xFF800000> : vector<24xf32>
    %172 = vector.multi_reduction <maximumf>, %171, %cst_70 [1] : vector<24x24xf32> to vector<24xf32>
    %173 = vector.shape_cast %172 : vector<24xf32> to vector<24x1xf32>
    %174 = vector.broadcast %173 : vector<24x1xf32> to vector<24x24xf32>
    %175 = arith.subf %171, %174 : vector<24x24xf32>
    %176 = math.exp %175 : vector<24x24xf32>
    %cst_71 = arith.constant dense<0.000000e+00> : vector<24xf32>
    %177 = vector.multi_reduction <add>, %176, %cst_71 [1] : vector<24x24xf32> to vector<24xf32>
    %178 = vector.shape_cast %177 : vector<24xf32> to vector<24x1xf32>
    %179 = vector.broadcast %178 : vector<24x1xf32> to vector<24x24xf32>
    %180 = arith.divf %176, %179 : vector<24x24xf32>
    %181 = arith.truncf %180 : vector<24x24xf32> to vector<24x24xbf16>
    %cst_72 = arith.constant dense<0.000000e+00> : vector<24x64xf32>
    %182 = tpu.matmul %181, %166, %cst_72 {dimension_numbers = #tpu.dot_dimension_numbers<[1], [0], [0], [1], [0, 0, 1, 1], [], []>} : vector<24x24xbf16>, vector<24x64xbf16>, vector<24x64xf32> -> vector<24x64xf32>
    %183 = arith.truncf %182 : vector<24x64xf32> to vector<24x64xbf16>
    %c0_73 = arith.constant 0 : index
    %c320 = arith.constant 320 : index
    %c0_74 = arith.constant 0 : index
    %184 = vector.load %arg10[%c0_73, %c320, %c0_74] : memref<1x384x384xbf16, #tpu.memory_space<vmem>>, vector<1x64x384xbf16>
    %185 = vector.shape_cast %184 : vector<1x64x384xbf16> to vector<64x384xbf16>
    %cst_75 = arith.constant dense<0.000000e+00> : vector<24x384xf32>
    %186 = tpu.matmul %183, %185, %cst_75 {dimension_numbers = #tpu.dot_dimension_numbers<[1], [0], [0], [1], [0, 0, 1, 1], [], []>} : vector<24x64xbf16>, vector<64x384xbf16>, vector<24x384xf32> -> vector<24x384xf32>
    %187 = arith.addf %163, %186 : vector<24x384xf32>
    %c0_76 = arith.constant 0 : index
    %c0_77 = arith.constant 0 : index
    %c0_78 = arith.constant 0 : index
    %188 = vector.load %arg11[%c0_76, %c0_77, %c0_78] : memref<1x1x384xf32, #tpu.memory_space<vmem>>, vector<1x1x384xf32>
    %189 = vector.shape_cast %188 : vector<1x1x384xf32> to vector<1x384xf32>
    %190 = vector.broadcast %189 : vector<1x384xf32> to vector<24x384xf32>
    %191 = arith.addf %187, %190 : vector<24x384xf32>
    %c0_79 = arith.constant 0 : index
    %c0_80 = arith.constant 0 : index
    %c0_81 = arith.constant 0 : index
    %192 = vector.load %arg12[%c0_79, %c0_80, %c0_81] : memref<1x1x384xf32, #tpu.memory_space<vmem>>, vector<1x1x384xf32>
    %193 = vector.shape_cast %192 : vector<1x1x384xf32> to vector<1x384xf32>
    %194 = vector.broadcast %193 : vector<1x384xf32> to vector<24x384xf32>
    %195 = arith.mulf %191, %194 : vector<24x384xf32>
    %196 = arith.addf %4, %195 : vector<24x384xf32>
    %cst_82 = arith.constant dense<0.000000e+00> : vector<24xf32>
    %197 = vector.multi_reduction <add>, %196, %cst_82 [1] : vector<24x384xf32> to vector<24xf32>
    %198 = vector.shape_cast %197 : vector<24xf32> to vector<24x1xf32>
    %cst_83 = arith.constant 3.840000e+02 : f32
    %199 = vector.broadcast %cst_83 : f32 to vector<24x1xf32>
    %200 = arith.divf %198, %199 : vector<24x1xf32>
    %201 = vector.broadcast %200 : vector<24x1xf32> to vector<24x384xf32>
    %202 = arith.subf %196, %201 : vector<24x384xf32>
    %203 = arith.mulf %202, %202 : vector<24x384xf32>
    %cst_84 = arith.constant dense<0.000000e+00> : vector<24xf32>
    %204 = vector.multi_reduction <add>, %203, %cst_84 [1] : vector<24x384xf32> to vector<24xf32>
    %205 = vector.shape_cast %204 : vector<24xf32> to vector<24x1xf32>
    %cst_85 = arith.constant 3.840000e+02 : f32
    %206 = vector.broadcast %cst_85 : f32 to vector<24x1xf32>
    %207 = arith.divf %205, %206 : vector<24x1xf32>
    %208 = vector.broadcast %200 : vector<24x1xf32> to vector<24x384xf32>
    %209 = arith.subf %196, %208 : vector<24x384xf32>
    %cst_86 = arith.constant 9.99999997E-7 : f32
    %210 = vector.broadcast %cst_86 : f32 to vector<24x1xf32>
    %211 = arith.addf %207, %210 : vector<24x1xf32>
    %212 = math.rsqrt %211 : vector<24x1xf32>
    %213 = vector.broadcast %212 : vector<24x1xf32> to vector<24x384xf32>
    %214 = arith.mulf %209, %213 : vector<24x384xf32>
    %c0_87 = arith.constant 0 : index
    %c0_88 = arith.constant 0 : index
    %c0_89 = arith.constant 0 : index
    %215 = vector.load %arg13[%c0_87, %c0_88, %c0_89] : memref<1x1x384xf32, #tpu.memory_space<vmem>>, vector<1x1x384xf32>
    %216 = vector.shape_cast %215 : vector<1x1x384xf32> to vector<1x384xf32>
    %217 = vector.broadcast %216 : vector<1x384xf32> to vector<24x384xf32>
    %218 = arith.mulf %214, %217 : vector<24x384xf32>
    %c0_90 = arith.constant 0 : index
    %c0_91 = arith.constant 0 : index
    %c0_92 = arith.constant 0 : index
    %219 = vector.load %arg14[%c0_90, %c0_91, %c0_92] : memref<1x1x384xf32, #tpu.memory_space<vmem>>, vector<1x1x384xf32>
    %220 = vector.shape_cast %219 : vector<1x1x384xf32> to vector<1x384xf32>
    %221 = vector.broadcast %220 : vector<1x384xf32> to vector<24x384xf32>
    %222 = arith.addf %218, %221 : vector<24x384xf32>
    %223 = arith.truncf %222 : vector<24x384xf32> to vector<24x384xbf16>
    %c0_93 = arith.constant 0 : index
    %c0_94 = arith.constant 0 : index
    %c0_95 = arith.constant 0 : index
    %224 = vector.load %arg15[%c0_93, %c0_94, %c0_95] : memref<1x384x1536xbf16, #tpu.memory_space<vmem>>, vector<1x384x1536xbf16>
    %225 = vector.shape_cast %224 : vector<1x384x1536xbf16> to vector<384x1536xbf16>
    %cst_96 = arith.constant dense<0.000000e+00> : vector<24x1536xf32>
    %226 = tpu.matmul %223, %225, %cst_96 {dimension_numbers = #tpu.dot_dimension_numbers<[1], [0], [0], [1], [0, 0, 1, 1], [], []>} : vector<24x384xbf16>, vector<384x1536xbf16>, vector<24x1536xf32> -> vector<24x1536xf32>
    %c0_97 = arith.constant 0 : index
    %c0_98 = arith.constant 0 : index
    %c0_99 = arith.constant 0 : index
    %227 = vector.load %arg16[%c0_97, %c0_98, %c0_99] : memref<1x1x1536xf32, #tpu.memory_space<vmem>>, vector<1x1x1536xf32>
    %228 = vector.shape_cast %227 : vector<1x1x1536xf32> to vector<1x1536xf32>
    %229 = vector.broadcast %228 : vector<1x1536xf32> to vector<24x1536xf32>
    %230 = arith.addf %226, %229 : vector<24x1536xf32>
    %231 = arith.mulf %230, %230 : vector<24x1536xf32>
    %232 = arith.mulf %230, %231 : vector<24x1536xf32>
    %cst_100 = arith.constant 4.471500e-02 : f32
    %233 = vector.broadcast %cst_100 : f32 to vector<24x1536xf32>
    %234 = arith.mulf %233, %232 : vector<24x1536xf32>
    %235 = arith.addf %230, %234 : vector<24x1536xf32>
    %cst_101 = arith.constant 0.797884583 : f32
    %236 = vector.broadcast %cst_101 : f32 to vector<24x1536xf32>
    %237 = arith.mulf %236, %235 : vector<24x1536xf32>
    %238 = math.tanh %237 : vector<24x1536xf32>
    %cst_102 = arith.constant 1.000000e+00 : f32
    %239 = vector.broadcast %cst_102 : f32 to vector<24x1536xf32>
    %240 = arith.addf %239, %238 : vector<24x1536xf32>
    %cst_103 = arith.constant 5.000000e-01 : f32
    %241 = vector.broadcast %cst_103 : f32 to vector<24x1536xf32>
    %242 = arith.mulf %241, %240 : vector<24x1536xf32>
    %243 = arith.mulf %230, %242 : vector<24x1536xf32>
    %244 = arith.truncf %243 : vector<24x1536xf32> to vector<24x1536xbf16>
    %c0_104 = arith.constant 0 : index
    %c0_105 = arith.constant 0 : index
    %c0_106 = arith.constant 0 : index
    %245 = vector.load %arg17[%c0_104, %c0_105, %c0_106] : memref<1x1536x384xbf16, #tpu.memory_space<vmem>>, vector<1x1536x384xbf16>
    %246 = vector.shape_cast %245 : vector<1x1536x384xbf16> to vector<1536x384xbf16>
    %cst_107 = arith.constant dense<0.000000e+00> : vector<24x384xf32>
    %247 = tpu.matmul %244, %246, %cst_107 {dimension_numbers = #tpu.dot_dimension_numbers<[1], [0], [0], [1], [0, 0, 1, 1], [], []>} : vector<24x1536xbf16>, vector<1536x384xbf16>, vector<24x384xf32> -> vector<24x384xf32>
    %c0_108 = arith.constant 0 : index
    %c0_109 = arith.constant 0 : index
    %c0_110 = arith.constant 0 : index
    %248 = vector.load %arg18[%c0_108, %c0_109, %c0_110] : memref<1x1x384xf32, #tpu.memory_space<vmem>>, vector<1x1x384xf32>
    %249 = vector.shape_cast %248 : vector<1x1x384xf32> to vector<1x384xf32>
    %250 = vector.broadcast %249 : vector<1x384xf32> to vector<24x384xf32>
    %251 = arith.addf %247, %250 : vector<24x384xf32>
    %c0_111 = arith.constant 0 : index
    %c0_112 = arith.constant 0 : index
    %c0_113 = arith.constant 0 : index
    %252 = vector.load %arg19[%c0_111, %c0_112, %c0_113] : memref<1x1x384xf32, #tpu.memory_space<vmem>>, vector<1x1x384xf32>
    %253 = vector.shape_cast %252 : vector<1x1x384xf32> to vector<1x384xf32>
    %254 = vector.broadcast %253 : vector<1x384xf32> to vector<24x384xf32>
    %255 = arith.mulf %251, %254 : vector<24x384xf32>
    %256 = arith.addf %196, %255 : vector<24x384xf32>
    %257 = vector.shape_cast %256 : vector<24x384xf32> to vector<1x24x384xf32>
    %c0_114 = arith.constant 0 : index
    %c0_115 = arith.constant 0 : index
    %c0_116 = arith.constant 0 : index
    %258 = vector.load %arg23[%c0_114, %c0_115, %c0_116] : memref<1x24x384xf32, #tpu.memory_space<vmem>>, vector<1x24x384xf32>
    tpu.vector_store %arg23[%c0_114, %c0_115, %c0_116], %257 {strides = array<i32>} : memref<1x24x384xf32, #tpu.memory_space<vmem>>, vector<1x24x384xf32>,
    %c1_i32 = arith.constant 1 : i32
    %259 = arith.cmpi eq, %arg1, %c1_i32 : i32
    %260 = arith.extui %259 : i1 to i32
    %c0_i32_117 = arith.constant 0 : i32
    %261 = arith.cmpi ne, %260, %c0_i32_117 : i32
    scf.if %261 {
      %262 = vector.extract_strided_slice %256 {offsets = [0, 0], sizes = [1, 384], strides = [1, 1]} : vector<24x384xf32> to vector<1x384xf32>
      %cst_118 = arith.constant dense<0.000000e+00> : vector<1xf32>
      %263 = vector.multi_reduction <add>, %262, %cst_118 [1] : vector<1x384xf32> to vector<1xf32>
      %264 = vector.shape_cast %263 : vector<1xf32> to vector<1x1xf32>
      %cst_119 = arith.constant 3.840000e+02 : f32
      %265 = vector.broadcast %cst_119 : f32 to vector<1x1xf32>
      %266 = arith.divf %264, %265 : vector<1x1xf32>
      %267 = vector.broadcast %266 : vector<1x1xf32> to vector<1x384xf32>
      %268 = arith.subf %262, %267 : vector<1x384xf32>
      %269 = arith.mulf %268, %268 : vector<1x384xf32>
      %cst_120 = arith.constant dense<0.000000e+00> : vector<1xf32>
      %270 = vector.multi_reduction <add>, %269, %cst_120 [1] : vector<1x384xf32> to vector<1xf32>
      %271 = vector.shape_cast %270 : vector<1xf32> to vector<1x1xf32>
      %cst_121 = arith.constant 3.840000e+02 : f32
      %272 = vector.broadcast %cst_121 : f32 to vector<1x1xf32>
      %273 = arith.divf %271, %272 : vector<1x1xf32>
      %274 = vector.broadcast %266 : vector<1x1xf32> to vector<1x384xf32>
      %275 = arith.subf %262, %274 : vector<1x384xf32>
      %cst_122 = arith.constant 9.99999997E-7 : f32
      %276 = vector.broadcast %cst_122 : f32 to vector<1x1xf32>
      %277 = arith.addf %273, %276 : vector<1x1xf32>
      %278 = math.rsqrt %277 : vector<1x1xf32>
      %279 = vector.broadcast %278 : vector<1x1xf32> to vector<1x384xf32>
      %280 = arith.mulf %275, %279 : vector<1x384xf32>
      %c0_123 = arith.constant 0 : index
      %c0_124 = arith.constant 0 : index
      %281 = vector.load %arg20[%c0_123, %c0_124] : memref<1x384xf32, #tpu.memory_space<vmem>>, vector<1x384xf32>
      %282 = arith.mulf %280, %281 : vector<1x384xf32>
      %c0_125 = arith.constant 0 : index
      %c0_126 = arith.constant 0 : index
      %283 = vector.load %arg21[%c0_125, %c0_126] : memref<1x384xf32, #tpu.memory_space<vmem>>, vector<1x384xf32>
      %284 = arith.addf %282, %283 : vector<1x384xf32>
      %285 = vector.shape_cast %284 : vector<1x384xf32> to vector<1x1x384xf32>
      %c0_127 = arith.constant 0 : index
      %c0_128 = arith.constant 0 : index
      %c0_129 = arith.constant 0 : index
      %286 = vector.load %arg22[%c0_127, %c0_128, %c0_129] : memref<1x1x384xf32, #tpu.memory_space<vmem>>, vector<1x1x384xf32>
      tpu.vector_store %arg22[%c0_127, %c0_128, %c0_129], %285 {strides = array<i32>} : memref<1x1x384xf32, #tpu.memory_space<vmem>>, vector<1x1x384xf32>,
    } else {
    }
    return
  }
  func.func @transform_0(%arg0: i32, %arg1: i32) -> (i32, i32, i32) {
    %c0_i32 = arith.constant 0 : i32
    %c0_i32_0 = arith.constant 0 : i32
    %c0_i32_1 = arith.constant 0 : i32
    return %arg0, %c0_i32, %c0_i32_0 : i32, i32, i32
  }
  func.func @transform_1(%arg0: i32, %arg1: i32) -> (i32, i32) {
    %c0_i32 = arith.constant 0 : i32
    %c0_i32_0 = arith.constant 0 : i32
    %c0_i32_1 = arith.constant 0 : i32
    return %c0_i32, %c0_i32_0 : i32, i32
  }
  func.func @transform_2(%arg0: i32, %arg1: i32) -> (i32, i32) {
    %c0_i32 = arith.constant 0 : i32
    %c0_i32_0 = arith.constant 0 : i32
    %c0_i32_1 = arith.constant 0 : i32
    return %c0_i32, %c0_i32_0 : i32, i32
  }
  func.func @transform_3(%arg0: i32, %arg1: i32) -> (i32, i32) {
    %c0_i32 = arith.constant 0 : i32
    %c0_i32_0 = arith.constant 0 : i32
    %c0_i32_1 = arith.constant 0 : i32
    return %c0_i32, %c0_i32_0 : i32, i32
  }
  func.func @transform_4(%arg0: i32, %arg1: i32) -> (i32, i32, i32) {
    %c0_i32 = arith.constant 0 : i32
    %c0_i32_0 = arith.constant 0 : i32
    %c0_i32_1 = arith.constant 0 : i32
    return %arg1, %c0_i32, %c0_i32_0 : i32, i32, i32
  }
  func.func @transform_5(%arg0: i32, %arg1: i32) -> (i32, i32, i32) {
    %c0_i32 = arith.constant 0 : i32
    %c0_i32_0 = arith.constant 0 : i32
    %c0_i32_1 = arith.constant 0 : i32
    return %arg1, %c0_i32, %c0_i32_0 : i32, i32, i32
  }
  func.func @transform_6(%arg0: i32, %arg1: i32) -> (i32, i32, i32) {
    %c0_i32 = arith.constant 0 : i32
    %c0_i32_0 = arith.constant 0 : i32
    %c0_i32_1 = arith.constant 0 : i32
    return %arg1, %c0_i32, %c0_i32_0 : i32, i32, i32
  }
  func.func @transform_7(%arg0: i32, %arg1: i32) -> (i32, i32, i32) {
    %c0_i32 = arith.constant 0 : i32
    %c0_i32_0 = arith.constant 0 : i32
    %c0_i32_1 = arith.constant 0 : i32
    return %arg1, %c0_i32, %c0_i32_0 : i32, i32, i32
  }
  func.func @transform_8(%arg0: i32, %arg1: i32) -> (i32, i32, i32) {
    %c0_i32 = arith.constant 0 : i32
    %c0_i32_0 = arith.constant 0 : i32
    %c0_i32_1 = arith.constant 0 : i32
    return %arg1, %c0_i32, %c0_i32_0 : i32, i32, i32
  }
  func.func @transform_9(%arg0: i32, %arg1: i32) -> (i32, i32, i32) {
    %c0_i32 = arith.constant 0 : i32
    %c0_i32_0 = arith.constant 0 : i32
    %c0_i32_1 = arith.constant 0 : i32
    return %arg1, %c0_i32, %c0_i32_0 : i32, i32, i32
  }
  func.func @transform_10(%arg0: i32, %arg1: i32) -> (i32, i32, i32) {
    %c0_i32 = arith.constant 0 : i32
    %c0_i32_0 = arith.constant 0 : i32
    %c0_i32_1 = arith.constant 0 : i32
    return %arg1, %c0_i32, %c0_i32_0 : i32, i32, i32
  }
  func.func @transform_11(%arg0: i32, %arg1: i32) -> (i32, i32, i32) {
    %c0_i32 = arith.constant 0 : i32
    %c0_i32_0 = arith.constant 0 : i32
    %c0_i32_1 = arith.constant 0 : i32
    return %arg1, %c0_i32, %c0_i32_0 : i32, i32, i32
  }
  func.func @transform_12(%arg0: i32, %arg1: i32) -> (i32, i32, i32) {
    %c0_i32 = arith.constant 0 : i32
    %c0_i32_0 = arith.constant 0 : i32
    %c0_i32_1 = arith.constant 0 : i32
    return %arg1, %c0_i32, %c0_i32_0 : i32, i32, i32
  }
  func.func @transform_13(%arg0: i32, %arg1: i32) -> (i32, i32, i32) {
    %c0_i32 = arith.constant 0 : i32
    %c0_i32_0 = arith.constant 0 : i32
    %c0_i32_1 = arith.constant 0 : i32
    return %arg1, %c0_i32, %c0_i32_0 : i32, i32, i32
  }
  func.func @transform_14(%arg0: i32, %arg1: i32) -> (i32, i32, i32) {
    %c0_i32 = arith.constant 0 : i32
    %c0_i32_0 = arith.constant 0 : i32
    %c0_i32_1 = arith.constant 0 : i32
    return %arg1, %c0_i32, %c0_i32_0 : i32, i32, i32
  }
  func.func @transform_15(%arg0: i32, %arg1: i32) -> (i32, i32, i32) {
    %c0_i32 = arith.constant 0 : i32
    %c0_i32_0 = arith.constant 0 : i32
    %c0_i32_1 = arith.constant 0 : i32
    return %arg1, %c0_i32, %c0_i32_0 : i32, i32, i32
  }
  func.func @transform_16(%arg0: i32, %arg1: i32) -> (i32, i32, i32) {
    %c0_i32 = arith.constant 0 : i32
    %c0_i32_0 = arith.constant 0 : i32
    %c0_i32_1 = arith.constant 0 : i32
    return %arg1, %c0_i32, %c0_i32_0 : i32, i32, i32
  }
  func.func @transform_17(%arg0: i32, %arg1: i32) -> (i32, i32, i32) {
    %c0_i32 = arith.constant 0 : i32
    %c0_i32_0 = arith.constant 0 : i32
    %c0_i32_1 = arith.constant 0 : i32
    return %arg1, %c0_i32, %c0_i32_0 : i32, i32, i32
  }
  func.func @transform_18(%arg0: i32, %arg1: i32) -> (i32, i32) {
    %c0_i32 = arith.constant 0 : i32
    %c0_i32_0 = arith.constant 0 : i32
    %c0_i32_1 = arith.constant 0 : i32
    return %c0_i32, %c0_i32_0 : i32, i32
  }
  func.func @transform_19(%arg0: i32, %arg1: i32) -> (i32, i32) {
    %c0_i32 = arith.constant 0 : i32
    %c0_i32_0 = arith.constant 0 : i32
    %c0_i32_1 = arith.constant 0 : i32
    return %c0_i32, %c0_i32_0 : i32, i32
  }
  func.func @transform_20(%arg0: i32, %arg1: i32) -> (i32, i32, i32) {
    %c0_i32 = arith.constant 0 : i32
    %c0_i32_0 = arith.constant 0 : i32
    %c0_i32_1 = arith.constant 0 : i32
    return %arg0, %c0_i32, %c0_i32_0 : i32, i32, i32
  }
}

</mosaic_0001>

<llo_original>
// kernel: tpu_custom_call.1
$region0: #{tpu_custom_call.1}
  #allocation0 [shape = 'u32[]', space=smem, size = 0x4, offset = 0x4, fixed_abs, tag = 'smem constant byte address 0x4 - core index']
  #allocation1 [shape = 'u32[72,128]{1,0:T(1,128)}', space=vmem, size = 0x9000, scoped, tag = 'internal scratch']
  #allocation2 [shape = 'f32[1,24,384]{2,1,0:T(8,128)}', space=vmem, size = 0x9000, scoped, tag = 'scratch operand']
  %s0 = inlined_call_operand.hbm [shape: f32[2,16,64], index: 0, kind: input, shape index: {}]
  %s1 = inlined_call_operand.hbm [shape: bf16[64,384], index: 1, kind: input, shape index: {}]
  %s2 = inlined_call_operand.hbm [shape: f32[1,384], index: 2, kind: input, shape index: {}]
  %s3 = inlined_call_operand.hbm [shape: f32[16,384], index: 3, kind: input, shape index: {}]
  %s4 = inlined_call_operand.hbm [shape: f32[2,1,384], index: 4, kind: input, shape index: {}]
  %s5 = inlined_call_operand.hbm [shape: f32[2,1,384], index: 5, kind: input, shape index: {}]
  %s6 = inlined_call_operand.hbm [shape: bf16[2,384,1152], index: 6, kind: input, shape index: {}]
  %s7 = inlined_call_operand.hbm [shape: f32[2,1,1152], index: 7, kind: input, shape index: {}]
  %s8 = inlined_call_operand.hbm [shape: bf16[2,384,384], index: 8, kind: input, shape index: {}]
  %s9 = inlined_call_operand.hbm [shape: f32[2,1,384], index: 9, kind: input, shape index: {}]
  %s10 = inlined_call_operand.hbm [shape: f32[2,1,384], index: 10, kind: input, shape index: {}]
  %s11 = inlined_call_operand.hbm [shape: f32[2,1,384], index: 11, kind: input, shape index: {}]
  %s12 = inlined_call_operand.hbm [shape: f32[2,1,384], index: 12, kind: input, shape index: {}]
  %s13 = inlined_call_operand.hbm [shape: bf16[2,384,1536], index: 13, kind: input, shape index: {}]
  %s14 = inlined_call_operand.hbm [shape: f32[2,1,1536], index: 14, kind: input, shape index: {}]
  %s15 = inlined_call_operand.hbm [shape: bf16[2,1536,384], index: 15, kind: input, shape index: {}]
  %s16 = inlined_call_operand.hbm [shape: f32[2,1,384], index: 16, kind: input, shape index: {}]
  %s17 = inlined_call_operand.hbm [shape: f32[2,1,384], index: 17, kind: input, shape index: {}]
  %s18 = inlined_call_operand.hbm [shape: f32[1,384], index: 18, kind: input, shape index: {}]
  %s19 = inlined_call_operand.hbm [shape: f32[1,384], index: 19, kind: input, shape index: {}]
  %s20 = inlined_call_operand.hbm [shape: f32[2,1,384], index: 20, kind: output, shape index: {}]
  %s21 = sld [smem:[#allocation0]]
  $region201: #{tpu_custom_call.1} parent=0
    _
  %s23 = ssub.s32 1, %s21
  %s24 = scalar_select 0, %s23, %s21
  $region1: #{tpu_custom_call.1} parent=0
    #allocation3 [shape = 'u8[16384]{0}', space=vmem, size = 0x4000, scoped, tag = 'input window, operand 0']
    #allocation4 [shape = 's32[2]{0}', space=sflag, size = 0x8, scoped, tag = 'scoped memory for tpu_custom_call.1']
    #allocation5 [shape = 's32[2]{0}', space=sflag, size = 0x8, scoped, tag = 'scoped memory for tpu_custom_call.1']
    #allocation6 [shape = 'u8[49152]{0}', space=vmem, size = 0xc000, scoped, tag = 'input window, operand 1, single buffered']
    #allocation7 [shape = 's32[1]{0}', space=sflag, size = 0x4, scoped, tag = 'scoped memory for tpu_custom_call.1']
    #allocation8 [shape = 'u8[1536]{0}', space=vmem, size = 0x800, scoped, tag = 'input window, operand 2, single buffered']
    #allocation9 [shape = 'u8[24576]{0}', space=vmem, size = 0x6000, scoped, tag = 'input window, operand 3, single buffered']
    #allocation10 [shape = 's32[1]{0}', space=sflag, size = 0x4, scoped, tag = 'scoped memory for tpu_custom_call.1']
    #allocation11 [shape = 'u8[3072]{0}', space=vmem, size = 0xc00, scoped, tag = 'input window, operand 4']
    #allocation12 [shape = 'u8[3072]{0}', space=vmem, size = 0xc00, scoped, tag = 'input window, operand 5']
    #allocation13 [shape = 'u8[1769472]{0}', space=vmem, size = 0x1b0000, scoped, tag = 'input window, operand 6']
    #allocation14 [shape = 'u8[9216]{0}', space=vmem, size = 0x2400, scoped, tag = 'input window, operand 7']
    #allocation15 [shape = 'u8[589824]{0}', space=vmem, size = 0x90000, scoped, tag = 'input window, operand 8']
    #allocation16 [shape = 'u8[3072]{0}', space=vmem, size = 0xc00, scoped, tag = 'input window, operand 9']
    #allocation17 [shape = 'u8[3072]{0}', space=vmem, size = 0xc00, scoped, tag = 'input window, operand 10']
    #allocation18 [shape = 'u8[3072]{0}', space=vmem, size = 0xc00, scoped, tag = 'input window, operand 11']
    #allocation19 [shape = 'u8[3072]{0}', space=vmem, size = 0xc00, scoped, tag = 'input window, operand 12']
    #allocation20 [shape = 'u8[2359296]{0}', space=vmem, size = 0x240000, scoped, tag = 'input window, operand 13']
    #allocation21 [shape = 'u8[12288]{0}', space=vmem, size = 0x3000, scoped, tag = 'input window, operand 14']
    #allocation22 [shape = 'u8[2359296]{0}', space=vmem, size = 0x240000, scoped, tag = 'input window, operand 15']
    #allocation23 [shape = 'u8[3072]{0}', space=vmem, size = 0xc00, scoped, tag = 'input window, operand 16']
    #allocation24 [shape = 'u8[3072]{0}', space=vmem, size = 0xc00, scoped, tag = 'input window, operand 17']
    #allocation25 [shape = 'u8[1536]{0}', space=vmem, size = 0x800, scoped, tag = 'input window, operand 18, single buffered']
    #allocation26 [shape = 'u8[1536]{0}', space=vmem, size = 0x800, scoped, tag = 'input window, operand 19, single buffered']
    #allocation27 [shape = 'u8[3072]{0}', space=vmem, size = 0xc00, scoped, tag = 'output window, operand 0']
    %25 = vsyncpa [#allocation4], 0
    %s26 = scalar_lea.sflag [#allocation4], 1
    %27 = vsyncpa %s26, 0
    %28 = vsyncpa [#allocation7], 0
    %29 = vsyncpa [#allocation10], 0
    %30 = vsyncpa [#allocation5], 0
    %s31 = scalar_lea.sflag [#allocation5], 1
    %32 = vsyncpa %s31, 0
    loop: start=0, step=1, limit=6
    $region2: #{tpu_custom_call.1} parent=1 // loop_pre_header
      _
    $region3: #{tpu_custom_call.1} parent=1 // loop_header
      %s34 = sphi 0, %s38
      %p35 = scmp.ge.s32.totalorder %s34, 6
      %s41 = sphi 0, %s53
      %s42 = sphi 0, %s49
      %s43 = sphi 0, %s41
      %s44 = sphi 0, %s42
      %s45 = sphi 0, %s43
      %s46 = sphi 0, %s44
      %s56 = sphi 0, %s58
      %s59 = sphi 0, %s56
      %s60 = sphi 0, %s59
      %s76 = sphi 0, %s60
      %s80 = sphi 0, %s80
      %s82 = sphi 0, %s80
      %s83 = sphi 0, %s82
      %s97 = sphi 0, %s83
      %s101 = sphi 0, %s101
      %s103 = sphi 0, %s101
      %s104 = sphi 0, %s103
      %s118 = sphi 0, %s104
      %s122 = sphi 0, %s122
      %s124 = sphi 0, %s122
      %s125 = sphi 0, %s124
      %s139 = sphi 0, %s125
      %s145 = sphi 0, %s147
      %s148 = sphi 0, %s145
      %s149 = sphi 0, %s148
      %s165 = sphi 0, %s149
      %s171 = sphi 0, %s173
      %s174 = sphi 0, %s171
      %s175 = sphi 0, %s174
      %s191 = sphi 0, %s175
      %s197 = sphi 0, %s199
      %s200 = sphi 0, %s197
      %s201 = sphi 0, %s200
      %s217 = sphi 0, %s201
      %s223 = sphi 0, %s225
      %s226 = sphi 0, %s223
      %s227 = sphi 0, %s226
      %s243 = sphi 0, %s227
      %s249 = sphi 0, %s251
      %s252 = sphi 0, %s249
      %s253 = sphi 0, %s252
      %s269 = sphi 0, %s253
      %s275 = sphi 0, %s277
      %s278 = sphi 0, %s275
      %s279 = sphi 0, %s278
      %s295 = sphi 0, %s279
      %s301 = sphi 0, %s303
      %s304 = sphi 0, %s301
      %s305 = sphi 0, %s304
      %s321 = sphi 0, %s305
      %s327 = sphi 0, %s329
      %s330 = sphi 0, %s327
      %s331 = sphi 0, %s330
      %s347 = sphi 0, %s331
      %s353 = sphi 0, %s355
      %s356 = sphi 0, %s353
      %s357 = sphi 0, %s356
      %s373 = sphi 0, %s357
      %s379 = sphi 0, %s381
      %s382 = sphi 0, %s379
      %s383 = sphi 0, %s382
      %s399 = sphi 0, %s383
      %s405 = sphi 0, %s407
      %s408 = sphi 0, %s405
      %s409 = sphi 0, %s408
      %s425 = sphi 0, %s409
      %s431 = sphi 0, %s433
      %s434 = sphi 0, %s431
      %s435 = sphi 0, %s434
      %s451 = sphi 0, %s435
      %s457 = sphi 0, %s459
      %s460 = sphi 0, %s457
      %s461 = sphi 0, %s460
      %s477 = sphi 0, %s461
      %s483 = sphi 0, %s485
      %s486 = sphi 0, %s483
      %s487 = sphi 0, %s486
      %s503 = sphi 0, %s487
      %s507 = sphi 0, %s507
      %s509 = sphi 0, %s507
      %s510 = sphi 0, %s509
      %s524 = sphi 0, %s510
      %s528 = sphi 0, %s528
      %s530 = sphi 0, %s528
      %s531 = sphi 0, %s530
      %s545 = sphi 0, %s531
      %s551 = sphi 0, %s553
      %s554 = sphi 0, %s551
      %s555 = sphi 0, %s554
      %s571 = sphi 0, %s555
    $region4: #{tpu_custom_call.1} parent=1 // loop_header_branch
      %37 = sbr.rel (%p35) target = $region8
    $region5: #{tpu_custom_call.1} parent=1 // loop_body
      %s39 = ssub.s32 %s34, 1
      %s40 = ssub.s32 %s34, 2
      %s47 = sadd.s32 1, %s42
      %p48 = scmp.ge.s32.totalorder %s47, 2
      %s49 = scalar_select %p48, 0, %s47
      %s50 = sadd.s32 1, %s41
      %s51 = scalar_select %p48, %s50, %s41
      %p52 = scmp.ge.s32.totalorder %s51, 2
      %s53 = scalar_select %p52, 0, %s51
      %s54 = ssub.s32 %s41, %s53
      %p55 = scmp.eq.s32.totalorder %s54, 0
      %s57 = sadd.s32 %s56, 1
      %s58 = scalar_select %p55, %s56, %s57
      %p61 = pneg %p55
      %p62 = scmp.eq.s32.totalorder %s34, 3
      %p63 = por %p61, %p62
      %p64 = scmp.ne.s32.totalorder %s56, %s59
      %p65 = scmp.eq.s32.totalorder %s34, 0
      %p66 = por %p64, %p65
      %p67 = scmp.ne.s32.totalorder %s56, %s59
      %p68 = scmp.eq.s32.totalorder %s39, 3
      %p69 = por %p67, %p68
      %p70 = scmp.ne.s32.totalorder %s59, %s60
      %p71 = scmp.eq.s32.totalorder %s39, 0
      %p72 = por %p70, %p71
      %p73 = scmp.ne.s32.totalorder %s59, %s60
      %p74 = scmp.eq.s32.totalorder %s40, 3
      %p75 = por %p73, %p74
      %p77 = scmp.ne.s32.totalorder %s60, %s76
      %p78 = scmp.eq.s32.totalorder %s40, 0
      %p79 = por %p77, %p78
      %s81 = sadd.s32 %s80, 1
      %p84 = scmp.eq.s32.totalorder %s34, 3
      %p85 = scmp.ne.s32.totalorder %s80, %s82
      %p86 = scmp.eq.s32.totalorder %s34, 0
      %p87 = por %p85, %p86
      %p88 = scmp.ne.s32.totalorder %s80, %s82
      %p89 = scmp.eq.s32.totalorder %s39, 3
      %p90 = por %p88, %p89
      %p91 = scmp.ne.s32.totalorder %s82, %s83
      %p92 = scmp.eq.s32.totalorder %s39, 0
      %p93 = por %p91, %p92
      %p94 = scmp.ne.s32.totalorder %s82, %s83
      %p95 = scmp.eq.s32.totalorder %s40, 3
      %p96 = por %p94, %p95
      %p98 = scmp.ne.s32.totalorder %s83, %s97
      %p99 = scmp.eq.s32.totalorder %s40, 0
      %p100 = por %p98, %p99
      %s102 = sadd.s32 %s101, 1
      %p105 = scmp.eq.s32.totalorder %s34, 3
      %p106 = scmp.ne.s32.totalorder %s101, %s103
      %p107 = scmp.eq.s32.totalorder %s34, 0
      %p108 = por %p106, %p107
      %p109 = scmp.ne.s32.totalorder %s101, %s103
      %p110 = scmp.eq.s32.totalorder %s39, 3
      %p111 = por %p109, %p110
      %p112 = scmp.ne.s32.totalorder %s103, %s104
      %p113 = scmp.eq.s32.totalorder %s39, 0
      %p114 = por %p112, %p113
      %p115 = scmp.ne.s32.totalorder %s103, %s104
      %p116 = scmp.eq.s32.totalorder %s40, 3
      %p117 = por %p115, %p116
      %p119 = scmp.ne.s32.totalorder %s104, %s118
      %p120 = scmp.eq.s32.totalorder %s40, 0
      %p121 = por %p119, %p120
      %s123 = sadd.s32 %s122, 1
      %p126 = scmp.eq.s32.totalorder %s34, 3
      %p127 = scmp.ne.s32.totalorder %s122, %s124
      %p128 = scmp.eq.s32.totalorder %s34, 0
      %p129 = por %p127, %p128
      %p130 = scmp.ne.s32.totalorder %s122, %s124
      %p131 = scmp.eq.s32.totalorder %s39, 3
      %p132 = por %p130, %p131
      %p133 = scmp.ne.s32.totalorder %s124, %s125
      %p134 = scmp.eq.s32.totalorder %s39, 0
      %p135 = por %p133, %p134
      %p136 = scmp.ne.s32.totalorder %s124, %s125
      %p137 = scmp.eq.s32.totalorder %s40, 3
      %p138 = por %p136, %p137
      %p140 = scmp.ne.s32.totalorder %s125, %s139
      %p141 = scmp.eq.s32.totalorder %s40, 0
      %p142 = por %p140, %p141
      %s143 = ssub.s32 %s42, %s49
      %p144 = scmp.eq.s32.totalorder %s143, 0
      %s146 = sadd.s32 %s145, 1
      %s147 = scalar_select %p144, %s145, %s146
      %p150 = pneg %p144
      %p151 = scmp.eq.s32.totalorder %s34, 3
      %p152 = por %p150, %p151
      %p153 = scmp.ne.s32.totalorder %s145, %s148
      %p154 = scmp.eq.s32.totalorder %s34, 0
      %p155 = por %p153, %p154
      %p156 = scmp.ne.s32.totalorder %s145, %s148
      %p157 = scmp.eq.s32.totalorder %s39, 3
      %p158 = por %p156, %p157
      %p159 = scmp.ne.s32.totalorder %s148, %s149
      %p160 = scmp.eq.s32.totalorder %s39, 0
      %p161 = por %p159, %p160
      %p162 = scmp.ne.s32.totalorder %s148, %s149
      %p163 = scmp.eq.s32.totalorder %s40, 3
      %p164 = por %p162, %p163
      %p166 = scmp.ne.s32.totalorder %s149, %s165
      %p167 = scmp.eq.s32.totalorder %s40, 0
      %p168 = por %p166, %p167
      %s169 = ssub.s32 %s42, %s49
      %p170 = scmp.eq.s32.totalorder %s169, 0
      %s172 = sadd.s32 %s171, 1
      %s173 = scalar_select %p170, %s171, %s172
      %p176 = pneg %p170
      %p177 = scmp.eq.s32.totalorder %s34, 3
      %p178 = por %p176, %p177
      %p179 = scmp.ne.s32.totalorder %s171, %s174
      %p180 = scmp.eq.s32.totalorder %s34, 0
      %p181 = por %p179, %p180
      %p182 = scmp.ne.s32.totalorder %s171, %s174
      %p183 = scmp.eq.s32.totalorder %s39, 3
      %p184 = por %p182, %p183
      %p185 = scmp.ne.s32.totalorder %s174, %s175
      %p186 = scmp.eq.s32.totalorder %s39, 0
      %p187 = por %p185, %p186
      %p188 = scmp.ne.s32.totalorder %s174, %s175
      %p189 = scmp.eq.s32.totalorder %s40, 3
      %p190 = por %p188, %p189
      %p192 = scmp.ne.s32.totalorder %s175, %s191
      %p193 = scmp.eq.s32.totalorder %s40, 0
      %p194 = por %p192, %p193
      %s195 = ssub.s32 %s42, %s49
      %p196 = scmp.eq.s32.totalorder %s195, 0
      %s198 = sadd.s32 %s197, 1
      %s199 = scalar_select %p196, %s197, %s198
      %p202 = pneg %p196
      %p203 = scmp.eq.s32.totalorder %s34, 3
      %p204 = por %p202, %p203
      %p205 = scmp.ne.s32.totalorder %s197, %s200
      %p206 = scmp.eq.s32.totalorder %s34, 0
      %p207 = por %p205, %p206
      %p208 = scmp.ne.s32.totalorder %s197, %s200
      %p209 = scmp.eq.s32.totalorder %s39, 3
      %p210 = por %p208, %p209
      %p211 = scmp.ne.s32.totalorder %s200, %s201
      %p212 = scmp.eq.s32.totalorder %s39, 0
      %p213 = por %p211, %p212
      %p214 = scmp.ne.s32.totalorder %s200, %s201
      %p215 = scmp.eq.s32.totalorder %s40, 3
      %p216 = por %p214, %p215
      %p218 = scmp.ne.s32.totalorder %s201, %s217
      %p219 = scmp.eq.s32.totalorder %s40, 0
      %p220 = por %p218, %p219
      %s221 = ssub.s32 %s42, %s49
      %p222 = scmp.eq.s32.totalorder %s221, 0
      %s224 = sadd.s32 %s223, 1
      %s225 = scalar_select %p222, %s223, %s224
      %p228 = pneg %p222
      %p229 = scmp.eq.s32.totalorder %s34, 3
      %p230 = por %p228, %p229
      %p231 = scmp.ne.s32.totalorder %s223, %s226
      %p232 = scmp.eq.s32.totalorder %s34, 0
      %p233 = por %p231, %p232
      %p234 = scmp.ne.s32.totalorder %s223, %s226
      %p235 = scmp.eq.s32.totalorder %s39, 3
      %p236 = por %p234, %p235
      %p237 = scmp.ne.s32.totalorder %s226, %s227
      %p238 = scmp.eq.s32.totalorder %s39, 0
      %p239 = por %p237, %p238
      %p240 = scmp.ne.s32.totalorder %s226, %s227
      %p241 = scmp.eq.s32.totalorder %s40, 3
      %p242 = por %p240, %p241
      %p244 = scmp.ne.s32.totalorder %s227, %s243
      %p245 = scmp.eq.s32.totalorder %s40, 0
      %p246 = por %p244, %p245
      %s247 = ssub.s32 %s42, %s49
      %p248 = scmp.eq.s32.totalorder %s247, 0
      %s250 = sadd.s32 %s249, 1
      %s251 = scalar_select %p248, %s249, %s250
      %p254 = pneg %p248
      %p255 = scmp.eq.s32.totalorder %s34, 3
      %p256 = por %p254, %p255
      %p257 = scmp.ne.s32.totalorder %s249, %s252
      %p258 = scmp.eq.s32.totalorder %s34, 0
      %p259 = por %p257, %p258
      %p260 = scmp.ne.s32.totalorder %s249, %s252
      %p261 = scmp.eq.s32.totalorder %s39, 3
      %p262 = por %p260, %p261
      %p263 = scmp.ne.s32.totalorder %s252, %s253
      %p264 = scmp.eq.s32.totalorder %s39, 0
      %p265 = por %p263, %p264
      %p266 = scmp.ne.s32.totalorder %s252, %s253
      %p267 = scmp.eq.s32.totalorder %s40, 3
      %p268 = por %p266, %p267
      %p270 = scmp.ne.s32.totalorder %s253, %s269
      %p271 = scmp.eq.s32.totalorder %s40, 0
      %p272 = por %p270, %p271
      %s273 = ssub.s32 %s42, %s49
      %p274 = scmp.eq.s32.totalorder %s273, 0
      %s276 = sadd.s32 %s275, 1
      %s277 = scalar_select %p274, %s275, %s276
      %p280 = pneg %p274
      %p281 = scmp.eq.s32.totalorder %s34, 3
      %p282 = por %p280, %p281
      %p283 = scmp.ne.s32.totalorder %s275, %s278
      %p284 = scmp.eq.s32.totalorder %s34, 0
      %p285 = por %p283, %p284
      %p286 = scmp.ne.s32.totalorder %s275, %s278
      %p287 = scmp.eq.s32.totalorder %s39, 3
      %p288 = por %p286, %p287
      %p289 = scmp.ne.s32.totalorder %s278, %s279
      %p290 = scmp.eq.s32.totalorder %s39, 0
      %p291 = por %p289, %p290
      %p292 = scmp.ne.s32.totalorder %s278, %s279
      %p293 = scmp.eq.s32.totalorder %s40, 3
      %p294 = por %p292, %p293
      %p296 = scmp.ne.s32.totalorder %s279, %s295
      %p297 = scmp.eq.s32.totalorder %s40, 0
      %p298 = por %p296, %p297
      %s299 = ssub.s32 %s42, %s49
      %p300 = scmp.eq.s32.totalorder %s299, 0
      %s302 = sadd.s32 %s301, 1
      %s303 = scalar_select %p300, %s301, %s302
      %p306 = pneg %p300
      %p307 = scmp.eq.s32.totalorder %s34, 3
      %p308 = por %p306, %p307
      %p309 = scmp.ne.s32.totalorder %s301, %s304
      %p310 = scmp.eq.s32.totalorder %s34, 0
      %p311 = por %p309, %p310
      %p312 = scmp.ne.s32.totalorder %s301, %s304
      %p313 = scmp.eq.s32.totalorder %s39, 3
      %p314 = por %p312, %p313
      %p315 = scmp.ne.s32.totalorder %s304, %s305
      %p316 = scmp.eq.s32.totalorder %s39, 0
      %p317 = por %p315, %p316
      %p318 = scmp.ne.s32.totalorder %s304, %s305
      %p319 = scmp.eq.s32.totalorder %s40, 3
      %p320 = por %p318, %p319
      %p322 = scmp.ne.s32.totalorder %s305, %s321
      %p323 = scmp.eq.s32.totalorder %s40, 0
      %p324 = por %p322, %p323
      %s325 = ssub.s32 %s42, %s49
      %p326 = scmp.eq.s32.totalorder %s325, 0
      %s328 = sadd.s32 %s327, 1
      %s329 = scalar_select %p326, %s327, %s328
      %p332 = pneg %p326
      %p333 = scmp.eq.s32.totalorder %s34, 3
      %p334 = por %p332, %p333
      %p335 = scmp.ne.s32.totalorder %s327, %s330
      %p336 = scmp.eq.s32.totalorder %s34, 0
      %p337 = por %p335, %p336
      %p338 = scmp.ne.s32.totalorder %s327, %s330
      %p339 = scmp.eq.s32.totalorder %s39, 3
      %p340 = por %p338, %p339
      %p341 = scmp.ne.s32.totalorder %s330, %s331
      %p342 = scmp.eq.s32.totalorder %s39, 0
      %p343 = por %p341, %p342
      %p344 = scmp.ne.s32.totalorder %s330, %s331
      %p345 = scmp.eq.s32.totalorder %s40, 3
      %p346 = por %p344, %p345
      %p348 = scmp.ne.s32.totalorder %s331, %s347
      %p349 = scmp.eq.s32.totalorder %s40, 0
      %p350 = por %p348, %p349
      %s351 = ssub.s32 %s42, %s49
      %p352 = scmp.eq.s32.totalorder %s351, 0
      %s354 = sadd.s32 %s353, 1
      %s355 = scalar_select %p352, %s353, %s354
      %p358 = pneg %p352
      %p359 = scmp.eq.s32.totalorder %s34, 3
      %p360 = por %p358, %p359
      %p361 = scmp.ne.s32.totalorder %s353, %s356
      %p362 = scmp.eq.s32.totalorder %s34, 0
      %p363 = por %p361, %p362
      %p364 = scmp.ne.s32.totalorder %s353, %s356
      %p365 = scmp.eq.s32.totalorder %s39, 3
      %p366 = por %p364, %p365
      %p367 = scmp.ne.s32.totalorder %s356, %s357
      %p368 = scmp.eq.s32.totalorder %s39, 0
      %p369 = por %p367, %p368
      %p370 = scmp.ne.s32.totalorder %s356, %s357
      %p371 = scmp.eq.s32.totalorder %s40, 3
      %p372 = por %p370, %p371
      %p374 = scmp.ne.s32.totalorder %s357, %s373
      %p375 = scmp.eq.s32.totalorder %s40, 0
      %p376 = por %p374, %p375
      %s377 = ssub.s32 %s42, %s49
      %p378 = scmp.eq.s32.totalorder %s377, 0
      %s380 = sadd.s32 %s379, 1
      %s381 = scalar_select %p378, %s379, %s380
      %p384 = pneg %p378
      %p385 = scmp.eq.s32.totalorder %s34, 3
      %p386 = por %p384, %p385
      %p387 = scmp.ne.s32.totalorder %s379, %s382
      %p388 = scmp.eq.s32.totalorder %s34, 0
      %p389 = por %p387, %p388
      %p390 = scmp.ne.s32.totalorder %s379, %s382
      %p391 = scmp.eq.s32.totalorder %s39, 3
      %p392 = por %p390, %p391
      %p393 = scmp.ne.s32.totalorder %s382, %s383
      %p394 = scmp.eq.s32.totalorder %s39, 0
      %p395 = por %p393, %p394
      %p396 = scmp.ne.s32.totalorder %s382, %s383
      %p397 = scmp.eq.s32.totalorder %s40, 3
      %p398 = por %p396, %p397
      %p400 = scmp.ne.s32.totalorder %s383, %s399
      %p401 = scmp.eq.s32.totalorder %s40, 0
      %p402 = por %p400, %p401
      %s403 = ssub.s32 %s42, %s49
      %p404 = scmp.eq.s32.totalorder %s403, 0
      %s406 = sadd.s32 %s405, 1
      %s407 = scalar_select %p404, %s405, %s406
      %p410 = pneg %p404
      %p411 = scmp.eq.s32.totalorder %s34, 3
      %p412 = por %p410, %p411
      %p413 = scmp.ne.s32.totalorder %s405, %s408
      %p414 = scmp.eq.s32.totalorder %s34, 0
      %p415 = por %p413, %p414
      %p416 = scmp.ne.s32.totalorder %s405, %s408
      %p417 = scmp.eq.s32.totalorder %s39, 3
      %p418 = por %p416, %p417
      %p419 = scmp.ne.s32.totalorder %s408, %s409
      %p420 = scmp.eq.s32.totalorder %s39, 0
      %p421 = por %p419, %p420
      %p422 = scmp.ne.s32.totalorder %s408, %s409
      %p423 = scmp.eq.s32.totalorder %s40, 3
      %p424 = por %p422, %p423
      %p426 = scmp.ne.s32.totalorder %s409, %s425
      %p427 = scmp.eq.s32.totalorder %s40, 0
      %p428 = por %p426, %p427
      %s429 = ssub.s32 %s42, %s49
      %p430 = scmp.eq.s32.totalorder %s429, 0
      %s432 = sadd.s32 %s431, 1
      %s433 = scalar_select %p430, %s431, %s432
      %p436 = pneg %p430
      %p437 = scmp.eq.s32.totalorder %s34, 3
      %p438 = por %p436, %p437
      %p439 = scmp.ne.s32.totalorder %s431, %s434
      %p440 = scmp.eq.s32.totalorder %s34, 0
      %p441 = por %p439, %p440
      %p442 = scmp.ne.s32.totalorder %s431, %s434
      %p443 = scmp.eq.s32.totalorder %s39, 3
      %p444 = por %p442, %p443
      %p445 = scmp.ne.s32.totalorder %s434, %s435
      %p446 = scmp.eq.s32.totalorder %s39, 0
      %p447 = por %p445, %p446
      %p448 = scmp.ne.s32.totalorder %s434, %s435
      %p449 = scmp.eq.s32.totalorder %s40, 3
      %p450 = por %p448, %p449
      %p452 = scmp.ne.s32.totalorder %s435, %s451
      %p453 = scmp.eq.s32.totalorder %s40, 0
      %p454 = por %p452, %p453
      %s455 = ssub.s32 %s42, %s49
      %p456 = scmp.eq.s32.totalorder %s455, 0
      %s458 = sadd.s32 %s457, 1
      %s459 = scalar_select %p456, %s457, %s458
      %p462 = pneg %p456
      %p463 = scmp.eq.s32.totalorder %s34, 3
      %p464 = por %p462, %p463
      %p465 = scmp.ne.s32.totalorder %s457, %s460
      %p466 = scmp.eq.s32.totalorder %s34, 0
      %p467 = por %p465, %p466
      %p468 = scmp.ne.s32.totalorder %s457, %s460
      %p469 = scmp.eq.s32.totalorder %s39, 3
      %p470 = por %p468, %p469
      %p471 = scmp.ne.s32.totalorder %s460, %s461
      %p472 = scmp.eq.s32.totalorder %s39, 0
      %p473 = por %p471, %p472
      %p474 = scmp.ne.s32.totalorder %s460, %s461
      %p475 = scmp.eq.s32.totalorder %s40, 3
      %p476 = por %p474, %p475
      %p478 = scmp.ne.s32.totalorder %s461, %s477
      %p479 = scmp.eq.s32.totalorder %s40, 0
      %p480 = por %p478, %p479
      %s481 = ssub.s32 %s42, %s49
      %p482 = scmp.eq.s32.totalorder %s481, 0
      %s484 = sadd.s32 %s483, 1
      %s485 = scalar_select %p482, %s483, %s484
      %p488 = pneg %p482
      %p489 = scmp.eq.s32.totalorder %s34, 3
      %p490 = por %p488, %p489
      %p491 = scmp.ne.s32.totalorder %s483, %s486
      %p492 = scmp.eq.s32.totalorder %s34, 0
      %p493 = por %p491, %p492
      %p494 = scmp.ne.s32.totalorder %s483, %s486
      %p495 = scmp.eq.s32.totalorder %s39, 3
      %p496 = por %p494, %p495
      %p497 = scmp.ne.s32.totalorder %s486, %s487
      %p498 = scmp.eq.s32.totalorder %s39, 0
      %p499 = por %p497, %p498
      %p500 = scmp.ne.s32.totalorder %s486, %s487
      %p501 = scmp.eq.s32.totalorder %s40, 3
      %p502 = por %p500, %p501
      %p504 = scmp.ne.s32.totalorder %s487, %s503
      %p505 = scmp.eq.s32.totalorder %s40, 0
      %p506 = por %p504, %p505
      %s508 = sadd.s32 %s507, 1
      %p511 = scmp.eq.s32.totalorder %s34, 3
      %p512 = scmp.ne.s32.totalorder %s507, %s509
      %p513 = scmp.eq.s32.totalorder %s34, 0
      %p514 = por %p512, %p513
      %p515 = scmp.ne.s32.totalorder %s507, %s509
      %p516 = scmp.eq.s32.totalorder %s39, 3
      %p517 = por %p515, %p516
      %p518 = scmp.ne.s32.totalorder %s509, %s510
      %p519 = scmp.eq.s32.totalorder %s39, 0
      %p520 = por %p518, %p519
      %p521 = scmp.ne.s32.totalorder %s509, %s510
      %p522 = scmp.eq.s32.totalorder %s40, 3
      %p523 = por %p521, %p522
      %p525 = scmp.ne.s32.totalorder %s510, %s524
      %p526 = scmp.eq.s32.totalorder %s40, 0
      %p527 = por %p525, %p526
      %s529 = sadd.s32 %s528, 1
      %p532 = scmp.eq.s32.totalorder %s34, 3
      %p533 = scmp.ne.s32.totalorder %s528, %s530
      %p534 = scmp.eq.s32.totalorder %s34, 0
      %p535 = por %p533, %p534
      %p536 = scmp.ne.s32.totalorder %s528, %s530
      %p537 = scmp.eq.s32.totalorder %s39, 3
      %p538 = por %p536, %p537
      %p539 = scmp.ne.s32.totalorder %s530, %s531
      %p540 = scmp.eq.s32.totalorder %s39, 0
      %p541 = por %p539, %p540
      %p542 = scmp.ne.s32.totalorder %s530, %s531
      %p543 = scmp.eq.s32.totalorder %s40, 3
      %p544 = por %p542, %p543
      %p546 = scmp.ne.s32.totalorder %s531, %s545
      %p547 = scmp.eq.s32.totalorder %s40, 0
      %p548 = por %p546, %p547
      %s549 = ssub.s32 %s41, %s53
      %p550 = scmp.eq.s32.totalorder %s549, 0
      %s552 = sadd.s32 %s551, 1
      %s553 = scalar_select %p550, %s551, %s552
      %p556 = pneg %p550
      %p557 = scmp.eq.s32.totalorder %s34, 3
      %p558 = por %p556, %p557
      %p559 = scmp.ne.s32.totalorder %s551, %s554
      %p560 = scmp.eq.s32.totalorder %s34, 0
      %p561 = por %p559, %p560
      %p562 = scmp.ne.s32.totalorder %s551, %s554
      %p563 = scmp.eq.s32.totalorder %s39, 3
      %p564 = por %p562, %p563
      %p565 = scmp.ne.s32.totalorder %s554, %s555
      %p566 = scmp.eq.s32.totalorder %s39, 0
      %p567 = por %p565, %p566
      %p568 = scmp.ne.s32.totalorder %s554, %s555
      %p569 = scmp.eq.s32.totalorder %s40, 3
      %p570 = por %p568, %p569
      %p572 = scmp.ne.s32.totalorder %s555, %s571
      %p573 = scmp.eq.s32.totalorder %s40, 0
      %p574 = por %p572, %p573
      %p575 = scmp.le.s32.totalorder 1, %s34
      %p576 = scmp.lt.s32.totalorder %s34, 5
      %p577 = pnand %p575, %p576
      %p578 = pneg %p577
      // Predicated region
      $region9: #{tpu_custom_call.1} parent=5 // pred_check
        _
      $region10: #{tpu_custom_call.1} parent=5 // pred_check_branch
        %580 = sbr.rel (%p577) target = $region12
      $region11: #{tpu_custom_call.1} parent=5 // pred_region
        %s581 = ssub.s32 %s34, 1
        // Predicated region
        $region13: #{tpu_custom_call.1} parent=11 // pred_check
          %p582 = pneg %p93
        $region14: #{tpu_custom_call.1} parent=11 // pred_check_branch
          %584 = sbr.rel (%p582) target = $region16
        $region15: #{tpu_custom_call.1} parent=11 // pred_region
          %586 = vsyncadd [#allocation7], 0
          %s587 = sshll.u32 %s1, 4
          %s588 = int_to_ptr.hbm [resolvable:$true] %s587
          %s589 = sshll.u32 [#allocation6], 4
          %s590 = int_to_ptr.vmem [resolvable:$true] %s589
          %595 = dma.hbm_to_vmem [thread:$0]  %s588, 1536, %s590, [#allocation7], 192, 192, 12
        $region16: #{tpu_custom_call.1} parent=11 // pred_fallthru
          _
        // Predicated region
        $region17: #{tpu_custom_call.1} parent=11 // pred_check
          %p596 = pneg %p114
        $region18: #{tpu_custom_call.1} parent=11 // pred_check_branch
          %598 = sbr.rel (%p596) target = $region20
        $region19: #{tpu_custom_call.1} parent=11 // pred_region
          %600 = vsyncadd [#allocation7], 0
          %s602 = sshll.u32 %s2, 4
          %s603 = int_to_ptr.hbm [resolvable:$true] %s602
          %s604 = sshll.u32 [#allocation8], 4
          %s605 = int_to_ptr.vmem [resolvable:$true] %s604
          %607 = dma.hbm_to_vmem [thread:$0]  %s603, 48, %s605, [#allocation7]
        $region20: #{tpu_custom_call.1} parent=11 // pred_fallthru
          _
        // Predicated region
        $region21: #{tpu_custom_call.1} parent=11 // pred_check
          %p608 = pneg %p135
        $region22: #{tpu_custom_call.1} parent=11 // pred_check_branch
          %610 = sbr.rel (%p608) target = $region24
        $region23: #{tpu_custom_call.1} parent=11 // pred_region
          %612 = vsyncadd [#allocation10], 0
          %s613 = sshll.u32 %s3, 4
          %s614 = int_to_ptr.hbm [resolvable:$true] %s613
          %s615 = sshll.u32 [#allocation9], 4
          %s616 = int_to_ptr.vmem [resolvable:$true] %s615
          %621 = dma.hbm_to_vmem [thread:$0]  %s614, 768, %s616, [#allocation10], 384, 384, 24
        $region24: #{tpu_custom_call.1} parent=11 // pred_fallthru
          _
        // Predicated region
        $region25: #{tpu_custom_call.1} parent=11 // pred_check
          %p622 = pneg %p520
        $region26: #{tpu_custom_call.1} parent=11 // pred_check_branch
          %624 = sbr.rel (%p622) target = $region28
        $region27: #{tpu_custom_call.1} parent=11 // pred_region
          %626 = vsyncadd [#allocation7], 0
          %s628 = sshll.u32 %s18, 4
          %s629 = int_to_ptr.hbm [resolvable:$true] %s628
          %s630 = sshll.u32 [#allocation25], 4
          %s631 = int_to_ptr.vmem [resolvable:$true] %s630
          %633 = dma.hbm_to_vmem [thread:$0]  %s629, 48, %s631, [#allocation7]
        $region28: #{tpu_custom_call.1} parent=11 // pred_fallthru
          _
        // Predicated region
        $region29: #{tpu_custom_call.1} parent=11 // pred_check
          %p634 = pneg %p541
        $region30: #{tpu_custom_call.1} parent=11 // pred_check_branch
          %636 = sbr.rel (%p634) target = $region32
        $region31: #{tpu_custom_call.1} parent=11 // pred_region
          %638 = vsyncadd [#allocation10], 0
          %s640 = sshll.u32 %s19, 4
          %s641 = int_to_ptr.hbm [resolvable:$true] %s640
          %s642 = sshll.u32 [#allocation26], 4
          %s643 = int_to_ptr.vmem [resolvable:$true] %s642
          %645 = dma.hbm_to_vmem [thread:$0]  %s641, 48, %s643, [#allocation10]
        $region32: #{tpu_custom_call.1} parent=11 // pred_fallthru
          _
      $region12: #{tpu_custom_call.1} parent=5 // pred_fallthru
        _
      %p646 = scmp.lt.s32.totalorder %s34, 4
      // Predicated region
      $region33: #{tpu_custom_call.1} parent=5 // pred_check
        %p647 = pneg %p646
      $region34: #{tpu_custom_call.1} parent=5 // pred_check_branch
        %649 = sbr.rel (%p647) target = $region36
      $region35: #{tpu_custom_call.1} parent=5 // pred_region
        // Predicated region
        $region37: #{tpu_custom_call.1} parent=35 // pred_check
          %p650 = pneg %p66
        $region38: #{tpu_custom_call.1} parent=35 // pred_check_branch
          %652 = sbr.rel (%p650) target = $region40
        $region39: #{tpu_custom_call.1} parent=35 // pred_region
          %s653 = sand.u32 %s34, 1
          %s654 = scalar_lea.sflag [#allocation4], %s653
          %s655 = sand.u32 %s56, 1
          %s656 = smul.addr %s655, 16
          %s657 = scalar_lea.vmem [#allocation3], %s656
          %659 = vsyncadd %s654, 0
          %s660 = smul.addr %s41, 2
          %s661 = smul.addr %s660, 8
          %s662 = scalar_lea.hbm %s0, %s661
          %s663 = sshll.u32 %s662, 4
          %s664 = int_to_ptr.hbm [resolvable:$true] %s663
          %s665 = sshll.u32 %s657, 4
          %s666 = int_to_ptr.vmem [resolvable:$true] %s665
          %671 = dma.hbm_to_vmem [thread:$0]  %s664, 256, %s666, %s654, 128, 128, 8
        $region40: #{tpu_custom_call.1} parent=35 // pred_fallthru
          _
        // Predicated region
        $region41: #{tpu_custom_call.1} parent=35 // pred_check
          %p672 = pneg %p155
        $region42: #{tpu_custom_call.1} parent=35 // pred_check_branch
          %674 = sbr.rel (%p672) target = $region44
        $region43: #{tpu_custom_call.1} parent=35 // pred_region
          %s675 = sand.u32 %s34, 1
          %s676 = scalar_lea.sflag [#allocation4], %s675
          %s677 = sand.u32 %s145, 1
          %s678 = smul.addr %s677, 3
          %s679 = scalar_lea.vmem [#allocation11], %s678
          %681 = vsyncadd %s676, 0
          %s682 = smul.addr %s42, 3
          %s683 = scalar_lea.hbm %s4, %s682
          %s685 = sshll.u32 %s683, 4
          %s686 = int_to_ptr.hbm [resolvable:$true] %s685
          %s687 = sshll.u32 %s679, 4
          %s688 = int_to_ptr.vmem [resolvable:$true] %s687
          %690 = dma.hbm_to_vmem [thread:$0]  %s686, 48, %s688, %s676
        $region44: #{tpu_custom_call.1} parent=35 // pred_fallthru
          _
        // Predicated region
        $region45: #{tpu_custom_call.1} parent=35 // pred_check
          %p691 = pneg %p181
        $region46: #{tpu_custom_call.1} parent=35 // pred_check_branch
          %693 = sbr.rel (%p691) target = $region48
        $region47: #{tpu_custom_call.1} parent=35 // pred_region
          %s694 = sand.u32 %s34, 1
          %s695 = scalar_lea.sflag [#allocation4], %s694
          %s696 = sand.u32 %s171, 1
          %s697 = smul.addr %s696, 3
          %s698 = scalar_lea.vmem [#allocation12], %s697
          %700 = vsyncadd %s695, 0
          %s701 = smul.addr %s42, 3
          %s702 = scalar_lea.hbm %s5, %s701
          %s704 = sshll.u32 %s702, 4
          %s705 = int_to_ptr.hbm [resolvable:$true] %s704
          %s706 = sshll.u32 %s698, 4
          %s707 = int_to_ptr.vmem [resolvable:$true] %s706
          %709 = dma.hbm_to_vmem [thread:$0]  %s705, 48, %s707, %s695
        $region48: #{tpu_custom_call.1} parent=35 // pred_fallthru
          _
        // Predicated region
        $region49: #{tpu_custom_call.1} parent=35 // pred_check
          %p710 = pneg %p207
        $region50: #{tpu_custom_call.1} parent=35 // pred_check_branch
          %712 = sbr.rel (%p710) target = $region52
        $region51: #{tpu_custom_call.1} parent=35 // pred_region
          %s713 = sand.u32 %s34, 1
          %s714 = scalar_lea.sflag [#allocation4], %s713
          %s715 = sand.u32 %s197, 1
          %s716 = smul.addr %s715, 1728
          %s717 = scalar_lea.vmem [#allocation13], %s716
          %719 = vsyncadd %s714, 0
          %s720 = smul.addr %s42, 432
          %s721 = smul.addr %s720, 4
          %s722 = scalar_lea.hbm %s6, %s721
          %s723 = sshll.u32 %s722, 4
          %s724 = int_to_ptr.hbm [resolvable:$true] %s723
          %s725 = sshll.u32 %s717, 4
          %s726 = int_to_ptr.vmem [resolvable:$true] %s725
          %731 = dma.hbm_to_vmem [thread:$0]  %s724, 27648, %s726, %s714, 576, 576, 36
        $region52: #{tpu_custom_call.1} parent=35 // pred_fallthru
          _
        // Predicated region
        $region53: #{tpu_custom_call.1} parent=35 // pred_check
          %p732 = pneg %p233
        $region54: #{tpu_custom_call.1} parent=35 // pred_check_branch
          %734 = sbr.rel (%p732) target = $region56
        $region55: #{tpu_custom_call.1} parent=35 // pred_region
          %s735 = sand.u32 %s34, 1
          %s736 = scalar_lea.sflag [#allocation4], %s735
          %s737 = sand.u32 %s223, 1
          %s738 = smul.addr %s737, 9
          %s739 = scalar_lea.vmem [#allocation14], %s738
          %741 = vsyncadd %s736, 0
          %s742 = smul.addr %s42, 9
          %s743 = scalar_lea.hbm %s7, %s742
          %s745 = sshll.u32 %s743, 4
          %s746 = int_to_ptr.hbm [resolvable:$true] %s745
          %s747 = sshll.u32 %s739, 4
          %s748 = int_to_ptr.vmem [resolvable:$true] %s747
          %750 = dma.hbm_to_vmem [thread:$0]  %s746, 144, %s748, %s736
        $region56: #{tpu_custom_call.1} parent=35 // pred_fallthru
          _
        // Predicated region
        $region57: #{tpu_custom_call.1} parent=35 // pred_check
          %p751 = pneg %p259
        $region58: #{tpu_custom_call.1} parent=35 // pred_check_branch
          %753 = sbr.rel (%p751) target = $region60
        $region59: #{tpu_custom_call.1} parent=35 // pred_region
          %s754 = sand.u32 %s34, 1
          %s755 = scalar_lea.sflag [#allocation4], %s754
          %s756 = sand.u32 %s249, 1
          %s757 = smul.addr %s756, 576
          %s758 = scalar_lea.vmem [#allocation15], %s757
          %760 = vsyncadd %s755, 0
          %s761 = smul.addr %s42, 144
          %s762 = smul.addr %s761, 4
          %s763 = scalar_lea.hbm %s8, %s762
          %s764 = sshll.u32 %s763, 4
          %s765 = int_to_ptr.hbm [resolvable:$true] %s764
          %s766 = sshll.u32 %s758, 4
          %s767 = int_to_ptr.vmem [resolvable:$true] %s766
          %772 = dma.hbm_to_vmem [thread:$0]  %s765, 9216, %s767, %s755, 192, 192, 12
        $region60: #{tpu_custom_call.1} parent=35 // pred_fallthru
          _
        // Predicated region
        $region61: #{tpu_custom_call.1} parent=35 // pred_check
          %p773 = pneg %p285
        $region62: #{tpu_custom_call.1} parent=35 // pred_check_branch
          %775 = sbr.rel (%p773) target = $region64
        $region63: #{tpu_custom_call.1} parent=35 // pred_region
          %s776 = sand.u32 %s34, 1
          %s777 = scalar_lea.sflag [#allocation4], %s776
          %s778 = sand.u32 %s275, 1
          %s779 = smul.addr %s778, 3
          %s780 = scalar_lea.vmem [#allocation16], %s779
          %782 = vsyncadd %s777, 0
          %s783 = smul.addr %s42, 3
          %s784 = scalar_lea.hbm %s9, %s783
          %s786 = sshll.u32 %s784, 4
          %s787 = int_to_ptr.hbm [resolvable:$true] %s786
          %s788 = sshll.u32 %s780, 4
          %s789 = int_to_ptr.vmem [resolvable:$true] %s788
          %791 = dma.hbm_to_vmem [thread:$0]  %s787, 48, %s789, %s777
        $region64: #{tpu_custom_call.1} parent=35 // pred_fallthru
          _
        // Predicated region
        $region65: #{tpu_custom_call.1} parent=35 // pred_check
          %p792 = pneg %p311
        $region66: #{tpu_custom_call.1} parent=35 // pred_check_branch
          %794 = sbr.rel (%p792) target = $region68
        $region67: #{tpu_custom_call.1} parent=35 // pred_region
          %s795 = sand.u32 %s34, 1
          %s796 = scalar_lea.sflag [#allocation4], %s795
          %s797 = sand.u32 %s301, 1
          %s798 = smul.addr %s797, 3
          %s799 = scalar_lea.vmem [#allocation17], %s798
          %801 = vsyncadd %s796, 0
          %s802 = smul.addr %s42, 3
          %s803 = scalar_lea.hbm %s10, %s802
          %s805 = sshll.u32 %s803, 4
          %s806 = int_to_ptr.hbm [resolvable:$true] %s805
          %s807 = sshll.u32 %s799, 4
          %s808 = int_to_ptr.vmem [resolvable:$true] %s807
          %810 = dma.hbm_to_vmem [thread:$0]  %s806, 48, %s808, %s796
        $region68: #{tpu_custom_call.1} parent=35 // pred_fallthru
          _
        // Predicated region
        $region69: #{tpu_custom_call.1} parent=35 // pred_check
          %p811 = pneg %p337
        $region70: #{tpu_custom_call.1} parent=35 // pred_check_branch
          %813 = sbr.rel (%p811) target = $region72
        $region71: #{tpu_custom_call.1} parent=35 // pred_region
          %s814 = sand.u32 %s34, 1
          %s815 = scalar_lea.sflag [#allocation4], %s814
          %s816 = sand.u32 %s327, 1
          %s817 = smul.addr %s816, 3
          %s818 = scalar_lea.vmem [#allocation18], %s817
          %820 = vsyncadd %s815, 0
          %s821 = smul.addr %s42, 3
          %s822 = scalar_lea.hbm %s11, %s821
          %s824 = sshll.u32 %s822, 4
          %s825 = int_to_ptr.hbm [resolvable:$true] %s824
          %s826 = sshll.u32 %s818, 4
          %s827 = int_to_ptr.vmem [resolvable:$true] %s826
          %829 = dma.hbm_to_vmem [thread:$0]  %s825, 48, %s827, %s815
        $region72: #{tpu_custom_call.1} parent=35 // pred_fallthru
          _
        // Predicated region
        $region73: #{tpu_custom_call.1} parent=35 // pred_check
          %p830 = pneg %p363
        $region74: #{tpu_custom_call.1} parent=35 // pred_check_branch
          %832 = sbr.rel (%p830) target = $region76
        $region75: #{tpu_custom_call.1} parent=35 // pred_region
          %s833 = sand.u32 %s34, 1
          %s834 = scalar_lea.sflag [#allocation4], %s833
          %s835 = sand.u32 %s353, 1
          %s836 = smul.addr %s835, 3
          %s837 = scalar_lea.vmem [#allocation19], %s836
          %839 = vsyncadd %s834, 0
          %s840 = smul.addr %s42, 3
          %s841 = scalar_lea.hbm %s12, %s840
          %s843 = sshll.u32 %s841, 4
          %s844 = int_to_ptr.hbm [resolvable:$true] %s843
          %s845 = sshll.u32 %s837, 4
          %s846 = int_to_ptr.vmem [resolvable:$true] %s845
          %848 = dma.hbm_to_vmem [thread:$0]  %s844, 48, %s846, %s834
        $region76: #{tpu_custom_call.1} parent=35 // pred_fallthru
          _
        // Predicated region
        $region77: #{tpu_custom_call.1} parent=35 // pred_check
          %p849 = pneg %p389
        $region78: #{tpu_custom_call.1} parent=35 // pred_check_branch
          %851 = sbr.rel (%p849) target = $region80
        $region79: #{tpu_custom_call.1} parent=35 // pred_region
          %s852 = sand.u32 %s34, 1
          %s853 = scalar_lea.sflag [#allocation4], %s852
          %s854 = sand.u32 %s379, 1
          %s855 = smul.addr %s854, 2304
          %s856 = scalar_lea.vmem [#allocation20], %s855
          %858 = vsyncadd %s853, 0
          %s859 = smul.addr %s42, 576
          %s860 = smul.addr %s859, 4
          %s861 = scalar_lea.hbm %s13, %s860
          %s862 = sshll.u32 %s861, 4
          %s863 = int_to_ptr.hbm [resolvable:$true] %s862
          %s864 = sshll.u32 %s856, 4
          %s865 = int_to_ptr.vmem [resolvable:$true] %s864
          %870 = dma.hbm_to_vmem [thread:$0]  %s863, 36864, %s865, %s853, 768, 768, 48
        $region80: #{tpu_custom_call.1} parent=35 // pred_fallthru
          _
        // Predicated region
        $region81: #{tpu_custom_call.1} parent=35 // pred_check
          %p871 = pneg %p415
        $region82: #{tpu_custom_call.1} parent=35 // pred_check_branch
          %873 = sbr.rel (%p871) target = $region84
        $region83: #{tpu_custom_call.1} parent=35 // pred_region
          %s874 = sand.u32 %s34, 1
          %s875 = scalar_lea.sflag [#allocation4], %s874
          %s876 = sand.u32 %s405, 1
          %s877 = smul.addr %s876, 12
          %s878 = scalar_lea.vmem [#allocation21], %s877
          %880 = vsyncadd %s875, 0
          %s881 = smul.addr %s42, 12
          %s882 = scalar_lea.hbm %s14, %s881
          %s884 = sshll.u32 %s882, 4
          %s885 = int_to_ptr.hbm [resolvable:$true] %s884
          %s886 = sshll.u32 %s878, 4
          %s887 = int_to_ptr.vmem [resolvable:$true] %s886
          %889 = dma.hbm_to_vmem [thread:$0]  %s885, 192, %s887, %s875
        $region84: #{tpu_custom_call.1} parent=35 // pred_fallthru
          _
        // Predicated region
        $region85: #{tpu_custom_call.1} parent=35 // pred_check
          %p890 = pneg %p441
        $region86: #{tpu_custom_call.1} parent=35 // pred_check_branch
          %892 = sbr.rel (%p890) target = $region88
        $region87: #{tpu_custom_call.1} parent=35 // pred_region
          %s893 = sand.u32 %s34, 1
          %s894 = scalar_lea.sflag [#allocation4], %s893
          %s895 = sand.u32 %s431, 1
          %s896 = smul.addr %s895, 2304
          %s897 = scalar_lea.vmem [#allocation22], %s896
          %899 = vsyncadd %s894, 0
          %s900 = smul.addr %s42, 576
          %s901 = smul.addr %s900, 4
          %s902 = scalar_lea.hbm %s15, %s901
          %s903 = sshll.u32 %s902, 4
          %s904 = int_to_ptr.hbm [resolvable:$true] %s903
          %s905 = sshll.u32 %s897, 4
          %s906 = int_to_ptr.vmem [resolvable:$true] %s905
          %911 = dma.hbm_to_vmem [thread:$0]  %s904, 36864, %s906, %s894, 192, 192, 12
        $region88: #{tpu_custom_call.1} parent=35 // pred_fallthru
          _
        // Predicated region
        $region89: #{tpu_custom_call.1} parent=35 // pred_check
          %p912 = pneg %p467
        $region90: #{tpu_custom_call.1} parent=35 // pred_check_branch
          %914 = sbr.rel (%p912) target = $region92
        $region91: #{tpu_custom_call.1} parent=35 // pred_region
          %s915 = sand.u32 %s34, 1
          %s916 = scalar_lea.sflag [#allocation4], %s915
          %s917 = sand.u32 %s457, 1
          %s918 = smul.addr %s917, 3
          %s919 = scalar_lea.vmem [#allocation23], %s918
          %921 = vsyncadd %s916, 0
          %s922 = smul.addr %s42, 3
          %s923 = scalar_lea.hbm %s16, %s922
          %s925 = sshll.u32 %s923, 4
          %s926 = int_to_ptr.hbm [resolvable:$true] %s925
          %s927 = sshll.u32 %s919, 4
          %s928 = int_to_ptr.vmem [resolvable:$true] %s927
          %930 = dma.hbm_to_vmem [thread:$0]  %s926, 48, %s928, %s916
        $region92: #{tpu_custom_call.1} parent=35 // pred_fallthru
          _
        // Predicated region
        $region93: #{tpu_custom_call.1} parent=35 // pred_check
          %p931 = pneg %p493
        $region94: #{tpu_custom_call.1} parent=35 // pred_check_branch
          %933 = sbr.rel (%p931) target = $region96
        $region95: #{tpu_custom_call.1} parent=35 // pred_region
          %s934 = sand.u32 %s34, 1
          %s935 = scalar_lea.sflag [#allocation4], %s934
          %s936 = sand.u32 %s483, 1
          %s937 = smul.addr %s936, 3
          %s938 = scalar_lea.vmem [#allocation24], %s937
          %940 = vsyncadd %s935, 0
          %s941 = smul.addr %s42, 3
          %s942 = scalar_lea.hbm %s17, %s941
          %s944 = sshll.u32 %s942, 4
          %s945 = int_to_ptr.hbm [resolvable:$true] %s944
          %s946 = sshll.u32 %s938, 4
          %s947 = int_to_ptr.vmem [resolvable:$true] %s946
          %949 = dma.hbm_to_vmem [thread:$0]  %s945, 48, %s947, %s935
        $region96: #{tpu_custom_call.1} parent=35 // pred_fallthru
          _
      $region36: #{tpu_custom_call.1} parent=5 // pred_fallthru
        _
      %p950 = scmp.le.s32.totalorder 1, %s34
      %p951 = scmp.lt.s32.totalorder %s34, 5
      %p952 = pnand %p950, %p951
      %p953 = pneg %p952
      // Predicated region
      $region97: #{tpu_custom_call.1} parent=5 // pred_check
        _
      $region98: #{tpu_custom_call.1} parent=5 // pred_check_branch
        %955 = sbr.rel (%p952) target = $region100
      $region99: #{tpu_custom_call.1} parent=5 // pred_region
        %s956 = ssub.s32 %s34, 1
        %s957 = sand.u32 %s39, 1
        %s958 = scalar_lea.sflag [#allocation4], %s957
        %s959 = sand.u32 %s59, 1
        %s960 = smul.addr %s959, 16
        %s961 = scalar_lea.vmem [#allocation3], %s960
        // Predicated region
        $region101: #{tpu_custom_call.1} parent=99 // pred_check
          %p962 = pneg %p72
        $region102: #{tpu_custom_call.1} parent=99 // pred_check_branch
          %964 = sbr.rel (%p962) target = $region104
        $region103: #{tpu_custom_call.1} parent=99 // pred_region
          %966 = dma.done %s958, 256
        $region104: #{tpu_custom_call.1} parent=99 // pred_fallthru
          _
        // Predicated region
        $region105: #{tpu_custom_call.1} parent=99 // pred_check
          %p967 = pneg %p93
        $region106: #{tpu_custom_call.1} parent=99 // pred_check_branch
          %969 = sbr.rel (%p967) target = $region108
        $region107: #{tpu_custom_call.1} parent=99 // pred_region
          %971 = dma.done [#allocation7], 1536
        $region108: #{tpu_custom_call.1} parent=99 // pred_fallthru
          _
        // Predicated region
        $region109: #{tpu_custom_call.1} parent=99 // pred_check
          %p972 = pneg %p114
        $region110: #{tpu_custom_call.1} parent=99 // pred_check_branch
          %974 = sbr.rel (%p972) target = $region112
        $region111: #{tpu_custom_call.1} parent=99 // pred_region
          %976 = dma.done [#allocation7], 48
        $region112: #{tpu_custom_call.1} parent=99 // pred_fallthru
          _
        // Predicated region
        $region113: #{tpu_custom_call.1} parent=99 // pred_check
          %p977 = pneg %p135
        $region114: #{tpu_custom_call.1} parent=99 // pred_check_branch
          %979 = sbr.rel (%p977) target = $region116
        $region115: #{tpu_custom_call.1} parent=99 // pred_region
          %981 = dma.done [#allocation10], 768
        $region116: #{tpu_custom_call.1} parent=99 // pred_fallthru
          _
        %s982 = sand.u32 %s39, 1
        %s983 = scalar_lea.sflag [#allocation4], %s982
        %s984 = sand.u32 %s148, 1
        %s985 = smul.addr %s984, 3
        %s986 = scalar_lea.vmem [#allocation11], %s985
        // Predicated region
        $region117: #{tpu_custom_call.1} parent=99 // pred_check
          %p987 = pneg %p161
        $region118: #{tpu_custom_call.1} parent=99 // pred_check_branch
          %989 = sbr.rel (%p987) target = $region120
        $region119: #{tpu_custom_call.1} parent=99 // pred_region
          %991 = dma.done %s983, 48
        $region120: #{tpu_custom_call.1} parent=99 // pred_fallthru
          _
        %s992 = sand.u32 %s39, 1
        %s993 = scalar_lea.sflag [#allocation4], %s992
        %s994 = sand.u32 %s174, 1
        %s995 = smul.addr %s994, 3
        %s996 = scalar_lea.vmem [#allocation12], %s995
        // Predicated region
        $region121: #{tpu_custom_call.1} parent=99 // pred_check
          %p997 = pneg %p187
        $region122: #{tpu_custom_call.1} parent=99 // pred_check_branch
          %999 = sbr.rel (%p997) target = $region124
        $region123: #{tpu_custom_call.1} parent=99 // pred_region
          %1001 = dma.done %s993, 48
        $region124: #{tpu_custom_call.1} parent=99 // pred_fallthru
          _
        %s1002 = sand.u32 %s39, 1
        %s1003 = scalar_lea.sflag [#allocation4], %s1002
        %s1004 = sand.u32 %s200, 1
        %s1005 = smul.addr %s1004, 1728
        %s1006 = scalar_lea.vmem [#allocation13], %s1005
        // Predicated region
        $region125: #{tpu_custom_call.1} parent=99 // pred_check
          %p1007 = pneg %p213
        $region126: #{tpu_custom_call.1} parent=99 // pred_check_branch
          %1009 = sbr.rel (%p1007) target = $region128
        $region127: #{tpu_custom_call.1} parent=99 // pred_region
          %1011 = dma.done %s1003, 27648
        $region128: #{tpu_custom_call.1} parent=99 // pred_fallthru
          _
        %s1012 = sand.u32 %s39, 1
        %s1013 = scalar_lea.sflag [#allocation4], %s1012
        %s1014 = sand.u32 %s226, 1
        %s1015 = smul.addr %s1014, 9
        %s1016 = scalar_lea.vmem [#allocation14], %s1015
        // Predicated region
        $region129: #{tpu_custom_call.1} parent=99 // pred_check
          %p1017 = pneg %p239
        $region130: #{tpu_custom_call.1} parent=99 // pred_check_branch
          %1019 = sbr.rel (%p1017) target = $region132
        $region131: #{tpu_custom_call.1} parent=99 // pred_region
          %1021 = dma.done %s1013, 144
        $region132: #{tpu_custom_call.1} parent=99 // pred_fallthru
          _
        %s1022 = sand.u32 %s39, 1
        %s1023 = scalar_lea.sflag [#allocation4], %s1022
        %s1024 = sand.u32 %s252, 1
        %s1025 = smul.addr %s1024, 576
        %s1026 = scalar_lea.vmem [#allocation15], %s1025
        // Predicated region
        $region133: #{tpu_custom_call.1} parent=99 // pred_check
          %p1027 = pneg %p265
        $region134: #{tpu_custom_call.1} parent=99 // pred_check_branch
          %1029 = sbr.rel (%p1027) target = $region136
        $region135: #{tpu_custom_call.1} parent=99 // pred_region
          %1031 = dma.done %s1023, 9216
        $region136: #{tpu_custom_call.1} parent=99 // pred_fallthru
          _
        %s1032 = sand.u32 %s39, 1
        %s1033 = scalar_lea.sflag [#allocation4], %s1032
        %s1034 = sand.u32 %s278, 1
        %s1035 = smul.addr %s1034, 3
        %s1036 = scalar_lea.vmem [#allocation16], %s1035
        // Predicated region
        $region137: #{tpu_custom_call.1} parent=99 // pred_check
          %p1037 = pneg %p291
        $region138: #{tpu_custom_call.1} parent=99 // pred_check_branch
          %1039 = sbr.rel (%p1037) target = $region140
        $region139: #{tpu_custom_call.1} parent=99 // pred_region
          %1041 = dma.done %s1033, 48
        $region140: #{tpu_custom_call.1} parent=99 // pred_fallthru
          _
        %s1042 = sand.u32 %s39, 1
        %s1043 = scalar_lea.sflag [#allocation4], %s1042
        %s1044 = sand.u32 %s304, 1
        %s1045 = smul.addr %s1044, 3
        %s1046 = scalar_lea.vmem [#allocation17], %s1045
        // Predicated region
        $region141: #{tpu_custom_call.1} parent=99 // pred_check
          %p1047 = pneg %p317
        $region142: #{tpu_custom_call.1} parent=99 // pred_check_branch
          %1049 = sbr.rel (%p1047) target = $region144
        $region143: #{tpu_custom_call.1} parent=99 // pred_region
          %1051 = dma.done %s1043, 48
        $region144: #{tpu_custom_call.1} parent=99 // pred_fallthru
          _
        %s1052 = sand.u32 %s39, 1
        %s1053 = scalar_lea.sflag [#allocation4], %s1052
        %s1054 = sand.u32 %s330, 1
        %s1055 = smul.addr %s1054, 3
        %s1056 = scalar_lea.vmem [#allocation18], %s1055
        // Predicated region
        $region145: #{tpu_custom_call.1} parent=99 // pred_check
          %p1057 = pneg %p343
        $region146: #{tpu_custom_call.1} parent=99 // pred_check_branch
          %1059 = sbr.rel (%p1057) target = $region148
        $region147: #{tpu_custom_call.1} parent=99 // pred_region
          %1061 = dma.done %s1053, 48
        $region148: #{tpu_custom_call.1} parent=99 // pred_fallthru
          _
        %s1062 = sand.u32 %s39, 1
        %s1063 = scalar_lea.sflag [#allocation4], %s1062
        %s1064 = sand.u32 %s356, 1
        %s1065 = smul.addr %s1064, 3
        %s1066 = scalar_lea.vmem [#allocation19], %s1065
        // Predicated region
        $region149: #{tpu_custom_call.1} parent=99 // pred_check
          %p1067 = pneg %p369
        $region150: #{tpu_custom_call.1} parent=99 // pred_check_branch
          %1069 = sbr.rel (%p1067) target = $region152
        $region151: #{tpu_custom_call.1} parent=99 // pred_region
          %1071 = dma.done %s1063, 48
        $region152: #{tpu_custom_call.1} parent=99 // pred_fallthru
          _
        %s1072 = sand.u32 %s39, 1
        %s1073 = scalar_lea.sflag [#allocation4], %s1072
        %s1074 = sand.u32 %s382, 1
        %s1075 = smul.addr %s1074, 2304
        %s1076 = scalar_lea.vmem [#allocation20], %s1075
        // Predicated region
        $region153: #{tpu_custom_call.1} parent=99 // pred_check
          %p1077 = pneg %p395
        $region154: #{tpu_custom_call.1} parent=99 // pred_check_branch
          %1079 = sbr.rel (%p1077) target = $region156
        $region155: #{tpu_custom_call.1} parent=99 // pred_region
          %1081 = dma.done %s1073, 36864
        $region156: #{tpu_custom_call.1} parent=99 // pred_fallthru
          _
        %s1082 = sand.u32 %s39, 1
        %s1083 = scalar_lea.sflag [#allocation4], %s1082
        %s1084 = sand.u32 %s408, 1
        %s1085 = smul.addr %s1084, 12
        %s1086 = scalar_lea.vmem [#allocation21], %s1085
        // Predicated region
        $region157: #{tpu_custom_call.1} parent=99 // pred_check
          %p1087 = pneg %p421
        $region158: #{tpu_custom_call.1} parent=99 // pred_check_branch
          %1089 = sbr.rel (%p1087) target = $region160
        $region159: #{tpu_custom_call.1} parent=99 // pred_region
          %1091 = dma.done %s1083, 192
        $region160: #{tpu_custom_call.1} parent=99 // pred_fallthru
          _
        %s1092 = sand.u32 %s39, 1
        %s1093 = scalar_lea.sflag [#allocation4], %s1092
        %s1094 = sand.u32 %s434, 1
        %s1095 = smul.addr %s1094, 2304
        %s1096 = scalar_lea.vmem [#allocation22], %s1095
        // Predicated region
        $region161: #{tpu_custom_call.1} parent=99 // pred_check
          %p1097 = pneg %p447
        $region162: #{tpu_custom_call.1} parent=99 // pred_check_branch
          %1099 = sbr.rel (%p1097) target = $region164
        $region163: #{tpu_custom_call.1} parent=99 // pred_region
          %1101 = dma.done %s1093, 36864
        $region164: #{tpu_custom_call.1} parent=99 // pred_fallthru
          _
        %s1102 = sand.u32 %s39, 1
        %s1103 = scalar_lea.sflag [#allocation4], %s1102
        %s1104 = sand.u32 %s460, 1
        %s1105 = smul.addr %s1104, 3
        %s1106 = scalar_lea.vmem [#allocation23], %s1105
        // Predicated region
        $region165: #{tpu_custom_call.1} parent=99 // pred_check
          %p1107 = pneg %p473
        $region166: #{tpu_custom_call.1} parent=99 // pred_check_branch
          %1109 = sbr.rel (%p1107) target = $region168
        $region167: #{tpu_custom_call.1} parent=99 // pred_region
          %1111 = dma.done %s1103, 48
        $region168: #{tpu_custom_call.1} parent=99 // pred_fallthru
          _
        %s1112 = sand.u32 %s39, 1
        %s1113 = scalar_lea.sflag [#allocation4], %s1112
        %s1114 = sand.u32 %s486, 1
        %s1115 = smul.addr %s1114, 3
        %s1116 = scalar_lea.vmem [#allocation24], %s1115
        // Predicated region
        $region169: #{tpu_custom_call.1} parent=99 // pred_check
          %p1117 = pneg %p499
        $region170: #{tpu_custom_call.1} parent=99 // pred_check_branch
          %1119 = sbr.rel (%p1117) target = $region172
        $region171: #{tpu_custom_call.1} parent=99 // pred_region
          %1121 = dma.done %s1113, 48
        $region172: #{tpu_custom_call.1} parent=99 // pred_fallthru
          _
        // Predicated region
        $region173: #{tpu_custom_call.1} parent=99 // pred_check
          %p1122 = pneg %p520
        $region174: #{tpu_custom_call.1} parent=99 // pred_check_branch
          %1124 = sbr.rel (%p1122) target = $region176
        $region175: #{tpu_custom_call.1} parent=99 // pred_region
          %1126 = dma.done [#allocation7], 48
        $region176: #{tpu_custom_call.1} parent=99 // pred_fallthru
          _
        // Predicated region
        $region177: #{tpu_custom_call.1} parent=99 // pred_check
          %p1127 = pneg %p541
        $region178: #{tpu_custom_call.1} parent=99 // pred_check_branch
          %1129 = sbr.rel (%p1127) target = $region180
        $region179: #{tpu_custom_call.1} parent=99 // pred_region
          %1131 = dma.done [#allocation10], 48
        $region180: #{tpu_custom_call.1} parent=99 // pred_fallthru
          _
        %s1132 = sand.u32 %s39, 1
        %s1133 = scalar_lea.sflag [#allocation4], %s1132
        %s1134 = sand.u32 %s59, 1
        %s1135 = smul.addr %s1134, 16
        %s1136 = scalar_lea.vmem [#allocation3], %s1135
        %p1137 = pneg %p72
        %p1138 = pneg %p69
        %p1139 = pneg %p93
        %p1140 = pneg %p90
        %p1141 = pneg %p114
        %p1142 = pneg %p111
        %p1143 = pneg %p135
        %p1144 = pneg %p132
        %s1145 = sand.u32 %s39, 1
        %s1146 = scalar_lea.sflag [#allocation4], %s1145
        %s1147 = sand.u32 %s148, 1
        %s1148 = smul.addr %s1147, 3
        %s1149 = scalar_lea.vmem [#allocation11], %s1148
        %p1150 = pneg %p161
        %p1151 = pneg %p158
        %s1152 = sand.u32 %s39, 1
        %s1153 = scalar_lea.sflag [#allocation4], %s1152
        %s1154 = sand.u32 %s174, 1
        %s1155 = smul.addr %s1154, 3
        %s1156 = scalar_lea.vmem [#allocation12], %s1155
        %p1157 = pneg %p187
        %p1158 = pneg %p184
        %s1159 = sand.u32 %s39, 1
        %s1160 = scalar_lea.sflag [#allocation4], %s1159
        %s1161 = sand.u32 %s200, 1
        %s1162 = smul.addr %s1161, 1728
        %s1163 = scalar_lea.vmem [#allocation13], %s1162
        %p1164 = pneg %p213
        %p1165 = pneg %p210
        %s1166 = sand.u32 %s39, 1
        %s1167 = scalar_lea.sflag [#allocation4], %s1166
        %s1168 = sand.u32 %s226, 1
        %s1169 = smul.addr %s1168, 9
        %s1170 = scalar_lea.vmem [#allocation14], %s1169
        %p1171 = pneg %p239
        %p1172 = pneg %p236
        %s1173 = sand.u32 %s39, 1
        %s1174 = scalar_lea.sflag [#allocation4], %s1173
        %s1175 = sand.u32 %s252, 1
        %s1176 = smul.addr %s1175, 576
        %s1177 = scalar_lea.vmem [#allocation15], %s1176
        %p1178 = pneg %p265
        %p1179 = pneg %p262
        %s1180 = sand.u32 %s39, 1
        %s1181 = scalar_lea.sflag [#allocation4], %s1180
        %s1182 = sand.u32 %s278, 1
        %s1183 = smul.addr %s1182, 3
        %s1184 = scalar_lea.vmem [#allocation16], %s1183
        %p1185 = pneg %p291
        %p1186 = pneg %p288
        %s1187 = sand.u32 %s39, 1
        %s1188 = scalar_lea.sflag [#allocation4], %s1187
        %s1189 = sand.u32 %s304, 1
        %s1190 = smul.addr %s1189, 3
        %s1191 = scalar_lea.vmem [#allocation17], %s1190
        %p1192 = pneg %p317
        %p1193 = pneg %p314
        %s1194 = sand.u32 %s39, 1
        %s1195 = scalar_lea.sflag [#allocation4], %s1194
        %s1196 = sand.u32 %s330, 1
        %s1197 = smul.addr %s1196, 3
        %s1198 = scalar_lea.vmem [#allocation18], %s1197
        %p1199 = pneg %p343
        %p1200 = pneg %p340
        %s1201 = sand.u32 %s39, 1
        %s1202 = scalar_lea.sflag [#allocation4], %s1201
        %s1203 = sand.u32 %s356, 1
        %s1204 = smul.addr %s1203, 3
        %s1205 = scalar_lea.vmem [#allocation19], %s1204
        %p1206 = pneg %p369
        %p1207 = pneg %p366
        %s1208 = sand.u32 %s39, 1
        %s1209 = scalar_lea.sflag [#allocation4], %s1208
        %s1210 = sand.u32 %s382, 1
        %s1211 = smul.addr %s1210, 2304
        %s1212 = scalar_lea.vmem [#allocation20], %s1211
        %p1213 = pneg %p395
        %p1214 = pneg %p392
        %s1215 = sand.u32 %s39, 1
        %s1216 = scalar_lea.sflag [#allocation4], %s1215
        %s1217 = sand.u32 %s408, 1
        %s1218 = smul.addr %s1217, 12
        %s1219 = scalar_lea.vmem [#allocation21], %s1218
        %p1220 = pneg %p421
        %p1221 = pneg %p418
        %s1222 = sand.u32 %s39, 1
        %s1223 = scalar_lea.sflag [#allocation4], %s1222
        %s1224 = sand.u32 %s434, 1
        %s1225 = smul.addr %s1224, 2304
        %s1226 = scalar_lea.vmem [#allocation22], %s1225
        %p1227 = pneg %p447
        %p1228 = pneg %p444
        %s1229 = sand.u32 %s39, 1
        %s1230 = scalar_lea.sflag [#allocation4], %s1229
        %s1231 = sand.u32 %s460, 1
        %s1232 = smul.addr %s1231, 3
        %s1233 = scalar_lea.vmem [#allocation23], %s1232
        %p1234 = pneg %p473
        %p1235 = pneg %p470
        %s1236 = sand.u32 %s39, 1
        %s1237 = scalar_lea.sflag [#allocation4], %s1236
        %s1238 = sand.u32 %s486, 1
        %s1239 = smul.addr %s1238, 3
        %s1240 = scalar_lea.vmem [#allocation24], %s1239
        %p1241 = pneg %p499
        %p1242 = pneg %p496
        %p1243 = pneg %p520
        %p1244 = pneg %p517
        %p1245 = pneg %p541
        %p1246 = pneg %p538
        %p1247 = pneg %p567
        %p1248 = pneg %p564
        %s1249 = sand.u32 %s554, 1
        %s1250 = scalar_lea.sflag [#allocation5], %s1249
        %s1251 = sand.u32 %s554, 1
        %s1252 = smul.addr %s1251, 3
        %s1253 = scalar_lea.vmem [#allocation27], %s1252
        %p1255 = scmp.eq.s32.totalorder %s44, 0
        // Predicated region
        $region181: #{tpu_custom_call.1} parent=99 // pred_check
          %p1256 = pneg %p1255
        $region182: #{tpu_custom_call.1} parent=99 // pred_check_branch
          %1258 = sbr.rel (%p1256) target = $region184
        $region183: #{tpu_custom_call.1} parent=99 // pred_region
          %1259 = vst [vmem:[#allocation2] sm:$0xff] 0.0
          %1260 = vst [vmem:[#allocation2 + $0x8] sm:$0xff] 0.0
          %1261 = vst [vmem:[#allocation2 + $0x10] sm:$0xff] 0.0
          %1262 = vst [vmem:[#allocation2 + $0x18] sm:$0xff] 0.0
          %1263 = vst [vmem:[#allocation2 + $0x20] sm:$0xff] 0.0
          %1264 = vst [vmem:[#allocation2 + $0x28] sm:$0xff] 0.0
          %1265 = vst [vmem:[#allocation2 + $0x30] sm:$0xff] 0.0
          %1266 = vst [vmem:[#allocation2 + $0x38] sm:$0xff] 0.0
          %1267 = vst [vmem:[#allocation2 + $0x40] sm:$0xff] 0.0
          %v1268 = vlaneseq
          %vm1269 = vcmp.ge.s32.totalorder %v1268, 0
          %vm1270 = vcmp.lt.s32.totalorder %v1268, 384
          %vm1271 = vmand %vm1269, %vm1270
          %1272 = vst.msk [vmem:[%s1253] sm:$0x7] %vm1271, 0.0
          %v1273 = vld [vmem:[%s961] sm:$0xff]
          %v1274 = vld [vmem:[%s961 + $0x8] sm:$0xff]
          %v1275 = vpack.c.bf16 %v1274, %v1273
          %v1276 = vld [vmem:[#allocation6] sm:$0xff]
          %v1277 = vld [vmem:[#allocation6 + $0x8] sm:$0xf]
          %v1278 = vld [vmem:[#allocation6 + $0xc] sm:$0xff]
          %v1279 = vld [vmem:[#allocation6 + $0x14] sm:$0xf]
          %v1280 = vld [vmem:[#allocation6 + $0x18] sm:$0xff]
          %v1281 = vld [vmem:[#allocation6 + $0x20] sm:$0xf]
          %v1282 = vld [vmem:[#allocation6 + $0x24] sm:$0xff]
          %v1283 = vld [vmem:[#allocation6 + $0x2c] sm:$0xf]
          %v1284 = vld [vmem:[#allocation6 + $0x30] sm:$0xff]
          %v1285 = vld [vmem:[#allocation6 + $0x38] sm:$0xf]
          %v1286 = vld [vmem:[#allocation6 + $0x3c] sm:$0xff]
          %v1287 = vld [vmem:[#allocation6 + $0x44] sm:$0xf]
          %v1288 = vld [vmem:[#allocation6 + $0x48] sm:$0xff]
          %v1289 = vld [vmem:[#allocation6 + $0x50] sm:$0xf]
          %v1290 = vld [vmem:[#allocation6 + $0x54] sm:$0xff]
          %v1291 = vld [vmem:[#allocation6 + $0x5c] sm:$0xf]
          %v1292 = vld [vmem:[#allocation8] sm:$0x7]
          %1293 = vst.msk [vmem:[#allocation2] ss:$8 sm:$0x7] %vm1271, %v1292
          %1294 = vst.msk [vmem:[#allocation2] ss:$8 sm:$0x0] %vm1271, %v1292
          %v1295 = vld [vmem:[#allocation9] sm:$0xff]
          %v1296 = vld [vmem:[#allocation9 + $0x8] sm:$0xff]
          %v1297 = vld [vmem:[#allocation9 + $0x10] sm:$0xff]
          %v1298 = vld [vmem:[#allocation9 + $0x18] sm:$0xff]
          %v1299 = vld [vmem:[#allocation9 + $0x20] sm:$0xff]
          %v1300 = vld [vmem:[#allocation9 + $0x28] sm:$0xff]
          %v1317 = vunpack.c.l.b16 %v1276
          %v1318 = vunpack.c.h.b16 %v1276
          %v1319 = vunpack.c.l.b16 %v1277
          %v1320 = vunpack.c.l.b16 %v1278
          %v1321 = vunpack.c.h.b16 %v1278
          %v1322 = vunpack.c.l.b16 %v1279
          %v1323 = vunpack.c.l.b16 %v1280
          %v1324 = vunpack.c.h.b16 %v1280
          %v1325 = vunpack.c.l.b16 %v1281
          %v1326 = vunpack.c.l.b16 %v1282
          %v1327 = vunpack.c.h.b16 %v1282
          %v1328 = vunpack.c.l.b16 %v1283
          %v1329 = vunpack.c.l.b16 %v1284
          %v1330 = vunpack.c.h.b16 %v1284
          %v1331 = vunpack.c.l.b16 %v1285
          %v1332 = vunpack.c.l.b16 %v1286
          %v1333 = vunpack.c.h.b16 %v1286
          %v1334 = vunpack.c.l.b16 %v1287
          %v1335 = vunpack.c.l.b16 %v1288
          %v1336 = vunpack.c.h.b16 %v1288
          %v1337 = vunpack.c.l.b16 %v1289
          %v1338 = vunpack.c.l.b16 %v1290
          %v1339 = vunpack.c.h.b16 %v1290
          %v1340 = vunpack.c.l.b16 %v1291
          %v1341 = vpack.c.b16 %v1320, %v1317
          %v1342 = vpack.c.b16 %v1321, %v1318
          %v1343 = vpack.c.b16 %v1322, %v1319
          %v1344 = vpack.c.b16 %v1326, %v1323
          %v1345 = vpack.c.b16 %v1327, %v1324
          %v1346 = vpack.c.b16 %v1328, %v1325
          %v1347 = vpack.c.b16 %v1332, %v1329
          %v1348 = vpack.c.b16 %v1333, %v1330
          %v1349 = vpack.c.b16 %v1334, %v1331
          %v1350 = vpack.c.b16 %v1338, %v1335
          %v1351 = vpack.c.b16 %v1339, %v1336
          %v1352 = vpack.c.b16 %v1340, %v1337
          %vm1365 = vcmask 523264
          %v1367 = vsel %vm1365, %v1275, 0
          %1369 = vmatpush.bf16.msra.mxu0 0
          %1370 = vmatpush.bf16.msra.mxu0 0
          %1371 = vmatpush.bf16.msra.mxu0 0
          %1372 = vmatpush.bf16.msra.mxu0 0
          %1373 = vmatpush.bf16.msra.mxu0 %v1350
          %1374 = vmatpush.bf16.msra.mxu0 %v1347
          %1375 = vmatpush.bf16.msra.mxu0 %v1344
          %1376 = vmatpush.bf16.msra.mxu0 %v1341
          %1377 = vmatmul.bf16.gmra.mxu0 %v1367
          %v1378 = vpop.f32.mrf.mxu0
          %v1379 = vadd.f32 %v1295, %v1378
          %v1380 = vpop.f32.mrf.mxu0
          %v1381 = vadd.f32 %v1298, %v1380
          %1382 = vdwg.mxu0
          %1383 = vmatpush.bf16.msra.mxu0 0
          %1384 = vmatpush.bf16.msra.mxu0 0
          %1385 = vmatpush.bf16.msra.mxu0 0
          %1386 = vmatpush.bf16.msra.mxu0 0
          %1387 = vmatpush.bf16.msra.mxu0 %v1351
          %1388 = vmatpush.bf16.msra.mxu0 %v1348
          %1389 = vmatpush.bf16.msra.mxu0 %v1345
          %1390 = vmatpush.bf16.msra.mxu0 %v1342
          %1391 = vmatmul.bf16.gmra.mxu0 %v1367
          %v1392 = vpop.f32.mrf.mxu0
          %v1393 = vadd.f32 %v1296, %v1392
          %v1394 = vpop.f32.mrf.mxu0
          %v1395 = vadd.f32 %v1299, %v1394
          %1396 = vdwg.mxu0
          %1397 = vmatpush.bf16.msra.mxu0 0
          %1398 = vmatpush.bf16.msra.mxu0 0
          %1399 = vmatpush.bf16.msra.mxu0 0
          %1400 = vmatpush.bf16.msra.mxu0 0
          %1401 = vmatpush.bf16.msra.mxu0 %v1352
          %1402 = vmatpush.bf16.msra.mxu0 %v1349
          %1403 = vmatpush.bf16.msra.mxu0 %v1346
          %1404 = vmatpush.bf16.msra.mxu0 %v1343
          %1405 = vmatmul.bf16.gmra.mxu0 %v1367
          %v1406 = vpop.f32.mrf.mxu0
          %v1407 = vadd.f32 %v1297, %v1406
          %v1408 = vpop.f32.mrf.mxu0
          %v1409 = vadd.f32 %v1300, %v1408
          %1410 = vdwg.mxu0
          %vm1417 = vcmask 1040384
          %v1418 = vrot.slane %v1379, 7
          %v1419 = vrot.slane %v1393, 7
          %v1420 = vrot.slane %v1407, 7
          %v1421 = vrot.slane %v1381, 7
          %v1422 = vsel %vm1417, %v1418, %v1421
          %v1423 = vrot.slane %v1395, 7
          %v1424 = vsel %vm1417, %v1419, %v1423
          %v1425 = vrot.slane %v1409, 7
          %v1426 = vsel %vm1417, %v1420, %v1425
          %1436 = vst [vmem:[#allocation2] sm:$0xfe] %v1418
          %1437 = vst [vmem:[#allocation2 + $0x8] sm:$0xfe] %v1419
          %1438 = vst [vmem:[#allocation2 + $0x10] sm:$0xfe] %v1420
          %1439 = vst [vmem:[#allocation2 + $0x18] sm:$0xff] %v1422
          %1440 = vst [vmem:[#allocation2 + $0x20] sm:$0xff] %v1424
          %1441 = vst [vmem:[#allocation2 + $0x28] sm:$0xff] %v1426
          %1442 = vst [vmem:[#allocation2 + $0x30] sm:$0x1] %v1421
          %1443 = vst [vmem:[#allocation2 + $0x38] sm:$0x1] %v1423
          %1444 = vst [vmem:[#allocation2 + $0x40] sm:$0x1] %v1425
        $region184: #{tpu_custom_call.1} parent=99 // pred_fallthru
          _
        %v1445 = vld [vmem:[#allocation2] sm:$0xff]
        %v1446 = vld [vmem:[#allocation2 + $0x8] sm:$0xff]
        %v1447 = vld [vmem:[#allocation2 + $0x10] sm:$0xff]
        %v1448 = vld [vmem:[#allocation2 + $0x18] sm:$0xff]
        %v1449 = vld [vmem:[#allocation2 + $0x20] sm:$0xff]
        %v1450 = vld [vmem:[#allocation2 + $0x28] sm:$0xff]
        %v1451 = vld [vmem:[#allocation2 + $0x30] sm:$0xff]
        %v1452 = vld [vmem:[#allocation2 + $0x38] sm:$0xff]
        %v1453 = vld [vmem:[#allocation2 + $0x40] sm:$0xff]
        %v1454 = vadd.f32 %v1445, %v1446
        %v1455 = vadd.f32 %v1454, %v1447
        %1456 = vadd.xlane.f32.xlu0 %v1455
        %v1457 = vpop.xlane.xlu0 %1456
        %v1458 = vadd.f32 %v1448, %v1449
        %v1459 = vadd.f32 %v1458, %v1450
        %1460 = vadd.xlane.f32.xlu0 %v1459
        %v1461 = vpop.xlane.xlu0 %1460
        %v1462 = vadd.f32 %v1451, %v1452
        %v1463 = vadd.f32 %v1462, %v1453
        %1464 = vadd.xlane.f32.xlu0 %v1463
        %v1465 = vpop.xlane.xlu0 %1464
        %v1466 = vrcp.pop 384.0
        %v1467 = vmul.f32 384.0, %v1466
        %v1468 = vsub.f32 1.0, %v1467
        %v1469 = vmul.f32 %v1466, %v1468
        %v1470 = vadd.f32 %v1466, %v1469
        %vm1471 = vweird.f32 %v1466
        %v1472 = vsel %vm1471, %v1466, %v1470
        %v1473 = vmul.f32 %v1457, %v1472
        %v1474 = vmul.f32 %v1461, %v1472
        %v1475 = vmul.f32 %v1465, %v1472
        %v1476 = vsub.f32 %v1445, %v1473
        %v1477 = vsub.f32 %v1446, %v1473
        %v1478 = vsub.f32 %v1447, %v1473
        %v1479 = vsub.f32 %v1448, %v1474
        %v1480 = vsub.f32 %v1449, %v1474
        %v1481 = vsub.f32 %v1450, %v1474
        %v1482 = vsub.f32 %v1451, %v1475
        %v1483 = vsub.f32 %v1452, %v1475
        %v1484 = vsub.f32 %v1453, %v1475
        %v1485 = vmul.f32 %v1476, %v1476
        %v1486 = vmul.f32 %v1477, %v1477
        %v1487 = vmul.f32 %v1478, %v1478
        %v1488 = vmul.f32 %v1479, %v1479
        %v1489 = vmul.f32 %v1480, %v1480
        %v1490 = vmul.f32 %v1481, %v1481
        %v1491 = vmul.f32 %v1482, %v1482
        %v1492 = vmul.f32 %v1483, %v1483
        %v1493 = vmul.f32 %v1484, %v1484
        %v1494 = vadd.f32 %v1485, %v1486
        %v1495 = vadd.f32 %v1494, %v1487
        %1496 = vadd.xlane.f32.xlu0 %v1495
        %v1497 = vpop.xlane.xlu0 %1496
        %v1498 = vadd.f32 %v1488, %v1489
        %v1499 = vadd.f32 %v1498, %v1490
        %1500 = vadd.xlane.f32.xlu0 %v1499
        %v1501 = vpop.xlane.xlu0 %1500
        %v1502 = vadd.f32 %v1491, %v1492
        %v1503 = vadd.f32 %v1502, %v1493
        %1504 = vadd.xlane.f32.xlu0 %v1503
        %v1505 = vpop.xlane.xlu0 %1504
        %v1506 = vmul.f32 %v1497, %v1472
        %v1507 = vmul.f32 %v1501, %v1472
        %v1508 = vmul.f32 %v1505, %v1472
        %v1509 = vadd.f32 %v1506, 1e-06
        %v1510 = vadd.f32 %v1507, 1e-06
        %v1511 = vadd.f32 %v1508, 1e-06
        %v1512 = vrsqrt.pop %v1509
        %v1513 = vmul.f32 %v1512, %v1509
        %v1514 = vmul.f32 %v1513, %v1512
        %v1515 = vmul.f32 0.5, %v1514
        %v1516 = vsub.f32 1.5, %v1515
        %v1517 = vmul.f32 %v1512, %v1516
        %vm1518 = vweird.f32 %v1509
        %vm1519 = vweird.f32 %v1512
        %vm1520 = vmor %vm1518, %vm1519
        %v1521 = vsel %vm1520, %v1512, %v1517
        %v1522 = vrsqrt.pop %v1510
        %v1523 = vmul.f32 %v1522, %v1510
        %v1524 = vmul.f32 %v1523, %v1522
        %v1525 = vmul.f32 0.5, %v1524
        %v1526 = vsub.f32 1.5, %v1525
        %v1527 = vmul.f32 %v1522, %v1526
        %vm1528 = vweird.f32 %v1510
        %vm1529 = vweird.f32 %v1522
        %vm1530 = vmor %vm1528, %vm1529
        %v1531 = vsel %vm1530, %v1522, %v1527
        %v1532 = vrsqrt.pop %v1511
        %v1533 = vmul.f32 %v1532, %v1511
        %v1534 = vmul.f32 %v1533, %v1532
        %v1535 = vmul.f32 0.5, %v1534
        %v1536 = vsub.f32 1.5, %v1535
        %v1537 = vmul.f32 %v1532, %v1536
        %vm1538 = vweird.f32 %v1511
        %vm1539 = vweird.f32 %v1532
        %vm1540 = vmor %vm1538, %vm1539
        %v1541 = vsel %vm1540, %v1532, %v1537
        %v1542 = vmul.f32 %v1476, %v1521
        %v1543 = vmul.f32 %v1477, %v1521
        %v1544 = vmul.f32 %v1478, %v1521
        %v1545 = vmul.f32 %v1479, %v1531
        %v1546 = vmul.f32 %v1480, %v1531
        %v1547 = vmul.f32 %v1481, %v1531
        %v1548 = vmul.f32 %v1482, %v1541
        %v1549 = vmul.f32 %v1483, %v1541
        %v1550 = vmul.f32 %v1484, %v1541
        %v1551 = vld [vmem:[%s986] sm:$0x7]
        %v1553 = vperm.slane %v1551, 0
        %v1554 = vperm.slane %v1551, 1
        %v1555 = vperm.slane %v1551, 2
        %v1559 = vmul.f32 %v1542, %v1553
        %v1560 = vmul.f32 %v1543, %v1554
        %v1561 = vmul.f32 %v1544, %v1555
        %v1562 = vmul.f32 %v1545, %v1553
        %v1563 = vmul.f32 %v1546, %v1554
        %v1564 = vmul.f32 %v1547, %v1555
        %v1565 = vmul.f32 %v1548, %v1553
        %v1566 = vmul.f32 %v1549, %v1554
        %v1567 = vmul.f32 %v1550, %v1555
        %v1568 = vld [vmem:[%s996] sm:$0x7]
        %v1570 = vperm.slane %v1568, 0
        %v1571 = vperm.slane %v1568, 1
        %v1572 = vperm.slane %v1568, 2
        %v1576 = vadd.f32 %v1559, %v1570
        %v1577 = vadd.f32 %v1560, %v1571
        %v1578 = vadd.f32 %v1561, %v1572
        %v1579 = vadd.f32 %v1562, %v1570
        %v1580 = vadd.f32 %v1563, %v1571
        %v1581 = vadd.f32 %v1564, %v1572
        %v1582 = vadd.f32 %v1565, %v1570
        %v1583 = vadd.f32 %v1566, %v1571
        %v1584 = vadd.f32 %v1567, %v1572
        %v1585 = vpack.c.bf16 %v1579, %v1576
        %v1586 = vpack.c.bf16 %v1580, %v1577
        %v1587 = vpack.c.bf16 %v1581, %v1578
        %v1588 = vpack.c.bf16 %v1582, %v1582
        %v1589 = vpack.c.bf16 %v1583, %v1583
        %v1590 = vpack.c.bf16 %v1584, %v1584
        %v1591 = vld [vmem:[%s1006] sm:$0xff]
        %v1592 = vld [vmem:[%s1006 + $0x8] sm:$0xff]
        %v1593 = vld [vmem:[%s1006 + $0x10] sm:$0xff]
        %v1594 = vld [vmem:[%s1006 + $0x18] sm:$0xff]
        %v1595 = vld [vmem:[%s1006 + $0x20] sm:$0xf]
        %v1596 = vld [vmem:[%s1006 + $0x24] sm:$0xff]
        %v1597 = vld [vmem:[%s1006 + $0x2c] sm:$0xff]
        %v1598 = vld [vmem:[%s1006 + $0x34] sm:$0xff]
        %v1599 = vld [vmem:[%s1006 + $0x3c] sm:$0xff]
        %v1600 = vld [vmem:[%s1006 + $0x44] sm:$0xf]
        %v1601 = vld [vmem:[%s1006 + $0x48] sm:$0xff]
        %v1602 = vld [vmem:[%s1006 + $0x50] sm:$0xff]
        %v1603 = vld [vmem:[%s1006 + $0x58] sm:$0xff]
        %v1604 = vld [vmem:[%s1006 + $0x60] sm:$0xff]
        %v1605 = vld [vmem:[%s1006 + $0x68] sm:$0xf]
        %v1606 = vld [vmem:[%s1006 + $0x6c] sm:$0xff]
        %v1607 = vld [vmem:[%s1006 + $0x74] sm:$0xff]
        %v1608 = vld [vmem:[%s1006 + $0x7c] sm:$0xff]
        %v1609 = vld [vmem:[%s1006 + $0x84] sm:$0xff]
        %v1610 = vld [vmem:[%s1006 + $0x8c] sm:$0xf]
        %v1611 = vld [vmem:[%s1006 + $0x90] sm:$0xff]
        %v1612 = vld [vmem:[%s1006 + $0x98] sm:$0xff]
        %v1613 = vld [vmem:[%s1006 + $0xa0] sm:$0xff]
        %v1614 = vld [vmem:[%s1006 + $0xa8] sm:$0xff]
        %v1615 = vld [vmem:[%s1006 + $0xb0] sm:$0xf]
        %v1616 = vld [vmem:[%s1006 + $0xb4] sm:$0xff]
        %v1617 = vld [vmem:[%s1006 + $0xbc] sm:$0xff]
        %v1618 = vld [vmem:[%s1006 + $0xc4] sm:$0xff]
        %v1619 = vld [vmem:[%s1006 + $0xcc] sm:$0xff]
        %v1620 = vld [vmem:[%s1006 + $0xd4] sm:$0xf]
        %v1621 = vld [vmem:[%s1006 + $0xd8] sm:$0xff]
        %v1622 = vld [vmem:[%s1006 + $0xe0] sm:$0xff]
        %v1623 = vld [vmem:[%s1006 + $0xe8] sm:$0xff]
        %v1624 = vld [vmem:[%s1006 + $0xf0] sm:$0xff]
        %v1625 = vld [vmem:[%s1006 + $0xf8] sm:$0xf]
        %v1626 = vld [vmem:[%s1006 + $0xfc] sm:$0xff]
        %v1627 = vld [vmem:[%s1006 + $0x104] sm:$0xff]
        %v1628 = vld [vmem:[%s1006 + $0x10c] sm:$0xff]
        %v1629 = vld [vmem:[%s1006 + $0x114] sm:$0xff]
        %v1630 = vld [vmem:[%s1006 + $0x11c] sm:$0xf]
        %v1631 = vld [vmem:[%s1006 + $0x120] sm:$0xff]
        %v1632 = vld [vmem:[%s1006 + $0x128] sm:$0xff]
        %v1633 = vld [vmem:[%s1006 + $0x130] sm:$0xff]
        %v1634 = vld [vmem:[%s1006 + $0x138] sm:$0xff]
        %v1635 = vld [vmem:[%s1006 + $0x140] sm:$0xf]
        %v1636 = vld [vmem:[%s1006 + $0x144] sm:$0xff]
        %v1637 = vld [vmem:[%s1006 + $0x14c] sm:$0xff]
        %v1638 = vld [vmem:[%s1006 + $0x154] sm:$0xff]
        %v1639 = vld [vmem:[%s1006 + $0x15c] sm:$0xff]
        %v1640 = vld [vmem:[%s1006 + $0x164] sm:$0xf]
        %v1641 = vld [vmem:[%s1006 + $0x168] sm:$0xff]
        %v1642 = vld [vmem:[%s1006 + $0x170] sm:$0xff]
        %v1643 = vld [vmem:[%s1006 + $0x178] sm:$0xff]
        %v1644 = vld [vmem:[%s1006 + $0x180] sm:$0xff]
        %v1645 = vld [vmem:[%s1006 + $0x188] sm:$0xf]
        %v1646 = vld [vmem:[%s1006 + $0x18c] sm:$0xff]
        %v1647 = vld [vmem:[%s1006 + $0x194] sm:$0xff]
        %v1648 = vld [vmem:[%s1006 + $0x19c] sm:$0xff]
        %v1649 = vld [vmem:[%s1006 + $0x1a4] sm:$0xff]
        %v1650 = vld [vmem:[%s1006 + $0x1ac] sm:$0xf]
        %v1651 = vld [vmem:[%s1006 + $0x1b0] sm:$0xff]
        %v1652 = vld [vmem:[%s1006 + $0x1b8] sm:$0xff]
        %v1653 = vld [vmem:[%s1006 + $0x1c0] sm:$0xff]
        %v1654 = vld [vmem:[%s1006 + $0x1c8] sm:$0xff]
        %v1655 = vld [vmem:[%s1006 + $0x1d0] sm:$0xf]
        %v1656 = vld [vmem:[%s1006 + $0x1d4] sm:$0xff]
        %v1657 = vld [vmem:[%s1006 + $0x1dc] sm:$0xff]
        %v1658 = vld [vmem:[%s1006 + $0x1e4] sm:$0xff]
        %v1659 = vld [vmem:[%s1006 + $0x1ec] sm:$0xff]
        %v1660 = vld [vmem:[%s1006 + $0x1f4] sm:$0xf]
        %v1661 = vld [vmem:[%s1006 + $0x1f8] sm:$0xff]
        %v1662 = vld [vmem:[%s1006 + $0x200] sm:$0xff]
        %v1663 = vld [vmem:[%s1006 + $0x208] sm:$0xff]
        %v1664 = vld [vmem:[%s1006 + $0x210] sm:$0xff]
        %v1665 = vld [vmem:[%s1006 + $0x218] sm:$0xf]
        %v1666 = vld [vmem:[%s1006 + $0x21c] sm:$0xff]
        %v1667 = vld [vmem:[%s1006 + $0x224] sm:$0xff]
        %v1668 = vld [vmem:[%s1006 + $0x22c] sm:$0xff]
        %v1669 = vld [vmem:[%s1006 + $0x234] sm:$0xff]
        %v1670 = vld [vmem:[%s1006 + $0x23c] sm:$0xf]
        %v1671 = vld [vmem:[%s1006 + $0x240] sm:$0xff]
        %v1672 = vld [vmem:[%s1006 + $0x248] sm:$0xff]
        %v1673 = vld [vmem:[%s1006 + $0x250] sm:$0xff]
        %v1674 = vld [vmem:[%s1006 + $0x258] sm:$0xff]
        %v1675 = vld [vmem:[%s1006 + $0x260] sm:$0xf]
        %v1676 = vld [vmem:[%s1006 + $0x264] sm:$0xff]
        %v1677 = vld [vmem:[%s1006 + $0x26c] sm:$0xff]
        %v1678 = vld [vmem:[%s1006 + $0x274] sm:$0xff]
        %v1679 = vld [vmem:[%s1006 + $0x27c] sm:$0xff]
        %v1680 = vld [vmem:[%s1006 + $0x284] sm:$0xf]
        %v1681 = vld [vmem:[%s1006 + $0x288] sm:$0xff]
        %v1682 = vld [vmem:[%s1006 + $0x290] sm:$0xff]
        %v1683 = vld [vmem:[%s1006 + $0x298] sm:$0xff]
        %v1684 = vld [vmem:[%s1006 + $0x2a0] sm:$0xff]
        %v1685 = vld [vmem:[%s1006 + $0x2a8] sm:$0xf]
        %v1686 = vld [vmem:[%s1006 + $0x2ac] sm:$0xff]
        %v1687 = vld [vmem:[%s1006 + $0x2b4] sm:$0xff]
        %v1688 = vld [vmem:[%s1006 + $0x2bc] sm:$0xff]
        %v1689 = vld [vmem:[%s1006 + $0x2c4] sm:$0xff]
        %v1690 = vld [vmem:[%s1006 + $0x2cc] sm:$0xf]
        %v1691 = vld [vmem:[%s1006 + $0x2d0] sm:$0xff]
        %v1692 = vld [vmem:[%s1006 + $0x2d8] sm:$0xff]
        %v1693 = vld [vmem:[%s1006 + $0x2e0] sm:$0xff]
        %v1694 = vld [vmem:[%s1006 + $0x2e8] sm:$0xff]
        %v1695 = vld [vmem:[%s1006 + $0x2f0] sm:$0xf]
        %v1696 = vld [vmem:[%s1006 + $0x2f4] sm:$0xff]
        %v1697 = vld [vmem:[%s1006 + $0x2fc] sm:$0xff]
        %v1698 = vld [vmem:[%s1006 + $0x304] sm:$0xff]
        %v1699 = vld [vmem:[%s1006 + $0x30c] sm:$0xff]
        %v1700 = vld [vmem:[%s1006 + $0x314] sm:$0xf]
        %v1701 = vld [vmem:[%s1006 + $0x318] sm:$0xff]
        %v1702 = vld [vmem:[%s1006 + $0x320] sm:$0xff]
        %v1703 = vld [vmem:[%s1006 + $0x328] sm:$0xff]
        %v1704 = vld [vmem:[%s1006 + $0x330] sm:$0xff]
        %v1705 = vld [vmem:[%s1006 + $0x338] sm:$0xf]
        %v1706 = vld [vmem:[%s1006 + $0x33c] sm:$0xff]
        %v1707 = vld [vmem:[%s1006 + $0x344] sm:$0xff]
        %v1708 = vld [vmem:[%s1006 + $0x34c] sm:$0xff]
        %v1709 = vld [vmem:[%s1006 + $0x354] sm:$0xff]
        %v1710 = vld [vmem:[%s1006 + $0x35c] sm:$0xf]
        %v1711 = vld [vmem:[%s1006 + $0x360] sm:$0xff]
        %v1712 = vld [vmem:[%s1006 + $0x368] sm:$0xff]
        %v1713 = vld [vmem:[%s1006 + $0x370] sm:$0xff]
        %v1714 = vld [vmem:[%s1006 + $0x378] sm:$0xff]
        %v1715 = vld [vmem:[%s1006 + $0x380] sm:$0xf]
        %v1716 = vld [vmem:[%s1006 + $0x384] sm:$0xff]
        %v1717 = vld [vmem:[%s1006 + $0x38c] sm:$0xff]
        %v1718 = vld [vmem:[%s1006 + $0x394] sm:$0xff]
        %v1719 = vld [vmem:[%s1006 + $0x39c] sm:$0xff]
        %v1720 = vld [vmem:[%s1006 + $0x3a4] sm:$0xf]
        %v1721 = vld [vmem:[%s1006 + $0x3a8] sm:$0xff]
        %v1722 = vld [vmem:[%s1006 + $0x3b0] sm:$0xff]
        %v1723 = vld [vmem:[%s1006 + $0x3b8] sm:$0xff]
        %v1724 = vld [vmem:[%s1006 + $0x3c0] sm:$0xff]
        %v1725 = vld [vmem:[%s1006 + $0x3c8] sm:$0xf]
        %v1726 = vld [vmem:[%s1006 + $0x3cc] sm:$0xff]
        %v1727 = vld [vmem:[%s1006 + $0x3d4] sm:$0xff]
        %v1728 = vld [vmem:[%s1006 + $0x3dc] sm:$0xff]
        %v1729 = vld [vmem:[%s1006 + $0x3e4] sm:$0xff]
        %v1730 = vld [vmem:[%s1006 + $0x3ec] sm:$0xf]
        %v1731 = vld [vmem:[%s1006 + $0x3f0] sm:$0xff]
        %v1732 = vld [vmem:[%s1006 + $0x3f8] sm:$0xff]
        %v1733 = vld [vmem:[%s1006 + $0x400] sm:$0xff]
        %v1734 = vld [vmem:[%s1006 + $0x408] sm:$0xff]
        %v1735 = vld [vmem:[%s1006 + $0x410] sm:$0xf]
        %v1736 = vld [vmem:[%s1006 + $0x414] sm:$0xff]
        %v1737 = vld [vmem:[%s1006 + $0x41c] sm:$0xff]
        %v1738 = vld [vmem:[%s1006 + $0x424] sm:$0xff]
        %v1739 = vld [vmem:[%s1006 + $0x42c] sm:$0xff]
        %v1740 = vld [vmem:[%s1006 + $0x434] sm:$0xf]
        %v1741 = vld [vmem:[%s1006 + $0x438] sm:$0xff]
        %v1742 = vld [vmem:[%s1006 + $0x440] sm:$0xff]
        %v1743 = vld [vmem:[%s1006 + $0x448] sm:$0xff]
        %v1744 = vld [vmem:[%s1006 + $0x450] sm:$0xff]
        %v1745 = vld [vmem:[%s1006 + $0x458] sm:$0xf]
        %v1746 = vld [vmem:[%s1006 + $0x45c] sm:$0xff]
        %v1747 = vld [vmem:[%s1006 + $0x464] sm:$0xff]
        %v1748 = vld [vmem:[%s1006 + $0x46c] sm:$0xff]
        %v1749 = vld [vmem:[%s1006 + $0x474] sm:$0xff]
        %v1750 = vld [vmem:[%s1006 + $0x47c] sm:$0xf]
        %v1751 = vld [vmem:[%s1006 + $0x480] sm:$0xff]
        %v1752 = vld [vmem:[%s1006 + $0x488] sm:$0xff]
        %v1753 = vld [vmem:[%s1006 + $0x490] sm:$0xff]
        %v1754 = vld [vmem:[%s1006 + $0x498] sm:$0xff]
        %v1755 = vld [vmem:[%s1006 + $0x4a0] sm:$0xf]
        %v1756 = vld [vmem:[%s1006 + $0x4a4] sm:$0xff]
        %v1757 = vld [vmem:[%s1006 + $0x4ac] sm:$0xff]
        %v1758 = vld [vmem:[%s1006 + $0x4b4] sm:$0xff]
        %v1759 = vld [vmem:[%s1006 + $0x4bc] sm:$0xff]
        %v1760 = vld [vmem:[%s1006 + $0x4c4] sm:$0xf]
        %v1761 = vld [vmem:[%s1006 + $0x4c8] sm:$0xff]
        %v1762 = vld [vmem:[%s1006 + $0x4d0] sm:$0xff]
        %v1763 = vld [vmem:[%s1006 + $0x4d8] sm:$0xff]
        %v1764 = vld [vmem:[%s1006 + $0x4e0] sm:$0xff]
        %v1765 = vld [vmem:[%s1006 + $0x4e8] sm:$0xf]
        %v1766 = vld [vmem:[%s1006 + $0x4ec] sm:$0xff]
        %v1767 = vld [vmem:[%s1006 + $0x4f4] sm:$0xff]
        %v1768 = vld [vmem:[%s1006 + $0x4fc] sm:$0xff]
        %v1769 = vld [vmem:[%s1006 + $0x504] sm:$0xff]
        %v1770 = vld [vmem:[%s1006 + $0x50c] sm:$0xf]
        %v1771 = vld [vmem:[%s1006 + $0x510] sm:$0xff]
        %v1772 = vld [vmem:[%s1006 + $0x518] sm:$0xff]
        %v1773 = vld [vmem:[%s1006 + $0x520] sm:$0xff]
        %v1774 = vld [vmem:[%s1006 + $0x528] sm:$0xff]
        %v1775 = vld [vmem:[%s1006 + $0x530] sm:$0xf]
        %v1776 = vld [vmem:[%s1006 + $0x534] sm:$0xff]
        %v1777 = vld [vmem:[%s1006 + $0x53c] sm:$0xff]
        %v1778 = vld [vmem:[%s1006 + $0x544] sm:$0xff]
        %v1779 = vld [vmem:[%s1006 + $0x54c] sm:$0xff]
        %v1780 = vld [vmem:[%s1006 + $0x554] sm:$0xf]
        %v1781 = vld [vmem:[%s1006 + $0x558] sm:$0xff]
        %v1782 = vld [vmem:[%s1006 + $0x560] sm:$0xff]
        %v1783 = vld [vmem:[%s1006 + $0x568] sm:$0xff]
        %v1784 = vld [vmem:[%s1006 + $0x570] sm:$0xff]
        %v1785 = vld [vmem:[%s1006 + $0x578] sm:$0xf]
        %v1786 = vld [vmem:[%s1006 + $0x57c] sm:$0xff]
        %v1787 = vld [vmem:[%s1006 + $0x584] sm:$0xff]
        %v1788 = vld [vmem:[%s1006 + $0x58c] sm:$0xff]
        %v1789 = vld [vmem:[%s1006 + $0x594] sm:$0xff]
        %v1790 = vld [vmem:[%s1006 + $0x59c] sm:$0xf]
        %v1791 = vld [vmem:[%s1006 + $0x5a0] sm:$0xff]
        %v1792 = vld [vmem:[%s1006 + $0x5a8] sm:$0xff]
        %v1793 = vld [vmem:[%s1006 + $0x5b0] sm:$0xff]
        %v1794 = vld [vmem:[%s1006 + $0x5b8] sm:$0xff]
        %v1795 = vld [vmem:[%s1006 + $0x5c0] sm:$0xf]
        %v1796 = vld [vmem:[%s1006 + $0x5c4] sm:$0xff]
        %v1797 = vld [vmem:[%s1006 + $0x5cc] sm:$0xff]
        %v1798 = vld [vmem:[%s1006 + $0x5d4] sm:$0xff]
        %v1799 = vld [vmem:[%s1006 + $0x5dc] sm:$0xff]
        %v1800 = vld [vmem:[%s1006 + $0x5e4] sm:$0xf]
        %v1801 = vld [vmem:[%s1006 + $0x5e8] sm:$0xff]
        %v1802 = vld [vmem:[%s1006 + $0x5f0] sm:$0xff]
        %v1803 = vld [vmem:[%s1006 + $0x5f8] sm:$0xff]
        %v1804 = vld [vmem:[%s1006 + $0x600] sm:$0xff]
        %v1805 = vld [vmem:[%s1006 + $0x608] sm:$0xf]
        %v1806 = vld [vmem:[%s1006 + $0x60c] sm:$0xff]
        %v1807 = vld [vmem:[%s1006 + $0x614] sm:$0xff]
        %v1808 = vld [vmem:[%s1006 + $0x61c] sm:$0xff]
        %v1809 = vld [vmem:[%s1006 + $0x624] sm:$0xff]
        %v1810 = vld [vmem:[%s1006 + $0x62c] sm:$0xf]
        %v1811 = vld [vmem:[%s1006 + $0x630] sm:$0xff]
        %v1812 = vld [vmem:[%s1006 + $0x638] sm:$0xff]
        %v1813 = vld [vmem:[%s1006 + $0x640] sm:$0xff]
        %v1814 = vld [vmem:[%s1006 + $0x648] sm:$0xff]
        %v1815 = vld [vmem:[%s1006 + $0x650] sm:$0xf]
        %v1816 = vld [vmem:[%s1006 + $0x654] sm:$0xff]
        %v1817 = vld [vmem:[%s1006 + $0x65c] sm:$0xff]
        %v1818 = vld [vmem:[%s1006 + $0x664] sm:$0xff]
        %v1819 = vld [vmem:[%s1006 + $0x66c] sm:$0xff]
        %v1820 = vld [vmem:[%s1006 + $0x674] sm:$0xf]
        %v1821 = vld [vmem:[%s1006 + $0x678] sm:$0xff]
        %v1822 = vld [vmem:[%s1006 + $0x680] sm:$0xff]
        %v1823 = vld [vmem:[%s1006 + $0x688] sm:$0xff]
        %v1824 = vld [vmem:[%s1006 + $0x690] sm:$0xff]
        %v1825 = vld [vmem:[%s1006 + $0x698] sm:$0xf]
        %v1826 = vld [vmem:[%s1006 + $0x69c] sm:$0xff]
        %v1827 = vld [vmem:[%s1006 + $0x6a4] sm:$0xff]
        %v1828 = vld [vmem:[%s1006 + $0x6ac] sm:$0xff]
        %v1829 = vld [vmem:[%s1006 + $0x6b4] sm:$0xff]
        %v1830 = vld [vmem:[%s1006 + $0x6bc] sm:$0xf]
        %v1831 = vld [vmem:[%s1016] sm:$0xff]
        %v1832 = vld [vmem:[%s1016 + $0x8] sm:$0x1]
        %v1835 = vperm.slane %v1831, 0
        %v1836 = vperm.slane %v1831, 1
        %v1837 = vperm.slane %v1831, 2
        %v1838 = vperm.slane %v1831, 3
        %v1839 = vperm.slane %v1831, 4
        %v1840 = vperm.slane %v1831, 5
        %v1841 = vperm.slane %v1831, 6
        %v1842 = vperm.slane %v1831, 7
        %v1843 = vperm.slane %v1832, 0
        %v2093 = vunpack.c.l.b16 %v1591
        %v2094 = vunpack.c.h.b16 %v1591
        %v2095 = vunpack.c.l.b16 %v1592
        %v2096 = vunpack.c.h.b16 %v1592
        %v2097 = vunpack.c.l.b16 %v1593
        %v2098 = vunpack.c.h.b16 %v1593
        %v2099 = vunpack.c.l.b16 %v1594
        %v2100 = vunpack.c.h.b16 %v1594
        %v2101 = vunpack.c.l.b16 %v1595
        %v2102 = vunpack.c.l.b16 %v1596
        %v2103 = vunpack.c.h.b16 %v1596
        %v2104 = vunpack.c.l.b16 %v1597
        %v2105 = vunpack.c.h.b16 %v1597
        %v2106 = vunpack.c.l.b16 %v1598
        %v2107 = vunpack.c.h.b16 %v1598
        %v2108 = vunpack.c.l.b16 %v1599
        %v2109 = vunpack.c.h.b16 %v1599
        %v2110 = vunpack.c.l.b16 %v1600
        %v2111 = vunpack.c.l.b16 %v1601
        %v2112 = vunpack.c.h.b16 %v1601
        %v2113 = vunpack.c.l.b16 %v1602
        %v2114 = vunpack.c.h.b16 %v1602
        %v2115 = vunpack.c.l.b16 %v1603
        %v2116 = vunpack.c.h.b16 %v1603
        %v2117 = vunpack.c.l.b16 %v1604
        %v2118 = vunpack.c.h.b16 %v1604
        %v2119 = vunpack.c.l.b16 %v1605
        %v2120 = vunpack.c.l.b16 %v1606
        %v2121 = vunpack.c.h.b16 %v1606
        %v2122 = vunpack.c.l.b16 %v1607
        %v2123 = vunpack.c.h.b16 %v1607
        %v2124 = vunpack.c.l.b16 %v1608
        %v2125 = vunpack.c.h.b16 %v1608
        %v2126 = vunpack.c.l.b16 %v1609
        %v2127 = vunpack.c.h.b16 %v1609
        %v2128 = vunpack.c.l.b16 %v1610
        %v2129 = vunpack.c.l.b16 %v1611
        %v2130 = vunpack.c.h.b16 %v1611
        %v2131 = vunpack.c.l.b16 %v1612
        %v2132 = vunpack.c.h.b16 %v1612
        %v2133 = vunpack.c.l.b16 %v1613
        %v2134 = vunpack.c.h.b16 %v1613
        %v2135 = vunpack.c.l.b16 %v1614
        %v2136 = vunpack.c.h.b16 %v1614
        %v2137 = vunpack.c.l.b16 %v1615
        %v2138 = vunpack.c.l.b16 %v1616
        %v2139 = vunpack.c.h.b16 %v1616
        %v2140 = vunpack.c.l.b16 %v1617
        %v2141 = vunpack.c.h.b16 %v1617
        %v2142 = vunpack.c.l.b16 %v1618
        %v2143 = vunpack.c.h.b16 %v1618
        %v2144 = vunpack.c.l.b16 %v1619
        %v2145 = vunpack.c.h.b16 %v1619
        %v2146 = vunpack.c.l.b16 %v1620
        %v2147 = vunpack.c.l.b16 %v1621
        %v2148 = vunpack.c.h.b16 %v1621
        %v2149 = vunpack.c.l.b16 %v1622
        %v2150 = vunpack.c.h.b16 %v1622
        %v2151 = vunpack.c.l.b16 %v1623
        %v2152 = vunpack.c.h.b16 %v1623
        %v2153 = vunpack.c.l.b16 %v1624
        %v2154 = vunpack.c.h.b16 %v1624
        %v2155 = vunpack.c.l.b16 %v1625
        %v2156 = vunpack.c.l.b16 %v1626
        %v2157 = vunpack.c.h.b16 %v1626
        %v2158 = vunpack.c.l.b16 %v1627
        %v2159 = vunpack.c.h.b16 %v1627
        %v2160 = vunpack.c.l.b16 %v1628
        %v2161 = vunpack.c.h.b16 %v1628
        %v2162 = vunpack.c.l.b16 %v1629
        %v2163 = vunpack.c.h.b16 %v1629
        %v2164 = vunpack.c.l.b16 %v1630
        %v2165 = vunpack.c.l.b16 %v1631
        %v2166 = vunpack.c.h.b16 %v1631
        %v2167 = vunpack.c.l.b16 %v1632
        %v2168 = vunpack.c.h.b16 %v1632
        %v2169 = vunpack.c.l.b16 %v1633
        %v2170 = vunpack.c.h.b16 %v1633
        %v2171 = vunpack.c.l.b16 %v1634
        %v2172 = vunpack.c.h.b16 %v1634
        %v2173 = vunpack.c.l.b16 %v1635
        %v2174 = vunpack.c.l.b16 %v1636
        %v2175 = vunpack.c.h.b16 %v1636
        %v2176 = vunpack.c.l.b16 %v1637
        %v2177 = vunpack.c.h.b16 %v1637
        %v2178 = vunpack.c.l.b16 %v1638
        %v2179 = vunpack.c.h.b16 %v1638
        %v2180 = vunpack.c.l.b16 %v1639
        %v2181 = vunpack.c.h.b16 %v1639
        %v2182 = vunpack.c.l.b16 %v1640
        %v2183 = vunpack.c.l.b16 %v1641
        %v2184 = vunpack.c.h.b16 %v1641
        %v2185 = vunpack.c.l.b16 %v1642
        %v2186 = vunpack.c.h.b16 %v1642
        %v2187 = vunpack.c.l.b16 %v1643
        %v2188 = vunpack.c.h.b16 %v1643
        %v2189 = vunpack.c.l.b16 %v1644
        %v2190 = vunpack.c.h.b16 %v1644
        %v2191 = vunpack.c.l.b16 %v1645
        %v2192 = vunpack.c.l.b16 %v1646
        %v2193 = vunpack.c.h.b16 %v1646
        %v2194 = vunpack.c.l.b16 %v1647
        %v2195 = vunpack.c.h.b16 %v1647
        %v2196 = vunpack.c.l.b16 %v1648
        %v2197 = vunpack.c.h.b16 %v1648
        %v2198 = vunpack.c.l.b16 %v1649
        %v2199 = vunpack.c.h.b16 %v1649
        %v2200 = vunpack.c.l.b16 %v1650
        %v2201 = vunpack.c.l.b16 %v1651
        %v2202 = vunpack.c.h.b16 %v1651
        %v2203 = vunpack.c.l.b16 %v1652
        %v2204 = vunpack.c.h.b16 %v1652
        %v2205 = vunpack.c.l.b16 %v1653
        %v2206 = vunpack.c.h.b16 %v1653
        %v2207 = vunpack.c.l.b16 %v1654
        %v2208 = vunpack.c.h.b16 %v1654
        %v2209 = vunpack.c.l.b16 %v1655
        %v2210 = vunpack.c.l.b16 %v1656
        %v2211 = vunpack.c.h.b16 %v1656
        %v2212 = vunpack.c.l.b16 %v1657
        %v2213 = vunpack.c.h.b16 %v1657
        %v2214 = vunpack.c.l.b16 %v1658
        %v2215 = vunpack.c.h.b16 %v1658
        %v2216 = vunpack.c.l.b16 %v1659
        %v2217 = vunpack.c.h.b16 %v1659
        %v2218 = vunpack.c.l.b16 %v1660
        %v2219 = vunpack.c.l.b16 %v1661
        %v2220 = vunpack.c.h.b16 %v1661
        %v2221 = vunpack.c.l.b16 %v1662
        %v2222 = vunpack.c.h.b16 %v1662
        %v2223 = vunpack.c.l.b16 %v1663
        %v2224 = vunpack.c.h.b16 %v1663
        %v2225 = vunpack.c.l.b16 %v1664
        %v2226 = vunpack.c.h.b16 %v1664
        %v2227 = vunpack.c.l.b16 %v1665
        %v2228 = vunpack.c.l.b16 %v1666
        %v2229 = vunpack.c.h.b16 %v1666
        %v2230 = vunpack.c.l.b16 %v1667
        %v2231 = vunpack.c.h.b16 %v1667
        %v2232 = vunpack.c.l.b16 %v1668
        %v2233 = vunpack.c.h.b16 %v1668
        %v2234 = vunpack.c.l.b16 %v1669
        %v2235 = vunpack.c.h.b16 %v1669
        %v2236 = vunpack.c.l.b16 %v1670
        %v2237 = vunpack.c.l.b16 %v1671
        %v2238 = vunpack.c.h.b16 %v1671
        %v2239 = vunpack.c.l.b16 %v1672
        %v2240 = vunpack.c.h.b16 %v1672
        %v2241 = vunpack.c.l.b16 %v1673
        %v2242 = vunpack.c.h.b16 %v1673
        %v2243 = vunpack.c.l.b16 %v1674
        %v2244 = vunpack.c.h.b16 %v1674
        %v2245 = vunpack.c.l.b16 %v1675
        %v2246 = vunpack.c.l.b16 %v1676
        %v2247 = vunpack.c.h.b16 %v1676
        %v2248 = vunpack.c.l.b16 %v1677
        %v2249 = vunpack.c.h.b16 %v1677
        %v2250 = vunpack.c.l.b16 %v1678
        %v2251 = vunpack.c.h.b16 %v1678
        %v2252 = vunpack.c.l.b16 %v1679
        %v2253 = vunpack.c.h.b16 %v1679
        %v2254 = vunpack.c.l.b16 %v1680
        %v2255 = vunpack.c.l.b16 %v1681
        %v2256 = vunpack.c.h.b16 %v1681
        %v2257 = vunpack.c.l.b16 %v1682
        %v2258 = vunpack.c.h.b16 %v1682
        %v2259 = vunpack.c.l.b16 %v1683
        %v2260 = vunpack.c.h.b16 %v1683
        %v2261 = vunpack.c.l.b16 %v1684
        %v2262 = vunpack.c.h.b16 %v1684
        %v2263 = vunpack.c.l.b16 %v1685
        %v2264 = vunpack.c.l.b16 %v1686
        %v2265 = vunpack.c.h.b16 %v1686
        %v2266 = vunpack.c.l.b16 %v1687
        %v2267 = vunpack.c.h.b16 %v1687
        %v2268 = vunpack.c.l.b16 %v1688
        %v2269 = vunpack.c.h.b16 %v1688
        %v2270 = vunpack.c.l.b16 %v1689
        %v2271 = vunpack.c.h.b16 %v1689
        %v2272 = vunpack.c.l.b16 %v1690
        %v2273 = vunpack.c.l.b16 %v1691
        %v2274 = vunpack.c.h.b16 %v1691
        %v2275 = vunpack.c.l.b16 %v1692
        %v2276 = vunpack.c.h.b16 %v1692
        %v2277 = vunpack.c.l.b16 %v1693
        %v2278 = vunpack.c.h.b16 %v1693
        %v2279 = vunpack.c.l.b16 %v1694
        %v2280 = vunpack.c.h.b16 %v1694
        %v2281 = vunpack.c.l.b16 %v1695
        %v2282 = vunpack.c.l.b16 %v1696
        %v2283 = vunpack.c.h.b16 %v1696
        %v2284 = vunpack.c.l.b16 %v1697
        %v2285 = vunpack.c.h.b16 %v1697
        %v2286 = vunpack.c.l.b16 %v1698
        %v2287 = vunpack.c.h.b16 %v1698
        %v2288 = vunpack.c.l.b16 %v1699
        %v2289 = vunpack.c.h.b16 %v1699
        %v2290 = vunpack.c.l.b16 %v1700
        %v2291 = vunpack.c.l.b16 %v1701
        %v2292 = vunpack.c.h.b16 %v1701
        %v2293 = vunpack.c.l.b16 %v1702
        %v2294 = vunpack.c.h.b16 %v1702
        %v2295 = vunpack.c.l.b16 %v1703
        %v2296 = vunpack.c.h.b16 %v1703
        %v2297 = vunpack.c.l.b16 %v1704
        %v2298 = vunpack.c.h.b16 %v1704
        %v2299 = vunpack.c.l.b16 %v1705
        %v2300 = vunpack.c.l.b16 %v1706
        %v2301 = vunpack.c.h.b16 %v1706
        %v2302 = vunpack.c.l.b16 %v1707
        %v2303 = vunpack.c.h.b16 %v1707
        %v2304 = vunpack.c.l.b16 %v1708
        %v2305 = vunpack.c.h.b16 %v1708
        %v2306 = vunpack.c.l.b16 %v1709
        %v2307 = vunpack.c.h.b16 %v1709
        %v2308 = vunpack.c.l.b16 %v1710
        %v2309 = vunpack.c.l.b16 %v1711
        %v2310 = vunpack.c.h.b16 %v1711
        %v2311 = vunpack.c.l.b16 %v1712
        %v2312 = vunpack.c.h.b16 %v1712
        %v2313 = vunpack.c.l.b16 %v1713
        %v2314 = vunpack.c.h.b16 %v1713
        %v2315 = vunpack.c.l.b16 %v1714
        %v2316 = vunpack.c.h.b16 %v1714
        %v2317 = vunpack.c.l.b16 %v1715
        %v2318 = vunpack.c.l.b16 %v1716
        %v2319 = vunpack.c.h.b16 %v1716
        %v2320 = vunpack.c.l.b16 %v1717
        %v2321 = vunpack.c.h.b16 %v1717
        %v2322 = vunpack.c.l.b16 %v1718
        %v2323 = vunpack.c.h.b16 %v1718
        %v2324 = vunpack.c.l.b16 %v1719
        %v2325 = vunpack.c.h.b16 %v1719
        %v2326 = vunpack.c.l.b16 %v1720
        %v2327 = vunpack.c.l.b16 %v1721
        %v2328 = vunpack.c.h.b16 %v1721
        %v2329 = vunpack.c.l.b16 %v1722
        %v2330 = vunpack.c.h.b16 %v1722
        %v2331 = vunpack.c.l.b16 %v1723
        %v2332 = vunpack.c.h.b16 %v1723
        %v2333 = vunpack.c.l.b16 %v1724
        %v2334 = vunpack.c.h.b16 %v1724
        %v2335 = vunpack.c.l.b16 %v1725
        %v2336 = vunpack.c.l.b16 %v1726
        %v2337 = vunpack.c.h.b16 %v1726
        %v2338 = vunpack.c.l.b16 %v1727
        %v2339 = vunpack.c.h.b16 %v1727
        %v2340 = vunpack.c.l.b16 %v1728
        %v2341 = vunpack.c.h.b16 %v1728
        %v2342 = vunpack.c.l.b16 %v1729
        %v2343 = vunpack.c.h.b16 %v1729
        %v2344 = vunpack.c.l.b16 %v1730
        %v2345 = vunpack.c.l.b16 %v1731
        %v2346 = vunpack.c.h.b16 %v1731
        %v2347 = vunpack.c.l.b16 %v1732
        %v2348 = vunpack.c.h.b16 %v1732
        %v2349 = vunpack.c.l.b16 %v1733
        %v2350 = vunpack.c.h.b16 %v1733
        %v2351 = vunpack.c.l.b16 %v1734
        %v2352 = vunpack.c.h.b16 %v1734
        %v2353 = vunpack.c.l.b16 %v1735
        %v2354 = vunpack.c.l.b16 %v1736
        %v2355 = vunpack.c.h.b16 %v1736
        %v2356 = vunpack.c.l.b16 %v1737
        %v2357 = vunpack.c.h.b16 %v1737
        %v2358 = vunpack.c.l.b16 %v1738
        %v2359 = vunpack.c.h.b16 %v1738
        %v2360 = vunpack.c.l.b16 %v1739
        %v2361 = vunpack.c.h.b16 %v1739
        %v2362 = vunpack.c.l.b16 %v1740
        %v2363 = vunpack.c.l.b16 %v1741
        %v2364 = vunpack.c.h.b16 %v1741
        %v2365 = vunpack.c.l.b16 %v1742
        %v2366 = vunpack.c.h.b16 %v1742
        %v2367 = vunpack.c.l.b16 %v1743
        %v2368 = vunpack.c.h.b16 %v1743
        %v2369 = vunpack.c.l.b16 %v1744
        %v2370 = vunpack.c.h.b16 %v1744
        %v2371 = vunpack.c.l.b16 %v1745
        %v2372 = vunpack.c.l.b16 %v1746
        %v2373 = vunpack.c.h.b16 %v1746
        %v2374 = vunpack.c.l.b16 %v1747
        %v2375 = vunpack.c.h.b16 %v1747
        %v2376 = vunpack.c.l.b16 %v1748
        %v2377 = vunpack.c.h.b16 %v1748
        %v2378 = vunpack.c.l.b16 %v1749
        %v2379 = vunpack.c.h.b16 %v1749
        %v2380 = vunpack.c.l.b16 %v1750
        %v2381 = vunpack.c.l.b16 %v1751
        %v2382 = vunpack.c.h.b16 %v1751
        %v2383 = vunpack.c.l.b16 %v1752
        %v2384 = vunpack.c.h.b16 %v1752
        %v2385 = vunpack.c.l.b16 %v1753
        %v2386 = vunpack.c.h.b16 %v1753
        %v2387 = vunpack.c.l.b16 %v1754
        %v2388 = vunpack.c.h.b16 %v1754
        %v2389 = vunpack.c.l.b16 %v1755
        %v2390 = vunpack.c.l.b16 %v1756
        %v2391 = vunpack.c.h.b16 %v1756
        %v2392 = vunpack.c.l.b16 %v1757
        %v2393 = vunpack.c.h.b16 %v1757
        %v2394 = vunpack.c.l.b16 %v1758
        %v2395 = vunpack.c.h.b16 %v1758
        %v2396 = vunpack.c.l.b16 %v1759
        %v2397 = vunpack.c.h.b16 %v1759
        %v2398 = vunpack.c.l.b16 %v1760
        %v2399 = vunpack.c.l.b16 %v1761
        %v2400 = vunpack.c.h.b16 %v1761
        %v2401 = vunpack.c.l.b16 %v1762
        %v2402 = vunpack.c.h.b16 %v1762
        %v2403 = vunpack.c.l.b16 %v1763
        %v2404 = vunpack.c.h.b16 %v1763
        %v2405 = vunpack.c.l.b16 %v1764
        %v2406 = vunpack.c.h.b16 %v1764
        %v2407 = vunpack.c.l.b16 %v1765
        %v2408 = vunpack.c.l.b16 %v1766
        %v2409 = vunpack.c.h.b16 %v1766
        %v2410 = vunpack.c.l.b16 %v1767
        %v2411 = vunpack.c.h.b16 %v1767
        %v2412 = vunpack.c.l.b16 %v1768
        %v2413 = vunpack.c.h.b16 %v1768
        %v2414 = vunpack.c.l.b16 %v1769
        %v2415 = vunpack.c.h.b16 %v1769
        %v2416 = vunpack.c.l.b16 %v1770
        %v2417 = vunpack.c.l.b16 %v1771
        %v2418 = vunpack.c.h.b16 %v1771
        %v2419 = vunpack.c.l.b16 %v1772
        %v2420 = vunpack.c.h.b16 %v1772
        %v2421 = vunpack.c.l.b16 %v1773
        %v2422 = vunpack.c.h.b16 %v1773
        %v2423 = vunpack.c.l.b16 %v1774
        %v2424 = vunpack.c.h.b16 %v1774
        %v2425 = vunpack.c.l.b16 %v1775
        %v2426 = vunpack.c.l.b16 %v1776
        %v2427 = vunpack.c.h.b16 %v1776
        %v2428 = vunpack.c.l.b16 %v1777
        %v2429 = vunpack.c.h.b16 %v1777
        %v2430 = vunpack.c.l.b16 %v1778
        %v2431 = vunpack.c.h.b16 %v1778
        %v2432 = vunpack.c.l.b16 %v1779
        %v2433 = vunpack.c.h.b16 %v1779
        %v2434 = vunpack.c.l.b16 %v1780
        %v2435 = vunpack.c.l.b16 %v1781
        %v2436 = vunpack.c.h.b16 %v1781
        %v2437 = vunpack.c.l.b16 %v1782
        %v2438 = vunpack.c.h.b16 %v1782
        %v2439 = vunpack.c.l.b16 %v1783
        %v2440 = vunpack.c.h.b16 %v1783
        %v2441 = vunpack.c.l.b16 %v1784
        %v2442 = vunpack.c.h.b16 %v1784
        %v2443 = vunpack.c.l.b16 %v1785
        %v2444 = vunpack.c.l.b16 %v1786
        %v2445 = vunpack.c.h.b16 %v1786
        %v2446 = vunpack.c.l.b16 %v1787
        %v2447 = vunpack.c.h.b16 %v1787
        %v2448 = vunpack.c.l.b16 %v1788
        %v2449 = vunpack.c.h.b16 %v1788
        %v2450 = vunpack.c.l.b16 %v1789
        %v2451 = vunpack.c.h.b16 %v1789
        %v2452 = vunpack.c.l.b16 %v1790
        %v2453 = vunpack.c.l.b16 %v1791
        %v2454 = vunpack.c.h.b16 %v1791
        %v2455 = vunpack.c.l.b16 %v1792
        %v2456 = vunpack.c.h.b16 %v1792
        %v2457 = vunpack.c.l.b16 %v1793
        %v2458 = vunpack.c.h.b16 %v1793
        %v2459 = vunpack.c.l.b16 %v1794
        %v2460 = vunpack.c.h.b16 %v1794
        %v2461 = vunpack.c.l.b16 %v1795
        %v2462 = vunpack.c.l.b16 %v1796
        %v2463 = vunpack.c.h.b16 %v1796
        %v2464 = vunpack.c.l.b16 %v1797
        %v2465 = vunpack.c.h.b16 %v1797
        %v2466 = vunpack.c.l.b16 %v1798
        %v2467 = vunpack.c.h.b16 %v1798
        %v2468 = vunpack.c.l.b16 %v1799
        %v2469 = vunpack.c.h.b16 %v1799
        %v2470 = vunpack.c.l.b16 %v1800
        %v2471 = vunpack.c.l.b16 %v1801
        %v2472 = vunpack.c.h.b16 %v1801
        %v2473 = vunpack.c.l.b16 %v1802
        %v2474 = vunpack.c.h.b16 %v1802
        %v2475 = vunpack.c.l.b16 %v1803
        %v2476 = vunpack.c.h.b16 %v1803
        %v2477 = vunpack.c.l.b16 %v1804
        %v2478 = vunpack.c.h.b16 %v1804
        %v2479 = vunpack.c.l.b16 %v1805
        %v2480 = vunpack.c.l.b16 %v1806
        %v2481 = vunpack.c.h.b16 %v1806
        %v2482 = vunpack.c.l.b16 %v1807
        %v2483 = vunpack.c.h.b16 %v1807
        %v2484 = vunpack.c.l.b16 %v1808
        %v2485 = vunpack.c.h.b16 %v1808
        %v2486 = vunpack.c.l.b16 %v1809
        %v2487 = vunpack.c.h.b16 %v1809
        %v2488 = vunpack.c.l.b16 %v1810
        %v2489 = vunpack.c.l.b16 %v1811
        %v2490 = vunpack.c.h.b16 %v1811
        %v2491 = vunpack.c.l.b16 %v1812
        %v2492 = vunpack.c.h.b16 %v1812
        %v2493 = vunpack.c.l.b16 %v1813
        %v2494 = vunpack.c.h.b16 %v1813
        %v2495 = vunpack.c.l.b16 %v1814
        %v2496 = vunpack.c.h.b16 %v1814
        %v2497 = vunpack.c.l.b16 %v1815
        %v2498 = vunpack.c.l.b16 %v1816
        %v2499 = vunpack.c.h.b16 %v1816
        %v2500 = vunpack.c.l.b16 %v1817
        %v2501 = vunpack.c.h.b16 %v1817
        %v2502 = vunpack.c.l.b16 %v1818
        %v2503 = vunpack.c.h.b16 %v1818
        %v2504 = vunpack.c.l.b16 %v1819
        %v2505 = vunpack.c.h.b16 %v1819
        %v2506 = vunpack.c.l.b16 %v1820
        %v2507 = vunpack.c.l.b16 %v1821
        %v2508 = vunpack.c.h.b16 %v1821
        %v2509 = vunpack.c.l.b16 %v1822
        %v2510 = vunpack.c.h.b16 %v1822
        %v2511 = vunpack.c.l.b16 %v1823
        %v2512 = vunpack.c.h.b16 %v1823
        %v2513 = vunpack.c.l.b16 %v1824
        %v2514 = vunpack.c.h.b16 %v1824
        %v2515 = vunpack.c.l.b16 %v1825
        %v2516 = vunpack.c.l.b16 %v1826
        %v2517 = vunpack.c.h.b16 %v1826
        %v2518 = vunpack.c.l.b16 %v1827
        %v2519 = vunpack.c.h.b16 %v1827
        %v2520 = vunpack.c.l.b16 %v1828
        %v2521 = vunpack.c.h.b16 %v1828
        %v2522 = vunpack.c.l.b16 %v1829
        %v2523 = vunpack.c.h.b16 %v1829
        %v2524 = vunpack.c.l.b16 %v1830
        %v2525 = vpack.c.b16 %v2102, %v2093
        %v2526 = vpack.c.b16 %v2103, %v2094
        %v2527 = vpack.c.b16 %v2104, %v2095
        %v2528 = vpack.c.b16 %v2105, %v2096
        %v2529 = vpack.c.b16 %v2106, %v2097
        %v2530 = vpack.c.b16 %v2107, %v2098
        %v2531 = vpack.c.b16 %v2108, %v2099
        %v2532 = vpack.c.b16 %v2109, %v2100
        %v2533 = vpack.c.b16 %v2110, %v2101
        %v2534 = vpack.c.b16 %v2120, %v2111
        %v2535 = vpack.c.b16 %v2121, %v2112
        %v2536 = vpack.c.b16 %v2122, %v2113
        %v2537 = vpack.c.b16 %v2123, %v2114
        %v2538 = vpack.c.b16 %v2124, %v2115
        %v2539 = vpack.c.b16 %v2125, %v2116
        %v2540 = vpack.c.b16 %v2126, %v2117
        %v2541 = vpack.c.b16 %v2127, %v2118
        %v2542 = vpack.c.b16 %v2128, %v2119
        %v2543 = vpack.c.b16 %v2138, %v2129
        %v2544 = vpack.c.b16 %v2139, %v2130
        %v2545 = vpack.c.b16 %v2140, %v2131
        %v2546 = vpack.c.b16 %v2141, %v2132
        %v2547 = vpack.c.b16 %v2142, %v2133
        %v2548 = vpack.c.b16 %v2143, %v2134
        %v2549 = vpack.c.b16 %v2144, %v2135
        %v2550 = vpack.c.b16 %v2145, %v2136
        %v2551 = vpack.c.b16 %v2146, %v2137
        %v2552 = vpack.c.b16 %v2156, %v2147
        %v2553 = vpack.c.b16 %v2157, %v2148
        %v2554 = vpack.c.b16 %v2158, %v2149
        %v2555 = vpack.c.b16 %v2159, %v2150
        %v2556 = vpack.c.b16 %v2160, %v2151
        %v2557 = vpack.c.b16 %v2161, %v2152
        %v2558 = vpack.c.b16 %v2162, %v2153
        %v2559 = vpack.c.b16 %v2163, %v2154
        %v2560 = vpack.c.b16 %v2164, %v2155
        %v2561 = vpack.c.b16 %v2174, %v2165
        %v2562 = vpack.c.b16 %v2175, %v2166
        %v2563 = vpack.c.b16 %v2176, %v2167
        %v2564 = vpack.c.b16 %v2177, %v2168
        %v2565 = vpack.c.b16 %v2178, %v2169
        %v2566 = vpack.c.b16 %v2179, %v2170
        %v2567 = vpack.c.b16 %v2180, %v2171
        %v2568 = vpack.c.b16 %v2181, %v2172
        %v2569 = vpack.c.b16 %v2182, %v2173
        %v2570 = vpack.c.b16 %v2192, %v2183
        %v2571 = vpack.c.b16 %v2193, %v2184
        %v2572 = vpack.c.b16 %v2194, %v2185
        %v2573 = vpack.c.b16 %v2195, %v2186
        %v2574 = vpack.c.b16 %v2196, %v2187
        %v2575 = vpack.c.b16 %v2197, %v2188
        %v2576 = vpack.c.b16 %v2198, %v2189
        %v2577 = vpack.c.b16 %v2199, %v2190
        %v2578 = vpack.c.b16 %v2200, %v2191
        %v2579 = vpack.c.b16 %v2210, %v2201
        %v2580 = vpack.c.b16 %v2211, %v2202
        %v2581 = vpack.c.b16 %v2212, %v2203
        %v2582 = vpack.c.b16 %v2213, %v2204
        %v2583 = vpack.c.b16 %v2214, %v2205
        %v2584 = vpack.c.b16 %v2215, %v2206
        %v2585 = vpack.c.b16 %v2216, %v2207
        %v2586 = vpack.c.b16 %v2217, %v2208
        %v2587 = vpack.c.b16 %v2218, %v2209
        %v2588 = vpack.c.b16 %v2228, %v2219
        %v2589 = vpack.c.b16 %v2229, %v2220
        %v2590 = vpack.c.b16 %v2230, %v2221
        %v2591 = vpack.c.b16 %v2231, %v2222
        %v2592 = vpack.c.b16 %v2232, %v2223
        %v2593 = vpack.c.b16 %v2233, %v2224
        %v2594 = vpack.c.b16 %v2234, %v2225
        %v2595 = vpack.c.b16 %v2235, %v2226
        %v2596 = vpack.c.b16 %v2236, %v2227
        %v2597 = vpack.c.b16 %v2246, %v2237
        %v2598 = vpack.c.b16 %v2247, %v2238
        %v2599 = vpack.c.b16 %v2248, %v2239
        %v2600 = vpack.c.b16 %v2249, %v2240
        %v2601 = vpack.c.b16 %v2250, %v2241
        %v2602 = vpack.c.b16 %v2251, %v2242
        %v2603 = vpack.c.b16 %v2252, %v2243
        %v2604 = vpack.c.b16 %v2253, %v2244
        %v2605 = vpack.c.b16 %v2254, %v2245
        %v2606 = vpack.c.b16 %v2264, %v2255
        %v2607 = vpack.c.b16 %v2265, %v2256
        %v2608 = vpack.c.b16 %v2266, %v2257
        %v2609 = vpack.c.b16 %v2267, %v2258
        %v2610 = vpack.c.b16 %v2268, %v2259
        %v2611 = vpack.c.b16 %v2269, %v2260
        %v2612 = vpack.c.b16 %v2270, %v2261
        %v2613 = vpack.c.b16 %v2271, %v2262
        %v2614 = vpack.c.b16 %v2272, %v2263
        %v2615 = vpack.c.b16 %v2282, %v2273
        %v2616 = vpack.c.b16 %v2283, %v2274
        %v2617 = vpack.c.b16 %v2284, %v2275
        %v2618 = vpack.c.b16 %v2285, %v2276
        %v2619 = vpack.c.b16 %v2286, %v2277
        %v2620 = vpack.c.b16 %v2287, %v2278
        %v2621 = vpack.c.b16 %v2288, %v2279
        %v2622 = vpack.c.b16 %v2289, %v2280
        %v2623 = vpack.c.b16 %v2290, %v2281
        %v2624 = vpack.c.b16 %v2300, %v2291
        %v2625 = vpack.c.b16 %v2301, %v2292
        %v2626 = vpack.c.b16 %v2302, %v2293
        %v2627 = vpack.c.b16 %v2303, %v2294
        %v2628 = vpack.c.b16 %v2304, %v2295
        %v2629 = vpack.c.b16 %v2305, %v2296
        %v2630 = vpack.c.b16 %v2306, %v2297
        %v2631 = vpack.c.b16 %v2307, %v2298
        %v2632 = vpack.c.b16 %v2308, %v2299
        %v2633 = vpack.c.b16 %v2318, %v2309
        %v2634 = vpack.c.b16 %v2319, %v2310
        %v2635 = vpack.c.b16 %v2320, %v2311
        %v2636 = vpack.c.b16 %v2321, %v2312
        %v2637 = vpack.c.b16 %v2322, %v2313
        %v2638 = vpack.c.b16 %v2323, %v2314
        %v2639 = vpack.c.b16 %v2324, %v2315
        %v2640 = vpack.c.b16 %v2325, %v2316
        %v2641 = vpack.c.b16 %v2326, %v2317
        %v2642 = vpack.c.b16 %v2336, %v2327
        %v2643 = vpack.c.b16 %v2337, %v2328
        %v2644 = vpack.c.b16 %v2338, %v2329
        %v2645 = vpack.c.b16 %v2339, %v2330
        %v2646 = vpack.c.b16 %v2340, %v2331
        %v2647 = vpack.c.b16 %v2341, %v2332
        %v2648 = vpack.c.b16 %v2342, %v2333
        %v2649 = vpack.c.b16 %v2343, %v2334
        %v2650 = vpack.c.b16 %v2344, %v2335
        %v2651 = vpack.c.b16 %v2354, %v2345
        %v2652 = vpack.c.b16 %v2355, %v2346
        %v2653 = vpack.c.b16 %v2356, %v2347
        %v2654 = vpack.c.b16 %v2357, %v2348
        %v2655 = vpack.c.b16 %v2358, %v2349
        %v2656 = vpack.c.b16 %v2359, %v2350
        %v2657 = vpack.c.b16 %v2360, %v2351
        %v2658 = vpack.c.b16 %v2361, %v2352
        %v2659 = vpack.c.b16 %v2362, %v2353
        %v2660 = vpack.c.b16 %v2372, %v2363
        %v2661 = vpack.c.b16 %v2373, %v2364
        %v2662 = vpack.c.b16 %v2374, %v2365
        %v2663 = vpack.c.b16 %v2375, %v2366
        %v2664 = vpack.c.b16 %v2376, %v2367
        %v2665 = vpack.c.b16 %v2377, %v2368
        %v2666 = vpack.c.b16 %v2378, %v2369
        %v2667 = vpack.c.b16 %v2379, %v2370
        %v2668 = vpack.c.b16 %v2380, %v2371
        %v2669 = vpack.c.b16 %v2390, %v2381
        %v2670 = vpack.c.b16 %v2391, %v2382
        %v2671 = vpack.c.b16 %v2392, %v2383
        %v2672 = vpack.c.b16 %v2393, %v2384
        %v2673 = vpack.c.b16 %v2394, %v2385
        %v2674 = vpack.c.b16 %v2395, %v2386
        %v2675 = vpack.c.b16 %v2396, %v2387
        %v2676 = vpack.c.b16 %v2397, %v2388
        %v2677 = vpack.c.b16 %v2398, %v2389
        %v2678 = vpack.c.b16 %v2408, %v2399
        %v2679 = vpack.c.b16 %v2409, %v2400
        %v2680 = vpack.c.b16 %v2410, %v2401
        %v2681 = vpack.c.b16 %v2411, %v2402
        %v2682 = vpack.c.b16 %v2412, %v2403
        %v2683 = vpack.c.b16 %v2413, %v2404
        %v2684 = vpack.c.b16 %v2414, %v2405
        %v2685 = vpack.c.b16 %v2415, %v2406
        %v2686 = vpack.c.b16 %v2416, %v2407
        %v2687 = vpack.c.b16 %v2426, %v2417
        %v2688 = vpack.c.b16 %v2427, %v2418
        %v2689 = vpack.c.b16 %v2428, %v2419
        %v2690 = vpack.c.b16 %v2429, %v2420
        %v2691 = vpack.c.b16 %v2430, %v2421
        %v2692 = vpack.c.b16 %v2431, %v2422
        %v2693 = vpack.c.b16 %v2432, %v2423
        %v2694 = vpack.c.b16 %v2433, %v2424
        %v2695 = vpack.c.b16 %v2434, %v2425
        %v2696 = vpack.c.b16 %v2444, %v2435
        %v2697 = vpack.c.b16 %v2445, %v2436
        %v2698 = vpack.c.b16 %v2446, %v2437
        %v2699 = vpack.c.b16 %v2447, %v2438
        %v2700 = vpack.c.b16 %v2448, %v2439
        %v2701 = vpack.c.b16 %v2449, %v2440
        %v2702 = vpack.c.b16 %v2450, %v2441
        %v2703 = vpack.c.b16 %v2451, %v2442
        %v2704 = vpack.c.b16 %v2452, %v2443
        %v2705 = vpack.c.b16 %v2462, %v2453
        %v2706 = vpack.c.b16 %v2463, %v2454
        %v2707 = vpack.c.b16 %v2464, %v2455
        %v2708 = vpack.c.b16 %v2465, %v2456
        %v2709 = vpack.c.b16 %v2466, %v2457
        %v2710 = vpack.c.b16 %v2467, %v2458
        %v2711 = vpack.c.b16 %v2468, %v2459
        %v2712 = vpack.c.b16 %v2469, %v2460
        %v2713 = vpack.c.b16 %v2470, %v2461
        %v2714 = vpack.c.b16 %v2480, %v2471
        %v2715 = vpack.c.b16 %v2481, %v2472
        %v2716 = vpack.c.b16 %v2482, %v2473
        %v2717 = vpack.c.b16 %v2483, %v2474
        %v2718 = vpack.c.b16 %v2484, %v2475
        %v2719 = vpack.c.b16 %v2485, %v2476
        %v2720 = vpack.c.b16 %v2486, %v2477
        %v2721 = vpack.c.b16 %v2487, %v2478
        %v2722 = vpack.c.b16 %v2488, %v2479
        %v2723 = vpack.c.b16 %v2498, %v2489
        %v2724 = vpack.c.b16 %v2499, %v2490
        %v2725 = vpack.c.b16 %v2500, %v2491
        %v2726 = vpack.c.b16 %v2501, %v2492
        %v2727 = vpack.c.b16 %v2502, %v2493
        %v2728 = vpack.c.b16 %v2503, %v2494
        %v2729 = vpack.c.b16 %v2504, %v2495
        %v2730 = vpack.c.b16 %v2505, %v2496
        %v2731 = vpack.c.b16 %v2506, %v2497
        %v2732 = vpack.c.b16 %v2516, %v2507
        %v2733 = vpack.c.b16 %v2517, %v2508
        %v2734 = vpack.c.b16 %v2518, %v2509
        %v2735 = vpack.c.b16 %v2519, %v2510
        %v2736 = vpack.c.b16 %v2520, %v2511
        %v2737 = vpack.c.b16 %v2521, %v2512
        %v2738 = vpack.c.b16 %v2522, %v2513
        %v2739 = vpack.c.b16 %v2523, %v2514
        %v2740 = vpack.c.b16 %v2524, %v2515
        %2957 = vmatpush.bf16.msra.mxu0 %v2588
        %2958 = vmatpush.bf16.msra.mxu0 %v2579
        %2959 = vmatpush.bf16.msra.mxu0 %v2570
        %2960 = vmatpush.bf16.msra.mxu0 %v2561
        %2961 = vmatpush.bf16.msra.mxu0 %v2552
        %2962 = vmatpush.bf16.msra.mxu0 %v2543
        %2963 = vmatpush.bf16.msra.mxu0 %v2534
        %2964 = vmatpush.bf16.msra.mxu0 %v2525
        %2965 = vmatmul.bf16.gmra.mxu0 %v1585
        %v2966 = vpop.f32.mrf.mxu0
        %v2967 = vadd.f32 %v1835, %v2966
        %v2968 = vpop.f32.mrf.mxu0
        %v2969 = vadd.f32 %v1835, %v2968
        %2970 = vmatmul.bf16.gmra.mxu0 %v1588
        %v2971 = vpop.f32.mrf.mxu0
        %v2972 = vadd.f32 %v1835, %v2971
        %v2973 = vpop.f32.mrf.mxu0
        %2974 = vdwg.mxu0
        %2975 = vmatpush.bf16.msra.mxu0 %v2660
        %2976 = vmatpush.bf16.msra.mxu0 %v2651
        %2977 = vmatpush.bf16.msra.mxu0 %v2642
        %2978 = vmatpush.bf16.msra.mxu0 %v2633
        %2979 = vmatpush.bf16.msra.mxu0 %v2624
        %2980 = vmatpush.bf16.msra.mxu0 %v2615
        %2981 = vmatpush.bf16.msra.mxu0 %v2606
        %2982 = vmatpush.bf16.msra.mxu0 %v2597
        %2983 = vmatmul.bf16.gmra.mxu0 %v1586
        %v2984 = vpop.f32.mrf.mxu0
        %v2985 = vadd.f32 %v2967, %v2984
        %v2986 = vpop.f32.mrf.mxu0
        %v2987 = vadd.f32 %v2969, %v2986
        %2988 = vmatmul.bf16.gmra.mxu0 %v1589
        %v2989 = vpop.f32.mrf.mxu0
        %v2990 = vadd.f32 %v2972, %v2989
        %v2991 = vpop.f32.mrf.mxu0
        %2992 = vdwg.mxu0
        %2993 = vmatpush.bf16.msra.mxu0 %v2732
        %2994 = vmatpush.bf16.msra.mxu0 %v2723
        %2995 = vmatpush.bf16.msra.mxu0 %v2714
        %2996 = vmatpush.bf16.msra.mxu0 %v2705
        %2997 = vmatpush.bf16.msra.mxu0 %v2696
        %2998 = vmatpush.bf16.msra.mxu0 %v2687
        %2999 = vmatpush.bf16.msra.mxu0 %v2678
        %3000 = vmatpush.bf16.msra.mxu0 %v2669
        %3001 = vmatmul.bf16.gmra.mxu0 %v1587
        %v3002 = vpop.f32.mrf.mxu0
        %v3003 = vadd.f32 %v2985, %v3002
        %v3004 = vpop.f32.mrf.mxu0
        %v3005 = vadd.f32 %v2987, %v3004
        %3006 = vmatmul.bf16.gmra.mxu0 %v1590
        %v3007 = vpop.f32.mrf.mxu0
        %v3008 = vadd.f32 %v2990, %v3007
        %v3009 = vpop.f32.mrf.mxu0
        %3010 = vdwg.mxu0
        %3011 = vmatpush.bf16.msra.mxu0 %v2589
        %3012 = vmatpush.bf16.msra.mxu0 %v2580
        %3013 = vmatpush.bf16.msra.mxu0 %v2571
        %3014 = vmatpush.bf16.msra.mxu0 %v2562
        %3015 = vmatpush.bf16.msra.mxu0 %v2553
        %3016 = vmatpush.bf16.msra.mxu0 %v2544
        %3017 = vmatpush.bf16.msra.mxu0 %v2535
        %3018 = vmatpush.bf16.msra.mxu0 %v2526
        %3019 = vmatmul.bf16.gmra.mxu0 %v1585
        %v3020 = vpop.f32.mrf.mxu0
        %v3021 = vadd.f32 %v1836, %v3020
        %v3022 = vpop.f32.mrf.mxu0
        %v3023 = vadd.f32 %v1836, %v3022
        %3024 = vmatmul.bf16.gmra.mxu0 %v1588
        %v3025 = vpop.f32.mrf.mxu0
        %v3026 = vadd.f32 %v1836, %v3025
        %v3027 = vpop.f32.mrf.mxu0
        %3028 = vdwg.mxu0
        %3029 = vmatpush.bf16.msra.mxu0 %v2661
        %3030 = vmatpush.bf16.msra.mxu0 %v2652
        %3031 = vmatpush.bf16.msra.mxu0 %v2643
        %3032 = vmatpush.bf16.msra.mxu0 %v2634
        %3033 = vmatpush.bf16.msra.mxu0 %v2625
        %3034 = vmatpush.bf16.msra.mxu0 %v2616
        %3035 = vmatpush.bf16.msra.mxu0 %v2607
        %3036 = vmatpush.bf16.msra.mxu0 %v2598
        %3037 = vmatmul.bf16.gmra.mxu0 %v1586
        %v3038 = vpop.f32.mrf.mxu0
        %v3039 = vadd.f32 %v3021, %v3038
        %v3040 = vpop.f32.mrf.mxu0
        %v3041 = vadd.f32 %v3023, %v3040
        %3042 = vmatmul.bf16.gmra.mxu0 %v1589
        %v3043 = vpop.f32.mrf.mxu0
        %v3044 = vadd.f32 %v3026, %v3043
        %v3045 = vpop.f32.mrf.mxu0
        %3046 = vdwg.mxu0
        %3047 = vmatpush.bf16.msra.mxu0 %v2733
        %3048 = vmatpush.bf16.msra.mxu0 %v2724
        %3049 = vmatpush.bf16.msra.mxu0 %v2715
        %3050 = vmatpush.bf16.msra.mxu0 %v2706
        %3051 = vmatpush.bf16.msra.mxu0 %v2697
        %3052 = vmatpush.bf16.msra.mxu0 %v2688
        %3053 = vmatpush.bf16.msra.mxu0 %v2679
        %3054 = vmatpush.bf16.msra.mxu0 %v2670
        %3055 = vmatmul.bf16.gmra.mxu0 %v1587
        %v3056 = vpop.f32.mrf.mxu0
        %v3057 = vadd.f32 %v3039, %v3056
        %v3058 = vpop.f32.mrf.mxu0
        %v3059 = vadd.f32 %v3041, %v3058
        %3060 = vmatmul.bf16.gmra.mxu0 %v1590
        %v3061 = vpop.f32.mrf.mxu0
        %v3062 = vadd.f32 %v3044, %v3061
        %v3063 = vpop.f32.mrf.mxu0
        %3064 = vdwg.mxu0
        %3065 = vmatpush.bf16.msra.mxu0 %v2590
        %3066 = vmatpush.bf16.msra.mxu0 %v2581
        %3067 = vmatpush.bf16.msra.mxu0 %v2572
        %3068 = vmatpush.bf16.msra.mxu0 %v2563
        %3069 = vmatpush.bf16.msra.mxu0 %v2554
        %3070 = vmatpush.bf16.msra.mxu0 %v2545
        %3071 = vmatpush.bf16.msra.mxu0 %v2536
        %3072 = vmatpush.bf16.msra.mxu0 %v2527
        %3073 = vmatmul.bf16.gmra.mxu0 %v1585
        %v3074 = vpop.f32.mrf.mxu0
        %v3075 = vadd.f32 %v1837, %v3074
        %v3076 = vpop.f32.mrf.mxu0
        %v3077 = vadd.f32 %v1837, %v3076
        %3078 = vmatmul.bf16.gmra.mxu0 %v1588
        %v3079 = vpop.f32.mrf.mxu0
        %v3080 = vadd.f32 %v1837, %v3079
        %v3081 = vpop.f32.mrf.mxu0
        %3082 = vdwg.mxu0
        %3083 = vmatpush.bf16.msra.mxu0 %v2662
        %3084 = vmatpush.bf16.msra.mxu0 %v2653
        %3085 = vmatpush.bf16.msra.mxu0 %v2644
        %3086 = vmatpush.bf16.msra.mxu0 %v2635
        %3087 = vmatpush.bf16.msra.mxu0 %v2626
        %3088 = vmatpush.bf16.msra.mxu0 %v2617
        %3089 = vmatpush.bf16.msra.mxu0 %v2608
        %3090 = vmatpush.bf16.msra.mxu0 %v2599
        %3091 = vmatmul.bf16.gmra.mxu0 %v1586
        %v3092 = vpop.f32.mrf.mxu0
        %v3093 = vadd.f32 %v3075, %v3092
        %v3094 = vpop.f32.mrf.mxu0
        %v3095 = vadd.f32 %v3077, %v3094
        %3096 = vmatmul.bf16.gmra.mxu0 %v1589
        %v3097 = vpop.f32.mrf.mxu0
        %v3098 = vadd.f32 %v3080, %v3097
        %v3099 = vpop.f32.mrf.mxu0
        %3100 = vdwg.mxu0
        %3101 = vmatpush.bf16.msra.mxu0 %v2734
        %3102 = vmatpush.bf16.msra.mxu0 %v2725
        %3103 = vmatpush.bf16.msra.mxu0 %v2716
        %3104 = vmatpush.bf16.msra.mxu0 %v2707
        %3105 = vmatpush.bf16.msra.mxu0 %v2698
        %3106 = vmatpush.bf16.msra.mxu0 %v2689
        %3107 = vmatpush.bf16.msra.mxu0 %v2680
        %3108 = vmatpush.bf16.msra.mxu0 %v2671
        %3109 = vmatmul.bf16.gmra.mxu0 %v1587
        %v3110 = vpop.f32.mrf.mxu0
        %v3111 = vadd.f32 %v3093, %v3110
        %v3112 = vpop.f32.mrf.mxu0
        %v3113 = vadd.f32 %v3095, %v3112
        %3114 = vmatmul.bf16.gmra.mxu0 %v1590
        %v3115 = vpop.f32.mrf.mxu0
        %v3116 = vadd.f32 %v3098, %v3115
        %v3117 = vpop.f32.mrf.mxu0
        %3118 = vdwg.mxu0
        %3119 = vmatpush.bf16.msra.mxu0 %v2591
        %3120 = vmatpush.bf16.msra.mxu0 %v2582
        %3121 = vmatpush.bf16.msra.mxu0 %v2573
        %3122 = vmatpush.bf16.msra.mxu0 %v2564
        %3123 = vmatpush.bf16.msra.mxu0 %v2555
        %3124 = vmatpush.bf16.msra.mxu0 %v2546
        %3125 = vmatpush.bf16.msra.mxu0 %v2537
        %3126 = vmatpush.bf16.msra.mxu0 %v2528
        %3127 = vmatmul.bf16.gmra.mxu0 %v1585
        %v3128 = vpop.f32.mrf.mxu0
        %v3129 = vadd.f32 %v1838, %v3128
        %v3130 = vpop.f32.mrf.mxu0
        %v3131 = vadd.f32 %v1838, %v3130
        %3132 = vmatmul.bf16.gmra.mxu0 %v1588
        %v3133 = vpop.f32.mrf.mxu0
        %v3134 = vadd.f32 %v1838, %v3133
        %v3135 = vpop.f32.mrf.mxu0
        %3136 = vdwg.mxu0
        %3137 = vmatpush.bf16.msra.mxu0 %v2663
        %3138 = vmatpush.bf16.msra.mxu0 %v2654
        %3139 = vmatpush.bf16.msra.mxu0 %v2645
        %3140 = vmatpush.bf16.msra.mxu0 %v2636
        %3141 = vmatpush.bf16.msra.mxu0 %v2627
        %3142 = vmatpush.bf16.msra.mxu0 %v2618
        %3143 = vmatpush.bf16.msra.mxu0 %v2609
        %3144 = vmatpush.bf16.msra.mxu0 %v2600
        %3145 = vmatmul.bf16.gmra.mxu0 %v1586
        %v3146 = vpop.f32.mrf.mxu0
        %v3147 = vadd.f32 %v3129, %v3146
        %v3148 = vpop.f32.mrf.mxu0
        %v3149 = vadd.f32 %v3131, %v3148
        %3150 = vmatmul.bf16.gmra.mxu0 %v1589
        %v3151 = vpop.f32.mrf.mxu0
        %v3152 = vadd.f32 %v3134, %v3151
        %v3153 = vpop.f32.mrf.mxu0
        %3154 = vdwg.mxu0
        %3155 = vmatpush.bf16.msra.mxu0 %v2735
        %3156 = vmatpush.bf16.msra.mxu0 %v2726
        %3157 = vmatpush.bf16.msra.mxu0 %v2717
        %3158 = vmatpush.bf16.msra.mxu0 %v2708
        %3159 = vmatpush.bf16.msra.mxu0 %v2699
        %3160 = vmatpush.bf16.msra.mxu0 %v2690
        %3161 = vmatpush.bf16.msra.mxu0 %v2681
        %3162 = vmatpush.bf16.msra.mxu0 %v2672
        %3163 = vmatmul.bf16.gmra.mxu0 %v1587
        %v3164 = vpop.f32.mrf.mxu0
        %v3165 = vadd.f32 %v3147, %v3164
        %v3166 = vpop.f32.mrf.mxu0
        %v3167 = vadd.f32 %v3149, %v3166
        %3168 = vmatmul.bf16.gmra.mxu0 %v1590
        %v3169 = vpop.f32.mrf.mxu0
        %v3170 = vadd.f32 %v3152, %v3169
        %v3171 = vpop.f32.mrf.mxu0
        %3172 = vdwg.mxu0
        %3173 = vmatpush.bf16.msra.mxu0 %v2592
        %3174 = vmatpush.bf16.msra.mxu0 %v2583
        %3175 = vmatpush.bf16.msra.mxu0 %v2574
        %3176 = vmatpush.bf16.msra.mxu0 %v2565
        %3177 = vmatpush.bf16.msra.mxu0 %v2556
        %3178 = vmatpush.bf16.msra.mxu0 %v2547
        %3179 = vmatpush.bf16.msra.mxu0 %v2538
        %3180 = vmatpush.bf16.msra.mxu0 %v2529
        %3181 = vmatmul.bf16.gmra.mxu0 %v1585
        %v3182 = vpop.f32.mrf.mxu0
        %v3183 = vadd.f32 %v1839, %v3182
        %v3184 = vpop.f32.mrf.mxu0
        %v3185 = vadd.f32 %v1839, %v3184
        %3186 = vmatmul.bf16.gmra.mxu0 %v1588
        %v3187 = vpop.f32.mrf.mxu0
        %v3188 = vadd.f32 %v1839, %v3187
        %v3189 = vpop.f32.mrf.mxu0
        %3190 = vdwg.mxu0
        %3191 = vmatpush.bf16.msra.mxu0 %v2664
        %3192 = vmatpush.bf16.msra.mxu0 %v2655
        %3193 = vmatpush.bf16.msra.mxu0 %v2646
        %3194 = vmatpush.bf16.msra.mxu0 %v2637
        %3195 = vmatpush.bf16.msra.mxu0 %v2628
        %3196 = vmatpush.bf16.msra.mxu0 %v2619
        %3197 = vmatpush.bf16.msra.mxu0 %v2610
        %3198 = vmatpush.bf16.msra.mxu0 %v2601
        %3199 = vmatmul.bf16.gmra.mxu0 %v1586
        %v3200 = vpop.f32.mrf.mxu0
        %v3201 = vadd.f32 %v3183, %v3200
        %v3202 = vpop.f32.mrf.mxu0
        %v3203 = vadd.f32 %v3185, %v3202
        %3204 = vmatmul.bf16.gmra.mxu0 %v1589
        %v3205 = vpop.f32.mrf.mxu0
        %v3206 = vadd.f32 %v3188, %v3205
        %v3207 = vpop.f32.mrf.mxu0
        %3208 = vdwg.mxu0
        %3209 = vmatpush.bf16.msra.mxu0 %v2736
        %3210 = vmatpush.bf16.msra.mxu0 %v2727
        %3211 = vmatpush.bf16.msra.mxu0 %v2718
        %3212 = vmatpush.bf16.msra.mxu0 %v2709
        %3213 = vmatpush.bf16.msra.mxu0 %v2700
        %3214 = vmatpush.bf16.msra.mxu0 %v2691
        %3215 = vmatpush.bf16.msra.mxu0 %v2682
        %3216 = vmatpush.bf16.msra.mxu0 %v2673
        %3217 = vmatmul.bf16.gmra.mxu0 %v1587
        %v3218 = vpop.f32.mrf.mxu0
        %v3219 = vadd.f32 %v3201, %v3218
        %v3220 = vpop.f32.mrf.mxu0
        %v3221 = vadd.f32 %v3203, %v3220
        %3222 = vmatmul.bf16.gmra.mxu0 %v1590
        %v3223 = vpop.f32.mrf.mxu0
        %v3224 = vadd.f32 %v3206, %v3223
        %v3225 = vpop.f32.mrf.mxu0
        %3226 = vdwg.mxu0
        %3227 = vmatpush.bf16.msra.mxu0 %v2593
        %3228 = vmatpush.bf16.msra.mxu0 %v2584
        %3229 = vmatpush.bf16.msra.mxu0 %v2575
        %3230 = vmatpush.bf16.msra.mxu0 %v2566
        %3231 = vmatpush.bf16.msra.mxu0 %v2557
        %3232 = vmatpush.bf16.msra.mxu0 %v2548
        %3233 = vmatpush.bf16.msra.mxu0 %v2539
        %3234 = vmatpush.bf16.msra.mxu0 %v2530
        %3235 = vmatmul.bf16.gmra.mxu0 %v1585
        %v3236 = vpop.f32.mrf.mxu0
        %v3237 = vadd.f32 %v1840, %v3236
        %v3238 = vpop.f32.mrf.mxu0
        %v3239 = vadd.f32 %v1840, %v3238
        %3240 = vmatmul.bf16.gmra.mxu0 %v1588
        %v3241 = vpop.f32.mrf.mxu0
        %v3242 = vadd.f32 %v1840, %v3241
        %v3243 = vpop.f32.mrf.mxu0
        %3244 = vdwg.mxu0
        %3245 = vmatpush.bf16.msra.mxu0 %v2665
        %3246 = vmatpush.bf16.msra.mxu0 %v2656
        %3247 = vmatpush.bf16.msra.mxu0 %v2647
        %3248 = vmatpush.bf16.msra.mxu0 %v2638
        %3249 = vmatpush.bf16.msra.mxu0 %v2629
        %3250 = vmatpush.bf16.msra.mxu0 %v2620
        %3251 = vmatpush.bf16.msra.mxu0 %v2611
        %3252 = vmatpush.bf16.msra.mxu0 %v2602
        %3253 = vmatmul.bf16.gmra.mxu0 %v1586
        %v3254 = vpop.f32.mrf.mxu0
        %v3255 = vadd.f32 %v3237, %v3254
        %v3256 = vpop.f32.mrf.mxu0
        %v3257 = vadd.f32 %v3239, %v3256
        %3258 = vmatmul.bf16.gmra.mxu0 %v1589
        %v3259 = vpop.f32.mrf.mxu0
        %v3260 = vadd.f32 %v3242, %v3259
        %v3261 = vpop.f32.mrf.mxu0
        %3262 = vdwg.mxu0
        %3263 = vmatpush.bf16.msra.mxu0 %v2737
        %3264 = vmatpush.bf16.msra.mxu0 %v2728
        %3265 = vmatpush.bf16.msra.mxu0 %v2719
        %3266 = vmatpush.bf16.msra.mxu0 %v2710
        %3267 = vmatpush.bf16.msra.mxu0 %v2701
        %3268 = vmatpush.bf16.msra.mxu0 %v2692
        %3269 = vmatpush.bf16.msra.mxu0 %v2683
        %3270 = vmatpush.bf16.msra.mxu0 %v2674
        %3271 = vmatmul.bf16.gmra.mxu0 %v1587
        %v3272 = vpop.f32.mrf.mxu0
        %v3273 = vadd.f32 %v3255, %v3272
        %v3274 = vpop.f32.mrf.mxu0
        %v3275 = vadd.f32 %v3257, %v3274
        %3276 = vmatmul.bf16.gmra.mxu0 %v1590
        %v3277 = vpop.f32.mrf.mxu0
        %v3278 = vadd.f32 %v3260, %v3277
        %v3279 = vpop.f32.mrf.mxu0
        %3280 = vdwg.mxu0
        %3281 = vmatpush.bf16.msra.mxu0 %v2594
        %3282 = vmatpush.bf16.msra.mxu0 %v2585
        %3283 = vmatpush.bf16.msra.mxu0 %v2576
        %3284 = vmatpush.bf16.msra.mxu0 %v2567
        %3285 = vmatpush.bf16.msra.mxu0 %v2558
        %3286 = vmatpush.bf16.msra.mxu0 %v2549
        %3287 = vmatpush.bf16.msra.mxu0 %v2540
        %3288 = vmatpush.bf16.msra.mxu0 %v2531
        %3289 = vmatmul.bf16.gmra.mxu0 %v1585
        %v3290 = vpop.f32.mrf.mxu0
        %v3291 = vadd.f32 %v1841, %v3290
        %v3292 = vpop.f32.mrf.mxu0
        %v3293 = vadd.f32 %v1841, %v3292
        %3294 = vmatmul.bf16.gmra.mxu0 %v1588
        %v3295 = vpop.f32.mrf.mxu0
        %v3296 = vadd.f32 %v1841, %v3295
        %v3297 = vpop.f32.mrf.mxu0
        %3298 = vdwg.mxu0
        %3299 = vmatpush.bf16.msra.mxu0 %v2666
        %3300 = vmatpush.bf16.msra.mxu0 %v2657
        %3301 = vmatpush.bf16.msra.mxu0 %v2648
        %3302 = vmatpush.bf16.msra.mxu0 %v2639
        %3303 = vmatpush.bf16.msra.mxu0 %v2630
        %3304 = vmatpush.bf16.msra.mxu0 %v2621
        %3305 = vmatpush.bf16.msra.mxu0 %v2612
        %3306 = vmatpush.bf16.msra.mxu0 %v2603
        %3307 = vmatmul.bf16.gmra.mxu0 %v1586
        %v3308 = vpop.f32.mrf.mxu0
        %v3309 = vadd.f32 %v3291, %v3308
        %v3310 = vpop.f32.mrf.mxu0
        %v3311 = vadd.f32 %v3293, %v3310
        %3312 = vmatmul.bf16.gmra.mxu0 %v1589
        %v3313 = vpop.f32.mrf.mxu0
        %v3314 = vadd.f32 %v3296, %v3313
        %v3315 = vpop.f32.mrf.mxu0
        %3316 = vdwg.mxu0
        %3317 = vmatpush.bf16.msra.mxu0 %v2738
        %3318 = vmatpush.bf16.msra.mxu0 %v2729
        %3319 = vmatpush.bf16.msra.mxu0 %v2720
        %3320 = vmatpush.bf16.msra.mxu0 %v2711
        %3321 = vmatpush.bf16.msra.mxu0 %v2702
        %3322 = vmatpush.bf16.msra.mxu0 %v2693
        %3323 = vmatpush.bf16.msra.mxu0 %v2684
        %3324 = vmatpush.bf16.msra.mxu0 %v2675
        %3325 = vmatmul.bf16.gmra.mxu0 %v1587
        %v3326 = vpop.f32.mrf.mxu0
        %v3327 = vadd.f32 %v3309, %v3326
        %v3328 = vpop.f32.mrf.mxu0
        %v3329 = vadd.f32 %v3311, %v3328
        %3330 = vmatmul.bf16.gmra.mxu0 %v1590
        %v3331 = vpop.f32.mrf.mxu0
        %v3332 = vadd.f32 %v3314, %v3331
        %v3333 = vpop.f32.mrf.mxu0
        %3334 = vdwg.mxu0
        %3335 = vmatpush.bf16.msra.mxu0 %v2595
        %3336 = vmatpush.bf16.msra.mxu0 %v2586
        %3337 = vmatpush.bf16.msra.mxu0 %v2577
        %3338 = vmatpush.bf16.msra.mxu0 %v2568
        %3339 = vmatpush.bf16.msra.mxu0 %v2559
        %3340 = vmatpush.bf16.msra.mxu0 %v2550
        %3341 = vmatpush.bf16.msra.mxu0 %v2541
        %3342 = vmatpush.bf16.msra.mxu0 %v2532
        %3343 = vmatmul.bf16.gmra.mxu0 %v1585
        %v3344 = vpop.f32.mrf.mxu0
        %v3345 = vadd.f32 %v1842, %v3344
        %v3346 = vpop.f32.mrf.mxu0
        %v3347 = vadd.f32 %v1842, %v3346
        %3348 = vmatmul.bf16.gmra.mxu0 %v1588
        %v3349 = vpop.f32.mrf.mxu0
        %v3350 = vadd.f32 %v1842, %v3349
        %v3351 = vpop.f32.mrf.mxu0
        %3352 = vdwg.mxu0
        %3353 = vmatpush.bf16.msra.mxu0 %v2667
        %3354 = vmatpush.bf16.msra.mxu0 %v2658
        %3355 = vmatpush.bf16.msra.mxu0 %v2649
        %3356 = vmatpush.bf16.msra.mxu0 %v2640
        %3357 = vmatpush.bf16.msra.mxu0 %v2631
        %3358 = vmatpush.bf16.msra.mxu0 %v2622
        %3359 = vmatpush.bf16.msra.mxu0 %v2613
        %3360 = vmatpush.bf16.msra.mxu0 %v2604
        %3361 = vmatmul.bf16.gmra.mxu0 %v1586
        %v3362 = vpop.f32.mrf.mxu0
        %v3363 = vadd.f32 %v3345, %v3362
        %v3364 = vpop.f32.mrf.mxu0
        %v3365 = vadd.f32 %v3347, %v3364
        %3366 = vmatmul.bf16.gmra.mxu0 %v1589
        %v3367 = vpop.f32.mrf.mxu0
        %v3368 = vadd.f32 %v3350, %v3367
        %v3369 = vpop.f32.mrf.mxu0
        %3370 = vdwg.mxu0
        %3371 = vmatpush.bf16.msra.mxu0 %v2739
        %3372 = vmatpush.bf16.msra.mxu0 %v2730
        %3373 = vmatpush.bf16.msra.mxu0 %v2721
        %3374 = vmatpush.bf16.msra.mxu0 %v2712
        %3375 = vmatpush.bf16.msra.mxu0 %v2703
        %3376 = vmatpush.bf16.msra.mxu0 %v2694
        %3377 = vmatpush.bf16.msra.mxu0 %v2685
        %3378 = vmatpush.bf16.msra.mxu0 %v2676
        %3379 = vmatmul.bf16.gmra.mxu0 %v1587
        %v3380 = vpop.f32.mrf.mxu0
        %v3381 = vadd.f32 %v3363, %v3380
        %v3382 = vpop.f32.mrf.mxu0
        %v3383 = vadd.f32 %v3365, %v3382
        %3384 = vmatmul.bf16.gmra.mxu0 %v1590
        %v3385 = vpop.f32.mrf.mxu0
        %v3386 = vadd.f32 %v3368, %v3385
        %v3387 = vpop.f32.mrf.mxu0
        %3388 = vdwg.mxu0
        %3389 = vmatpush.bf16.msra.mxu0 %v2596
        %3390 = vmatpush.bf16.msra.mxu0 %v2587
        %3391 = vmatpush.bf16.msra.mxu0 %v2578
        %3392 = vmatpush.bf16.msra.mxu0 %v2569
        %3393 = vmatpush.bf16.msra.mxu0 %v2560
        %3394 = vmatpush.bf16.msra.mxu0 %v2551
        %3395 = vmatpush.bf16.msra.mxu0 %v2542
        %3396 = vmatpush.bf16.msra.mxu0 %v2533
        %3397 = vmatmul.bf16.gmra.mxu0 %v1585
        %v3398 = vpop.f32.mrf.mxu0
        %v3399 = vadd.f32 %v1843, %v3398
        %v3400 = vpop.f32.mrf.mxu0
        %v3401 = vadd.f32 %v1843, %v3400
        %3402 = vmatmul.bf16.gmra.mxu0 %v1588
        %v3403 = vpop.f32.mrf.mxu0
        %v3404 = vadd.f32 %v1843, %v3403
        %v3405 = vpop.f32.mrf.mxu0
        %3406 = vdwg.mxu0
        %3407 = vmatpush.bf16.msra.mxu0 %v2668
        %3408 = vmatpush.bf16.msra.mxu0 %v2659
        %3409 = vmatpush.bf16.msra.mxu0 %v2650
        %3410 = vmatpush.bf16.msra.mxu0 %v2641
        %3411 = vmatpush.bf16.msra.mxu0 %v2632
        %3412 = vmatpush.bf16.msra.mxu0 %v2623
        %3413 = vmatpush.bf16.msra.mxu0 %v2614
        %3414 = vmatpush.bf16.msra.mxu0 %v2605
        %3415 = vmatmul.bf16.gmra.mxu0 %v1586
        %v3416 = vpop.f32.mrf.mxu0
        %v3417 = vadd.f32 %v3399, %v3416
        %v3418 = vpop.f32.mrf.mxu0
        %v3419 = vadd.f32 %v3401, %v3418
        %3420 = vmatmul.bf16.gmra.mxu0 %v1589
        %v3421 = vpop.f32.mrf.mxu0
        %v3422 = vadd.f32 %v3404, %v3421
        %v3423 = vpop.f32.mrf.mxu0
        %3424 = vdwg.mxu0
        %3425 = vmatpush.bf16.msra.mxu0 %v2740
        %3426 = vmatpush.bf16.msra.mxu0 %v2731
        %3427 = vmatpush.bf16.msra.mxu0 %v2722
        %3428 = vmatpush.bf16.msra.mxu0 %v2713
        %3429 = vmatpush.bf16.msra.mxu0 %v2704
        %3430 = vmatpush.bf16.msra.mxu0 %v2695
        %3431 = vmatpush.bf16.msra.mxu0 %v2686
        %3432 = vmatpush.bf16.msra.mxu0 %v2677
        %3433 = vmatmul.bf16.gmra.mxu0 %v1587
        %v3434 = vpop.f32.mrf.mxu0
        %v3435 = vadd.f32 %v3417, %v3434
        %v3436 = vpop.f32.mrf.mxu0
        %v3437 = vadd.f32 %v3419, %v3436
        %3438 = vmatmul.bf16.gmra.mxu0 %v1590
        %v3439 = vpop.f32.mrf.mxu0
        %v3440 = vadd.f32 %v3422, %v3439
        %v3441 = vpop.f32.mrf.mxu0
        %3442 = vdwg.mxu0
        %v3443 = vpack.c.bf16 %v3057, %v3003
        %v3444 = vpack.c.bf16 %v3165, %v3111
        %v3445 = vpack.c.bf16 %v3273, %v3219
        %v3446 = vpack.c.bf16 %v3381, %v3327
        %v3447 = vpack.c.bf16 %v3435, %v3435
        %v3448 = vpack.c.bf16 %v3059, %v3005
        %v3449 = vpack.c.bf16 %v3167, %v3113
        %v3450 = vpack.c.bf16 %v3275, %v3221
        %v3451 = vpack.c.bf16 %v3383, %v3329
        %v3452 = vpack.c.bf16 %v3437, %v3437
        %v3453 = vpack.c.bf16 %v3062, %v3008
        %v3454 = vpack.c.bf16 %v3170, %v3116
        %v3455 = vpack.c.bf16 %v3278, %v3224
        %v3456 = vpack.c.bf16 %v3386, %v3332
        %v3457 = vpack.c.bf16 %v3440, %v3440
        %v3458 = vlaneseq
        %v3459 = vand.u32 %v3458, 127
        %vm3460 = vcmp.lt.s32.totalorder %v3459, 17
        %v3464 = vunpack.c.l.b16 %v3443
        %v3465 = vunpack.c.l.b16 %v3448
        %v3466 = vunpack.c.l.b16 %v3453
        %v3467 = vpack.c.b16 %v3465, %v3464
        %v3468 = vpack.c.b16 %v3466, %v3466
        %v3472 = vunpack.c.h.b16 %v3444
        %v3473 = vunpack.c.h.b16 %v3449
        %v3474 = vunpack.c.h.b16 %v3454
        %v3475 = vpack.c.b16 %v3473, %v3472
        %v3476 = vpack.c.b16 %v3474, %v3474
        %vm3477 = vcmask 523264
        %v3479 = vsel %vm3477, %v3467, 0
        %v3482 = vsel %vm3477, %v3468, 0
        %v3485 = vsel %vm3477, %v3475, 0
        %v3488 = vsel %vm3477, %v3476, 0
        %3490 = vmatpush.bf16.xpose.msra.mxu0 0
        %3491 = vmatpush.bf16.xpose.msra.mxu0 0
        %3492 = vmatpush.bf16.xpose.msra.mxu0 0
        %3493 = vmatpush.bf16.xpose.msra.mxu0 0
        %3494 = vmatpush.bf16.xpose.msra.mxu0 0
        %3495 = vmatpush.bf16.xpose.msra.mxu0 0
        %3496 = vmatpush.bf16.xpose.msra.mxu0 %v3488
        %3497 = vmatpush.bf16.xpose.msra.mxu0 %v3485
        %3498 = vmatmul.bf16.gmra.mxu0 %v3479
        %v3499 = vpop.f32.mrf.mxu0
        %v3500 = vadd.f32 0.0, %v3499
        %v3501 = vpop.f32.mrf.mxu0
        %v3502 = vadd.f32 0.0, %v3501
        %3503 = vmatmul.bf16.gmra.mxu0 %v3482
        %v3504 = vpop.f32.mrf.mxu0
        %v3505 = vadd.f32 0.0, %v3504
        %v3506 = vpop.f32.mrf.mxu0
        %3507 = vdwg.mxu0
        %v3508 = vmul.f32 %v3500, 0.125
        %v3509 = vmul.f32 %v3502, 0.125
        %v3510 = vmul.f32 %v3505, 0.125
        %v3511 = vsel %vm3460, %v3508, -1e+30
        %v3512 = vsel %vm3460, %v3509, -1e+30
        %v3513 = vsel %vm3460, %v3510, -1e+30
        %vm3514 = vcmask 195584
        %v3515 = vsel %vm3514, %v3511, -inf
        %3516 = vmax.xlane.f32.xlu0 %v3515
        %v3517 = vpop.xlane.xlu0 %3516
        %v3518 = vsel %vm3514, %v3512, -inf
        %3519 = vmax.xlane.f32.xlu0 %v3518
        %v3520 = vpop.xlane.xlu0 %3519
        %v3521 = vsel %vm3514, %v3513, -inf
        %3522 = vmax.xlane.f32.xlu0 %v3521
        %v3523 = vpop.xlane.xlu0 %3522
        %v3524 = vsub.f32 %v3511, %v3517
        %v3525 = vsub.f32 %v3512, %v3520
        %v3526 = vsub.f32 %v3513, %v3523
        %v3527 = vmul.f32 %v3524, 1.442695
        %v3528 = vpow.pop %v3527
        %v3529 = vmul.f32 %v3525, 1.442695
        %v3530 = vpow.pop %v3529
        %v3531 = vmul.f32 %v3526, 1.442695
        %v3532 = vpow.pop %v3531
        %v3533 = vsel %vm3514, %v3528, 0.0
        %3534 = vadd.xlane.f32.xlu0 %v3533
        %v3535 = vpop.xlane.xlu0 %3534
        %v3536 = vsel %vm3514, %v3530, 0.0
        %3537 = vadd.xlane.f32.xlu0 %v3536
        %v3538 = vpop.xlane.xlu0 %3537
        %v3539 = vsel %vm3514, %v3532, 0.0
        %3540 = vadd.xlane.f32.xlu0 %v3539
        %v3541 = vpop.xlane.xlu0 %3540
        %v3542 = vrcp.pop %v3535
        %v3543 = vmul.f32 %v3535, %v3542
        %v3544 = vsub.f32 1.0, %v3543
        %v3545 = vmul.f32 %v3542, %v3544
        %v3546 = vadd.f32 %v3542, %v3545
        %vm3547 = vweird.f32 %v3535
        %vm3548 = vweird.f32 %v3542
        %vm3549 = vmor %vm3547, %vm3548
        %v3550 = vsel %vm3549, %v3542, %v3546
        %v3551 = vand.u32 2147483647, %v3535
        %vm3552 = vcmp.eq.f32.partialorder %v3551, 8.507059e+37
        %v3553 = vand.u32 %v3535, 2147483648
        %v3554 = vor.u32 1.1754944e-38, %v3553
        %v3555 = vsel %vm3552, %v3554, %v3550
        %v3556 = vmul.f32 %v3528, %v3555
        %v3557 = vrcp.pop %v3538
        %v3558 = vmul.f32 %v3538, %v3557
        %v3559 = vsub.f32 1.0, %v3558
        %v3560 = vmul.f32 %v3557, %v3559
        %v3561 = vadd.f32 %v3557, %v3560
        %vm3562 = vweird.f32 %v3538
        %vm3563 = vweird.f32 %v3557
        %vm3564 = vmor %vm3562, %vm3563
        %v3565 = vsel %vm3564, %v3557, %v3561
        %v3566 = vand.u32 2147483647, %v3538
        %vm3567 = vcmp.eq.f32.partialorder %v3566, 8.507059e+37
        %v3568 = vand.u32 %v3538, 2147483648
        %v3569 = vor.u32 1.1754944e-38, %v3568
        %v3570 = vsel %vm3567, %v3569, %v3565
        %v3571 = vmul.f32 %v3530, %v3570
        %v3572 = vrcp.pop %v3541
        %v3573 = vmul.f32 %v3541, %v3572
        %v3574 = vsub.f32 1.0, %v3573
        %v3575 = vmul.f32 %v3572, %v3574
        %v3576 = vadd.f32 %v3572, %v3575
        %vm3577 = vweird.f32 %v3541
        %vm3578 = vweird.f32 %v3572
        %vm3579 = vmor %vm3577, %vm3578
        %v3580 = vsel %vm3579, %v3572, %v3576
        %v3581 = vand.u32 2147483647, %v3541
        %vm3582 = vcmp.eq.f32.partialorder %v3581, 8.507059e+37
        %v3583 = vand.u32 %v3541, 2147483648
        %v3584 = vor.u32 1.1754944e-38, %v3583
        %v3585 = vsel %vm3582, %v3584, %v3580
        %v3586 = vmul.f32 %v3532, %v3585
        %v3587 = vpack.c.bf16 %v3571, %v3556
        %v3588 = vpack.c.bf16 %v3586, %v3586
        %v3592 = vunpack.c.l.b16 %v3446
        %v3593 = vunpack.c.l.b16 %v3451
        %v3594 = vunpack.c.l.b16 %v3456
        %v3595 = vpack.c.b16 %v3593, %v3592
        %v3596 = vpack.c.b16 %v3594, %v3594
        %v3599 = vsel %vm3514, %v3587, 0
        %v3602 = vsel %vm3514, %v3588, 0
        %vm3604 = vcmask 1043456
        %v3606 = vsel %vm3604, %v3596, 0
        %3608 = vmatpush.bf16.msra.mxu0 0
        %3609 = vmatpush.bf16.msra.mxu0 0
        %3610 = vmatpush.bf16.msra.mxu0 0
        %3611 = vmatpush.bf16.msra.mxu0 0
        %3612 = vmatpush.bf16.msra.mxu0 0
        %3613 = vmatpush.bf16.msra.mxu0 0
        %3614 = vmatpush.bf16.msra.mxu0 %v3606
        %3615 = vmatpush.bf16.msra.mxu0 %v3595
        %3616 = vmatmul.bf16.gmra.mxu0 %v3599
        %v3617 = vpop.f32.mrf.mxu0
        %v3618 = vadd.f32 0.0, %v3617
        %v3619 = vpop.f32.mrf.mxu0
        %v3620 = vadd.f32 0.0, %v3619
        %3621 = vmatmul.bf16.gmra.mxu0 %v3602
        %v3622 = vpop.f32.mrf.mxu0
        %v3623 = vadd.f32 0.0, %v3622
        %v3624 = vpop.f32.mrf.mxu0
        %3625 = vdwg.mxu0
        %v3626 = vpack.c.bf16 %v3620, %v3618
        %v3627 = vpack.c.bf16 %v3623, %v3623
        %v3628 = vld [vmem:[%s1026] sm:$0xff]
        %v3629 = vld [vmem:[%s1026 + $0x8] sm:$0xf]
        %v3630 = vld [vmem:[%s1026 + $0xc] sm:$0xff]
        %v3631 = vld [vmem:[%s1026 + $0x14] sm:$0xf]
        %v3632 = vld [vmem:[%s1026 + $0x18] sm:$0xff]
        %v3633 = vld [vmem:[%s1026 + $0x20] sm:$0xf]
        %v3634 = vld [vmem:[%s1026 + $0x24] sm:$0xff]
        %v3635 = vld [vmem:[%s1026 + $0x2c] sm:$0xf]
        %v3636 = vld [vmem:[%s1026 + $0x30] sm:$0xff]
        %v3637 = vld [vmem:[%s1026 + $0x38] sm:$0xf]
        %v3638 = vld [vmem:[%s1026 + $0x3c] sm:$0xff]
        %v3639 = vld [vmem:[%s1026 + $0x44] sm:$0xf]
        %v3640 = vld [vmem:[%s1026 + $0x48] sm:$0xff]
        %v3641 = vld [vmem:[%s1026 + $0x50] sm:$0xf]
        %v3642 = vld [vmem:[%s1026 + $0x54] sm:$0xff]
        %v3643 = vld [vmem:[%s1026 + $0x5c] sm:$0xf]
        %3644 = vrot.lane.b32.xlu0 %v3467, 64
        %v3645 = vpop.permute.xlu0 %3644
        %3646 = vrot.lane.b32.xlu0 %v3468, 64
        %v3647 = vpop.permute.xlu0 %3646
        %3648 = vrot.lane.b32.xlu0 %v3475, 64
        %v3649 = vpop.permute.xlu0 %3648
        %3650 = vrot.lane.b32.xlu0 %v3476, 64
        %v3651 = vpop.permute.xlu0 %3650
        %v3653 = vsel %vm3477, %v3645, 0
        %v3656 = vsel %vm3477, %v3647, 0
        %v3659 = vsel %vm3477, %v3649, 0
        %v3662 = vsel %vm3477, %v3651, 0
        %3664 = vmatpush.bf16.xpose.msra.mxu0 0
        %3665 = vmatpush.bf16.xpose.msra.mxu0 0
        %3666 = vmatpush.bf16.xpose.msra.mxu0 0
        %3667 = vmatpush.bf16.xpose.msra.mxu0 0
        %3668 = vmatpush.bf16.xpose.msra.mxu0 0
        %3669 = vmatpush.bf16.xpose.msra.mxu0 0
        %3670 = vmatpush.bf16.xpose.msra.mxu0 %v3662
        %3671 = vmatpush.bf16.xpose.msra.mxu0 %v3659
        %3672 = vmatmul.bf16.gmra.mxu0 %v3653
        %v3673 = vpop.f32.mrf.mxu0
        %v3674 = vadd.f32 0.0, %v3673
        %v3675 = vpop.f32.mrf.mxu0
        %v3676 = vadd.f32 0.0, %v3675
        %3677 = vmatmul.bf16.gmra.mxu0 %v3656
        %v3678 = vpop.f32.mrf.mxu0
        %v3679 = vadd.f32 0.0, %v3678
        %v3680 = vpop.f32.mrf.mxu0
        %3681 = vdwg.mxu0
        %v3682 = vmul.f32 %v3674, 0.125
        %v3683 = vmul.f32 %v3676, 0.125
        %v3684 = vmul.f32 %v3679, 0.125
        %v3685 = vsel %vm3460, %v3682, -1e+30
        %v3686 = vsel %vm3460, %v3683, -1e+30
        %v3687 = vsel %vm3460, %v3684, -1e+30
        %v3688 = vsel %vm3514, %v3685, -inf
        %3689 = vmax.xlane.f32.xlu0 %v3688
        %v3690 = vpop.xlane.xlu0 %3689
        %v3691 = vsel %vm3514, %v3686, -inf
        %3692 = vmax.xlane.f32.xlu0 %v3691
        %v3693 = vpop.xlane.xlu0 %3692
        %v3694 = vsel %vm3514, %v3687, -inf
        %3695 = vmax.xlane.f32.xlu0 %v3694
        %v3696 = vpop.xlane.xlu0 %3695
        %v3697 = vsub.f32 %v3685, %v3690
        %v3698 = vsub.f32 %v3686, %v3693
        %v3699 = vsub.f32 %v3687, %v3696
        %v3700 = vmul.f32 %v3697, 1.442695
        %v3701 = vpow.pop %v3700
        %v3702 = vmul.f32 %v3698, 1.442695
        %v3703 = vpow.pop %v3702
        %v3704 = vmul.f32 %v3699, 1.442695
        %v3705 = vpow.pop %v3704
        %v3706 = vsel %vm3514, %v3701, 0.0
        %3707 = vadd.xlane.f32.xlu0 %v3706
        %v3708 = vpop.xlane.xlu0 %3707
        %v3709 = vsel %vm3514, %v3703, 0.0
        %3710 = vadd.xlane.f32.xlu0 %v3709
        %v3711 = vpop.xlane.xlu0 %3710
        %v3712 = vsel %vm3514, %v3705, 0.0
        %3713 = vadd.xlane.f32.xlu0 %v3712
        %v3714 = vpop.xlane.xlu0 %3713
        %v3715 = vrcp.pop %v3708
        %v3716 = vmul.f32 %v3708, %v3715
        %v3717 = vsub.f32 1.0, %v3716
        %v3718 = vmul.f32 %v3715, %v3717
        %v3719 = vadd.f32 %v3715, %v3718
        %vm3720 = vweird.f32 %v3708
        %vm3721 = vweird.f32 %v3715
        %vm3722 = vmor %vm3720, %vm3721
        %v3723 = vsel %vm3722, %v3715, %v3719
        %v3724 = vand.u32 2147483647, %v3708
        %vm3725 = vcmp.eq.f32.partialorder %v3724, 8.507059e+37
        %v3726 = vand.u32 %v3708, 2147483648
        %v3727 = vor.u32 1.1754944e-38, %v3726
        %v3728 = vsel %vm3725, %v3727, %v3723
        %v3729 = vmul.f32 %v3701, %v3728
        %v3730 = vrcp.pop %v3711
        %v3731 = vmul.f32 %v3711, %v3730
        %v3732 = vsub.f32 1.0, %v3731
        %v3733 = vmul.f32 %v3730, %v3732
        %v3734 = vadd.f32 %v3730, %v3733
        %vm3735 = vweird.f32 %v3711
        %vm3736 = vweird.f32 %v3730
        %vm3737 = vmor %vm3735, %vm3736
        %v3738 = vsel %vm3737, %v3730, %v3734
        %v3739 = vand.u32 2147483647, %v3711
        %vm3740 = vcmp.eq.f32.partialorder %v3739, 8.507059e+37
        %v3741 = vand.u32 %v3711, 2147483648
        %v3742 = vor.u32 1.1754944e-38, %v3741
        %v3743 = vsel %vm3740, %v3742, %v3738
        %v3744 = vmul.f32 %v3703, %v3743
        %v3745 = vrcp.pop %v3714
        %v3746 = vmul.f32 %v3714, %v3745
        %v3747 = vsub.f32 1.0, %v3746
        %v3748 = vmul.f32 %v3745, %v3747
        %v3749 = vadd.f32 %v3745, %v3748
        %vm3750 = vweird.f32 %v3714
        %vm3751 = vweird.f32 %v3745
        %vm3752 = vmor %vm3750, %vm3751
        %v3753 = vsel %vm3752, %v3745, %v3749
        %v3754 = vand.u32 2147483647, %v3714
        %vm3755 = vcmp.eq.f32.partialorder %v3754, 8.507059e+37
        %v3756 = vand.u32 %v3714, 2147483648
        %v3757 = vor.u32 1.1754944e-38, %v3756
        %v3758 = vsel %vm3755, %v3757, %v3753
        %v3759 = vmul.f32 %v3705, %v3758
        %v3760 = vpack.c.bf16 %v3744, %v3729
        %v3761 = vpack.c.bf16 %v3759, %v3759
        %3762 = vrot.lane.b32.xlu0 %v3595, 64
        %v3763 = vpop.permute.xlu0 %3762
        %3764 = vrot.lane.b32.xlu0 %v3596, 64
        %v3765 = vpop.permute.xlu0 %3764
        %v3768 = vsel %vm3514, %v3760, 0
        %v3771 = vsel %vm3514, %v3761, 0
        %v3774 = vsel %vm3604, %v3765, 0
        %3776 = vmatpush.bf16.msra.mxu0 0
        %3777 = vmatpush.bf16.msra.mxu0 0
        %3778 = vmatpush.bf16.msra.mxu0 0
        %3779 = vmatpush.bf16.msra.mxu0 0
        %3780 = vmatpush.bf16.msra.mxu0 0
        %3781 = vmatpush.bf16.msra.mxu0 0
        %3782 = vmatpush.bf16.msra.mxu0 %v3774
        %3783 = vmatpush.bf16.msra.mxu0 %v3763
        %3784 = vmatmul.bf16.gmra.mxu0 %v3768
        %v3785 = vpop.f32.mrf.mxu0
        %v3786 = vadd.f32 0.0, %v3785
        %v3787 = vpop.f32.mrf.mxu0
        %v3788 = vadd.f32 0.0, %v3787
        %3789 = vmatmul.bf16.gmra.mxu0 %v3771
        %v3790 = vpop.f32.mrf.mxu0
        %v3791 = vadd.f32 0.0, %v3790
        %v3792 = vpop.f32.mrf.mxu0
        %3793 = vdwg.mxu0
        %v3794 = vpack.c.bf16 %v3788, %v3786
        %v3795 = vpack.c.bf16 %v3791, %v3791
        %v3796 = vld [vmem:[%s1026 + $0x60] sm:$0xff]
        %v3797 = vld [vmem:[%s1026 + $0x68] sm:$0xf]
        %v3798 = vld [vmem:[%s1026 + $0x6c] sm:$0xff]
        %v3799 = vld [vmem:[%s1026 + $0x74] sm:$0xf]
        %v3800 = vld [vmem:[%s1026 + $0x78] sm:$0xff]
        %v3801 = vld [vmem:[%s1026 + $0x80] sm:$0xf]
        %v3802 = vld [vmem:[%s1026 + $0x84] sm:$0xff]
        %v3803 = vld [vmem:[%s1026 + $0x8c] sm:$0xf]
        %v3804 = vld [vmem:[%s1026 + $0x90] sm:$0xff]
        %v3805 = vld [vmem:[%s1026 + $0x98] sm:$0xf]
        %v3806 = vld [vmem:[%s1026 + $0x9c] sm:$0xff]
        %v3807 = vld [vmem:[%s1026 + $0xa4] sm:$0xf]
        %v3808 = vld [vmem:[%s1026 + $0xa8] sm:$0xff]
        %v3809 = vld [vmem:[%s1026 + $0xb0] sm:$0xf]
        %v3810 = vld [vmem:[%s1026 + $0xb4] sm:$0xff]
        %v3811 = vld [vmem:[%s1026 + $0xbc] sm:$0xf]
        %v3828 = vunpack.c.l.b16 %v3796
        %v3829 = vunpack.c.h.b16 %v3796
        %v3830 = vunpack.c.l.b16 %v3797
        %v3831 = vunpack.c.l.b16 %v3798
        %v3832 = vunpack.c.h.b16 %v3798
        %v3833 = vunpack.c.l.b16 %v3799
        %v3834 = vunpack.c.l.b16 %v3800
        %v3835 = vunpack.c.h.b16 %v3800
        %v3836 = vunpack.c.l.b16 %v3801
        %v3837 = vunpack.c.l.b16 %v3802
        %v3838 = vunpack.c.h.b16 %v3802
        %v3839 = vunpack.c.l.b16 %v3803
        %v3840 = vunpack.c.l.b16 %v3804
        %v3841 = vunpack.c.h.b16 %v3804
        %v3842 = vunpack.c.l.b16 %v3805
        %v3843 = vunpack.c.l.b16 %v3806
        %v3844 = vunpack.c.h.b16 %v3806
        %v3845 = vunpack.c.l.b16 %v3807
        %v3846 = vunpack.c.l.b16 %v3808
        %v3847 = vunpack.c.h.b16 %v3808
        %v3848 = vunpack.c.l.b16 %v3809
        %v3849 = vunpack.c.l.b16 %v3810
        %v3850 = vunpack.c.h.b16 %v3810
        %v3851 = vunpack.c.l.b16 %v3811
        %v3852 = vpack.c.b16 %v3831, %v3828
        %v3853 = vpack.c.b16 %v3832, %v3829
        %v3854 = vpack.c.b16 %v3833, %v3830
        %v3855 = vpack.c.b16 %v3837, %v3834
        %v3856 = vpack.c.b16 %v3838, %v3835
        %v3857 = vpack.c.b16 %v3839, %v3836
        %v3858 = vpack.c.b16 %v3843, %v3840
        %v3859 = vpack.c.b16 %v3844, %v3841
        %v3860 = vpack.c.b16 %v3845, %v3842
        %v3861 = vpack.c.b16 %v3849, %v3846
        %v3862 = vpack.c.b16 %v3850, %v3847
        %v3863 = vpack.c.b16 %v3851, %v3848
        %v3877 = vsel %vm3477, %v3794, 0
        %v3880 = vsel %vm3477, %v3795, 0
        %3882 = vmatpush.bf16.msra.mxu0 0
        %3883 = vmatpush.bf16.msra.mxu0 0
        %3884 = vmatpush.bf16.msra.mxu0 0
        %3885 = vmatpush.bf16.msra.mxu0 0
        %3886 = vmatpush.bf16.msra.mxu0 %v3861
        %3887 = vmatpush.bf16.msra.mxu0 %v3858
        %3888 = vmatpush.bf16.msra.mxu0 %v3855
        %3889 = vmatpush.bf16.msra.mxu0 %v3852
        %3890 = vmatmul.bf16.gmra.mxu0 %v3877
        %v3891 = vpop.f32.mrf.mxu0
        %v3892 = vadd.f32 0.0, %v3891
        %v3893 = vpop.f32.mrf.mxu0
        %v3894 = vadd.f32 0.0, %v3893
        %3895 = vmatmul.bf16.gmra.mxu0 %v3880
        %v3896 = vpop.f32.mrf.mxu0
        %v3897 = vadd.f32 0.0, %v3896
        %v3898 = vpop.f32.mrf.mxu0
        %3899 = vdwg.mxu0
        %3900 = vmatpush.bf16.msra.mxu0 0
        %3901 = vmatpush.bf16.msra.mxu0 0
        %3902 = vmatpush.bf16.msra.mxu0 0
        %3903 = vmatpush.bf16.msra.mxu0 0
        %3904 = vmatpush.bf16.msra.mxu0 %v3862
        %3905 = vmatpush.bf16.msra.mxu0 %v3859
        %3906 = vmatpush.bf16.msra.mxu0 %v3856
        %3907 = vmatpush.bf16.msra.mxu0 %v3853
        %3908 = vmatmul.bf16.gmra.mxu0 %v3877
        %v3909 = vpop.f32.mrf.mxu0
        %v3910 = vadd.f32 0.0, %v3909
        %v3911 = vpop.f32.mrf.mxu0
        %v3912 = vadd.f32 0.0, %v3911
        %3913 = vmatmul.bf16.gmra.mxu0 %v3880
        %v3914 = vpop.f32.mrf.mxu0
        %v3915 = vadd.f32 0.0, %v3914
        %v3916 = vpop.f32.mrf.mxu0
        %3917 = vdwg.mxu0
        %3918 = vmatpush.bf16.msra.mxu0 0
        %3919 = vmatpush.bf16.msra.mxu0 0
        %3920 = vmatpush.bf16.msra.mxu0 0
        %3921 = vmatpush.bf16.msra.mxu0 0
        %3922 = vmatpush.bf16.msra.mxu0 %v3863
        %3923 = vmatpush.bf16.msra.mxu0 %v3860
        %3924 = vmatpush.bf16.msra.mxu0 %v3857
        %3925 = vmatpush.bf16.msra.mxu0 %v3854
        %3926 = vmatmul.bf16.gmra.mxu0 %v3877
        %v3927 = vpop.f32.mrf.mxu0
        %v3928 = vadd.f32 0.0, %v3927
        %v3929 = vpop.f32.mrf.mxu0
        %v3930 = vadd.f32 0.0, %v3929
        %3931 = vmatmul.bf16.gmra.mxu0 %v3880
        %v3932 = vpop.f32.mrf.mxu0
        %v3933 = vadd.f32 0.0, %v3932
        %v3934 = vpop.f32.mrf.mxu0
        %3935 = vdwg.mxu0
        %v3952 = vunpack.c.l.b16 %v3628
        %v3953 = vunpack.c.h.b16 %v3628
        %v3954 = vunpack.c.l.b16 %v3629
        %v3955 = vunpack.c.l.b16 %v3630
        %v3956 = vunpack.c.h.b16 %v3630
        %v3957 = vunpack.c.l.b16 %v3631
        %v3958 = vunpack.c.l.b16 %v3632
        %v3959 = vunpack.c.h.b16 %v3632
        %v3960 = vunpack.c.l.b16 %v3633
        %v3961 = vunpack.c.l.b16 %v3634
        %v3962 = vunpack.c.h.b16 %v3634
        %v3963 = vunpack.c.l.b16 %v3635
        %v3964 = vunpack.c.l.b16 %v3636
        %v3965 = vunpack.c.h.b16 %v3636
        %v3966 = vunpack.c.l.b16 %v3637
        %v3967 = vunpack.c.l.b16 %v3638
        %v3968 = vunpack.c.h.b16 %v3638
        %v3969 = vunpack.c.l.b16 %v3639
        %v3970 = vunpack.c.l.b16 %v3640
        %v3971 = vunpack.c.h.b16 %v3640
        %v3972 = vunpack.c.l.b16 %v3641
        %v3973 = vunpack.c.l.b16 %v3642
        %v3974 = vunpack.c.h.b16 %v3642
        %v3975 = vunpack.c.l.b16 %v3643
        %v3976 = vpack.c.b16 %v3955, %v3952
        %v3977 = vpack.c.b16 %v3956, %v3953
        %v3978 = vpack.c.b16 %v3957, %v3954
        %v3979 = vpack.c.b16 %v3961, %v3958
        %v3980 = vpack.c.b16 %v3962, %v3959
        %v3981 = vpack.c.b16 %v3963, %v3960
        %v3982 = vpack.c.b16 %v3967, %v3964
        %v3983 = vpack.c.b16 %v3968, %v3965
        %v3984 = vpack.c.b16 %v3969, %v3966
        %v3985 = vpack.c.b16 %v3973, %v3970
        %v3986 = vpack.c.b16 %v3974, %v3971
        %v3987 = vpack.c.b16 %v3975, %v3972
        %v4001 = vsel %vm3477, %v3626, 0
        %v4004 = vsel %vm3477, %v3627, 0
        %4006 = vmatpush.bf16.msra.mxu0 0
        %4007 = vmatpush.bf16.msra.mxu0 0
        %4008 = vmatpush.bf16.msra.mxu0 0
        %4009 = vmatpush.bf16.msra.mxu0 0
        %4010 = vmatpush.bf16.msra.mxu0 %v3985
        %4011 = vmatpush.bf16.msra.mxu0 %v3982
        %4012 = vmatpush.bf16.msra.mxu0 %v3979
        %4013 = vmatpush.bf16.msra.mxu0 %v3976
        %4014 = vmatmul.bf16.gmra.mxu0 %v4001
        %v4015 = vpop.f32.mrf.mxu0
        %v4016 = vadd.f32 %v3892, %v4015
        %v4017 = vpop.f32.mrf.mxu0
        %v4018 = vadd.f32 %v3894, %v4017
        %4019 = vmatmul.bf16.gmra.mxu0 %v4004
        %v4020 = vpop.f32.mrf.mxu0
        %v4021 = vadd.f32 %v3897, %v4020
        %v4022 = vpop.f32.mrf.mxu0
        %4023 = vdwg.mxu0
        %4024 = vmatpush.bf16.msra.mxu0 0
        %4025 = vmatpush.bf16.msra.mxu0 0
        %4026 = vmatpush.bf16.msra.mxu0 0
        %4027 = vmatpush.bf16.msra.mxu0 0
        %4028 = vmatpush.bf16.msra.mxu0 %v3986
        %4029 = vmatpush.bf16.msra.mxu0 %v3983
        %4030 = vmatpush.bf16.msra.mxu0 %v3980
        %4031 = vmatpush.bf16.msra.mxu0 %v3977
        %4032 = vmatmul.bf16.gmra.mxu0 %v4001
        %v4033 = vpop.f32.mrf.mxu0
        %v4034 = vadd.f32 %v3910, %v4033
        %v4035 = vpop.f32.mrf.mxu0
        %v4036 = vadd.f32 %v3912, %v4035
        %4037 = vmatmul.bf16.gmra.mxu0 %v4004
        %v4038 = vpop.f32.mrf.mxu0
        %v4039 = vadd.f32 %v3915, %v4038
        %v4040 = vpop.f32.mrf.mxu0
        %4041 = vdwg.mxu0
        %4042 = vmatpush.bf16.msra.mxu0 0
        %4043 = vmatpush.bf16.msra.mxu0 0
        %4044 = vmatpush.bf16.msra.mxu0 0
        %4045 = vmatpush.bf16.msra.mxu0 0
        %4046 = vmatpush.bf16.msra.mxu0 %v3987
        %4047 = vmatpush.bf16.msra.mxu0 %v3984
        %4048 = vmatpush.bf16.msra.mxu0 %v3981
        %4049 = vmatpush.bf16.msra.mxu0 %v3978
        %4050 = vmatmul.bf16.gmra.mxu0 %v4001
        %v4051 = vpop.f32.mrf.mxu0
        %v4052 = vadd.f32 %v3928, %v4051
        %v4053 = vpop.f32.mrf.mxu0
        %v4054 = vadd.f32 %v3930, %v4053
        %4055 = vmatmul.bf16.gmra.mxu0 %v4004
        %v4056 = vpop.f32.mrf.mxu0
        %v4057 = vadd.f32 %v3933, %v4056
        %v4058 = vpop.f32.mrf.mxu0
        %4059 = vdwg.mxu0
        %v4060 = vunpack.c.h.b16 %v3443
        %v4061 = vunpack.c.h.b16 %v3448
        %v4062 = vunpack.c.h.b16 %v3453
        %v4063 = vpack.c.b16 %v4061, %v4060
        %v4064 = vpack.c.b16 %v4062, %v4062
        %v4068 = vunpack.c.l.b16 %v3445
        %v4069 = vunpack.c.l.b16 %v3450
        %v4070 = vunpack.c.l.b16 %v3455
        %v4071 = vpack.c.b16 %v4069, %v4068
        %v4072 = vpack.c.b16 %v4070, %v4070
        %v4074 = vsel %vm3477, %v4063, 0
        %v4077 = vsel %vm3477, %v4064, 0
        %v4080 = vsel %vm3477, %v4071, 0
        %v4083 = vsel %vm3477, %v4072, 0
        %4085 = vmatpush.bf16.xpose.msra.mxu0 0
        %4086 = vmatpush.bf16.xpose.msra.mxu0 0
        %4087 = vmatpush.bf16.xpose.msra.mxu0 0
        %4088 = vmatpush.bf16.xpose.msra.mxu0 0
        %4089 = vmatpush.bf16.xpose.msra.mxu0 0
        %4090 = vmatpush.bf16.xpose.msra.mxu0 0
        %4091 = vmatpush.bf16.xpose.msra.mxu0 %v4083
        %4092 = vmatpush.bf16.xpose.msra.mxu0 %v4080
        %4093 = vmatmul.bf16.gmra.mxu0 %v4074
        %v4094 = vpop.f32.mrf.mxu0
        %v4095 = vadd.f32 0.0, %v4094
        %v4096 = vpop.f32.mrf.mxu0
        %v4097 = vadd.f32 0.0, %v4096
        %4098 = vmatmul.bf16.gmra.mxu0 %v4077
        %v4099 = vpop.f32.mrf.mxu0
        %v4100 = vadd.f32 0.0, %v4099
        %v4101 = vpop.f32.mrf.mxu0
        %4102 = vdwg.mxu0
        %v4103 = vmul.f32 %v4095, 0.125
        %v4104 = vmul.f32 %v4097, 0.125
        %v4105 = vmul.f32 %v4100, 0.125
        %v4106 = vsel %vm3460, %v4103, -1e+30
        %v4107 = vsel %vm3460, %v4104, -1e+30
        %v4108 = vsel %vm3460, %v4105, -1e+30
        %v4109 = vsel %vm3514, %v4106, -inf
        %4110 = vmax.xlane.f32.xlu0 %v4109
        %v4111 = vpop.xlane.xlu0 %4110
        %v4112 = vsel %vm3514, %v4107, -inf
        %4113 = vmax.xlane.f32.xlu0 %v4112
        %v4114 = vpop.xlane.xlu0 %4113
        %v4115 = vsel %vm3514, %v4108, -inf
        %4116 = vmax.xlane.f32.xlu0 %v4115
        %v4117 = vpop.xlane.xlu0 %4116
        %v4118 = vsub.f32 %v4106, %v4111
        %v4119 = vsub.f32 %v4107, %v4114
        %v4120 = vsub.f32 %v4108, %v4117
        %v4121 = vmul.f32 %v4118, 1.442695
        %v4122 = vpow.pop %v4121
        %v4123 = vmul.f32 %v4119, 1.442695
        %v4124 = vpow.pop %v4123
        %v4125 = vmul.f32 %v4120, 1.442695
        %v4126 = vpow.pop %v4125
        %v4127 = vsel %vm3514, %v4122, 0.0
        %4128 = vadd.xlane.f32.xlu0 %v4127
        %v4129 = vpop.xlane.xlu0 %4128
        %v4130 = vsel %vm3514, %v4124, 0.0
        %4131 = vadd.xlane.f32.xlu0 %v4130
        %v4132 = vpop.xlane.xlu0 %4131
        %v4133 = vsel %vm3514, %v4126, 0.0
        %4134 = vadd.xlane.f32.xlu0 %v4133
        %v4135 = vpop.xlane.xlu0 %4134
        %v4136 = vrcp.pop %v4129
        %v4137 = vmul.f32 %v4129, %v4136
        %v4138 = vsub.f32 1.0, %v4137
        %v4139 = vmul.f32 %v4136, %v4138
        %v4140 = vadd.f32 %v4136, %v4139
        %vm4141 = vweird.f32 %v4129
        %vm4142 = vweird.f32 %v4136
        %vm4143 = vmor %vm4141, %vm4142
        %v4144 = vsel %vm4143, %v4136, %v4140
        %v4145 = vand.u32 2147483647, %v4129
        %vm4146 = vcmp.eq.f32.partialorder %v4145, 8.507059e+37
        %v4147 = vand.u32 %v4129, 2147483648
        %v4148 = vor.u32 1.1754944e-38, %v4147
        %v4149 = vsel %vm4146, %v4148, %v4144
        %v4150 = vmul.f32 %v4122, %v4149
        %v4151 = vrcp.pop %v4132
        %v4152 = vmul.f32 %v4132, %v4151
        %v4153 = vsub.f32 1.0, %v4152
        %v4154 = vmul.f32 %v4151, %v4153
        %v4155 = vadd.f32 %v4151, %v4154
        %vm4156 = vweird.f32 %v4132
        %vm4157 = vweird.f32 %v4151
        %vm4158 = vmor %vm4156, %vm4157
        %v4159 = vsel %vm4158, %v4151, %v4155
        %v4160 = vand.u32 2147483647, %v4132
        %vm4161 = vcmp.eq.f32.partialorder %v4160, 8.507059e+37
        %v4162 = vand.u32 %v4132, 2147483648
        %v4163 = vor.u32 1.1754944e-38, %v4162
        %v4164 = vsel %vm4161, %v4163, %v4159
        %v4165 = vmul.f32 %v4124, %v4164
        %v4166 = vrcp.pop %v4135
        %v4167 = vmul.f32 %v4135, %v4166
        %v4168 = vsub.f32 1.0, %v4167
        %v4169 = vmul.f32 %v4166, %v4168
        %v4170 = vadd.f32 %v4166, %v4169
        %vm4171 = vweird.f32 %v4135
        %vm4172 = vweird.f32 %v4166
        %vm4173 = vmor %vm4171, %vm4172
        %v4174 = vsel %vm4173, %v4166, %v4170
        %v4175 = vand.u32 2147483647, %v4135
        %vm4176 = vcmp.eq.f32.partialorder %v4175, 8.507059e+37
        %v4177 = vand.u32 %v4135, 2147483648
        %v4178 = vor.u32 1.1754944e-38, %v4177
        %v4179 = vsel %vm4176, %v4178, %v4174
        %v4180 = vmul.f32 %v4126, %v4179
        %v4181 = vpack.c.bf16 %v4165, %v4150
        %v4182 = vpack.c.bf16 %v4180, %v4180
        %v4183 = vunpack.c.h.b16 %v3446
        %v4184 = vunpack.c.h.b16 %v3451
        %v4185 = vunpack.c.h.b16 %v3456
        %v4186 = vpack.c.b16 %v4184, %v4183
        %v4187 = vpack.c.b16 %v4185, %v4185
        %v4190 = vsel %vm3514, %v4181, 0
        %v4193 = vsel %vm3514, %v4182, 0
        %v4196 = vsel %vm3604, %v4187, 0
        %4198 = vmatpush.bf16.msra.mxu0 0
        %4199 = vmatpush.bf16.msra.mxu0 0
        %4200 = vmatpush.bf16.msra.mxu0 0
        %4201 = vmatpush.bf16.msra.mxu0 0
        %4202 = vmatpush.bf16.msra.mxu0 0
        %4203 = vmatpush.bf16.msra.mxu0 0
        %4204 = vmatpush.bf16.msra.mxu0 %v4196
        %4205 = vmatpush.bf16.msra.mxu0 %v4186
        %4206 = vmatmul.bf16.gmra.mxu0 %v4190
        %v4207 = vpop.f32.mrf.mxu0
        %v4208 = vadd.f32 0.0, %v4207
        %v4209 = vpop.f32.mrf.mxu0
        %v4210 = vadd.f32 0.0, %v4209
        %4211 = vmatmul.bf16.gmra.mxu0 %v4193
        %v4212 = vpop.f32.mrf.mxu0
        %v4213 = vadd.f32 0.0, %v4212
        %v4214 = vpop.f32.mrf.mxu0
        %4215 = vdwg.mxu0
        %v4216 = vpack.c.bf16 %v4210, %v4208
        %v4217 = vpack.c.bf16 %v4213, %v4213
        %v4218 = vld [vmem:[%s1026 + $0xc0] sm:$0xff]
        %v4219 = vld [vmem:[%s1026 + $0xc8] sm:$0xf]
        %v4220 = vld [vmem:[%s1026 + $0xcc] sm:$0xff]
        %v4221 = vld [vmem:[%s1026 + $0xd4] sm:$0xf]
        %v4222 = vld [vmem:[%s1026 + $0xd8] sm:$0xff]
        %v4223 = vld [vmem:[%s1026 + $0xe0] sm:$0xf]
        %v4224 = vld [vmem:[%s1026 + $0xe4] sm:$0xff]
        %v4225 = vld [vmem:[%s1026 + $0xec] sm:$0xf]
        %v4226 = vld [vmem:[%s1026 + $0xf0] sm:$0xff]
        %v4227 = vld [vmem:[%s1026 + $0xf8] sm:$0xf]
        %v4228 = vld [vmem:[%s1026 + $0xfc] sm:$0xff]
        %v4229 = vld [vmem:[%s1026 + $0x104] sm:$0xf]
        %v4230 = vld [vmem:[%s1026 + $0x108] sm:$0xff]
        %v4231 = vld [vmem:[%s1026 + $0x110] sm:$0xf]
        %v4232 = vld [vmem:[%s1026 + $0x114] sm:$0xff]
        %v4233 = vld [vmem:[%s1026 + $0x11c] sm:$0xf]
        %v4250 = vunpack.c.l.b16 %v4218
        %v4251 = vunpack.c.h.b16 %v4218
        %v4252 = vunpack.c.l.b16 %v4219
        %v4253 = vunpack.c.l.b16 %v4220
        %v4254 = vunpack.c.h.b16 %v4220
        %v4255 = vunpack.c.l.b16 %v4221
        %v4256 = vunpack.c.l.b16 %v4222
        %v4257 = vunpack.c.h.b16 %v4222
        %v4258 = vunpack.c.l.b16 %v4223
        %v4259 = vunpack.c.l.b16 %v4224
        %v4260 = vunpack.c.h.b16 %v4224
        %v4261 = vunpack.c.l.b16 %v4225
        %v4262 = vunpack.c.l.b16 %v4226
        %v4263 = vunpack.c.h.b16 %v4226
        %v4264 = vunpack.c.l.b16 %v4227
        %v4265 = vunpack.c.l.b16 %v4228
        %v4266 = vunpack.c.h.b16 %v4228
        %v4267 = vunpack.c.l.b16 %v4229
        %v4268 = vunpack.c.l.b16 %v4230
        %v4269 = vunpack.c.h.b16 %v4230
        %v4270 = vunpack.c.l.b16 %v4231
        %v4271 = vunpack.c.l.b16 %v4232
        %v4272 = vunpack.c.h.b16 %v4232
        %v4273 = vunpack.c.l.b16 %v4233
        %v4274 = vpack.c.b16 %v4253, %v4250
        %v4275 = vpack.c.b16 %v4254, %v4251
        %v4276 = vpack.c.b16 %v4255, %v4252
        %v4277 = vpack.c.b16 %v4259, %v4256
        %v4278 = vpack.c.b16 %v4260, %v4257
        %v4279 = vpack.c.b16 %v4261, %v4258
        %v4280 = vpack.c.b16 %v4265, %v4262
        %v4281 = vpack.c.b16 %v4266, %v4263
        %v4282 = vpack.c.b16 %v4267, %v4264
        %v4283 = vpack.c.b16 %v4271, %v4268
        %v4284 = vpack.c.b16 %v4272, %v4269
        %v4285 = vpack.c.b16 %v4273, %v4270
        %v4299 = vsel %vm3477, %v4216, 0
        %v4302 = vsel %vm3477, %v4217, 0
        %4304 = vmatpush.bf16.msra.mxu0 0
        %4305 = vmatpush.bf16.msra.mxu0 0
        %4306 = vmatpush.bf16.msra.mxu0 0
        %4307 = vmatpush.bf16.msra.mxu0 0
        %4308 = vmatpush.bf16.msra.mxu0 %v4283
        %4309 = vmatpush.bf16.msra.mxu0 %v4280
        %4310 = vmatpush.bf16.msra.mxu0 %v4277
        %4311 = vmatpush.bf16.msra.mxu0 %v4274
        %4312 = vmatmul.bf16.gmra.mxu0 %v4299
        %v4313 = vpop.f32.mrf.mxu0
        %v4314 = vadd.f32 0.0, %v4313
        %v4315 = vpop.f32.mrf.mxu0
        %v4316 = vadd.f32 0.0, %v4315
        %4317 = vmatmul.bf16.gmra.mxu0 %v4302
        %v4318 = vpop.f32.mrf.mxu0
        %v4319 = vadd.f32 0.0, %v4318
        %v4320 = vpop.f32.mrf.mxu0
        %4321 = vdwg.mxu0
        %4322 = vmatpush.bf16.msra.mxu0 0
        %4323 = vmatpush.bf16.msra.mxu0 0
        %4324 = vmatpush.bf16.msra.mxu0 0
        %4325 = vmatpush.bf16.msra.mxu0 0
        %4326 = vmatpush.bf16.msra.mxu0 %v4284
        %4327 = vmatpush.bf16.msra.mxu0 %v4281
        %4328 = vmatpush.bf16.msra.mxu0 %v4278
        %4329 = vmatpush.bf16.msra.mxu0 %v4275
        %4330 = vmatmul.bf16.gmra.mxu0 %v4299
        %v4331 = vpop.f32.mrf.mxu0
        %v4332 = vadd.f32 0.0, %v4331
        %v4333 = vpop.f32.mrf.mxu0
        %v4334 = vadd.f32 0.0, %v4333
        %4335 = vmatmul.bf16.gmra.mxu0 %v4302
        %v4336 = vpop.f32.mrf.mxu0
        %v4337 = vadd.f32 0.0, %v4336
        %v4338 = vpop.f32.mrf.mxu0
        %4339 = vdwg.mxu0
        %4340 = vmatpush.bf16.msra.mxu0 0
        %4341 = vmatpush.bf16.msra.mxu0 0
        %4342 = vmatpush.bf16.msra.mxu0 0
        %4343 = vmatpush.bf16.msra.mxu0 0
        %4344 = vmatpush.bf16.msra.mxu0 %v4285
        %4345 = vmatpush.bf16.msra.mxu0 %v4282
        %4346 = vmatpush.bf16.msra.mxu0 %v4279
        %4347 = vmatpush.bf16.msra.mxu0 %v4276
        %4348 = vmatmul.bf16.gmra.mxu0 %v4299
        %v4349 = vpop.f32.mrf.mxu0
        %v4350 = vadd.f32 0.0, %v4349
        %v4351 = vpop.f32.mrf.mxu0
        %v4352 = vadd.f32 0.0, %v4351
        %4353 = vmatmul.bf16.gmra.mxu0 %v4302
        %v4354 = vpop.f32.mrf.mxu0
        %v4355 = vadd.f32 0.0, %v4354
        %v4356 = vpop.f32.mrf.mxu0
        %4357 = vdwg.mxu0
        %v4358 = vadd.f32 %v4016, %v4314
        %v4359 = vadd.f32 %v4034, %v4332
        %v4360 = vadd.f32 %v4052, %v4350
        %v4361 = vadd.f32 %v4018, %v4316
        %v4362 = vadd.f32 %v4036, %v4334
        %v4363 = vadd.f32 %v4054, %v4352
        %v4364 = vadd.f32 %v4021, %v4319
        %v4365 = vadd.f32 %v4039, %v4337
        %v4366 = vadd.f32 %v4057, %v4355
        %4367 = vrot.lane.b32.xlu0 %v4063, 64
        %v4368 = vpop.permute.xlu0 %4367
        %4369 = vrot.lane.b32.xlu0 %v4064, 64
        %v4370 = vpop.permute.xlu0 %4369
        %4371 = vrot.lane.b32.xlu0 %v4071, 64
        %v4372 = vpop.permute.xlu0 %4371
        %4373 = vrot.lane.b32.xlu0 %v4072, 64
        %v4374 = vpop.permute.xlu0 %4373
        %v4376 = vsel %vm3477, %v4368, 0
        %v4379 = vsel %vm3477, %v4370, 0
        %v4382 = vsel %vm3477, %v4372, 0
        %v4385 = vsel %vm3477, %v4374, 0
        %4387 = vmatpush.bf16.xpose.msra.mxu0 0
        %4388 = vmatpush.bf16.xpose.msra.mxu0 0
        %4389 = vmatpush.bf16.xpose.msra.mxu0 0
        %4390 = vmatpush.bf16.xpose.msra.mxu0 0
        %4391 = vmatpush.bf16.xpose.msra.mxu0 0
        %4392 = vmatpush.bf16.xpose.msra.mxu0 0
        %4393 = vmatpush.bf16.xpose.msra.mxu0 %v4385
        %4394 = vmatpush.bf16.xpose.msra.mxu0 %v4382
        %4395 = vmatmul.bf16.gmra.mxu0 %v4376
        %v4396 = vpop.f32.mrf.mxu0
        %v4397 = vadd.f32 0.0, %v4396
        %v4398 = vpop.f32.mrf.mxu0
        %v4399 = vadd.f32 0.0, %v4398
        %4400 = vmatmul.bf16.gmra.mxu0 %v4379
        %v4401 = vpop.f32.mrf.mxu0
        %v4402 = vadd.f32 0.0, %v4401
        %v4403 = vpop.f32.mrf.mxu0
        %4404 = vdwg.mxu0
        %v4405 = vmul.f32 %v4397, 0.125
        %v4406 = vmul.f32 %v4399, 0.125
        %v4407 = vmul.f32 %v4402, 0.125
        %v4408 = vsel %vm3460, %v4405, -1e+30
        %v4409 = vsel %vm3460, %v4406, -1e+30
        %v4410 = vsel %vm3460, %v4407, -1e+30
        %v4411 = vsel %vm3514, %v4408, -inf
        %4412 = vmax.xlane.f32.xlu0 %v4411
        %v4413 = vpop.xlane.xlu0 %4412
        %v4414 = vsel %vm3514, %v4409, -inf
        %4415 = vmax.xlane.f32.xlu0 %v4414
        %v4416 = vpop.xlane.xlu0 %4415
        %v4417 = vsel %vm3514, %v4410, -inf
        %4418 = vmax.xlane.f32.xlu0 %v4417
        %v4419 = vpop.xlane.xlu0 %4418
        %v4420 = vsub.f32 %v4408, %v4413
        %v4421 = vsub.f32 %v4409, %v4416
        %v4422 = vsub.f32 %v4410, %v4419
        %v4423 = vmul.f32 %v4420, 1.442695
        %v4424 = vpow.pop %v4423
        %v4425 = vmul.f32 %v4421, 1.442695
        %v4426 = vpow.pop %v4425
        %v4427 = vmul.f32 %v4422, 1.442695
        %v4428 = vpow.pop %v4427
        %v4429 = vsel %vm3514, %v4424, 0.0
        %4430 = vadd.xlane.f32.xlu0 %v4429
        %v4431 = vpop.xlane.xlu0 %4430
        %v4432 = vsel %vm3514, %v4426, 0.0
        %4433 = vadd.xlane.f32.xlu0 %v4432
        %v4434 = vpop.xlane.xlu0 %4433
        %v4435 = vsel %vm3514, %v4428, 0.0
        %4436 = vadd.xlane.f32.xlu0 %v4435
        %v4437 = vpop.xlane.xlu0 %4436
        %v4438 = vrcp.pop %v4431
        %v4439 = vmul.f32 %v4431, %v4438
        %v4440 = vsub.f32 1.0, %v4439
        %v4441 = vmul.f32 %v4438, %v4440
        %v4442 = vadd.f32 %v4438, %v4441
        %vm4443 = vweird.f32 %v4431
        %vm4444 = vweird.f32 %v4438
        %vm4445 = vmor %vm4443, %vm4444
        %v4446 = vsel %vm4445, %v4438, %v4442
        %v4447 = vand.u32 2147483647, %v4431
        %vm4448 = vcmp.eq.f32.partialorder %v4447, 8.507059e+37
        %v4449 = vand.u32 %v4431, 2147483648
        %v4450 = vor.u32 1.1754944e-38, %v4449
        %v4451 = vsel %vm4448, %v4450, %v4446
        %v4452 = vmul.f32 %v4424, %v4451
        %v4453 = vrcp.pop %v4434
        %v4454 = vmul.f32 %v4434, %v4453
        %v4455 = vsub.f32 1.0, %v4454
        %v4456 = vmul.f32 %v4453, %v4455
        %v4457 = vadd.f32 %v4453, %v4456
        %vm4458 = vweird.f32 %v4434
        %vm4459 = vweird.f32 %v4453
        %vm4460 = vmor %vm4458, %vm4459
        %v4461 = vsel %vm4460, %v4453, %v4457
        %v4462 = vand.u32 2147483647, %v4434
        %vm4463 = vcmp.eq.f32.partialorder %v4462, 8.507059e+37
        %v4464 = vand.u32 %v4434, 2147483648
        %v4465 = vor.u32 1.1754944e-38, %v4464
        %v4466 = vsel %vm4463, %v4465, %v4461
        %v4467 = vmul.f32 %v4426, %v4466
        %v4468 = vrcp.pop %v4437
        %v4469 = vmul.f32 %v4437, %v4468
        %v4470 = vsub.f32 1.0, %v4469
        %v4471 = vmul.f32 %v4468, %v4470
        %v4472 = vadd.f32 %v4468, %v4471
        %vm4473 = vweird.f32 %v4437
        %vm4474 = vweird.f32 %v4468
        %vm4475 = vmor %vm4473, %vm4474
        %v4476 = vsel %vm4475, %v4468, %v4472
        %v4477 = vand.u32 2147483647, %v4437
        %vm4478 = vcmp.eq.f32.partialorder %v4477, 8.507059e+37
        %v4479 = vand.u32 %v4437, 2147483648
        %v4480 = vor.u32 1.1754944e-38, %v4479
        %v4481 = vsel %vm4478, %v4480, %v4476
        %v4482 = vmul.f32 %v4428, %v4481
        %v4483 = vpack.c.bf16 %v4467, %v4452
        %v4484 = vpack.c.bf16 %v4482, %v4482
        %4485 = vrot.lane.b32.xlu0 %v4186, 64
        %v4486 = vpop.permute.xlu0 %4485
        %4487 = vrot.lane.b32.xlu0 %v4187, 64
        %v4488 = vpop.permute.xlu0 %4487
        %v4491 = vsel %vm3514, %v4483, 0
        %v4494 = vsel %vm3514, %v4484, 0
        %v4497 = vsel %vm3604, %v4488, 0
        %4499 = vmatpush.bf16.msra.mxu0 0
        %4500 = vmatpush.bf16.msra.mxu0 0
        %4501 = vmatpush.bf16.msra.mxu0 0
        %4502 = vmatpush.bf16.msra.mxu0 0
        %4503 = vmatpush.bf16.msra.mxu0 0
        %4504 = vmatpush.bf16.msra.mxu0 0
        %4505 = vmatpush.bf16.msra.mxu0 %v4497
        %4506 = vmatpush.bf16.msra.mxu0 %v4486
        %4507 = vmatmul.bf16.gmra.mxu0 %v4491
        %v4508 = vpop.f32.mrf.mxu0
        %v4509 = vadd.f32 0.0, %v4508
        %v4510 = vpop.f32.mrf.mxu0
        %v4511 = vadd.f32 0.0, %v4510
        %4512 = vmatmul.bf16.gmra.mxu0 %v4494
        %v4513 = vpop.f32.mrf.mxu0
        %v4514 = vadd.f32 0.0, %v4513
        %v4515 = vpop.f32.mrf.mxu0
        %4516 = vdwg.mxu0
        %v4517 = vpack.c.bf16 %v4511, %v4509
        %v4518 = vpack.c.bf16 %v4514, %v4514
        %v4519 = vld [vmem:[%s1026 + $0x120] sm:$0xff]
        %v4520 = vld [vmem:[%s1026 + $0x128] sm:$0xf]
        %v4521 = vld [vmem:[%s1026 + $0x12c] sm:$0xff]
        %v4522 = vld [vmem:[%s1026 + $0x134] sm:$0xf]
        %v4523 = vld [vmem:[%s1026 + $0x138] sm:$0xff]
        %v4524 = vld [vmem:[%s1026 + $0x140] sm:$0xf]
        %v4525 = vld [vmem:[%s1026 + $0x144] sm:$0xff]
        %v4526 = vld [vmem:[%s1026 + $0x14c] sm:$0xf]
        %v4527 = vld [vmem:[%s1026 + $0x150] sm:$0xff]
        %v4528 = vld [vmem:[%s1026 + $0x158] sm:$0xf]
        %v4529 = vld [vmem:[%s1026 + $0x15c] sm:$0xff]
        %v4530 = vld [vmem:[%s1026 + $0x164] sm:$0xf]
        %v4531 = vld [vmem:[%s1026 + $0x168] sm:$0xff]
        %v4532 = vld [vmem:[%s1026 + $0x170] sm:$0xf]
        %v4533 = vld [vmem:[%s1026 + $0x174] sm:$0xff]
        %v4534 = vld [vmem:[%s1026 + $0x17c] sm:$0xf]
        %v4551 = vunpack.c.l.b16 %v4519
        %v4552 = vunpack.c.h.b16 %v4519
        %v4553 = vunpack.c.l.b16 %v4520
        %v4554 = vunpack.c.l.b16 %v4521
        %v4555 = vunpack.c.h.b16 %v4521
        %v4556 = vunpack.c.l.b16 %v4522
        %v4557 = vunpack.c.l.b16 %v4523
        %v4558 = vunpack.c.h.b16 %v4523
        %v4559 = vunpack.c.l.b16 %v4524
        %v4560 = vunpack.c.l.b16 %v4525
        %v4561 = vunpack.c.h.b16 %v4525
        %v4562 = vunpack.c.l.b16 %v4526
        %v4563 = vunpack.c.l.b16 %v4527
        %v4564 = vunpack.c.h.b16 %v4527
        %v4565 = vunpack.c.l.b16 %v4528
        %v4566 = vunpack.c.l.b16 %v4529
        %v4567 = vunpack.c.h.b16 %v4529
        %v4568 = vunpack.c.l.b16 %v4530
        %v4569 = vunpack.c.l.b16 %v4531
        %v4570 = vunpack.c.h.b16 %v4531
        %v4571 = vunpack.c.l.b16 %v4532
        %v4572 = vunpack.c.l.b16 %v4533
        %v4573 = vunpack.c.h.b16 %v4533
        %v4574 = vunpack.c.l.b16 %v4534
        %v4575 = vpack.c.b16 %v4554, %v4551
        %v4576 = vpack.c.b16 %v4555, %v4552
        %v4577 = vpack.c.b16 %v4556, %v4553
        %v4578 = vpack.c.b16 %v4560, %v4557
        %v4579 = vpack.c.b16 %v4561, %v4558
        %v4580 = vpack.c.b16 %v4562, %v4559
        %v4581 = vpack.c.b16 %v4566, %v4563
        %v4582 = vpack.c.b16 %v4567, %v4564
        %v4583 = vpack.c.b16 %v4568, %v4565
        %v4584 = vpack.c.b16 %v4572, %v4569
        %v4585 = vpack.c.b16 %v4573, %v4570
        %v4586 = vpack.c.b16 %v4574, %v4571
        %v4600 = vsel %vm3477, %v4517, 0
        %v4603 = vsel %vm3477, %v4518, 0
        %4605 = vmatpush.bf16.msra.mxu0 0
        %4606 = vmatpush.bf16.msra.mxu0 0
        %4607 = vmatpush.bf16.msra.mxu0 0
        %4608 = vmatpush.bf16.msra.mxu0 0
        %4609 = vmatpush.bf16.msra.mxu0 %v4584
        %4610 = vmatpush.bf16.msra.mxu0 %v4581
        %4611 = vmatpush.bf16.msra.mxu0 %v4578
        %4612 = vmatpush.bf16.msra.mxu0 %v4575
        %4613 = vmatmul.bf16.gmra.mxu0 %v4600
        %v4614 = vpop.f32.mrf.mxu0
        %v4615 = vadd.f32 0.0, %v4614
        %v4616 = vpop.f32.mrf.mxu0
        %v4617 = vadd.f32 0.0, %v4616
        %4618 = vmatmul.bf16.gmra.mxu0 %v4603
        %v4619 = vpop.f32.mrf.mxu0
        %v4620 = vadd.f32 0.0, %v4619
        %v4621 = vpop.f32.mrf.mxu0
        %4622 = vdwg.mxu0
        %4623 = vmatpush.bf16.msra.mxu0 0
        %4624 = vmatpush.bf16.msra.mxu0 0
        %4625 = vmatpush.bf16.msra.mxu0 0
        %4626 = vmatpush.bf16.msra.mxu0 0
        %4627 = vmatpush.bf16.msra.mxu0 %v4585
        %4628 = vmatpush.bf16.msra.mxu0 %v4582
        %4629 = vmatpush.bf16.msra.mxu0 %v4579
        %4630 = vmatpush.bf16.msra.mxu0 %v4576
        %4631 = vmatmul.bf16.gmra.mxu0 %v4600
        %v4632 = vpop.f32.mrf.mxu0
        %v4633 = vadd.f32 0.0, %v4632
        %v4634 = vpop.f32.mrf.mxu0
        %v4635 = vadd.f32 0.0, %v4634
        %4636 = vmatmul.bf16.gmra.mxu0 %v4603
        %v4637 = vpop.f32.mrf.mxu0
        %v4638 = vadd.f32 0.0, %v4637
        %v4639 = vpop.f32.mrf.mxu0
        %4640 = vdwg.mxu0
        %4641 = vmatpush.bf16.msra.mxu0 0
        %4642 = vmatpush.bf16.msra.mxu0 0
        %4643 = vmatpush.bf16.msra.mxu0 0
        %4644 = vmatpush.bf16.msra.mxu0 0
        %4645 = vmatpush.bf16.msra.mxu0 %v4586
        %4646 = vmatpush.bf16.msra.mxu0 %v4583
        %4647 = vmatpush.bf16.msra.mxu0 %v4580
        %4648 = vmatpush.bf16.msra.mxu0 %v4577
        %4649 = vmatmul.bf16.gmra.mxu0 %v4600
        %v4650 = vpop.f32.mrf.mxu0
        %v4651 = vadd.f32 0.0, %v4650
        %v4652 = vpop.f32.mrf.mxu0
        %v4653 = vadd.f32 0.0, %v4652
        %4654 = vmatmul.bf16.gmra.mxu0 %v4603
        %v4655 = vpop.f32.mrf.mxu0
        %v4656 = vadd.f32 0.0, %v4655
        %v4657 = vpop.f32.mrf.mxu0
        %4658 = vdwg.mxu0
        %v4659 = vadd.f32 %v4358, %v4615
        %v4660 = vadd.f32 %v4359, %v4633
        %v4661 = vadd.f32 %v4360, %v4651
        %v4662 = vadd.f32 %v4361, %v4617
        %v4663 = vadd.f32 %v4362, %v4635
        %v4664 = vadd.f32 %v4363, %v4653
        %v4665 = vadd.f32 %v4364, %v4620
        %v4666 = vadd.f32 %v4365, %v4638
        %v4667 = vadd.f32 %v4366, %v4656
        %v4668 = vunpack.c.l.b16 %v3444
        %v4669 = vunpack.c.l.b16 %v3449
        %v4670 = vunpack.c.l.b16 %v3454
        %v4671 = vpack.c.b16 %v4669, %v4668
        %v4672 = vpack.c.b16 %v4670, %v4670
        %v4673 = vunpack.c.h.b16 %v3445
        %v4674 = vunpack.c.h.b16 %v3450
        %v4675 = vunpack.c.h.b16 %v3455
        %v4676 = vpack.c.b16 %v4674, %v4673
        %v4677 = vpack.c.b16 %v4675, %v4675
        %v4679 = vsel %vm3477, %v4671, 0
        %v4682 = vsel %vm3477, %v4672, 0
        %v4685 = vsel %vm3477, %v4676, 0
        %v4688 = vsel %vm3477, %v4677, 0
        %4690 = vmatpush.bf16.xpose.msra.mxu0 0
        %4691 = vmatpush.bf16.xpose.msra.mxu0 0
        %4692 = vmatpush.bf16.xpose.msra.mxu0 0
        %4693 = vmatpush.bf16.xpose.msra.mxu0 0
        %4694 = vmatpush.bf16.xpose.msra.mxu0 0
        %4695 = vmatpush.bf16.xpose.msra.mxu0 0
        %4696 = vmatpush.bf16.xpose.msra.mxu0 %v4688
        %4697 = vmatpush.bf16.xpose.msra.mxu0 %v4685
        %4698 = vmatmul.bf16.gmra.mxu0 %v4679
        %v4699 = vpop.f32.mrf.mxu0
        %v4700 = vadd.f32 0.0, %v4699
        %v4701 = vpop.f32.mrf.mxu0
        %v4702 = vadd.f32 0.0, %v4701
        %4703 = vmatmul.bf16.gmra.mxu0 %v4682
        %v4704 = vpop.f32.mrf.mxu0
        %v4705 = vadd.f32 0.0, %v4704
        %v4706 = vpop.f32.mrf.mxu0
        %4707 = vdwg.mxu0
        %v4708 = vmul.f32 %v4700, 0.125
        %v4709 = vmul.f32 %v4702, 0.125
        %v4710 = vmul.f32 %v4705, 0.125
        %v4711 = vsel %vm3460, %v4708, -1e+30
        %v4712 = vsel %vm3460, %v4709, -1e+30
        %v4713 = vsel %vm3460, %v4710, -1e+30
        %v4714 = vsel %vm3514, %v4711, -inf
        %4715 = vmax.xlane.f32.xlu0 %v4714
        %v4716 = vpop.xlane.xlu0 %4715
        %v4717 = vsel %vm3514, %v4712, -inf
        %4718 = vmax.xlane.f32.xlu0 %v4717
        %v4719 = vpop.xlane.xlu0 %4718
        %v4720 = vsel %vm3514, %v4713, -inf
        %4721 = vmax.xlane.f32.xlu0 %v4720
        %v4722 = vpop.xlane.xlu0 %4721
        %v4723 = vsub.f32 %v4711, %v4716
        %v4724 = vsub.f32 %v4712, %v4719
        %v4725 = vsub.f32 %v4713, %v4722
        %v4726 = vmul.f32 %v4723, 1.442695
        %v4727 = vpow.pop %v4726
        %v4728 = vmul.f32 %v4724, 1.442695
        %v4729 = vpow.pop %v4728
        %v4730 = vmul.f32 %v4725, 1.442695
        %v4731 = vpow.pop %v4730
        %v4732 = vsel %vm3514, %v4727, 0.0
        %4733 = vadd.xlane.f32.xlu0 %v4732
        %v4734 = vpop.xlane.xlu0 %4733
        %v4735 = vsel %vm3514, %v4729, 0.0
        %4736 = vadd.xlane.f32.xlu0 %v4735
        %v4737 = vpop.xlane.xlu0 %4736
        %v4738 = vsel %vm3514, %v4731, 0.0
        %4739 = vadd.xlane.f32.xlu0 %v4738
        %v4740 = vpop.xlane.xlu0 %4739
        %v4741 = vrcp.pop %v4734
        %v4742 = vmul.f32 %v4734, %v4741
        %v4743 = vsub.f32 1.0, %v4742
        %v4744 = vmul.f32 %v4741, %v4743
        %v4745 = vadd.f32 %v4741, %v4744
        %vm4746 = vweird.f32 %v4734
        %vm4747 = vweird.f32 %v4741
        %vm4748 = vmor %vm4746, %vm4747
        %v4749 = vsel %vm4748, %v4741, %v4745
        %v4750 = vand.u32 2147483647, %v4734
        %vm4751 = vcmp.eq.f32.partialorder %v4750, 8.507059e+37
        %v4752 = vand.u32 %v4734, 2147483648
        %v4753 = vor.u32 1.1754944e-38, %v4752
        %v4754 = vsel %vm4751, %v4753, %v4749
        %v4755 = vmul.f32 %v4727, %v4754
        %v4756 = vrcp.pop %v4737
        %v4757 = vmul.f32 %v4737, %v4756
        %v4758 = vsub.f32 1.0, %v4757
        %v4759 = vmul.f32 %v4756, %v4758
        %v4760 = vadd.f32 %v4756, %v4759
        %vm4761 = vweird.f32 %v4737
        %vm4762 = vweird.f32 %v4756
        %vm4763 = vmor %vm4761, %vm4762
        %v4764 = vsel %vm4763, %v4756, %v4760
        %v4765 = vand.u32 2147483647, %v4737
        %vm4766 = vcmp.eq.f32.partialorder %v4765, 8.507059e+37
        %v4767 = vand.u32 %v4737, 2147483648
        %v4768 = vor.u32 1.1754944e-38, %v4767
        %v4769 = vsel %vm4766, %v4768, %v4764
        %v4770 = vmul.f32 %v4729, %v4769
        %v4771 = vrcp.pop %v4740
        %v4772 = vmul.f32 %v4740, %v4771
        %v4773 = vsub.f32 1.0, %v4772
        %v4774 = vmul.f32 %v4771, %v4773
        %v4775 = vadd.f32 %v4771, %v4774
        %vm4776 = vweird.f32 %v4740
        %vm4777 = vweird.f32 %v4771
        %vm4778 = vmor %vm4776, %vm4777
        %v4779 = vsel %vm4778, %v4771, %v4775
        %v4780 = vand.u32 2147483647, %v4740
        %vm4781 = vcmp.eq.f32.partialorder %v4780, 8.507059e+37
        %v4782 = vand.u32 %v4740, 2147483648
        %v4783 = vor.u32 1.1754944e-38, %v4782
        %v4784 = vsel %vm4781, %v4783, %v4779
        %v4785 = vmul.f32 %v4731, %v4784
        %v4786 = vpack.c.bf16 %v4770, %v4755
        %v4787 = vpack.c.bf16 %v4785, %v4785
        %v4791 = vunpack.c.l.b16 %v3447
        %v4792 = vunpack.c.l.b16 %v3452
        %v4793 = vunpack.c.l.b16 %v3457
        %v4794 = vpack.c.b16 %v4792, %v4791
        %v4795 = vpack.c.b16 %v4793, %v4793
        %v4798 = vsel %vm3514, %v4786, 0
        %v4801 = vsel %vm3514, %v4787, 0
        %v4804 = vsel %vm3604, %v4795, 0
        %4806 = vmatpush.bf16.msra.mxu0 0
        %4807 = vmatpush.bf16.msra.mxu0 0
        %4808 = vmatpush.bf16.msra.mxu0 0
        %4809 = vmatpush.bf16.msra.mxu0 0
        %4810 = vmatpush.bf16.msra.mxu0 0
        %4811 = vmatpush.bf16.msra.mxu0 0
        %4812 = vmatpush.bf16.msra.mxu0 %v4804
        %4813 = vmatpush.bf16.msra.mxu0 %v4794
        %4814 = vmatmul.bf16.gmra.mxu0 %v4798
        %v4815 = vpop.f32.mrf.mxu0
        %v4816 = vadd.f32 0.0, %v4815
        %v4817 = vpop.f32.mrf.mxu0
        %v4818 = vadd.f32 0.0, %v4817
        %4819 = vmatmul.bf16.gmra.mxu0 %v4801
        %v4820 = vpop.f32.mrf.mxu0
        %v4821 = vadd.f32 0.0, %v4820
        %v4822 = vpop.f32.mrf.mxu0
        %4823 = vdwg.mxu0
        %v4824 = vpack.c.bf16 %v4818, %v4816
        %v4825 = vpack.c.bf16 %v4821, %v4821
        %v4826 = vld [vmem:[%s1026 + $0x180] sm:$0xff]
        %v4827 = vld [vmem:[%s1026 + $0x188] sm:$0xf]
        %v4828 = vld [vmem:[%s1026 + $0x18c] sm:$0xff]
        %v4829 = vld [vmem:[%s1026 + $0x194] sm:$0xf]
        %v4830 = vld [vmem:[%s1026 + $0x198] sm:$0xff]
        %v4831 = vld [vmem:[%s1026 + $0x1a0] sm:$0xf]
        %v4832 = vld [vmem:[%s1026 + $0x1a4] sm:$0xff]
        %v4833 = vld [vmem:[%s1026 + $0x1ac] sm:$0xf]
        %v4834 = vld [vmem:[%s1026 + $0x1b0] sm:$0xff]
        %v4835 = vld [vmem:[%s1026 + $0x1b8] sm:$0xf]
        %v4836 = vld [vmem:[%s1026 + $0x1bc] sm:$0xff]
        %v4837 = vld [vmem:[%s1026 + $0x1c4] sm:$0xf]
        %v4838 = vld [vmem:[%s1026 + $0x1c8] sm:$0xff]
        %v4839 = vld [vmem:[%s1026 + $0x1d0] sm:$0xf]
        %v4840 = vld [vmem:[%s1026 + $0x1d4] sm:$0xff]
        %v4841 = vld [vmem:[%s1026 + $0x1dc] sm:$0xf]
        %v4858 = vunpack.c.l.b16 %v4826
        %v4859 = vunpack.c.h.b16 %v4826
        %v4860 = vunpack.c.l.b16 %v4827
        %v4861 = vunpack.c.l.b16 %v4828
        %v4862 = vunpack.c.h.b16 %v4828
        %v4863 = vunpack.c.l.b16 %v4829
        %v4864 = vunpack.c.l.b16 %v4830
        %v4865 = vunpack.c.h.b16 %v4830
        %v4866 = vunpack.c.l.b16 %v4831
        %v4867 = vunpack.c.l.b16 %v4832
        %v4868 = vunpack.c.h.b16 %v4832
        %v4869 = vunpack.c.l.b16 %v4833
        %v4870 = vunpack.c.l.b16 %v4834
        %v4871 = vunpack.c.h.b16 %v4834
        %v4872 = vunpack.c.l.b16 %v4835
        %v4873 = vunpack.c.l.b16 %v4836
        %v4874 = vunpack.c.h.b16 %v4836
        %v4875 = vunpack.c.l.b16 %v4837
        %v4876 = vunpack.c.l.b16 %v4838
        %v4877 = vunpack.c.h.b16 %v4838
        %v4878 = vunpack.c.l.b16 %v4839
        %v4879 = vunpack.c.l.b16 %v4840
        %v4880 = vunpack.c.h.b16 %v4840
        %v4881 = vunpack.c.l.b16 %v4841
        %v4882 = vpack.c.b16 %v4861, %v4858
        %v4883 = vpack.c.b16 %v4862, %v4859
        %v4884 = vpack.c.b16 %v4863, %v4860
        %v4885 = vpack.c.b16 %v4867, %v4864
        %v4886 = vpack.c.b16 %v4868, %v4865
        %v4887 = vpack.c.b16 %v4869, %v4866
        %v4888 = vpack.c.b16 %v4873, %v4870
        %v4889 = vpack.c.b16 %v4874, %v4871
        %v4890 = vpack.c.b16 %v4875, %v4872
        %v4891 = vpack.c.b16 %v4879, %v4876
        %v4892 = vpack.c.b16 %v4880, %v4877
        %v4893 = vpack.c.b16 %v4881, %v4878
        %v4907 = vsel %vm3477, %v4824, 0
        %v4910 = vsel %vm3477, %v4825, 0
        %4912 = vmatpush.bf16.msra.mxu0 0
        %4913 = vmatpush.bf16.msra.mxu0 0
        %4914 = vmatpush.bf16.msra.mxu0 0
        %4915 = vmatpush.bf16.msra.mxu0 0
        %4916 = vmatpush.bf16.msra.mxu0 %v4891
        %4917 = vmatpush.bf16.msra.mxu0 %v4888
        %4918 = vmatpush.bf16.msra.mxu0 %v4885
        %4919 = vmatpush.bf16.msra.mxu0 %v4882
        %4920 = vmatmul.bf16.gmra.mxu0 %v4907
        %v4921 = vpop.f32.mrf.mxu0
        %v4922 = vadd.f32 0.0, %v4921
        %v4923 = vpop.f32.mrf.mxu0
        %v4924 = vadd.f32 0.0, %v4923
        %4925 = vmatmul.bf16.gmra.mxu0 %v4910
        %v4926 = vpop.f32.mrf.mxu0
        %v4927 = vadd.f32 0.0, %v4926
        %v4928 = vpop.f32.mrf.mxu0
        %4929 = vdwg.mxu0
        %4930 = vmatpush.bf16.msra.mxu0 0
        %4931 = vmatpush.bf16.msra.mxu0 0
        %4932 = vmatpush.bf16.msra.mxu0 0
        %4933 = vmatpush.bf16.msra.mxu0 0
        %4934 = vmatpush.bf16.msra.mxu0 %v4892
        %4935 = vmatpush.bf16.msra.mxu0 %v4889
        %4936 = vmatpush.bf16.msra.mxu0 %v4886
        %4937 = vmatpush.bf16.msra.mxu0 %v4883
        %4938 = vmatmul.bf16.gmra.mxu0 %v4907
        %v4939 = vpop.f32.mrf.mxu0
        %v4940 = vadd.f32 0.0, %v4939
        %v4941 = vpop.f32.mrf.mxu0
        %v4942 = vadd.f32 0.0, %v4941
        %4943 = vmatmul.bf16.gmra.mxu0 %v4910
        %v4944 = vpop.f32.mrf.mxu0
        %v4945 = vadd.f32 0.0, %v4944
        %v4946 = vpop.f32.mrf.mxu0
        %4947 = vdwg.mxu0
        %4948 = vmatpush.bf16.msra.mxu0 0
        %4949 = vmatpush.bf16.msra.mxu0 0
        %4950 = vmatpush.bf16.msra.mxu0 0
        %4951 = vmatpush.bf16.msra.mxu0 0
        %4952 = vmatpush.bf16.msra.mxu0 %v4893
        %4953 = vmatpush.bf16.msra.mxu0 %v4890
        %4954 = vmatpush.bf16.msra.mxu0 %v4887
        %4955 = vmatpush.bf16.msra.mxu0 %v4884
        %4956 = vmatmul.bf16.gmra.mxu0 %v4907
        %v4957 = vpop.f32.mrf.mxu0
        %v4958 = vadd.f32 0.0, %v4957
        %v4959 = vpop.f32.mrf.mxu0
        %v4960 = vadd.f32 0.0, %v4959
        %4961 = vmatmul.bf16.gmra.mxu0 %v4910
        %v4962 = vpop.f32.mrf.mxu0
        %v4963 = vadd.f32 0.0, %v4962
        %v4964 = vpop.f32.mrf.mxu0
        %4965 = vdwg.mxu0
        %v4966 = vadd.f32 %v4659, %v4922
        %v4967 = vadd.f32 %v4660, %v4940
        %v4968 = vadd.f32 %v4661, %v4958
        %v4969 = vadd.f32 %v4662, %v4924
        %v4970 = vadd.f32 %v4663, %v4942
        %v4971 = vadd.f32 %v4664, %v4960
        %v4972 = vadd.f32 %v4665, %v4927
        %v4973 = vadd.f32 %v4666, %v4945
        %v4974 = vadd.f32 %v4667, %v4963
        %4975 = vrot.lane.b32.xlu0 %v4671, 64
        %v4976 = vpop.permute.xlu0 %4975
        %4977 = vrot.lane.b32.xlu0 %v4672, 64
        %v4978 = vpop.permute.xlu0 %4977
        %4979 = vrot.lane.b32.xlu0 %v4676, 64
        %v4980 = vpop.permute.xlu0 %4979
        %4981 = vrot.lane.b32.xlu0 %v4677, 64
        %v4982 = vpop.permute.xlu0 %4981
        %v4984 = vsel %vm3477, %v4976, 0
        %v4987 = vsel %vm3477, %v4978, 0
        %v4990 = vsel %vm3477, %v4980, 0
        %v4993 = vsel %vm3477, %v4982, 0
        %4995 = vmatpush.bf16.xpose.msra.mxu0 0
        %4996 = vmatpush.bf16.xpose.msra.mxu0 0
        %4997 = vmatpush.bf16.xpose.msra.mxu0 0
        %4998 = vmatpush.bf16.xpose.msra.mxu0 0
        %4999 = vmatpush.bf16.xpose.msra.mxu0 0
        %5000 = vmatpush.bf16.xpose.msra.mxu0 0
        %5001 = vmatpush.bf16.xpose.msra.mxu0 %v4993
        %5002 = vmatpush.bf16.xpose.msra.mxu0 %v4990
        %5003 = vmatmul.bf16.gmra.mxu0 %v4984
        %v5004 = vpop.f32.mrf.mxu0
        %v5005 = vadd.f32 0.0, %v5004
        %v5006 = vpop.f32.mrf.mxu0
        %v5007 = vadd.f32 0.0, %v5006
        %5008 = vmatmul.bf16.gmra.mxu0 %v4987
        %v5009 = vpop.f32.mrf.mxu0
        %v5010 = vadd.f32 0.0, %v5009
        %v5011 = vpop.f32.mrf.mxu0
        %5012 = vdwg.mxu0
        %v5013 = vmul.f32 %v5005, 0.125
        %v5014 = vmul.f32 %v5007, 0.125
        %v5015 = vmul.f32 %v5010, 0.125
        %v5016 = vsel %vm3460, %v5013, -1e+30
        %v5017 = vsel %vm3460, %v5014, -1e+30
        %v5018 = vsel %vm3460, %v5015, -1e+30
        %v5019 = vsel %vm3514, %v5016, -inf
        %5020 = vmax.xlane.f32.xlu0 %v5019
        %v5021 = vpop.xlane.xlu0 %5020
        %v5022 = vsel %vm3514, %v5017, -inf
        %5023 = vmax.xlane.f32.xlu0 %v5022
        %v5024 = vpop.xlane.xlu0 %5023
        %v5025 = vsel %vm3514, %v5018, -inf
        %5026 = vmax.xlane.f32.xlu0 %v5025
        %v5027 = vpop.xlane.xlu0 %5026
        %v5028 = vsub.f32 %v5016, %v5021
        %v5029 = vsub.f32 %v5017, %v5024
        %v5030 = vsub.f32 %v5018, %v5027
        %v5031 = vmul.f32 %v5028, 1.442695
        %v5032 = vpow.pop %v5031
        %v5033 = vmul.f32 %v5029, 1.442695
        %v5034 = vpow.pop %v5033
        %v5035 = vmul.f32 %v5030, 1.442695
        %v5036 = vpow.pop %v5035
        %v5037 = vsel %vm3514, %v5032, 0.0
        %5038 = vadd.xlane.f32.xlu0 %v5037
        %v5039 = vpop.xlane.xlu0 %5038
        %v5040 = vsel %vm3514, %v5034, 0.0
        %5041 = vadd.xlane.f32.xlu0 %v5040
        %v5042 = vpop.xlane.xlu0 %5041
        %v5043 = vsel %vm3514, %v5036, 0.0
        %5044 = vadd.xlane.f32.xlu0 %v5043
        %v5045 = vpop.xlane.xlu0 %5044
        %v5046 = vrcp.pop %v5039
        %v5047 = vmul.f32 %v5039, %v5046
        %v5048 = vsub.f32 1.0, %v5047
        %v5049 = vmul.f32 %v5046, %v5048
        %v5050 = vadd.f32 %v5046, %v5049
        %vm5051 = vweird.f32 %v5039
        %vm5052 = vweird.f32 %v5046
        %vm5053 = vmor %vm5051, %vm5052
        %v5054 = vsel %vm5053, %v5046, %v5050
        %v5055 = vand.u32 2147483647, %v5039
        %vm5056 = vcmp.eq.f32.partialorder %v5055, 8.507059e+37
        %v5057 = vand.u32 %v5039, 2147483648
        %v5058 = vor.u32 1.1754944e-38, %v5057
        %v5059 = vsel %vm5056, %v5058, %v5054
        %v5060 = vmul.f32 %v5032, %v5059
        %v5061 = vrcp.pop %v5042
        %v5062 = vmul.f32 %v5042, %v5061
        %v5063 = vsub.f32 1.0, %v5062
        %v5064 = vmul.f32 %v5061, %v5063
        %v5065 = vadd.f32 %v5061, %v5064
        %vm5066 = vweird.f32 %v5042
        %vm5067 = vweird.f32 %v5061
        %vm5068 = vmor %vm5066, %vm5067
        %v5069 = vsel %vm5068, %v5061, %v5065
        %v5070 = vand.u32 2147483647, %v5042
        %vm5071 = vcmp.eq.f32.partialorder %v5070, 8.507059e+37
        %v5072 = vand.u32 %v5042, 2147483648
        %v5073 = vor.u32 1.1754944e-38, %v5072
        %v5074 = vsel %vm5071, %v5073, %v5069
        %v5075 = vmul.f32 %v5034, %v5074
        %v5076 = vrcp.pop %v5045
        %v5077 = vmul.f32 %v5045, %v5076
        %v5078 = vsub.f32 1.0, %v5077
        %v5079 = vmul.f32 %v5076, %v5078
        %v5080 = vadd.f32 %v5076, %v5079
        %vm5081 = vweird.f32 %v5045
        %vm5082 = vweird.f32 %v5076
        %vm5083 = vmor %vm5081, %vm5082
        %v5084 = vsel %vm5083, %v5076, %v5080
        %v5085 = vand.u32 2147483647, %v5045
        %vm5086 = vcmp.eq.f32.partialorder %v5085, 8.507059e+37
        %v5087 = vand.u32 %v5045, 2147483648
        %v5088 = vor.u32 1.1754944e-38, %v5087
        %v5089 = vsel %vm5086, %v5088, %v5084
        %v5090 = vmul.f32 %v5036, %v5089
        %v5091 = vpack.c.bf16 %v5075, %v5060
        %v5092 = vpack.c.bf16 %v5090, %v5090
        %5093 = vrot.lane.b32.xlu0 %v4794, 64
        %v5094 = vpop.permute.xlu0 %5093
        %5095 = vrot.lane.b32.xlu0 %v4795, 64
        %v5096 = vpop.permute.xlu0 %5095
        %v5099 = vsel %vm3514, %v5091, 0
        %v5102 = vsel %vm3514, %v5092, 0
        %v5105 = vsel %vm3604, %v5096, 0
        %5107 = vmatpush.bf16.msra.mxu0 0
        %5108 = vmatpush.bf16.msra.mxu0 0
        %5109 = vmatpush.bf16.msra.mxu0 0
        %5110 = vmatpush.bf16.msra.mxu0 0
        %5111 = vmatpush.bf16.msra.mxu0 0
        %5112 = vmatpush.bf16.msra.mxu0 0
        %5113 = vmatpush.bf16.msra.mxu0 %v5105
        %5114 = vmatpush.bf16.msra.mxu0 %v5094
        %5115 = vmatmul.bf16.gmra.mxu0 %v5099
        %v5116 = vpop.f32.mrf.mxu0
        %v5117 = vadd.f32 0.0, %v5116
        %v5118 = vpop.f32.mrf.mxu0
        %v5119 = vadd.f32 0.0, %v5118
        %5120 = vmatmul.bf16.gmra.mxu0 %v5102
        %v5121 = vpop.f32.mrf.mxu0
        %v5122 = vadd.f32 0.0, %v5121
        %v5123 = vpop.f32.mrf.mxu0
        %5124 = vdwg.mxu0
        %v5125 = vpack.c.bf16 %v5119, %v5117
        %v5126 = vpack.c.bf16 %v5122, %v5122
        %v5127 = vld [vmem:[%s1026 + $0x1e0] sm:$0xff]
        %v5128 = vld [vmem:[%s1026 + $0x1e8] sm:$0xf]
        %v5129 = vld [vmem:[%s1026 + $0x1ec] sm:$0xff]
        %v5130 = vld [vmem:[%s1026 + $0x1f4] sm:$0xf]
        %v5131 = vld [vmem:[%s1026 + $0x1f8] sm:$0xff]
        %v5132 = vld [vmem:[%s1026 + $0x200] sm:$0xf]
        %v5133 = vld [vmem:[%s1026 + $0x204] sm:$0xff]
        %v5134 = vld [vmem:[%s1026 + $0x20c] sm:$0xf]
        %v5135 = vld [vmem:[%s1026 + $0x210] sm:$0xff]
        %v5136 = vld [vmem:[%s1026 + $0x218] sm:$0xf]
        %v5137 = vld [vmem:[%s1026 + $0x21c] sm:$0xff]
        %v5138 = vld [vmem:[%s1026 + $0x224] sm:$0xf]
        %v5139 = vld [vmem:[%s1026 + $0x228] sm:$0xff]
        %v5140 = vld [vmem:[%s1026 + $0x230] sm:$0xf]
        %v5141 = vld [vmem:[%s1026 + $0x234] sm:$0xff]
        %v5142 = vld [vmem:[%s1026 + $0x23c] sm:$0xf]
        %v5159 = vunpack.c.l.b16 %v5127
        %v5160 = vunpack.c.h.b16 %v5127
        %v5161 = vunpack.c.l.b16 %v5128
        %v5162 = vunpack.c.l.b16 %v5129
        %v5163 = vunpack.c.h.b16 %v5129
        %v5164 = vunpack.c.l.b16 %v5130
        %v5165 = vunpack.c.l.b16 %v5131
        %v5166 = vunpack.c.h.b16 %v5131
        %v5167 = vunpack.c.l.b16 %v5132
        %v5168 = vunpack.c.l.b16 %v5133
        %v5169 = vunpack.c.h.b16 %v5133
        %v5170 = vunpack.c.l.b16 %v5134
        %v5171 = vunpack.c.l.b16 %v5135
        %v5172 = vunpack.c.h.b16 %v5135
        %v5173 = vunpack.c.l.b16 %v5136
        %v5174 = vunpack.c.l.b16 %v5137
        %v5175 = vunpack.c.h.b16 %v5137
        %v5176 = vunpack.c.l.b16 %v5138
        %v5177 = vunpack.c.l.b16 %v5139
        %v5178 = vunpack.c.h.b16 %v5139
        %v5179 = vunpack.c.l.b16 %v5140
        %v5180 = vunpack.c.l.b16 %v5141
        %v5181 = vunpack.c.h.b16 %v5141
        %v5182 = vunpack.c.l.b16 %v5142
        %v5183 = vpack.c.b16 %v5162, %v5159
        %v5184 = vpack.c.b16 %v5163, %v5160
        %v5185 = vpack.c.b16 %v5164, %v5161
        %v5186 = vpack.c.b16 %v5168, %v5165
        %v5187 = vpack.c.b16 %v5169, %v5166
        %v5188 = vpack.c.b16 %v5170, %v5167
        %v5189 = vpack.c.b16 %v5174, %v5171
        %v5190 = vpack.c.b16 %v5175, %v5172
        %v5191 = vpack.c.b16 %v5176, %v5173
        %v5192 = vpack.c.b16 %v5180, %v5177
        %v5193 = vpack.c.b16 %v5181, %v5178
        %v5194 = vpack.c.b16 %v5182, %v5179
        %v5208 = vsel %vm3477, %v5125, 0
        %v5211 = vsel %vm3477, %v5126, 0
        %5213 = vmatpush.bf16.msra.mxu0 0
        %5214 = vmatpush.bf16.msra.mxu0 0
        %5215 = vmatpush.bf16.msra.mxu0 0
        %5216 = vmatpush.bf16.msra.mxu0 0
        %5217 = vmatpush.bf16.msra.mxu0 %v5192
        %5218 = vmatpush.bf16.msra.mxu0 %v5189
        %5219 = vmatpush.bf16.msra.mxu0 %v5186
        %5220 = vmatpush.bf16.msra.mxu0 %v5183
        %5221 = vmatmul.bf16.gmra.mxu0 %v5208
        %v5222 = vpop.f32.mrf.mxu0
        %v5223 = vadd.f32 0.0, %v5222
        %v5224 = vpop.f32.mrf.mxu0
        %v5225 = vadd.f32 0.0, %v5224
        %5226 = vmatmul.bf16.gmra.mxu0 %v5211
        %v5227 = vpop.f32.mrf.mxu0
        %v5228 = vadd.f32 0.0, %v5227
        %v5229 = vpop.f32.mrf.mxu0
        %5230 = vdwg.mxu0
        %5231 = vmatpush.bf16.msra.mxu0 0
        %5232 = vmatpush.bf16.msra.mxu0 0
        %5233 = vmatpush.bf16.msra.mxu0 0
        %5234 = vmatpush.bf16.msra.mxu0 0
        %5235 = vmatpush.bf16.msra.mxu0 %v5193
        %5236 = vmatpush.bf16.msra.mxu0 %v5190
        %5237 = vmatpush.bf16.msra.mxu0 %v5187
        %5238 = vmatpush.bf16.msra.mxu0 %v5184
        %5239 = vmatmul.bf16.gmra.mxu0 %v5208
        %v5240 = vpop.f32.mrf.mxu0
        %v5241 = vadd.f32 0.0, %v5240
        %v5242 = vpop.f32.mrf.mxu0
        %v5243 = vadd.f32 0.0, %v5242
        %5244 = vmatmul.bf16.gmra.mxu0 %v5211
        %v5245 = vpop.f32.mrf.mxu0
        %v5246 = vadd.f32 0.0, %v5245
        %v5247 = vpop.f32.mrf.mxu0
        %5248 = vdwg.mxu0
        %5249 = vmatpush.bf16.msra.mxu0 0
        %5250 = vmatpush.bf16.msra.mxu0 0
        %5251 = vmatpush.bf16.msra.mxu0 0
        %5252 = vmatpush.bf16.msra.mxu0 0
        %5253 = vmatpush.bf16.msra.mxu0 %v5194
        %5254 = vmatpush.bf16.msra.mxu0 %v5191
        %5255 = vmatpush.bf16.msra.mxu0 %v5188
        %5256 = vmatpush.bf16.msra.mxu0 %v5185
        %5257 = vmatmul.bf16.gmra.mxu0 %v5208
        %v5258 = vpop.f32.mrf.mxu0
        %v5259 = vadd.f32 0.0, %v5258
        %v5260 = vpop.f32.mrf.mxu0
        %v5261 = vadd.f32 0.0, %v5260
        %5262 = vmatmul.bf16.gmra.mxu0 %v5211
        %v5263 = vpop.f32.mrf.mxu0
        %v5264 = vadd.f32 0.0, %v5263
        %v5265 = vpop.f32.mrf.mxu0
        %5266 = vdwg.mxu0
        %v5267 = vadd.f32 %v4966, %v5223
        %v5268 = vadd.f32 %v4967, %v5241
        %v5269 = vadd.f32 %v4968, %v5259
        %v5270 = vadd.f32 %v4969, %v5225
        %v5271 = vadd.f32 %v4970, %v5243
        %v5272 = vadd.f32 %v4971, %v5261
        %v5273 = vadd.f32 %v4972, %v5228
        %v5274 = vadd.f32 %v4973, %v5246
        %v5275 = vadd.f32 %v4974, %v5264
        %v5276 = vld [vmem:[%s1036] sm:$0x7]
        %v5278 = vperm.slane %v5276, 0
        %v5279 = vperm.slane %v5276, 1
        %v5280 = vperm.slane %v5276, 2
        %v5284 = vadd.f32 %v5267, %v5278
        %v5285 = vadd.f32 %v5268, %v5279
        %v5286 = vadd.f32 %v5269, %v5280
        %v5287 = vadd.f32 %v5270, %v5278
        %v5288 = vadd.f32 %v5271, %v5279
        %v5289 = vadd.f32 %v5272, %v5280
        %v5290 = vadd.f32 %v5273, %v5278
        %v5291 = vadd.f32 %v5274, %v5279
        %v5292 = vadd.f32 %v5275, %v5280
        %v5293 = vld [vmem:[%s1046] sm:$0x7]
        %v5295 = vperm.slane %v5293, 0
        %v5296 = vperm.slane %v5293, 1
        %v5297 = vperm.slane %v5293, 2
        %v5301 = vmul.f32 %v5284, %v5295
        %v5302 = vmul.f32 %v5285, %v5296
        %v5303 = vmul.f32 %v5286, %v5297
        %v5304 = vmul.f32 %v5287, %v5295
        %v5305 = vmul.f32 %v5288, %v5296
        %v5306 = vmul.f32 %v5289, %v5297
        %v5307 = vmul.f32 %v5290, %v5295
        %v5308 = vmul.f32 %v5291, %v5296
        %v5309 = vmul.f32 %v5292, %v5297
        %v5310 = vadd.f32 %v1445, %v5301
        %v5311 = vadd.f32 %v1446, %v5302
        %v5312 = vadd.f32 %v1447, %v5303
        %v5313 = vadd.f32 %v1448, %v5304
        %v5314 = vadd.f32 %v1449, %v5305
        %v5315 = vadd.f32 %v1450, %v5306
        %v5316 = vadd.f32 %v1451, %v5307
        %v5317 = vadd.f32 %v1452, %v5308
        %v5318 = vadd.f32 %v1453, %v5309
        %v5319 = vadd.f32 %v5310, %v5311
        %v5320 = vadd.f32 %v5319, %v5312
        %5321 = vadd.xlane.f32.xlu0 %v5320
        %v5322 = vpop.xlane.xlu0 %5321
        %v5323 = vadd.f32 %v5313, %v5314
        %v5324 = vadd.f32 %v5323, %v5315
        %5325 = vadd.xlane.f32.xlu0 %v5324
        %v5326 = vpop.xlane.xlu0 %5325
        %v5327 = vadd.f32 %v5316, %v5317
        %v5328 = vadd.f32 %v5327, %v5318
        %5329 = vadd.xlane.f32.xlu0 %v5328
        %v5330 = vpop.xlane.xlu0 %5329
        %v5331 = vmul.f32 %v5322, %v1472
        %v5332 = vmul.f32 %v5326, %v1472
        %v5333 = vmul.f32 %v5330, %v1472
        %v5334 = vsub.f32 %v5310, %v5331
        %v5335 = vsub.f32 %v5311, %v5331
        %v5336 = vsub.f32 %v5312, %v5331
        %v5337 = vsub.f32 %v5313, %v5332
        %v5338 = vsub.f32 %v5314, %v5332
        %v5339 = vsub.f32 %v5315, %v5332
        %v5340 = vsub.f32 %v5316, %v5333
        %v5341 = vsub.f32 %v5317, %v5333
        %v5342 = vsub.f32 %v5318, %v5333
        %v5343 = vmul.f32 %v5334, %v5334
        %v5344 = vmul.f32 %v5335, %v5335
        %v5345 = vmul.f32 %v5336, %v5336
        %v5346 = vmul.f32 %v5337, %v5337
        %v5347 = vmul.f32 %v5338, %v5338
        %v5348 = vmul.f32 %v5339, %v5339
        %v5349 = vmul.f32 %v5340, %v5340
        %v5350 = vmul.f32 %v5341, %v5341
        %v5351 = vmul.f32 %v5342, %v5342
        %v5352 = vadd.f32 %v5343, %v5344
        %v5353 = vadd.f32 %v5352, %v5345
        %5354 = vadd.xlane.f32.xlu0 %v5353
        %v5355 = vpop.xlane.xlu0 %5354
        %v5356 = vadd.f32 %v5346, %v5347
        %v5357 = vadd.f32 %v5356, %v5348
        %5358 = vadd.xlane.f32.xlu0 %v5357
        %v5359 = vpop.xlane.xlu0 %5358
        %v5360 = vadd.f32 %v5349, %v5350
        %v5361 = vadd.f32 %v5360, %v5351
        %5362 = vadd.xlane.f32.xlu0 %v5361
        %v5363 = vpop.xlane.xlu0 %5362
        %v5364 = vmul.f32 %v5355, %v1472
        %v5365 = vmul.f32 %v5359, %v1472
        %v5366 = vmul.f32 %v5363, %v1472
        %v5367 = vadd.f32 %v5364, 1e-06
        %v5368 = vadd.f32 %v5365, 1e-06
        %v5369 = vadd.f32 %v5366, 1e-06
        %v5370 = vrsqrt.pop %v5367
        %v5371 = vmul.f32 %v5370, %v5367
        %v5372 = vmul.f32 %v5371, %v5370
        %v5373 = vmul.f32 0.5, %v5372
        %v5374 = vsub.f32 1.5, %v5373
        %v5375 = vmul.f32 %v5370, %v5374
        %vm5376 = vweird.f32 %v5367
        %vm5377 = vweird.f32 %v5370
        %vm5378 = vmor %vm5376, %vm5377
        %v5379 = vsel %vm5378, %v5370, %v5375
        %v5380 = vrsqrt.pop %v5368
        %v5381 = vmul.f32 %v5380, %v5368
        %v5382 = vmul.f32 %v5381, %v5380
        %v5383 = vmul.f32 0.5, %v5382
        %v5384 = vsub.f32 1.5, %v5383
        %v5385 = vmul.f32 %v5380, %v5384
        %vm5386 = vweird.f32 %v5368
        %vm5387 = vweird.f32 %v5380
        %vm5388 = vmor %vm5386, %vm5387
        %v5389 = vsel %vm5388, %v5380, %v5385
        %v5390 = vrsqrt.pop %v5369
        %v5391 = vmul.f32 %v5390, %v5369
        %v5392 = vmul.f32 %v5391, %v5390
        %v5393 = vmul.f32 0.5, %v5392
        %v5394 = vsub.f32 1.5, %v5393
        %v5395 = vmul.f32 %v5390, %v5394
        %vm5396 = vweird.f32 %v5369
        %vm5397 = vweird.f32 %v5390
        %vm5398 = vmor %vm5396, %vm5397
        %v5399 = vsel %vm5398, %v5390, %v5395
        %v5400 = vmul.f32 %v5334, %v5379
        %v5401 = vmul.f32 %v5335, %v5379
        %v5402 = vmul.f32 %v5336, %v5379
        %v5403 = vmul.f32 %v5337, %v5389
        %v5404 = vmul.f32 %v5338, %v5389
        %v5405 = vmul.f32 %v5339, %v5389
        %v5406 = vmul.f32 %v5340, %v5399
        %v5407 = vmul.f32 %v5341, %v5399
        %v5408 = vmul.f32 %v5342, %v5399
        %v5409 = vld [vmem:[%s1056] sm:$0x7]
        %v5411 = vperm.slane %v5409, 0
        %v5412 = vperm.slane %v5409, 1
        %v5413 = vperm.slane %v5409, 2
        %v5417 = vmul.f32 %v5400, %v5411
        %v5418 = vmul.f32 %v5401, %v5412
        %v5419 = vmul.f32 %v5402, %v5413
        %v5420 = vmul.f32 %v5403, %v5411
        %v5421 = vmul.f32 %v5404, %v5412
        %v5422 = vmul.f32 %v5405, %v5413
        %v5423 = vmul.f32 %v5406, %v5411
        %v5424 = vmul.f32 %v5407, %v5412
        %v5425 = vmul.f32 %v5408, %v5413
        %v5426 = vld [vmem:[%s1066] sm:$0x7]
        %v5428 = vperm.slane %v5426, 0
        %v5429 = vperm.slane %v5426, 1
        %v5430 = vperm.slane %v5426, 2
        %v5434 = vadd.f32 %v5417, %v5428
        %v5435 = vadd.f32 %v5418, %v5429
        %v5436 = vadd.f32 %v5419, %v5430
        %v5437 = vadd.f32 %v5420, %v5428
        %v5438 = vadd.f32 %v5421, %v5429
        %v5439 = vadd.f32 %v5422, %v5430
        %v5440 = vadd.f32 %v5423, %v5428
        %v5441 = vadd.f32 %v5424, %v5429
        %v5442 = vadd.f32 %v5425, %v5430
        %v5443 = vpack.c.bf16 %v5437, %v5434
        %v5444 = vpack.c.bf16 %v5438, %v5435
        %v5445 = vpack.c.bf16 %v5439, %v5436
        %v5446 = vpack.c.bf16 %v5440, %v5440
        %v5447 = vpack.c.bf16 %v5441, %v5441
        %v5448 = vpack.c.bf16 %v5442, %v5442
        %v5449 = vld [vmem:[%s1076] sm:$0xff]
        %v5450 = vld [vmem:[%s1076 + $0x8] sm:$0xff]
        %v5451 = vld [vmem:[%s1076 + $0x10] sm:$0xff]
        %v5452 = vld [vmem:[%s1076 + $0x18] sm:$0xff]
        %v5453 = vld [vmem:[%s1076 + $0x20] sm:$0xff]
        %v5454 = vld [vmem:[%s1076 + $0x28] sm:$0xff]
        %v5455 = vld [vmem:[%s1076 + $0x30] sm:$0xff]
        %v5456 = vld [vmem:[%s1076 + $0x38] sm:$0xff]
        %v5457 = vld [vmem:[%s1076 + $0x40] sm:$0xff]
        %v5458 = vld [vmem:[%s1076 + $0x48] sm:$0xff]
        %v5459 = vld [vmem:[%s1076 + $0x50] sm:$0xff]
        %v5460 = vld [vmem:[%s1076 + $0x58] sm:$0xff]
        %v5461 = vld [vmem:[%s1076 + $0x60] sm:$0xff]
        %v5462 = vld [vmem:[%s1076 + $0x68] sm:$0xff]
        %v5463 = vld [vmem:[%s1076 + $0x70] sm:$0xff]
        %v5464 = vld [vmem:[%s1076 + $0x78] sm:$0xff]
        %v5465 = vld [vmem:[%s1076 + $0x80] sm:$0xff]
        %v5466 = vld [vmem:[%s1076 + $0x88] sm:$0xff]
        %v5467 = vld [vmem:[%s1076 + $0x90] sm:$0xff]
        %v5468 = vld [vmem:[%s1076 + $0x98] sm:$0xff]
        %v5469 = vld [vmem:[%s1076 + $0xa0] sm:$0xff]
        %v5470 = vld [vmem:[%s1076 + $0xa8] sm:$0xff]
        %v5471 = vld [vmem:[%s1076 + $0xb0] sm:$0xff]
        %v5472 = vld [vmem:[%s1076 + $0xb8] sm:$0xff]
        %v5473 = vld [vmem:[%s1076 + $0xc0] sm:$0xff]
        %v5474 = vld [vmem:[%s1076 + $0xc8] sm:$0xff]
        %v5475 = vld [vmem:[%s1076 + $0xd0] sm:$0xff]
        %v5476 = vld [vmem:[%s1076 + $0xd8] sm:$0xff]
        %v5477 = vld [vmem:[%s1076 + $0xe0] sm:$0xff]
        %v5478 = vld [vmem:[%s1076 + $0xe8] sm:$0xff]
        %v5479 = vld [vmem:[%s1076 + $0xf0] sm:$0xff]
        %v5480 = vld [vmem:[%s1076 + $0xf8] sm:$0xff]
        %v5481 = vld [vmem:[%s1076 + $0x100] sm:$0xff]
        %v5482 = vld [vmem:[%s1076 + $0x108] sm:$0xff]
        %v5483 = vld [vmem:[%s1076 + $0x110] sm:$0xff]
        %v5484 = vld [vmem:[%s1076 + $0x118] sm:$0xff]
        %v5485 = vld [vmem:[%s1076 + $0x120] sm:$0xff]
        %v5486 = vld [vmem:[%s1076 + $0x128] sm:$0xff]
        %v5487 = vld [vmem:[%s1076 + $0x130] sm:$0xff]
        %v5488 = vld [vmem:[%s1076 + $0x138] sm:$0xff]
        %v5489 = vld [vmem:[%s1076 + $0x140] sm:$0xff]
        %v5490 = vld [vmem:[%s1076 + $0x148] sm:$0xff]
        %v5491 = vld [vmem:[%s1076 + $0x150] sm:$0xff]
        %v5492 = vld [vmem:[%s1076 + $0x158] sm:$0xff]
        %v5493 = vld [vmem:[%s1076 + $0x160] sm:$0xff]
        %v5494 = vld [vmem:[%s1076 + $0x168] sm:$0xff]
        %v5495 = vld [vmem:[%s1076 + $0x170] sm:$0xff]
        %v5496 = vld [vmem:[%s1076 + $0x178] sm:$0xff]
        %v5497 = vld [vmem:[%s1076 + $0x180] sm:$0xff]
        %v5498 = vld [vmem:[%s1076 + $0x188] sm:$0xff]
        %v5499 = vld [vmem:[%s1076 + $0x190] sm:$0xff]
        %v5500 = vld [vmem:[%s1076 + $0x198] sm:$0xff]
        %v5501 = vld [vmem:[%s1076 + $0x1a0] sm:$0xff]
        %v5502 = vld [vmem:[%s1076 + $0x1a8] sm:$0xff]
        %v5503 = vld [vmem:[%s1076 + $0x1b0] sm:$0xff]
        %v5504 = vld [vmem:[%s1076 + $0x1b8] sm:$0xff]
        %v5505 = vld [vmem:[%s1076 + $0x1c0] sm:$0xff]
        %v5506 = vld [vmem:[%s1076 + $0x1c8] sm:$0xff]
        %v5507 = vld [vmem:[%s1076 + $0x1d0] sm:$0xff]
        %v5508 = vld [vmem:[%s1076 + $0x1d8] sm:$0xff]
        %v5509 = vld [vmem:[%s1076 + $0x1e0] sm:$0xff]
        %v5510 = vld [vmem:[%s1076 + $0x1e8] sm:$0xff]
        %v5511 = vld [vmem:[%s1076 + $0x1f0] sm:$0xff]
        %v5512 = vld [vmem:[%s1076 + $0x1f8] sm:$0xff]
        %v5513 = vld [vmem:[%s1076 + $0x200] sm:$0xff]
        %v5514 = vld [vmem:[%s1076 + $0x208] sm:$0xff]
        %v5515 = vld [vmem:[%s1076 + $0x210] sm:$0xff]
        %v5516 = vld [vmem:[%s1076 + $0x218] sm:$0xff]
        %v5517 = vld [vmem:[%s1076 + $0x220] sm:$0xff]
        %v5518 = vld [vmem:[%s1076 + $0x228] sm:$0xff]
        %v5519 = vld [vmem:[%s1076 + $0x230] sm:$0xff]
        %v5520 = vld [vmem:[%s1076 + $0x238] sm:$0xff]
        %v5521 = vld [vmem:[%s1076 + $0x240] sm:$0xff]
        %v5522 = vld [vmem:[%s1076 + $0x248] sm:$0xff]
        %v5523 = vld [vmem:[%s1076 + $0x250] sm:$0xff]
        %v5524 = vld [vmem:[%s1076 + $0x258] sm:$0xff]
        %v5525 = vld [vmem:[%s1076 + $0x260] sm:$0xff]
        %v5526 = vld [vmem:[%s1076 + $0x268] sm:$0xff]
        %v5527 = vld [vmem:[%s1076 + $0x270] sm:$0xff]
        %v5528 = vld [vmem:[%s1076 + $0x278] sm:$0xff]
        %v5529 = vld [vmem:[%s1076 + $0x280] sm:$0xff]
        %v5530 = vld [vmem:[%s1076 + $0x288] sm:$0xff]
        %v5531 = vld [vmem:[%s1076 + $0x290] sm:$0xff]
        %v5532 = vld [vmem:[%s1076 + $0x298] sm:$0xff]
        %v5533 = vld [vmem:[%s1076 + $0x2a0] sm:$0xff]
        %v5534 = vld [vmem:[%s1076 + $0x2a8] sm:$0xff]
        %v5535 = vld [vmem:[%s1076 + $0x2b0] sm:$0xff]
        %v5536 = vld [vmem:[%s1076 + $0x2b8] sm:$0xff]
        %v5537 = vld [vmem:[%s1076 + $0x2c0] sm:$0xff]
        %v5538 = vld [vmem:[%s1076 + $0x2c8] sm:$0xff]
        %v5539 = vld [vmem:[%s1076 + $0x2d0] sm:$0xff]
        %v5540 = vld [vmem:[%s1076 + $0x2d8] sm:$0xff]
        %v5541 = vld [vmem:[%s1076 + $0x2e0] sm:$0xff]
        %v5542 = vld [vmem:[%s1076 + $0x2e8] sm:$0xff]
        %v5543 = vld [vmem:[%s1076 + $0x2f0] sm:$0xff]
        %v5544 = vld [vmem:[%s1076 + $0x2f8] sm:$0xff]
        %v5545 = vld [vmem:[%s1076 + $0x300] sm:$0xff]
        %v5546 = vld [vmem:[%s1076 + $0x308] sm:$0xff]
        %v5547 = vld [vmem:[%s1076 + $0x310] sm:$0xff]
        %v5548 = vld [vmem:[%s1076 + $0x318] sm:$0xff]
        %v5549 = vld [vmem:[%s1076 + $0x320] sm:$0xff]
        %v5550 = vld [vmem:[%s1076 + $0x328] sm:$0xff]
        %v5551 = vld [vmem:[%s1076 + $0x330] sm:$0xff]
        %v5552 = vld [vmem:[%s1076 + $0x338] sm:$0xff]
        %v5553 = vld [vmem:[%s1076 + $0x340] sm:$0xff]
        %v5554 = vld [vmem:[%s1076 + $0x348] sm:$0xff]
        %v5555 = vld [vmem:[%s1076 + $0x350] sm:$0xff]
        %v5556 = vld [vmem:[%s1076 + $0x358] sm:$0xff]
        %v5557 = vld [vmem:[%s1076 + $0x360] sm:$0xff]
        %v5558 = vld [vmem:[%s1076 + $0x368] sm:$0xff]
        %v5559 = vld [vmem:[%s1076 + $0x370] sm:$0xff]
        %v5560 = vld [vmem:[%s1076 + $0x378] sm:$0xff]
        %v5561 = vld [vmem:[%s1076 + $0x380] sm:$0xff]
        %v5562 = vld [vmem:[%s1076 + $0x388] sm:$0xff]
        %v5563 = vld [vmem:[%s1076 + $0x390] sm:$0xff]
        %v5564 = vld [vmem:[%s1076 + $0x398] sm:$0xff]
        %v5565 = vld [vmem:[%s1076 + $0x3a0] sm:$0xff]
        %v5566 = vld [vmem:[%s1076 + $0x3a8] sm:$0xff]
        %v5567 = vld [vmem:[%s1076 + $0x3b0] sm:$0xff]
        %v5568 = vld [vmem:[%s1076 + $0x3b8] sm:$0xff]
        %v5569 = vld [vmem:[%s1076 + $0x3c0] sm:$0xff]
        %v5570 = vld [vmem:[%s1076 + $0x3c8] sm:$0xff]
        %v5571 = vld [vmem:[%s1076 + $0x3d0] sm:$0xff]
        %v5572 = vld [vmem:[%s1076 + $0x3d8] sm:$0xff]
        %v5573 = vld [vmem:[%s1076 + $0x3e0] sm:$0xff]
        %v5574 = vld [vmem:[%s1076 + $0x3e8] sm:$0xff]
        %v5575 = vld [vmem:[%s1076 + $0x3f0] sm:$0xff]
        %v5576 = vld [vmem:[%s1076 + $0x3f8] sm:$0xff]
        %v5577 = vld [vmem:[%s1076 + $0x400] sm:$0xff]
        %v5578 = vld [vmem:[%s1076 + $0x408] sm:$0xff]
        %v5579 = vld [vmem:[%s1076 + $0x410] sm:$0xff]
        %v5580 = vld [vmem:[%s1076 + $0x418] sm:$0xff]
        %v5581 = vld [vmem:[%s1076 + $0x420] sm:$0xff]
        %v5582 = vld [vmem:[%s1076 + $0x428] sm:$0xff]
        %v5583 = vld [vmem:[%s1076 + $0x430] sm:$0xff]
        %v5584 = vld [vmem:[%s1076 + $0x438] sm:$0xff]
        %v5585 = vld [vmem:[%s1076 + $0x440] sm:$0xff]
        %v5586 = vld [vmem:[%s1076 + $0x448] sm:$0xff]
        %v5587 = vld [vmem:[%s1076 + $0x450] sm:$0xff]
        %v5588 = vld [vmem:[%s1076 + $0x458] sm:$0xff]
        %v5589 = vld [vmem:[%s1076 + $0x460] sm:$0xff]
        %v5590 = vld [vmem:[%s1076 + $0x468] sm:$0xff]
        %v5591 = vld [vmem:[%s1076 + $0x470] sm:$0xff]
        %v5592 = vld [vmem:[%s1076 + $0x478] sm:$0xff]
        %v5593 = vld [vmem:[%s1076 + $0x480] sm:$0xff]
        %v5594 = vld [vmem:[%s1076 + $0x488] sm:$0xff]
        %v5595 = vld [vmem:[%s1076 + $0x490] sm:$0xff]
        %v5596 = vld [vmem:[%s1076 + $0x498] sm:$0xff]
        %v5597 = vld [vmem:[%s1076 + $0x4a0] sm:$0xff]
        %v5598 = vld [vmem:[%s1076 + $0x4a8] sm:$0xff]
        %v5599 = vld [vmem:[%s1076 + $0x4b0] sm:$0xff]
        %v5600 = vld [vmem:[%s1076 + $0x4b8] sm:$0xff]
        %v5601 = vld [vmem:[%s1076 + $0x4c0] sm:$0xff]
        %v5602 = vld [vmem:[%s1076 + $0x4c8] sm:$0xff]
        %v5603 = vld [vmem:[%s1076 + $0x4d0] sm:$0xff]
        %v5604 = vld [vmem:[%s1076 + $0x4d8] sm:$0xff]
        %v5605 = vld [vmem:[%s1076 + $0x4e0] sm:$0xff]
        %v5606 = vld [vmem:[%s1076 + $0x4e8] sm:$0xff]
        %v5607 = vld [vmem:[%s1076 + $0x4f0] sm:$0xff]
        %v5608 = vld [vmem:[%s1076 + $0x4f8] sm:$0xff]
        %v5609 = vld [vmem:[%s1076 + $0x500] sm:$0xff]
        %v5610 = vld [vmem:[%s1076 + $0x508] sm:$0xff]
        %v5611 = vld [vmem:[%s1076 + $0x510] sm:$0xff]
        %v5612 = vld [vmem:[%s1076 + $0x518] sm:$0xff]
        %v5613 = vld [vmem:[%s1076 + $0x520] sm:$0xff]
        %v5614 = vld [vmem:[%s1076 + $0x528] sm:$0xff]
        %v5615 = vld [vmem:[%s1076 + $0x530] sm:$0xff]
        %v5616 = vld [vmem:[%s1076 + $0x538] sm:$0xff]
        %v5617 = vld [vmem:[%s1076 + $0x540] sm:$0xff]
        %v5618 = vld [vmem:[%s1076 + $0x548] sm:$0xff]
        %v5619 = vld [vmem:[%s1076 + $0x550] sm:$0xff]
        %v5620 = vld [vmem:[%s1076 + $0x558] sm:$0xff]
        %v5621 = vld [vmem:[%s1076 + $0x560] sm:$0xff]
        %v5622 = vld [vmem:[%s1076 + $0x568] sm:$0xff]
        %v5623 = vld [vmem:[%s1076 + $0x570] sm:$0xff]
        %v5624 = vld [vmem:[%s1076 + $0x578] sm:$0xff]
        %v5625 = vld [vmem:[%s1076 + $0x580] sm:$0xff]
        %v5626 = vld [vmem:[%s1076 + $0x588] sm:$0xff]
        %v5627 = vld [vmem:[%s1076 + $0x590] sm:$0xff]
        %v5628 = vld [vmem:[%s1076 + $0x598] sm:$0xff]
        %v5629 = vld [vmem:[%s1076 + $0x5a0] sm:$0xff]
        %v5630 = vld [vmem:[%s1076 + $0x5a8] sm:$0xff]
        %v5631 = vld [vmem:[%s1076 + $0x5b0] sm:$0xff]
        %v5632 = vld [vmem:[%s1076 + $0x5b8] sm:$0xff]
        %v5633 = vld [vmem:[%s1076 + $0x5c0] sm:$0xff]
        %v5634 = vld [vmem:[%s1076 + $0x5c8] sm:$0xff]
        %v5635 = vld [vmem:[%s1076 + $0x5d0] sm:$0xff]
        %v5636 = vld [vmem:[%s1076 + $0x5d8] sm:$0xff]
        %v5637 = vld [vmem:[%s1076 + $0x5e0] sm:$0xff]
        %v5638 = vld [vmem:[%s1076 + $0x5e8] sm:$0xff]
        %v5639 = vld [vmem:[%s1076 + $0x5f0] sm:$0xff]
        %v5640 = vld [vmem:[%s1076 + $0x5f8] sm:$0xff]
        %v5641 = vld [vmem:[%s1076 + $0x600] sm:$0xff]
        %v5642 = vld [vmem:[%s1076 + $0x608] sm:$0xff]
        %v5643 = vld [vmem:[%s1076 + $0x610] sm:$0xff]
        %v5644 = vld [vmem:[%s1076 + $0x618] sm:$0xff]
        %v5645 = vld [vmem:[%s1076 + $0x620] sm:$0xff]
        %v5646 = vld [vmem:[%s1076 + $0x628] sm:$0xff]
        %v5647 = vld [vmem:[%s1076 + $0x630] sm:$0xff]
        %v5648 = vld [vmem:[%s1076 + $0x638] sm:$0xff]
        %v5649 = vld [vmem:[%s1076 + $0x640] sm:$0xff]
        %v5650 = vld [vmem:[%s1076 + $0x648] sm:$0xff]
        %v5651 = vld [vmem:[%s1076 + $0x650] sm:$0xff]
        %v5652 = vld [vmem:[%s1076 + $0x658] sm:$0xff]
        %v5653 = vld [vmem:[%s1076 + $0x660] sm:$0xff]
        %v5654 = vld [vmem:[%s1076 + $0x668] sm:$0xff]
        %v5655 = vld [vmem:[%s1076 + $0x670] sm:$0xff]
        %v5656 = vld [vmem:[%s1076 + $0x678] sm:$0xff]
        %v5657 = vld [vmem:[%s1076 + $0x680] sm:$0xff]
        %v5658 = vld [vmem:[%s1076 + $0x688] sm:$0xff]
        %v5659 = vld [vmem:[%s1076 + $0x690] sm:$0xff]
        %v5660 = vld [vmem:[%s1076 + $0x698] sm:$0xff]
        %v5661 = vld [vmem:[%s1076 + $0x6a0] sm:$0xff]
        %v5662 = vld [vmem:[%s1076 + $0x6a8] sm:$0xff]
        %v5663 = vld [vmem:[%s1076 + $0x6b0] sm:$0xff]
        %v5664 = vld [vmem:[%s1076 + $0x6b8] sm:$0xff]
        %v5665 = vld [vmem:[%s1076 + $0x6c0] sm:$0xff]
        %v5666 = vld [vmem:[%s1076 + $0x6c8] sm:$0xff]
        %v5667 = vld [vmem:[%s1076 + $0x6d0] sm:$0xff]
        %v5668 = vld [vmem:[%s1076 + $0x6d8] sm:$0xff]
        %v5669 = vld [vmem:[%s1076 + $0x6e0] sm:$0xff]
        %v5670 = vld [vmem:[%s1076 + $0x6e8] sm:$0xff]
        %v5671 = vld [vmem:[%s1076 + $0x6f0] sm:$0xff]
        %v5672 = vld [vmem:[%s1076 + $0x6f8] sm:$0xff]
        %v5673 = vld [vmem:[%s1076 + $0x700] sm:$0xff]
        %v5674 = vld [vmem:[%s1076 + $0x708] sm:$0xff]
        %v5675 = vld [vmem:[%s1076 + $0x710] sm:$0xff]
        %v5676 = vld [vmem:[%s1076 + $0x718] sm:$0xff]
        %v5677 = vld [vmem:[%s1076 + $0x720] sm:$0xff]
        %v5678 = vld [vmem:[%s1076 + $0x728] sm:$0xff]
        %v5679 = vld [vmem:[%s1076 + $0x730] sm:$0xff]
        %v5680 = vld [vmem:[%s1076 + $0x738] sm:$0xff]
        %v5681 = vld [vmem:[%s1076 + $0x740] sm:$0xff]
        %v5682 = vld [vmem:[%s1076 + $0x748] sm:$0xff]
        %v5683 = vld [vmem:[%s1076 + $0x750] sm:$0xff]
        %v5684 = vld [vmem:[%s1076 + $0x758] sm:$0xff]
        %v5685 = vld [vmem:[%s1076 + $0x760] sm:$0xff]
        %v5686 = vld [vmem:[%s1076 + $0x768] sm:$0xff]
        %v5687 = vld [vmem:[%s1076 + $0x770] sm:$0xff]
        %v5688 = vld [vmem:[%s1076 + $0x778] sm:$0xff]
        %v5689 = vld [vmem:[%s1076 + $0x780] sm:$0xff]
        %v5690 = vld [vmem:[%s1076 + $0x788] sm:$0xff]
        %v5691 = vld [vmem:[%s1076 + $0x790] sm:$0xff]
        %v5692 = vld [vmem:[%s1076 + $0x798] sm:$0xff]
        %v5693 = vld [vmem:[%s1076 + $0x7a0] sm:$0xff]
        %v5694 = vld [vmem:[%s1076 + $0x7a8] sm:$0xff]
        %v5695 = vld [vmem:[%s1076 + $0x7b0] sm:$0xff]
        %v5696 = vld [vmem:[%s1076 + $0x7b8] sm:$0xff]
        %v5697 = vld [vmem:[%s1076 + $0x7c0] sm:$0xff]
        %v5698 = vld [vmem:[%s1076 + $0x7c8] sm:$0xff]
        %v5699 = vld [vmem:[%s1076 + $0x7d0] sm:$0xff]
        %v5700 = vld [vmem:[%s1076 + $0x7d8] sm:$0xff]
        %v5701 = vld [vmem:[%s1076 + $0x7e0] sm:$0xff]
        %v5702 = vld [vmem:[%s1076 + $0x7e8] sm:$0xff]
        %v5703 = vld [vmem:[%s1076 + $0x7f0] sm:$0xff]
        %v5704 = vld [vmem:[%s1076 + $0x7f8] sm:$0xff]
        %v5705 = vld [vmem:[%s1076 + $0x800] sm:$0xff]
        %v5706 = vld [vmem:[%s1076 + $0x808] sm:$0xff]
        %v5707 = vld [vmem:[%s1076 + $0x810] sm:$0xff]
        %v5708 = vld [vmem:[%s1076 + $0x818] sm:$0xff]
        %v5709 = vld [vmem:[%s1076 + $0x820] sm:$0xff]
        %v5710 = vld [vmem:[%s1076 + $0x828] sm:$0xff]
        %v5711 = vld [vmem:[%s1076 + $0x830] sm:$0xff]
        %v5712 = vld [vmem:[%s1076 + $0x838] sm:$0xff]
        %v5713 = vld [vmem:[%s1076 + $0x840] sm:$0xff]
        %v5714 = vld [vmem:[%s1076 + $0x848] sm:$0xff]
        %v5715 = vld [vmem:[%s1076 + $0x850] sm:$0xff]
        %v5716 = vld [vmem:[%s1076 + $0x858] sm:$0xff]
        %v5717 = vld [vmem:[%s1076 + $0x860] sm:$0xff]
        %v5718 = vld [vmem:[%s1076 + $0x868] sm:$0xff]
        %v5719 = vld [vmem:[%s1076 + $0x870] sm:$0xff]
        %v5720 = vld [vmem:[%s1076 + $0x878] sm:$0xff]
        %v5721 = vld [vmem:[%s1076 + $0x880] sm:$0xff]
        %v5722 = vld [vmem:[%s1076 + $0x888] sm:$0xff]
        %v5723 = vld [vmem:[%s1076 + $0x890] sm:$0xff]
        %v5724 = vld [vmem:[%s1076 + $0x898] sm:$0xff]
        %v5725 = vld [vmem:[%s1076 + $0x8a0] sm:$0xff]
        %v5726 = vld [vmem:[%s1076 + $0x8a8] sm:$0xff]
        %v5727 = vld [vmem:[%s1076 + $0x8b0] sm:$0xff]
        %v5728 = vld [vmem:[%s1076 + $0x8b8] sm:$0xff]
        %v5729 = vld [vmem:[%s1076 + $0x8c0] sm:$0xff]
        %v5730 = vld [vmem:[%s1076 + $0x8c8] sm:$0xff]
        %v5731 = vld [vmem:[%s1076 + $0x8d0] sm:$0xff]
        %v5732 = vld [vmem:[%s1076 + $0x8d8] sm:$0xff]
        %v5733 = vld [vmem:[%s1076 + $0x8e0] sm:$0xff]
        %v5734 = vld [vmem:[%s1076 + $0x8e8] sm:$0xff]
        %v5735 = vld [vmem:[%s1076 + $0x8f0] sm:$0xff]
        %v5736 = vld [vmem:[%s1076 + $0x8f8] sm:$0xff]
        %v5737 = vld [vmem:[%s1086] sm:$0xff]
        %v5738 = vld [vmem:[%s1086 + $0x8] sm:$0xf]
        %v5741 = vperm.slane %v5737, 0
        %v5742 = vperm.slane %v5737, 1
        %v5743 = vperm.slane %v5737, 2
        %v5744 = vperm.slane %v5737, 3
        %v5745 = vperm.slane %v5737, 4
        %v5746 = vperm.slane %v5737, 5
        %v5747 = vperm.slane %v5737, 6
        %v5748 = vperm.slane %v5737, 7
        %v5749 = vperm.slane %v5738, 0
        %v5750 = vperm.slane %v5738, 1
        %v5751 = vperm.slane %v5738, 2
        %v5752 = vperm.slane %v5738, 3
        %v6053 = vunpack.c.l.b16 %v5449
        %v6054 = vunpack.c.h.b16 %v5449
        %v6055 = vunpack.c.l.b16 %v5450
        %v6056 = vunpack.c.h.b16 %v5450
        %v6057 = vunpack.c.l.b16 %v5451
        %v6058 = vunpack.c.h.b16 %v5451
        %v6059 = vunpack.c.l.b16 %v5452
        %v6060 = vunpack.c.h.b16 %v5452
        %v6061 = vunpack.c.l.b16 %v5453
        %v6062 = vunpack.c.h.b16 %v5453
        %v6063 = vunpack.c.l.b16 %v5454
        %v6064 = vunpack.c.h.b16 %v5454
        %v6065 = vunpack.c.l.b16 %v5455
        %v6066 = vunpack.c.h.b16 %v5455
        %v6067 = vunpack.c.l.b16 %v5456
        %v6068 = vunpack.c.h.b16 %v5456
        %v6069 = vunpack.c.l.b16 %v5457
        %v6070 = vunpack.c.h.b16 %v5457
        %v6071 = vunpack.c.l.b16 %v5458
        %v6072 = vunpack.c.h.b16 %v5458
        %v6073 = vunpack.c.l.b16 %v5459
        %v6074 = vunpack.c.h.b16 %v5459
        %v6075 = vunpack.c.l.b16 %v5460
        %v6076 = vunpack.c.h.b16 %v5460
        %v6077 = vunpack.c.l.b16 %v5461
        %v6078 = vunpack.c.h.b16 %v5461
        %v6079 = vunpack.c.l.b16 %v5462
        %v6080 = vunpack.c.h.b16 %v5462
        %v6081 = vunpack.c.l.b16 %v5463
        %v6082 = vunpack.c.h.b16 %v5463
        %v6083 = vunpack.c.l.b16 %v5464
        %v6084 = vunpack.c.h.b16 %v5464
        %v6085 = vunpack.c.l.b16 %v5465
        %v6086 = vunpack.c.h.b16 %v5465
        %v6087 = vunpack.c.l.b16 %v5466
        %v6088 = vunpack.c.h.b16 %v5466
        %v6089 = vunpack.c.l.b16 %v5467
        %v6090 = vunpack.c.h.b16 %v5467
        %v6091 = vunpack.c.l.b16 %v5468
        %v6092 = vunpack.c.h.b16 %v5468
        %v6093 = vunpack.c.l.b16 %v5469
        %v6094 = vunpack.c.h.b16 %v5469
        %v6095 = vunpack.c.l.b16 %v5470
        %v6096 = vunpack.c.h.b16 %v5470
        %v6097 = vunpack.c.l.b16 %v5471
        %v6098 = vunpack.c.h.b16 %v5471
        %v6099 = vunpack.c.l.b16 %v5472
        %v6100 = vunpack.c.h.b16 %v5472
        %v6101 = vunpack.c.l.b16 %v5473
        %v6102 = vunpack.c.h.b16 %v5473
        %v6103 = vunpack.c.l.b16 %v5474
        %v6104 = vunpack.c.h.b16 %v5474
        %v6105 = vunpack.c.l.b16 %v5475
        %v6106 = vunpack.c.h.b16 %v5475
        %v6107 = vunpack.c.l.b16 %v5476
        %v6108 = vunpack.c.h.b16 %v5476
        %v6109 = vunpack.c.l.b16 %v5477
        %v6110 = vunpack.c.h.b16 %v5477
        %v6111 = vunpack.c.l.b16 %v5478
        %v6112 = vunpack.c.h.b16 %v5478
        %v6113 = vunpack.c.l.b16 %v5479
        %v6114 = vunpack.c.h.b16 %v5479
        %v6115 = vunpack.c.l.b16 %v5480
        %v6116 = vunpack.c.h.b16 %v5480
        %v6117 = vunpack.c.l.b16 %v5481
        %v6118 = vunpack.c.h.b16 %v5481
        %v6119 = vunpack.c.l.b16 %v5482
        %v6120 = vunpack.c.h.b16 %v5482
        %v6121 = vunpack.c.l.b16 %v5483
        %v6122 = vunpack.c.h.b16 %v5483
        %v6123 = vunpack.c.l.b16 %v5484
        %v6124 = vunpack.c.h.b16 %v5484
        %v6125 = vunpack.c.l.b16 %v5485
        %v6126 = vunpack.c.h.b16 %v5485
        %v6127 = vunpack.c.l.b16 %v5486
        %v6128 = vunpack.c.h.b16 %v5486
        %v6129 = vunpack.c.l.b16 %v5487
        %v6130 = vunpack.c.h.b16 %v5487
        %v6131 = vunpack.c.l.b16 %v5488
        %v6132 = vunpack.c.h.b16 %v5488
        %v6133 = vunpack.c.l.b16 %v5489
        %v6134 = vunpack.c.h.b16 %v5489
        %v6135 = vunpack.c.l.b16 %v5490
        %v6136 = vunpack.c.h.b16 %v5490
        %v6137 = vunpack.c.l.b16 %v5491
        %v6138 = vunpack.c.h.b16 %v5491
        %v6139 = vunpack.c.l.b16 %v5492
        %v6140 = vunpack.c.h.b16 %v5492
        %v6141 = vunpack.c.l.b16 %v5493
        %v6142 = vunpack.c.h.b16 %v5493
        %v6143 = vunpack.c.l.b16 %v5494
        %v6144 = vunpack.c.h.b16 %v5494
        %v6145 = vunpack.c.l.b16 %v5495
        %v6146 = vunpack.c.h.b16 %v5495
        %v6147 = vunpack.c.l.b16 %v5496
        %v6148 = vunpack.c.h.b16 %v5496
        %v6149 = vunpack.c.l.b16 %v5497
        %v6150 = vunpack.c.h.b16 %v5497
        %v6151 = vunpack.c.l.b16 %v5498
        %v6152 = vunpack.c.h.b16 %v5498
        %v6153 = vunpack.c.l.b16 %v5499
        %v6154 = vunpack.c.h.b16 %v5499
        %v6155 = vunpack.c.l.b16 %v5500
        %v6156 = vunpack.c.h.b16 %v5500
        %v6157 = vunpack.c.l.b16 %v5501
        %v6158 = vunpack.c.h.b16 %v5501
        %v6159 = vunpack.c.l.b16 %v5502
        %v6160 = vunpack.c.h.b16 %v5502
        %v6161 = vunpack.c.l.b16 %v5503
        %v6162 = vunpack.c.h.b16 %v5503
        %v6163 = vunpack.c.l.b16 %v5504
        %v6164 = vunpack.c.h.b16 %v5504
        %v6165 = vunpack.c.l.b16 %v5505
        %v6166 = vunpack.c.h.b16 %v5505
        %v6167 = vunpack.c.l.b16 %v5506
        %v6168 = vunpack.c.h.b16 %v5506
        %v6169 = vunpack.c.l.b16 %v5507
        %v6170 = vunpack.c.h.b16 %v5507
        %v6171 = vunpack.c.l.b16 %v5508
        %v6172 = vunpack.c.h.b16 %v5508
        %v6173 = vunpack.c.l.b16 %v5509
        %v6174 = vunpack.c.h.b16 %v5509
        %v6175 = vunpack.c.l.b16 %v5510
        %v6176 = vunpack.c.h.b16 %v5510
        %v6177 = vunpack.c.l.b16 %v5511
        %v6178 = vunpack.c.h.b16 %v5511
        %v6179 = vunpack.c.l.b16 %v5512
        %v6180 = vunpack.c.h.b16 %v5512
        %v6181 = vunpack.c.l.b16 %v5513
        %v6182 = vunpack.c.h.b16 %v5513
        %v6183 = vunpack.c.l.b16 %v5514
        %v6184 = vunpack.c.h.b16 %v5514
        %v6185 = vunpack.c.l.b16 %v5515
        %v6186 = vunpack.c.h.b16 %v5515
        %v6187 = vunpack.c.l.b16 %v5516
        %v6188 = vunpack.c.h.b16 %v5516
        %v6189 = vunpack.c.l.b16 %v5517
        %v6190 = vunpack.c.h.b16 %v5517
        %v6191 = vunpack.c.l.b16 %v5518
        %v6192 = vunpack.c.h.b16 %v5518
        %v6193 = vunpack.c.l.b16 %v5519
        %v6194 = vunpack.c.h.b16 %v5519
        %v6195 = vunpack.c.l.b16 %v5520
        %v6196 = vunpack.c.h.b16 %v5520
        %v6197 = vunpack.c.l.b16 %v5521
        %v6198 = vunpack.c.h.b16 %v5521
        %v6199 = vunpack.c.l.b16 %v5522
        %v6200 = vunpack.c.h.b16 %v5522
        %v6201 = vunpack.c.l.b16 %v5523
        %v6202 = vunpack.c.h.b16 %v5523
        %v6203 = vunpack.c.l.b16 %v5524
        %v6204 = vunpack.c.h.b16 %v5524
        %v6205 = vunpack.c.l.b16 %v5525
        %v6206 = vunpack.c.h.b16 %v5525
        %v6207 = vunpack.c.l.b16 %v5526
        %v6208 = vunpack.c.h.b16 %v5526
        %v6209 = vunpack.c.l.b16 %v5527
        %v6210 = vunpack.c.h.b16 %v5527
        %v6211 = vunpack.c.l.b16 %v5528
        %v6212 = vunpack.c.h.b16 %v5528
        %v6213 = vunpack.c.l.b16 %v5529
        %v6214 = vunpack.c.h.b16 %v5529
        %v6215 = vunpack.c.l.b16 %v5530
        %v6216 = vunpack.c.h.b16 %v5530
        %v6217 = vunpack.c.l.b16 %v5531
        %v6218 = vunpack.c.h.b16 %v5531
        %v6219 = vunpack.c.l.b16 %v5532
        %v6220 = vunpack.c.h.b16 %v5532
        %v6221 = vunpack.c.l.b16 %v5533
        %v6222 = vunpack.c.h.b16 %v5533
        %v6223 = vunpack.c.l.b16 %v5534
        %v6224 = vunpack.c.h.b16 %v5534
        %v6225 = vunpack.c.l.b16 %v5535
        %v6226 = vunpack.c.h.b16 %v5535
        %v6227 = vunpack.c.l.b16 %v5536
        %v6228 = vunpack.c.h.b16 %v5536
        %v6229 = vunpack.c.l.b16 %v5537
        %v6230 = vunpack.c.h.b16 %v5537
        %v6231 = vunpack.c.l.b16 %v5538
        %v6232 = vunpack.c.h.b16 %v5538
        %v6233 = vunpack.c.l.b16 %v5539
        %v6234 = vunpack.c.h.b16 %v5539
        %v6235 = vunpack.c.l.b16 %v5540
        %v6236 = vunpack.c.h.b16 %v5540
        %v6237 = vunpack.c.l.b16 %v5541
        %v6238 = vunpack.c.h.b16 %v5541
        %v6239 = vunpack.c.l.b16 %v5542
        %v6240 = vunpack.c.h.b16 %v5542
        %v6241 = vunpack.c.l.b16 %v5543
        %v6242 = vunpack.c.h.b16 %v5543
        %v6243 = vunpack.c.l.b16 %v5544
        %v6244 = vunpack.c.h.b16 %v5544
        %v6245 = vunpack.c.l.b16 %v5545
        %v6246 = vunpack.c.h.b16 %v5545
        %v6247 = vunpack.c.l.b16 %v5546
        %v6248 = vunpack.c.h.b16 %v5546
        %v6249 = vunpack.c.l.b16 %v5547
        %v6250 = vunpack.c.h.b16 %v5547
        %v6251 = vunpack.c.l.b16 %v5548
        %v6252 = vunpack.c.h.b16 %v5548
        %v6253 = vunpack.c.l.b16 %v5549
        %v6254 = vunpack.c.h.b16 %v5549
        %v6255 = vunpack.c.l.b16 %v5550
        %v6256 = vunpack.c.h.b16 %v5550
        %v6257 = vunpack.c.l.b16 %v5551
        %v6258 = vunpack.c.h.b16 %v5551
        %v6259 = vunpack.c.l.b16 %v5552
        %v6260 = vunpack.c.h.b16 %v5552
        %v6261 = vunpack.c.l.b16 %v5553
        %v6262 = vunpack.c.h.b16 %v5553
        %v6263 = vunpack.c.l.b16 %v5554
        %v6264 = vunpack.c.h.b16 %v5554
        %v6265 = vunpack.c.l.b16 %v5555
        %v6266 = vunpack.c.h.b16 %v5555
        %v6267 = vunpack.c.l.b16 %v5556
        %v6268 = vunpack.c.h.b16 %v5556
        %v6269 = vunpack.c.l.b16 %v5557
        %v6270 = vunpack.c.h.b16 %v5557
        %v6271 = vunpack.c.l.b16 %v5558
        %v6272 = vunpack.c.h.b16 %v5558
        %v6273 = vunpack.c.l.b16 %v5559
        %v6274 = vunpack.c.h.b16 %v5559
        %v6275 = vunpack.c.l.b16 %v5560
        %v6276 = vunpack.c.h.b16 %v5560
        %v6277 = vunpack.c.l.b16 %v5561
        %v6278 = vunpack.c.h.b16 %v5561
        %v6279 = vunpack.c.l.b16 %v5562
        %v6280 = vunpack.c.h.b16 %v5562
        %v6281 = vunpack.c.l.b16 %v5563
        %v6282 = vunpack.c.h.b16 %v5563
        %v6283 = vunpack.c.l.b16 %v5564
        %v6284 = vunpack.c.h.b16 %v5564
        %v6285 = vunpack.c.l.b16 %v5565
        %v6286 = vunpack.c.h.b16 %v5565
        %v6287 = vunpack.c.l.b16 %v5566
        %v6288 = vunpack.c.h.b16 %v5566
        %v6289 = vunpack.c.l.b16 %v5567
        %v6290 = vunpack.c.h.b16 %v5567
        %v6291 = vunpack.c.l.b16 %v5568
        %v6292 = vunpack.c.h.b16 %v5568
        %v6293 = vunpack.c.l.b16 %v5569
        %v6294 = vunpack.c.h.b16 %v5569
        %v6295 = vunpack.c.l.b16 %v5570
        %v6296 = vunpack.c.h.b16 %v5570
        %v6297 = vunpack.c.l.b16 %v5571
        %v6298 = vunpack.c.h.b16 %v5571
        %v6299 = vunpack.c.l.b16 %v5572
        %v6300 = vunpack.c.h.b16 %v5572
        %v6301 = vunpack.c.l.b16 %v5573
        %v6302 = vunpack.c.h.b16 %v5573
        %v6303 = vunpack.c.l.b16 %v5574
        %v6304 = vunpack.c.h.b16 %v5574
        %v6305 = vunpack.c.l.b16 %v5575
        %v6306 = vunpack.c.h.b16 %v5575
        %v6307 = vunpack.c.l.b16 %v5576
        %v6308 = vunpack.c.h.b16 %v5576
        %v6309 = vunpack.c.l.b16 %v5577
        %v6310 = vunpack.c.h.b16 %v5577
        %v6311 = vunpack.c.l.b16 %v5578
        %v6312 = vunpack.c.h.b16 %v5578
        %v6313 = vunpack.c.l.b16 %v5579
        %v6314 = vunpack.c.h.b16 %v5579
        %v6315 = vunpack.c.l.b16 %v5580
        %v6316 = vunpack.c.h.b16 %v5580
        %v6317 = vunpack.c.l.b16 %v5581
        %v6318 = vunpack.c.h.b16 %v5581
        %v6319 = vunpack.c.l.b16 %v5582
        %v6320 = vunpack.c.h.b16 %v5582
        %v6321 = vunpack.c.l.b16 %v5583
        %v6322 = vunpack.c.h.b16 %v5583
        %v6323 = vunpack.c.l.b16 %v5584
        %v6324 = vunpack.c.h.b16 %v5584
        %v6325 = vunpack.c.l.b16 %v5585
        %v6326 = vunpack.c.h.b16 %v5585
        %v6327 = vunpack.c.l.b16 %v5586
        %v6328 = vunpack.c.h.b16 %v5586
        %v6329 = vunpack.c.l.b16 %v5587
        %v6330 = vunpack.c.h.b16 %v5587
        %v6331 = vunpack.c.l.b16 %v5588
        %v6332 = vunpack.c.h.b16 %v5588
        %v6333 = vunpack.c.l.b16 %v5589
        %v6334 = vunpack.c.h.b16 %v5589
        %v6335 = vunpack.c.l.b16 %v5590
        %v6336 = vunpack.c.h.b16 %v5590
        %v6337 = vunpack.c.l.b16 %v5591
        %v6338 = vunpack.c.h.b16 %v5591
        %v6339 = vunpack.c.l.b16 %v5592
        %v6340 = vunpack.c.h.b16 %v5592
        %v6341 = vunpack.c.l.b16 %v5593
        %v6342 = vunpack.c.h.b16 %v5593
        %v6343 = vunpack.c.l.b16 %v5594
        %v6344 = vunpack.c.h.b16 %v5594
        %v6345 = vunpack.c.l.b16 %v5595
        %v6346 = vunpack.c.h.b16 %v5595
        %v6347 = vunpack.c.l.b16 %v5596
        %v6348 = vunpack.c.h.b16 %v5596
        %v6349 = vunpack.c.l.b16 %v5597
        %v6350 = vunpack.c.h.b16 %v5597
        %v6351 = vunpack.c.l.b16 %v5598
        %v6352 = vunpack.c.h.b16 %v5598
        %v6353 = vunpack.c.l.b16 %v5599
        %v6354 = vunpack.c.h.b16 %v5599
        %v6355 = vunpack.c.l.b16 %v5600
        %v6356 = vunpack.c.h.b16 %v5600
        %v6357 = vunpack.c.l.b16 %v5601
        %v6358 = vunpack.c.h.b16 %v5601
        %v6359 = vunpack.c.l.b16 %v5602
        %v6360 = vunpack.c.h.b16 %v5602
        %v6361 = vunpack.c.l.b16 %v5603
        %v6362 = vunpack.c.h.b16 %v5603
        %v6363 = vunpack.c.l.b16 %v5604
        %v6364 = vunpack.c.h.b16 %v5604
        %v6365 = vunpack.c.l.b16 %v5605
        %v6366 = vunpack.c.h.b16 %v5605
        %v6367 = vunpack.c.l.b16 %v5606
        %v6368 = vunpack.c.h.b16 %v5606
        %v6369 = vunpack.c.l.b16 %v5607
        %v6370 = vunpack.c.h.b16 %v5607
        %v6371 = vunpack.c.l.b16 %v5608
        %v6372 = vunpack.c.h.b16 %v5608
        %v6373 = vunpack.c.l.b16 %v5609
        %v6374 = vunpack.c.h.b16 %v5609
        %v6375 = vunpack.c.l.b16 %v5610
        %v6376 = vunpack.c.h.b16 %v5610
        %v6377 = vunpack.c.l.b16 %v5611
        %v6378 = vunpack.c.h.b16 %v5611
        %v6379 = vunpack.c.l.b16 %v5612
        %v6380 = vunpack.c.h.b16 %v5612
        %v6381 = vunpack.c.l.b16 %v5613
        %v6382 = vunpack.c.h.b16 %v5613
        %v6383 = vunpack.c.l.b16 %v5614
        %v6384 = vunpack.c.h.b16 %v5614
        %v6385 = vunpack.c.l.b16 %v5615
        %v6386 = vunpack.c.h.b16 %v5615
        %v6387 = vunpack.c.l.b16 %v5616
        %v6388 = vunpack.c.h.b16 %v5616
        %v6389 = vunpack.c.l.b16 %v5617
        %v6390 = vunpack.c.h.b16 %v5617
        %v6391 = vunpack.c.l.b16 %v5618
        %v6392 = vunpack.c.h.b16 %v5618
        %v6393 = vunpack.c.l.b16 %v5619
        %v6394 = vunpack.c.h.b16 %v5619
        %v6395 = vunpack.c.l.b16 %v5620
        %v6396 = vunpack.c.h.b16 %v5620
        %v6397 = vunpack.c.l.b16 %v5621
        %v6398 = vunpack.c.h.b16 %v5621
        %v6399 = vunpack.c.l.b16 %v5622
        %v6400 = vunpack.c.h.b16 %v5622
        %v6401 = vunpack.c.l.b16 %v5623
        %v6402 = vunpack.c.h.b16 %v5623
        %v6403 = vunpack.c.l.b16 %v5624
        %v6404 = vunpack.c.h.b16 %v5624
        %v6405 = vunpack.c.l.b16 %v5625
        %v6406 = vunpack.c.h.b16 %v5625
        %v6407 = vunpack.c.l.b16 %v5626
        %v6408 = vunpack.c.h.b16 %v5626
        %v6409 = vunpack.c.l.b16 %v5627
        %v6410 = vunpack.c.h.b16 %v5627
        %v6411 = vunpack.c.l.b16 %v5628
        %v6412 = vunpack.c.h.b16 %v5628
        %v6413 = vunpack.c.l.b16 %v5629
        %v6414 = vunpack.c.h.b16 %v5629
        %v6415 = vunpack.c.l.b16 %v5630
        %v6416 = vunpack.c.h.b16 %v5630
        %v6417 = vunpack.c.l.b16 %v5631
        %v6418 = vunpack.c.h.b16 %v5631
        %v6419 = vunpack.c.l.b16 %v5632
        %v6420 = vunpack.c.h.b16 %v5632
        %v6421 = vunpack.c.l.b16 %v5633
        %v6422 = vunpack.c.h.b16 %v5633
        %v6423 = vunpack.c.l.b16 %v5634
        %v6424 = vunpack.c.h.b16 %v5634
        %v6425 = vunpack.c.l.b16 %v5635
        %v6426 = vunpack.c.h.b16 %v5635
        %v6427 = vunpack.c.l.b16 %v5636
        %v6428 = vunpack.c.h.b16 %v5636
        %v6429 = vunpack.c.l.b16 %v5637
        %v6430 = vunpack.c.h.b16 %v5637
        %v6431 = vunpack.c.l.b16 %v5638
        %v6432 = vunpack.c.h.b16 %v5638
        %v6433 = vunpack.c.l.b16 %v5639
        %v6434 = vunpack.c.h.b16 %v5639
        %v6435 = vunpack.c.l.b16 %v5640
        %v6436 = vunpack.c.h.b16 %v5640
        %v6437 = vunpack.c.l.b16 %v5641
        %v6438 = vunpack.c.h.b16 %v5641
        %v6439 = vunpack.c.l.b16 %v5642
        %v6440 = vunpack.c.h.b16 %v5642
        %v6441 = vunpack.c.l.b16 %v5643
        %v6442 = vunpack.c.h.b16 %v5643
        %v6443 = vunpack.c.l.b16 %v5644
        %v6444 = vunpack.c.h.b16 %v5644
        %v6445 = vunpack.c.l.b16 %v5645
        %v6446 = vunpack.c.h.b16 %v5645
        %v6447 = vunpack.c.l.b16 %v5646
        %v6448 = vunpack.c.h.b16 %v5646
        %v6449 = vunpack.c.l.b16 %v5647
        %v6450 = vunpack.c.h.b16 %v5647
        %v6451 = vunpack.c.l.b16 %v5648
        %v6452 = vunpack.c.h.b16 %v5648
        %v6453 = vunpack.c.l.b16 %v5649
        %v6454 = vunpack.c.h.b16 %v5649
        %v6455 = vunpack.c.l.b16 %v5650
        %v6456 = vunpack.c.h.b16 %v5650
        %v6457 = vunpack.c.l.b16 %v5651
        %v6458 = vunpack.c.h.b16 %v5651
        %v6459 = vunpack.c.l.b16 %v5652
        %v6460 = vunpack.c.h.b16 %v5652
        %v6461 = vunpack.c.l.b16 %v5653
        %v6462 = vunpack.c.h.b16 %v5653
        %v6463 = vunpack.c.l.b16 %v5654
        %v6464 = vunpack.c.h.b16 %v5654
        %v6465 = vunpack.c.l.b16 %v5655
        %v6466 = vunpack.c.h.b16 %v5655
        %v6467 = vunpack.c.l.b16 %v5656
        %v6468 = vunpack.c.h.b16 %v5656
        %v6469 = vunpack.c.l.b16 %v5657
        %v6470 = vunpack.c.h.b16 %v5657
        %v6471 = vunpack.c.l.b16 %v5658
        %v6472 = vunpack.c.h.b16 %v5658
        %v6473 = vunpack.c.l.b16 %v5659
        %v6474 = vunpack.c.h.b16 %v5659
        %v6475 = vunpack.c.l.b16 %v5660
        %v6476 = vunpack.c.h.b16 %v5660
        %v6477 = vunpack.c.l.b16 %v5661
        %v6478 = vunpack.c.h.b16 %v5661
        %v6479 = vunpack.c.l.b16 %v5662
        %v6480 = vunpack.c.h.b16 %v5662
        %v6481 = vunpack.c.l.b16 %v5663
        %v6482 = vunpack.c.h.b16 %v5663
        %v6483 = vunpack.c.l.b16 %v5664
        %v6484 = vunpack.c.h.b16 %v5664
        %v6485 = vunpack.c.l.b16 %v5665
        %v6486 = vunpack.c.h.b16 %v5665
        %v6487 = vunpack.c.l.b16 %v5666
        %v6488 = vunpack.c.h.b16 %v5666
        %v6489 = vunpack.c.l.b16 %v5667
        %v6490 = vunpack.c.h.b16 %v5667
        %v6491 = vunpack.c.l.b16 %v5668
        %v6492 = vunpack.c.h.b16 %v5668
        %v6493 = vunpack.c.l.b16 %v5669
        %v6494 = vunpack.c.h.b16 %v5669
        %v6495 = vunpack.c.l.b16 %v5670
        %v6496 = vunpack.c.h.b16 %v5670
        %v6497 = vunpack.c.l.b16 %v5671
        %v6498 = vunpack.c.h.b16 %v5671
        %v6499 = vunpack.c.l.b16 %v5672
        %v6500 = vunpack.c.h.b16 %v5672
        %v6501 = vunpack.c.l.b16 %v5673
        %v6502 = vunpack.c.h.b16 %v5673
        %v6503 = vunpack.c.l.b16 %v5674
        %v6504 = vunpack.c.h.b16 %v5674
        %v6505 = vunpack.c.l.b16 %v5675
        %v6506 = vunpack.c.h.b16 %v5675
        %v6507 = vunpack.c.l.b16 %v5676
        %v6508 = vunpack.c.h.b16 %v5676
        %v6509 = vunpack.c.l.b16 %v5677
        %v6510 = vunpack.c.h.b16 %v5677
        %v6511 = vunpack.c.l.b16 %v5678
        %v6512 = vunpack.c.h.b16 %v5678
        %v6513 = vunpack.c.l.b16 %v5679
        %v6514 = vunpack.c.h.b16 %v5679
        %v6515 = vunpack.c.l.b16 %v5680
        %v6516 = vunpack.c.h.b16 %v5680
        %v6517 = vunpack.c.l.b16 %v5681
        %v6518 = vunpack.c.h.b16 %v5681
        %v6519 = vunpack.c.l.b16 %v5682
        %v6520 = vunpack.c.h.b16 %v5682
        %v6521 = vunpack.c.l.b16 %v5683
        %v6522 = vunpack.c.h.b16 %v5683
        %v6523 = vunpack.c.l.b16 %v5684
        %v6524 = vunpack.c.h.b16 %v5684
        %v6525 = vunpack.c.l.b16 %v5685
        %v6526 = vunpack.c.h.b16 %v5685
        %v6527 = vunpack.c.l.b16 %v5686
        %v6528 = vunpack.c.h.b16 %v5686
        %v6529 = vunpack.c.l.b16 %v5687
        %v6530 = vunpack.c.h.b16 %v5687
        %v6531 = vunpack.c.l.b16 %v5688
        %v6532 = vunpack.c.h.b16 %v5688
        %v6533 = vunpack.c.l.b16 %v5689
        %v6534 = vunpack.c.h.b16 %v5689
        %v6535 = vunpack.c.l.b16 %v5690
        %v6536 = vunpack.c.h.b16 %v5690
        %v6537 = vunpack.c.l.b16 %v5691
        %v6538 = vunpack.c.h.b16 %v5691
        %v6539 = vunpack.c.l.b16 %v5692
        %v6540 = vunpack.c.h.b16 %v5692
        %v6541 = vunpack.c.l.b16 %v5693
        %v6542 = vunpack.c.h.b16 %v5693
        %v6543 = vunpack.c.l.b16 %v5694
        %v6544 = vunpack.c.h.b16 %v5694
        %v6545 = vunpack.c.l.b16 %v5695
        %v6546 = vunpack.c.h.b16 %v5695
        %v6547 = vunpack.c.l.b16 %v5696
        %v6548 = vunpack.c.h.b16 %v5696
        %v6549 = vunpack.c.l.b16 %v5697
        %v6550 = vunpack.c.h.b16 %v5697
        %v6551 = vunpack.c.l.b16 %v5698
        %v6552 = vunpack.c.h.b16 %v5698
        %v6553 = vunpack.c.l.b16 %v5699
        %v6554 = vunpack.c.h.b16 %v5699
        %v6555 = vunpack.c.l.b16 %v5700
        %v6556 = vunpack.c.h.b16 %v5700
        %v6557 = vunpack.c.l.b16 %v5701
        %v6558 = vunpack.c.h.b16 %v5701
        %v6559 = vunpack.c.l.b16 %v5702
        %v6560 = vunpack.c.h.b16 %v5702
        %v6561 = vunpack.c.l.b16 %v5703
        %v6562 = vunpack.c.h.b16 %v5703
        %v6563 = vunpack.c.l.b16 %v5704
        %v6564 = vunpack.c.h.b16 %v5704
        %v6565 = vunpack.c.l.b16 %v5705
        %v6566 = vunpack.c.h.b16 %v5705
        %v6567 = vunpack.c.l.b16 %v5706
        %v6568 = vunpack.c.h.b16 %v5706
        %v6569 = vunpack.c.l.b16 %v5707
        %v6570 = vunpack.c.h.b16 %v5707
        %v6571 = vunpack.c.l.b16 %v5708
        %v6572 = vunpack.c.h.b16 %v5708
        %v6573 = vunpack.c.l.b16 %v5709
        %v6574 = vunpack.c.h.b16 %v5709
        %v6575 = vunpack.c.l.b16 %v5710
        %v6576 = vunpack.c.h.b16 %v5710
        %v6577 = vunpack.c.l.b16 %v5711
        %v6578 = vunpack.c.h.b16 %v5711
        %v6579 = vunpack.c.l.b16 %v5712
        %v6580 = vunpack.c.h.b16 %v5712
        %v6581 = vunpack.c.l.b16 %v5713
        %v6582 = vunpack.c.h.b16 %v5713
        %v6583 = vunpack.c.l.b16 %v5714
        %v6584 = vunpack.c.h.b16 %v5714
        %v6585 = vunpack.c.l.b16 %v5715
        %v6586 = vunpack.c.h.b16 %v5715
        %v6587 = vunpack.c.l.b16 %v5716
        %v6588 = vunpack.c.h.b16 %v5716
        %v6589 = vunpack.c.l.b16 %v5717
        %v6590 = vunpack.c.h.b16 %v5717
        %v6591 = vunpack.c.l.b16 %v5718
        %v6592 = vunpack.c.h.b16 %v5718
        %v6593 = vunpack.c.l.b16 %v5719
        %v6594 = vunpack.c.h.b16 %v5719
        %v6595 = vunpack.c.l.b16 %v5720
        %v6596 = vunpack.c.h.b16 %v5720
        %v6597 = vunpack.c.l.b16 %v5721
        %v6598 = vunpack.c.h.b16 %v5721
        %v6599 = vunpack.c.l.b16 %v5722
        %v6600 = vunpack.c.h.b16 %v5722
        %v6601 = vunpack.c.l.b16 %v5723
        %v6602 = vunpack.c.h.b16 %v5723
        %v6603 = vunpack.c.l.b16 %v5724
        %v6604 = vunpack.c.h.b16 %v5724
        %v6605 = vunpack.c.l.b16 %v5725
        %v6606 = vunpack.c.h.b16 %v5725
        %v6607 = vunpack.c.l.b16 %v5726
        %v6608 = vunpack.c.h.b16 %v5726
        %v6609 = vunpack.c.l.b16 %v5727
        %v6610 = vunpack.c.h.b16 %v5727
        %v6611 = vunpack.c.l.b16 %v5728
        %v6612 = vunpack.c.h.b16 %v5728
        %v6613 = vunpack.c.l.b16 %v5729
        %v6614 = vunpack.c.h.b16 %v5729
        %v6615 = vunpack.c.l.b16 %v5730
        %v6616 = vunpack.c.h.b16 %v5730
        %v6617 = vunpack.c.l.b16 %v5731
        %v6618 = vunpack.c.h.b16 %v5731
        %v6619 = vunpack.c.l.b16 %v5732
        %v6620 = vunpack.c.h.b16 %v5732
        %v6621 = vunpack.c.l.b16 %v5733
        %v6622 = vunpack.c.h.b16 %v5733
        %v6623 = vunpack.c.l.b16 %v5734
        %v6624 = vunpack.c.h.b16 %v5734
        %v6625 = vunpack.c.l.b16 %v5735
        %v6626 = vunpack.c.h.b16 %v5735
        %v6627 = vunpack.c.l.b16 %v5736
        %v6628 = vunpack.c.h.b16 %v5736
        %v6629 = vpack.c.b16 %v6065, %v6053
        %v6630 = vpack.c.b16 %v6066, %v6054
        %v6631 = vpack.c.b16 %v6067, %v6055
        %v6632 = vpack.c.b16 %v6068, %v6056
        %v6633 = vpack.c.b16 %v6069, %v6057
        %v6634 = vpack.c.b16 %v6070, %v6058
        %v6635 = vpack.c.b16 %v6071, %v6059
        %v6636 = vpack.c.b16 %v6072, %v6060
        %v6637 = vpack.c.b16 %v6073, %v6061
        %v6638 = vpack.c.b16 %v6074, %v6062
        %v6639 = vpack.c.b16 %v6075, %v6063
        %v6640 = vpack.c.b16 %v6076, %v6064
        %v6641 = vpack.c.b16 %v6089, %v6077
        %v6642 = vpack.c.b16 %v6090, %v6078
        %v6643 = vpack.c.b16 %v6091, %v6079
        %v6644 = vpack.c.b16 %v6092, %v6080
        %v6645 = vpack.c.b16 %v6093, %v6081
        %v6646 = vpack.c.b16 %v6094, %v6082
        %v6647 = vpack.c.b16 %v6095, %v6083
        %v6648 = vpack.c.b16 %v6096, %v6084
        %v6649 = vpack.c.b16 %v6097, %v6085
        %v6650 = vpack.c.b16 %v6098, %v6086
        %v6651 = vpack.c.b16 %v6099, %v6087
        %v6652 = vpack.c.b16 %v6100, %v6088
        %v6653 = vpack.c.b16 %v6113, %v6101
        %v6654 = vpack.c.b16 %v6114, %v6102
        %v6655 = vpack.c.b16 %v6115, %v6103
        %v6656 = vpack.c.b16 %v6116, %v6104
        %v6657 = vpack.c.b16 %v6117, %v6105
        %v6658 = vpack.c.b16 %v6118, %v6106
        %v6659 = vpack.c.b16 %v6119, %v6107
        %v6660 = vpack.c.b16 %v6120, %v6108
        %v6661 = vpack.c.b16 %v6121, %v6109
        %v6662 = vpack.c.b16 %v6122, %v6110
        %v6663 = vpack.c.b16 %v6123, %v6111
        %v6664 = vpack.c.b16 %v6124, %v6112
        %v6665 = vpack.c.b16 %v6137, %v6125
        %v6666 = vpack.c.b16 %v6138, %v6126
        %v6667 = vpack.c.b16 %v6139, %v6127
        %v6668 = vpack.c.b16 %v6140, %v6128
        %v6669 = vpack.c.b16 %v6141, %v6129
        %v6670 = vpack.c.b16 %v6142, %v6130
        %v6671 = vpack.c.b16 %v6143, %v6131
        %v6672 = vpack.c.b16 %v6144, %v6132
        %v6673 = vpack.c.b16 %v6145, %v6133
        %v6674 = vpack.c.b16 %v6146, %v6134
        %v6675 = vpack.c.b16 %v6147, %v6135
        %v6676 = vpack.c.b16 %v6148, %v6136
        %v6677 = vpack.c.b16 %v6161, %v6149
        %v6678 = vpack.c.b16 %v6162, %v6150
        %v6679 = vpack.c.b16 %v6163, %v6151
        %v6680 = vpack.c.b16 %v6164, %v6152
        %v6681 = vpack.c.b16 %v6165, %v6153
        %v6682 = vpack.c.b16 %v6166, %v6154
        %v6683 = vpack.c.b16 %v6167, %v6155
        %v6684 = vpack.c.b16 %v6168, %v6156
        %v6685 = vpack.c.b16 %v6169, %v6157
        %v6686 = vpack.c.b16 %v6170, %v6158
        %v6687 = vpack.c.b16 %v6171, %v6159
        %v6688 = vpack.c.b16 %v6172, %v6160
        %v6689 = vpack.c.b16 %v6185, %v6173
        %v6690 = vpack.c.b16 %v6186, %v6174
        %v6691 = vpack.c.b16 %v6187, %v6175
        %v6692 = vpack.c.b16 %v6188, %v6176
        %v6693 = vpack.c.b16 %v6189, %v6177
        %v6694 = vpack.c.b16 %v6190, %v6178
        %v6695 = vpack.c.b16 %v6191, %v6179
        %v6696 = vpack.c.b16 %v6192, %v6180
        %v6697 = vpack.c.b16 %v6193, %v6181
        %v6698 = vpack.c.b16 %v6194, %v6182
        %v6699 = vpack.c.b16 %v6195, %v6183
        %v6700 = vpack.c.b16 %v6196, %v6184
        %v6701 = vpack.c.b16 %v6209, %v6197
        %v6702 = vpack.c.b16 %v6210, %v6198
        %v6703 = vpack.c.b16 %v6211, %v6199
        %v6704 = vpack.c.b16 %v6212, %v6200
        %v6705 = vpack.c.b16 %v6213, %v6201
        %v6706 = vpack.c.b16 %v6214, %v6202
        %v6707 = vpack.c.b16 %v6215, %v6203
        %v6708 = vpack.c.b16 %v6216, %v6204
        %v6709 = vpack.c.b16 %v6217, %v6205
        %v6710 = vpack.c.b16 %v6218, %v6206
        %v6711 = vpack.c.b16 %v6219, %v6207
        %v6712 = vpack.c.b16 %v6220, %v6208
        %v6713 = vpack.c.b16 %v6233, %v6221
        %v6714 = vpack.c.b16 %v6234, %v6222
        %v6715 = vpack.c.b16 %v6235, %v6223
        %v6716 = vpack.c.b16 %v6236, %v6224
        %v6717 = vpack.c.b16 %v6237, %v6225
        %v6718 = vpack.c.b16 %v6238, %v6226
        %v6719 = vpack.c.b16 %v6239, %v6227
        %v6720 = vpack.c.b16 %v6240, %v6228
        %v6721 = vpack.c.b16 %v6241, %v6229
        %v6722 = vpack.c.b16 %v6242, %v6230
        %v6723 = vpack.c.b16 %v6243, %v6231
        %v6724 = vpack.c.b16 %v6244, %v6232
        %v6725 = vpack.c.b16 %v6257, %v6245
        %v6726 = vpack.c.b16 %v6258, %v6246
        %v6727 = vpack.c.b16 %v6259, %v6247
        %v6728 = vpack.c.b16 %v6260, %v6248
        %v6729 = vpack.c.b16 %v6261, %v6249
        %v6730 = vpack.c.b16 %v6262, %v6250
        %v6731 = vpack.c.b16 %v6263, %v6251
        %v6732 = vpack.c.b16 %v6264, %v6252
        %v6733 = vpack.c.b16 %v6265, %v6253
        %v6734 = vpack.c.b16 %v6266, %v6254
        %v6735 = vpack.c.b16 %v6267, %v6255
        %v6736 = vpack.c.b16 %v6268, %v6256
        %v6737 = vpack.c.b16 %v6281, %v6269
        %v6738 = vpack.c.b16 %v6282, %v6270
        %v6739 = vpack.c.b16 %v6283, %v6271
        %v6740 = vpack.c.b16 %v6284, %v6272
        %v6741 = vpack.c.b16 %v6285, %v6273
        %v6742 = vpack.c.b16 %v6286, %v6274
        %v6743 = vpack.c.b16 %v6287, %v6275
        %v6744 = vpack.c.b16 %v6288, %v6276
        %v6745 = vpack.c.b16 %v6289, %v6277
        %v6746 = vpack.c.b16 %v6290, %v6278
        %v6747 = vpack.c.b16 %v6291, %v6279
        %v6748 = vpack.c.b16 %v6292, %v6280
        %v6749 = vpack.c.b16 %v6305, %v6293
        %v6750 = vpack.c.b16 %v6306, %v6294
        %v6751 = vpack.c.b16 %v6307, %v6295
        %v6752 = vpack.c.b16 %v6308, %v6296
        %v6753 = vpack.c.b16 %v6309, %v6297
        %v6754 = vpack.c.b16 %v6310, %v6298
        %v6755 = vpack.c.b16 %v6311, %v6299
        %v6756 = vpack.c.b16 %v6312, %v6300
        %v6757 = vpack.c.b16 %v6313, %v6301
        %v6758 = vpack.c.b16 %v6314, %v6302
        %v6759 = vpack.c.b16 %v6315, %v6303
        %v6760 = vpack.c.b16 %v6316, %v6304
        %v6761 = vpack.c.b16 %v6329, %v6317
        %v6762 = vpack.c.b16 %v6330, %v6318
        %v6763 = vpack.c.b16 %v6331, %v6319
        %v6764 = vpack.c.b16 %v6332, %v6320
        %v6765 = vpack.c.b16 %v6333, %v6321
        %v6766 = vpack.c.b16 %v6334, %v6322
        %v6767 = vpack.c.b16 %v6335, %v6323
        %v6768 = vpack.c.b16 %v6336, %v6324
        %v6769 = vpack.c.b16 %v6337, %v6325
        %v6770 = vpack.c.b16 %v6338, %v6326
        %v6771 = vpack.c.b16 %v6339, %v6327
        %v6772 = vpack.c.b16 %v6340, %v6328
        %v6773 = vpack.c.b16 %v6353, %v6341
        %v6774 = vpack.c.b16 %v6354, %v6342
        %v6775 = vpack.c.b16 %v6355, %v6343
        %v6776 = vpack.c.b16 %v6356, %v6344
        %v6777 = vpack.c.b16 %v6357, %v6345
        %v6778 = vpack.c.b16 %v6358, %v6346
        %v6779 = vpack.c.b16 %v6359, %v6347
        %v6780 = vpack.c.b16 %v6360, %v6348
        %v6781 = vpack.c.b16 %v6361, %v6349
        %v6782 = vpack.c.b16 %v6362, %v6350
        %v6783 = vpack.c.b16 %v6363, %v6351
        %v6784 = vpack.c.b16 %v6364, %v6352
        %v6785 = vpack.c.b16 %v6377, %v6365
        %v6786 = vpack.c.b16 %v6378, %v6366
        %v6787 = vpack.c.b16 %v6379, %v6367
        %v6788 = vpack.c.b16 %v6380, %v6368
        %v6789 = vpack.c.b16 %v6381, %v6369
        %v6790 = vpack.c.b16 %v6382, %v6370
        %v6791 = vpack.c.b16 %v6383, %v6371
        %v6792 = vpack.c.b16 %v6384, %v6372
        %v6793 = vpack.c.b16 %v6385, %v6373
        %v6794 = vpack.c.b16 %v6386, %v6374
        %v6795 = vpack.c.b16 %v6387, %v6375
        %v6796 = vpack.c.b16 %v6388, %v6376
        %v6797 = vpack.c.b16 %v6401, %v6389
        %v6798 = vpack.c.b16 %v6402, %v6390
        %v6799 = vpack.c.b16 %v6403, %v6391
        %v6800 = vpack.c.b16 %v6404, %v6392
        %v6801 = vpack.c.b16 %v6405, %v6393
        %v6802 = vpack.c.b16 %v6406, %v6394
        %v6803 = vpack.c.b16 %v6407, %v6395
        %v6804 = vpack.c.b16 %v6408, %v6396
        %v6805 = vpack.c.b16 %v6409, %v6397
        %v6806 = vpack.c.b16 %v6410, %v6398
        %v6807 = vpack.c.b16 %v6411, %v6399
        %v6808 = vpack.c.b16 %v6412, %v6400
        %v6809 = vpack.c.b16 %v6425, %v6413
        %v6810 = vpack.c.b16 %v6426, %v6414
        %v6811 = vpack.c.b16 %v6427, %v6415
        %v6812 = vpack.c.b16 %v6428, %v6416
        %v6813 = vpack.c.b16 %v6429, %v6417
        %v6814 = vpack.c.b16 %v6430, %v6418
        %v6815 = vpack.c.b16 %v6431, %v6419
        %v6816 = vpack.c.b16 %v6432, %v6420
        %v6817 = vpack.c.b16 %v6433, %v6421
        %v6818 = vpack.c.b16 %v6434, %v6422
        %v6819 = vpack.c.b16 %v6435, %v6423
        %v6820 = vpack.c.b16 %v6436, %v6424
        %v6821 = vpack.c.b16 %v6449, %v6437
        %v6822 = vpack.c.b16 %v6450, %v6438
        %v6823 = vpack.c.b16 %v6451, %v6439
        %v6824 = vpack.c.b16 %v6452, %v6440
        %v6825 = vpack.c.b16 %v6453, %v6441
        %v6826 = vpack.c.b16 %v6454, %v6442
        %v6827 = vpack.c.b16 %v6455, %v6443
        %v6828 = vpack.c.b16 %v6456, %v6444
        %v6829 = vpack.c.b16 %v6457, %v6445
        %v6830 = vpack.c.b16 %v6458, %v6446
        %v6831 = vpack.c.b16 %v6459, %v6447
        %v6832 = vpack.c.b16 %v6460, %v6448
        %v6833 = vpack.c.b16 %v6473, %v6461
        %v6834 = vpack.c.b16 %v6474, %v6462
        %v6835 = vpack.c.b16 %v6475, %v6463
        %v6836 = vpack.c.b16 %v6476, %v6464
        %v6837 = vpack.c.b16 %v6477, %v6465
        %v6838 = vpack.c.b16 %v6478, %v6466
        %v6839 = vpack.c.b16 %v6479, %v6467
        %v6840 = vpack.c.b16 %v6480, %v6468
        %v6841 = vpack.c.b16 %v6481, %v6469
        %v6842 = vpack.c.b16 %v6482, %v6470
        %v6843 = vpack.c.b16 %v6483, %v6471
        %v6844 = vpack.c.b16 %v6484, %v6472
        %v6845 = vpack.c.b16 %v6497, %v6485
        %v6846 = vpack.c.b16 %v6498, %v6486
        %v6847 = vpack.c.b16 %v6499, %v6487
        %v6848 = vpack.c.b16 %v6500, %v6488
        %v6849 = vpack.c.b16 %v6501, %v6489
        %v6850 = vpack.c.b16 %v6502, %v6490
        %v6851 = vpack.c.b16 %v6503, %v6491
        %v6852 = vpack.c.b16 %v6504, %v6492
        %v6853 = vpack.c.b16 %v6505, %v6493
        %v6854 = vpack.c.b16 %v6506, %v6494
        %v6855 = vpack.c.b16 %v6507, %v6495
        %v6856 = vpack.c.b16 %v6508, %v6496
        %v6857 = vpack.c.b16 %v6521, %v6509
        %v6858 = vpack.c.b16 %v6522, %v6510
        %v6859 = vpack.c.b16 %v6523, %v6511
        %v6860 = vpack.c.b16 %v6524, %v6512
        %v6861 = vpack.c.b16 %v6525, %v6513
        %v6862 = vpack.c.b16 %v6526, %v6514
        %v6863 = vpack.c.b16 %v6527, %v6515
        %v6864 = vpack.c.b16 %v6528, %v6516
        %v6865 = vpack.c.b16 %v6529, %v6517
        %v6866 = vpack.c.b16 %v6530, %v6518
        %v6867 = vpack.c.b16 %v6531, %v6519
        %v6868 = vpack.c.b16 %v6532, %v6520
        %v6869 = vpack.c.b16 %v6545, %v6533
        %v6870 = vpack.c.b16 %v6546, %v6534
        %v6871 = vpack.c.b16 %v6547, %v6535
        %v6872 = vpack.c.b16 %v6548, %v6536
        %v6873 = vpack.c.b16 %v6549, %v6537
        %v6874 = vpack.c.b16 %v6550, %v6538
        %v6875 = vpack.c.b16 %v6551, %v6539
        %v6876 = vpack.c.b16 %v6552, %v6540
        %v6877 = vpack.c.b16 %v6553, %v6541
        %v6878 = vpack.c.b16 %v6554, %v6542
        %v6879 = vpack.c.b16 %v6555, %v6543
        %v6880 = vpack.c.b16 %v6556, %v6544
        %v6881 = vpack.c.b16 %v6569, %v6557
        %v6882 = vpack.c.b16 %v6570, %v6558
        %v6883 = vpack.c.b16 %v6571, %v6559
        %v6884 = vpack.c.b16 %v6572, %v6560
        %v6885 = vpack.c.b16 %v6573, %v6561
        %v6886 = vpack.c.b16 %v6574, %v6562
        %v6887 = vpack.c.b16 %v6575, %v6563
        %v6888 = vpack.c.b16 %v6576, %v6564
        %v6889 = vpack.c.b16 %v6577, %v6565
        %v6890 = vpack.c.b16 %v6578, %v6566
        %v6891 = vpack.c.b16 %v6579, %v6567
        %v6892 = vpack.c.b16 %v6580, %v6568
        %v6893 = vpack.c.b16 %v6593, %v6581
        %v6894 = vpack.c.b16 %v6594, %v6582
        %v6895 = vpack.c.b16 %v6595, %v6583
        %v6896 = vpack.c.b16 %v6596, %v6584
        %v6897 = vpack.c.b16 %v6597, %v6585
        %v6898 = vpack.c.b16 %v6598, %v6586
        %v6899 = vpack.c.b16 %v6599, %v6587
        %v6900 = vpack.c.b16 %v6600, %v6588
        %v6901 = vpack.c.b16 %v6601, %v6589
        %v6902 = vpack.c.b16 %v6602, %v6590
        %v6903 = vpack.c.b16 %v6603, %v6591
        %v6904 = vpack.c.b16 %v6604, %v6592
        %v6905 = vpack.c.b16 %v6617, %v6605
        %v6906 = vpack.c.b16 %v6618, %v6606
        %v6907 = vpack.c.b16 %v6619, %v6607
        %v6908 = vpack.c.b16 %v6620, %v6608
        %v6909 = vpack.c.b16 %v6621, %v6609
        %v6910 = vpack.c.b16 %v6622, %v6610
        %v6911 = vpack.c.b16 %v6623, %v6611
        %v6912 = vpack.c.b16 %v6624, %v6612
        %v6913 = vpack.c.b16 %v6625, %v6613
        %v6914 = vpack.c.b16 %v6626, %v6614
        %v6915 = vpack.c.b16 %v6627, %v6615
        %v6916 = vpack.c.b16 %v6628, %v6616
        %7205 = vmatpush.bf16.msra.mxu0 %v6713
        %7206 = vmatpush.bf16.msra.mxu0 %v6701
        %7207 = vmatpush.bf16.msra.mxu0 %v6689
        %7208 = vmatpush.bf16.msra.mxu0 %v6677
        %7209 = vmatpush.bf16.msra.mxu0 %v6665
        %7210 = vmatpush.bf16.msra.mxu0 %v6653
        %7211 = vmatpush.bf16.msra.mxu0 %v6641
        %7212 = vmatpush.bf16.msra.mxu0 %v6629
        %7213 = vmatmul.bf16.gmra.mxu0 %v5443
        %v7214 = vpop.f32.mrf.mxu0
        %v7215 = vadd.f32 %v5741, %v7214
        %v7216 = vpop.f32.mrf.mxu0
        %v7217 = vadd.f32 %v5741, %v7216
        %7218 = vmatmul.bf16.gmra.mxu0 %v5446
        %v7219 = vpop.f32.mrf.mxu0
        %v7220 = vadd.f32 %v5741, %v7219
        %v7221 = vpop.f32.mrf.mxu0
        %7222 = vdwg.mxu0
        %7223 = vmatpush.bf16.msra.mxu0 %v6809
        %7224 = vmatpush.bf16.msra.mxu0 %v6797
        %7225 = vmatpush.bf16.msra.mxu0 %v6785
        %7226 = vmatpush.bf16.msra.mxu0 %v6773
        %7227 = vmatpush.bf16.msra.mxu0 %v6761
        %7228 = vmatpush.bf16.msra.mxu0 %v6749
        %7229 = vmatpush.bf16.msra.mxu0 %v6737
        %7230 = vmatpush.bf16.msra.mxu0 %v6725
        %7231 = vmatmul.bf16.gmra.mxu0 %v5444
        %v7232 = vpop.f32.mrf.mxu0
        %v7233 = vadd.f32 %v7215, %v7232
        %v7234 = vpop.f32.mrf.mxu0
        %v7235 = vadd.f32 %v7217, %v7234
        %7236 = vmatmul.bf16.gmra.mxu0 %v5447
        %v7237 = vpop.f32.mrf.mxu0
        %v7238 = vadd.f32 %v7220, %v7237
        %v7239 = vpop.f32.mrf.mxu0
        %7240 = vdwg.mxu0
        %7241 = vmatpush.bf16.msra.mxu0 %v6905
        %7242 = vmatpush.bf16.msra.mxu0 %v6893
        %7243 = vmatpush.bf16.msra.mxu0 %v6881
        %7244 = vmatpush.bf16.msra.mxu0 %v6869
        %7245 = vmatpush.bf16.msra.mxu0 %v6857
        %7246 = vmatpush.bf16.msra.mxu0 %v6845
        %7247 = vmatpush.bf16.msra.mxu0 %v6833
        %7248 = vmatpush.bf16.msra.mxu0 %v6821
        %7249 = vmatmul.bf16.gmra.mxu0 %v5445
        %v7250 = vpop.f32.mrf.mxu0
        %v7251 = vadd.f32 %v7233, %v7250
        %v7252 = vpop.f32.mrf.mxu0
        %v7253 = vadd.f32 %v7235, %v7252
        %7254 = vmatmul.bf16.gmra.mxu0 %v5448
        %v7255 = vpop.f32.mrf.mxu0
        %v7256 = vadd.f32 %v7238, %v7255
        %v7257 = vpop.f32.mrf.mxu0
        %7258 = vdwg.mxu0
        %7259 = vmatpush.bf16.msra.mxu0 %v6714
        %7260 = vmatpush.bf16.msra.mxu0 %v6702
        %7261 = vmatpush.bf16.msra.mxu0 %v6690
        %7262 = vmatpush.bf16.msra.mxu0 %v6678
        %7263 = vmatpush.bf16.msra.mxu0 %v6666
        %7264 = vmatpush.bf16.msra.mxu0 %v6654
        %7265 = vmatpush.bf16.msra.mxu0 %v6642
        %7266 = vmatpush.bf16.msra.mxu0 %v6630
        %7267 = vmatmul.bf16.gmra.mxu0 %v5443
        %v7268 = vpop.f32.mrf.mxu0
        %v7269 = vadd.f32 %v5742, %v7268
        %v7270 = vpop.f32.mrf.mxu0
        %v7271 = vadd.f32 %v5742, %v7270
        %7272 = vmatmul.bf16.gmra.mxu0 %v5446
        %v7273 = vpop.f32.mrf.mxu0
        %v7274 = vadd.f32 %v5742, %v7273
        %v7275 = vpop.f32.mrf.mxu0
        %7276 = vdwg.mxu0
        %7277 = vmatpush.bf16.msra.mxu0 %v6810
        %7278 = vmatpush.bf16.msra.mxu0 %v6798
        %7279 = vmatpush.bf16.msra.mxu0 %v6786
        %7280 = vmatpush.bf16.msra.mxu0 %v6774
        %7281 = vmatpush.bf16.msra.mxu0 %v6762
        %7282 = vmatpush.bf16.msra.mxu0 %v6750
        %7283 = vmatpush.bf16.msra.mxu0 %v6738
        %7284 = vmatpush.bf16.msra.mxu0 %v6726
        %7285 = vmatmul.bf16.gmra.mxu0 %v5444
        %v7286 = vpop.f32.mrf.mxu0
        %v7287 = vadd.f32 %v7269, %v7286
        %v7288 = vpop.f32.mrf.mxu0
        %v7289 = vadd.f32 %v7271, %v7288
        %7290 = vmatmul.bf16.gmra.mxu0 %v5447
        %v7291 = vpop.f32.mrf.mxu0
        %v7292 = vadd.f32 %v7274, %v7291
        %v7293 = vpop.f32.mrf.mxu0
        %7294 = vdwg.mxu0
        %7295 = vmatpush.bf16.msra.mxu0 %v6906
        %7296 = vmatpush.bf16.msra.mxu0 %v6894
        %7297 = vmatpush.bf16.msra.mxu0 %v6882
        %7298 = vmatpush.bf16.msra.mxu0 %v6870
        %7299 = vmatpush.bf16.msra.mxu0 %v6858
        %7300 = vmatpush.bf16.msra.mxu0 %v6846
        %7301 = vmatpush.bf16.msra.mxu0 %v6834
        %7302 = vmatpush.bf16.msra.mxu0 %v6822
        %7303 = vmatmul.bf16.gmra.mxu0 %v5445
        %v7304 = vpop.f32.mrf.mxu0
        %v7305 = vadd.f32 %v7287, %v7304
        %v7306 = vpop.f32.mrf.mxu0
        %v7307 = vadd.f32 %v7289, %v7306
        %7308 = vmatmul.bf16.gmra.mxu0 %v5448
        %v7309 = vpop.f32.mrf.mxu0
        %v7310 = vadd.f32 %v7292, %v7309
        %v7311 = vpop.f32.mrf.mxu0
        %7312 = vdwg.mxu0
        %7313 = vmatpush.bf16.msra.mxu0 %v6715
        %7314 = vmatpush.bf16.msra.mxu0 %v6703
        %7315 = vmatpush.bf16.msra.mxu0 %v6691
        %7316 = vmatpush.bf16.msra.mxu0 %v6679
        %7317 = vmatpush.bf16.msra.mxu0 %v6667
        %7318 = vmatpush.bf16.msra.mxu0 %v6655
        %7319 = vmatpush.bf16.msra.mxu0 %v6643
        %7320 = vmatpush.bf16.msra.mxu0 %v6631
        %7321 = vmatmul.bf16.gmra.mxu0 %v5443
        %v7322 = vpop.f32.mrf.mxu0
        %v7323 = vadd.f32 %v5743, %v7322
        %v7324 = vpop.f32.mrf.mxu0
        %v7325 = vadd.f32 %v5743, %v7324
        %7326 = vmatmul.bf16.gmra.mxu0 %v5446
        %v7327 = vpop.f32.mrf.mxu0
        %v7328 = vadd.f32 %v5743, %v7327
        %v7329 = vpop.f32.mrf.mxu0
        %7330 = vdwg.mxu0
        %7331 = vmatpush.bf16.msra.mxu0 %v6811
        %7332 = vmatpush.bf16.msra.mxu0 %v6799
        %7333 = vmatpush.bf16.msra.mxu0 %v6787
        %7334 = vmatpush.bf16.msra.mxu0 %v6775
        %7335 = vmatpush.bf16.msra.mxu0 %v6763
        %7336 = vmatpush.bf16.msra.mxu0 %v6751
        %7337 = vmatpush.bf16.msra.mxu0 %v6739
        %7338 = vmatpush.bf16.msra.mxu0 %v6727
        %7339 = vmatmul.bf16.gmra.mxu0 %v5444
        %v7340 = vpop.f32.mrf.mxu0
        %v7341 = vadd.f32 %v7323, %v7340
        %v7342 = vpop.f32.mrf.mxu0
        %v7343 = vadd.f32 %v7325, %v7342
        %7344 = vmatmul.bf16.gmra.mxu0 %v5447
        %v7345 = vpop.f32.mrf.mxu0
        %v7346 = vadd.f32 %v7328, %v7345
        %v7347 = vpop.f32.mrf.mxu0
        %7348 = vdwg.mxu0
        %7349 = vmatpush.bf16.msra.mxu0 %v6907
        %7350 = vmatpush.bf16.msra.mxu0 %v6895
        %7351 = vmatpush.bf16.msra.mxu0 %v6883
        %7352 = vmatpush.bf16.msra.mxu0 %v6871
        %7353 = vmatpush.bf16.msra.mxu0 %v6859
        %7354 = vmatpush.bf16.msra.mxu0 %v6847
        %7355 = vmatpush.bf16.msra.mxu0 %v6835
        %7356 = vmatpush.bf16.msra.mxu0 %v6823
        %7357 = vmatmul.bf16.gmra.mxu0 %v5445
        %v7358 = vpop.f32.mrf.mxu0
        %v7359 = vadd.f32 %v7341, %v7358
        %v7360 = vpop.f32.mrf.mxu0
        %v7361 = vadd.f32 %v7343, %v7360
        %7362 = vmatmul.bf16.gmra.mxu0 %v5448
        %v7363 = vpop.f32.mrf.mxu0
        %v7364 = vadd.f32 %v7346, %v7363
        %v7365 = vpop.f32.mrf.mxu0
        %7366 = vdwg.mxu0
        %7367 = vmatpush.bf16.msra.mxu0 %v6716
        %7368 = vmatpush.bf16.msra.mxu0 %v6704
        %7369 = vmatpush.bf16.msra.mxu0 %v6692
        %7370 = vmatpush.bf16.msra.mxu0 %v6680
        %7371 = vmatpush.bf16.msra.mxu0 %v6668
        %7372 = vmatpush.bf16.msra.mxu0 %v6656
        %7373 = vmatpush.bf16.msra.mxu0 %v6644
        %7374 = vmatpush.bf16.msra.mxu0 %v6632
        %7375 = vmatmul.bf16.gmra.mxu0 %v5443
        %v7376 = vpop.f32.mrf.mxu0
        %v7377 = vadd.f32 %v5744, %v7376
        %v7378 = vpop.f32.mrf.mxu0
        %v7379 = vadd.f32 %v5744, %v7378
        %7380 = vmatmul.bf16.gmra.mxu0 %v5446
        %v7381 = vpop.f32.mrf.mxu0
        %v7382 = vadd.f32 %v5744, %v7381
        %v7383 = vpop.f32.mrf.mxu0
        %7384 = vdwg.mxu0
        %7385 = vmatpush.bf16.msra.mxu0 %v6812
        %7386 = vmatpush.bf16.msra.mxu0 %v6800
        %7387 = vmatpush.bf16.msra.mxu0 %v6788
        %7388 = vmatpush.bf16.msra.mxu0 %v6776
        %7389 = vmatpush.bf16.msra.mxu0 %v6764
        %7390 = vmatpush.bf16.msra.mxu0 %v6752
        %7391 = vmatpush.bf16.msra.mxu0 %v6740
        %7392 = vmatpush.bf16.msra.mxu0 %v6728
        %7393 = vmatmul.bf16.gmra.mxu0 %v5444
        %v7394 = vpop.f32.mrf.mxu0
        %v7395 = vadd.f32 %v7377, %v7394
        %v7396 = vpop.f32.mrf.mxu0
        %v7397 = vadd.f32 %v7379, %v7396
        %7398 = vmatmul.bf16.gmra.mxu0 %v5447
        %v7399 = vpop.f32.mrf.mxu0
        %v7400 = vadd.f32 %v7382, %v7399
        %v7401 = vpop.f32.mrf.mxu0
        %7402 = vdwg.mxu0
        %7403 = vmatpush.bf16.msra.mxu0 %v6908
        %7404 = vmatpush.bf16.msra.mxu0 %v6896
        %7405 = vmatpush.bf16.msra.mxu0 %v6884
        %7406 = vmatpush.bf16.msra.mxu0 %v6872
        %7407 = vmatpush.bf16.msra.mxu0 %v6860
        %7408 = vmatpush.bf16.msra.mxu0 %v6848
        %7409 = vmatpush.bf16.msra.mxu0 %v6836
        %7410 = vmatpush.bf16.msra.mxu0 %v6824
        %7411 = vmatmul.bf16.gmra.mxu0 %v5445
        %v7412 = vpop.f32.mrf.mxu0
        %v7413 = vadd.f32 %v7395, %v7412
        %v7414 = vpop.f32.mrf.mxu0
        %v7415 = vadd.f32 %v7397, %v7414
        %7416 = vmatmul.bf16.gmra.mxu0 %v5448
        %v7417 = vpop.f32.mrf.mxu0
        %v7418 = vadd.f32 %v7400, %v7417
        %v7419 = vpop.f32.mrf.mxu0
        %7420 = vdwg.mxu0
        %7421 = vmatpush.bf16.msra.mxu0 %v6717
        %7422 = vmatpush.bf16.msra.mxu0 %v6705
        %7423 = vmatpush.bf16.msra.mxu0 %v6693
        %7424 = vmatpush.bf16.msra.mxu0 %v6681
        %7425 = vmatpush.bf16.msra.mxu0 %v6669
        %7426 = vmatpush.bf16.msra.mxu0 %v6657
        %7427 = vmatpush.bf16.msra.mxu0 %v6645
        %7428 = vmatpush.bf16.msra.mxu0 %v6633
        %7429 = vmatmul.bf16.gmra.mxu0 %v5443
        %v7430 = vpop.f32.mrf.mxu0
        %v7431 = vadd.f32 %v5745, %v7430
        %v7432 = vpop.f32.mrf.mxu0
        %v7433 = vadd.f32 %v5745, %v7432
        %7434 = vmatmul.bf16.gmra.mxu0 %v5446
        %v7435 = vpop.f32.mrf.mxu0
        %v7436 = vadd.f32 %v5745, %v7435
        %v7437 = vpop.f32.mrf.mxu0
        %7438 = vdwg.mxu0
        %7439 = vmatpush.bf16.msra.mxu0 %v6813
        %7440 = vmatpush.bf16.msra.mxu0 %v6801
        %7441 = vmatpush.bf16.msra.mxu0 %v6789
        %7442 = vmatpush.bf16.msra.mxu0 %v6777
        %7443 = vmatpush.bf16.msra.mxu0 %v6765
        %7444 = vmatpush.bf16.msra.mxu0 %v6753
        %7445 = vmatpush.bf16.msra.mxu0 %v6741
        %7446 = vmatpush.bf16.msra.mxu0 %v6729
        %7447 = vmatmul.bf16.gmra.mxu0 %v5444
        %v7448 = vpop.f32.mrf.mxu0
        %v7449 = vadd.f32 %v7431, %v7448
        %v7450 = vpop.f32.mrf.mxu0
        %v7451 = vadd.f32 %v7433, %v7450
        %7452 = vmatmul.bf16.gmra.mxu0 %v5447
        %v7453 = vpop.f32.mrf.mxu0
        %v7454 = vadd.f32 %v7436, %v7453
        %v7455 = vpop.f32.mrf.mxu0
        %7456 = vdwg.mxu0
        %7457 = vmatpush.bf16.msra.mxu0 %v6909
        %7458 = vmatpush.bf16.msra.mxu0 %v6897
        %7459 = vmatpush.bf16.msra.mxu0 %v6885
        %7460 = vmatpush.bf16.msra.mxu0 %v6873
        %7461 = vmatpush.bf16.msra.mxu0 %v6861
        %7462 = vmatpush.bf16.msra.mxu0 %v6849
        %7463 = vmatpush.bf16.msra.mxu0 %v6837
        %7464 = vmatpush.bf16.msra.mxu0 %v6825
        %7465 = vmatmul.bf16.gmra.mxu0 %v5445
        %v7466 = vpop.f32.mrf.mxu0
        %v7467 = vadd.f32 %v7449, %v7466
        %v7468 = vpop.f32.mrf.mxu0
        %v7469 = vadd.f32 %v7451, %v7468
        %7470 = vmatmul.bf16.gmra.mxu0 %v5448
        %v7471 = vpop.f32.mrf.mxu0
        %v7472 = vadd.f32 %v7454, %v7471
        %v7473 = vpop.f32.mrf.mxu0
        %7474 = vdwg.mxu0
        %7475 = vmatpush.bf16.msra.mxu0 %v6718
        %7476 = vmatpush.bf16.msra.mxu0 %v6706
        %7477 = vmatpush.bf16.msra.mxu0 %v6694
        %7478 = vmatpush.bf16.msra.mxu0 %v6682
        %7479 = vmatpush.bf16.msra.mxu0 %v6670
        %7480 = vmatpush.bf16.msra.mxu0 %v6658
        %7481 = vmatpush.bf16.msra.mxu0 %v6646
        %7482 = vmatpush.bf16.msra.mxu0 %v6634
        %7483 = vmatmul.bf16.gmra.mxu0 %v5443
        %v7484 = vpop.f32.mrf.mxu0
        %v7485 = vadd.f32 %v5746, %v7484
        %v7486 = vpop.f32.mrf.mxu0
        %v7487 = vadd.f32 %v5746, %v7486
        %7488 = vmatmul.bf16.gmra.mxu0 %v5446
        %v7489 = vpop.f32.mrf.mxu0
        %v7490 = vadd.f32 %v5746, %v7489
        %v7491 = vpop.f32.mrf.mxu0
        %7492 = vdwg.mxu0
        %7493 = vmatpush.bf16.msra.mxu0 %v6814
        %7494 = vmatpush.bf16.msra.mxu0 %v6802
        %7495 = vmatpush.bf16.msra.mxu0 %v6790
        %7496 = vmatpush.bf16.msra.mxu0 %v6778
        %7497 = vmatpush.bf16.msra.mxu0 %v6766
        %7498 = vmatpush.bf16.msra.mxu0 %v6754
        %7499 = vmatpush.bf16.msra.mxu0 %v6742
        %7500 = vmatpush.bf16.msra.mxu0 %v6730
        %7501 = vmatmul.bf16.gmra.mxu0 %v5444
        %v7502 = vpop.f32.mrf.mxu0
        %v7503 = vadd.f32 %v7485, %v7502
        %v7504 = vpop.f32.mrf.mxu0
        %v7505 = vadd.f32 %v7487, %v7504
        %7506 = vmatmul.bf16.gmra.mxu0 %v5447
        %v7507 = vpop.f32.mrf.mxu0
        %v7508 = vadd.f32 %v7490, %v7507
        %v7509 = vpop.f32.mrf.mxu0
        %7510 = vdwg.mxu0
        %7511 = vmatpush.bf16.msra.mxu0 %v6910
        %7512 = vmatpush.bf16.msra.mxu0 %v6898
        %7513 = vmatpush.bf16.msra.mxu0 %v6886
        %7514 = vmatpush.bf16.msra.mxu0 %v6874
        %7515 = vmatpush.bf16.msra.mxu0 %v6862
        %7516 = vmatpush.bf16.msra.mxu0 %v6850
        %7517 = vmatpush.bf16.msra.mxu0 %v6838
        %7518 = vmatpush.bf16.msra.mxu0 %v6826
        %7519 = vmatmul.bf16.gmra.mxu0 %v5445
        %v7520 = vpop.f32.mrf.mxu0
        %v7521 = vadd.f32 %v7503, %v7520
        %v7522 = vpop.f32.mrf.mxu0
        %v7523 = vadd.f32 %v7505, %v7522
        %7524 = vmatmul.bf16.gmra.mxu0 %v5448
        %v7525 = vpop.f32.mrf.mxu0
        %v7526 = vadd.f32 %v7508, %v7525
        %v7527 = vpop.f32.mrf.mxu0
        %7528 = vdwg.mxu0
        %7529 = vmatpush.bf16.msra.mxu0 %v6719
        %7530 = vmatpush.bf16.msra.mxu0 %v6707
        %7531 = vmatpush.bf16.msra.mxu0 %v6695
        %7532 = vmatpush.bf16.msra.mxu0 %v6683
        %7533 = vmatpush.bf16.msra.mxu0 %v6671
        %7534 = vmatpush.bf16.msra.mxu0 %v6659
        %7535 = vmatpush.bf16.msra.mxu0 %v6647
        %7536 = vmatpush.bf16.msra.mxu0 %v6635
        %7537 = vmatmul.bf16.gmra.mxu0 %v5443
        %v7538 = vpop.f32.mrf.mxu0
        %v7539 = vadd.f32 %v5747, %v7538
        %v7540 = vpop.f32.mrf.mxu0
        %v7541 = vadd.f32 %v5747, %v7540
        %7542 = vmatmul.bf16.gmra.mxu0 %v5446
        %v7543 = vpop.f32.mrf.mxu0
        %v7544 = vadd.f32 %v5747, %v7543
        %v7545 = vpop.f32.mrf.mxu0
        %7546 = vdwg.mxu0
        %7547 = vmatpush.bf16.msra.mxu0 %v6815
        %7548 = vmatpush.bf16.msra.mxu0 %v6803
        %7549 = vmatpush.bf16.msra.mxu0 %v6791
        %7550 = vmatpush.bf16.msra.mxu0 %v6779
        %7551 = vmatpush.bf16.msra.mxu0 %v6767
        %7552 = vmatpush.bf16.msra.mxu0 %v6755
        %7553 = vmatpush.bf16.msra.mxu0 %v6743
        %7554 = vmatpush.bf16.msra.mxu0 %v6731
        %7555 = vmatmul.bf16.gmra.mxu0 %v5444
        %v7556 = vpop.f32.mrf.mxu0
        %v7557 = vadd.f32 %v7539, %v7556
        %v7558 = vpop.f32.mrf.mxu0
        %v7559 = vadd.f32 %v7541, %v7558
        %7560 = vmatmul.bf16.gmra.mxu0 %v5447
        %v7561 = vpop.f32.mrf.mxu0
        %v7562 = vadd.f32 %v7544, %v7561
        %v7563 = vpop.f32.mrf.mxu0
        %7564 = vdwg.mxu0
        %7565 = vmatpush.bf16.msra.mxu0 %v6911
        %7566 = vmatpush.bf16.msra.mxu0 %v6899
        %7567 = vmatpush.bf16.msra.mxu0 %v6887
        %7568 = vmatpush.bf16.msra.mxu0 %v6875
        %7569 = vmatpush.bf16.msra.mxu0 %v6863
        %7570 = vmatpush.bf16.msra.mxu0 %v6851
        %7571 = vmatpush.bf16.msra.mxu0 %v6839
        %7572 = vmatpush.bf16.msra.mxu0 %v6827
        %7573 = vmatmul.bf16.gmra.mxu0 %v5445
        %v7574 = vpop.f32.mrf.mxu0
        %v7575 = vadd.f32 %v7557, %v7574
        %v7576 = vpop.f32.mrf.mxu0
        %v7577 = vadd.f32 %v7559, %v7576
        %7578 = vmatmul.bf16.gmra.mxu0 %v5448
        %v7579 = vpop.f32.mrf.mxu0
        %v7580 = vadd.f32 %v7562, %v7579
        %v7581 = vpop.f32.mrf.mxu0
        %7582 = vdwg.mxu0
        %7583 = vmatpush.bf16.msra.mxu0 %v6720
        %7584 = vmatpush.bf16.msra.mxu0 %v6708
        %7585 = vmatpush.bf16.msra.mxu0 %v6696
        %7586 = vmatpush.bf16.msra.mxu0 %v6684
        %7587 = vmatpush.bf16.msra.mxu0 %v6672
        %7588 = vmatpush.bf16.msra.mxu0 %v6660
        %7589 = vmatpush.bf16.msra.mxu0 %v6648
        %7590 = vmatpush.bf16.msra.mxu0 %v6636
        %7591 = vmatmul.bf16.gmra.mxu0 %v5443
        %v7592 = vpop.f32.mrf.mxu0
        %v7593 = vadd.f32 %v5748, %v7592
        %v7594 = vpop.f32.mrf.mxu0
        %v7595 = vadd.f32 %v5748, %v7594
        %7596 = vmatmul.bf16.gmra.mxu0 %v5446
        %v7597 = vpop.f32.mrf.mxu0
        %v7598 = vadd.f32 %v5748, %v7597
        %v7599 = vpop.f32.mrf.mxu0
        %7600 = vdwg.mxu0
        %7601 = vmatpush.bf16.msra.mxu0 %v6816
        %7602 = vmatpush.bf16.msra.mxu0 %v6804
        %7603 = vmatpush.bf16.msra.mxu0 %v6792
        %7604 = vmatpush.bf16.msra.mxu0 %v6780
        %7605 = vmatpush.bf16.msra.mxu0 %v6768
        %7606 = vmatpush.bf16.msra.mxu0 %v6756
        %7607 = vmatpush.bf16.msra.mxu0 %v6744
        %7608 = vmatpush.bf16.msra.mxu0 %v6732
        %7609 = vmatmul.bf16.gmra.mxu0 %v5444
        %v7610 = vpop.f32.mrf.mxu0
        %v7611 = vadd.f32 %v7593, %v7610
        %v7612 = vpop.f32.mrf.mxu0
        %v7613 = vadd.f32 %v7595, %v7612
        %7614 = vmatmul.bf16.gmra.mxu0 %v5447
        %v7615 = vpop.f32.mrf.mxu0
        %v7616 = vadd.f32 %v7598, %v7615
        %v7617 = vpop.f32.mrf.mxu0
        %7618 = vdwg.mxu0
        %7619 = vmatpush.bf16.msra.mxu0 %v6912
        %7620 = vmatpush.bf16.msra.mxu0 %v6900
        %7621 = vmatpush.bf16.msra.mxu0 %v6888
        %7622 = vmatpush.bf16.msra.mxu0 %v6876
        %7623 = vmatpush.bf16.msra.mxu0 %v6864
        %7624 = vmatpush.bf16.msra.mxu0 %v6852
        %7625 = vmatpush.bf16.msra.mxu0 %v6840
        %7626 = vmatpush.bf16.msra.mxu0 %v6828
        %7627 = vmatmul.bf16.gmra.mxu0 %v5445
        %v7628 = vpop.f32.mrf.mxu0
        %v7629 = vadd.f32 %v7611, %v7628
        %v7630 = vpop.f32.mrf.mxu0
        %v7631 = vadd.f32 %v7613, %v7630
        %7632 = vmatmul.bf16.gmra.mxu0 %v5448
        %v7633 = vpop.f32.mrf.mxu0
        %v7634 = vadd.f32 %v7616, %v7633
        %v7635 = vpop.f32.mrf.mxu0
        %7636 = vdwg.mxu0
        %7637 = vmatpush.bf16.msra.mxu0 %v6721
        %7638 = vmatpush.bf16.msra.mxu0 %v6709
        %7639 = vmatpush.bf16.msra.mxu0 %v6697
        %7640 = vmatpush.bf16.msra.mxu0 %v6685
        %7641 = vmatpush.bf16.msra.mxu0 %v6673
        %7642 = vmatpush.bf16.msra.mxu0 %v6661
        %7643 = vmatpush.bf16.msra.mxu0 %v6649
        %7644 = vmatpush.bf16.msra.mxu0 %v6637
        %7645 = vmatmul.bf16.gmra.mxu0 %v5443
        %v7646 = vpop.f32.mrf.mxu0
        %v7647 = vadd.f32 %v5749, %v7646
        %v7648 = vpop.f32.mrf.mxu0
        %v7649 = vadd.f32 %v5749, %v7648
        %7650 = vmatmul.bf16.gmra.mxu0 %v5446
        %v7651 = vpop.f32.mrf.mxu0
        %v7652 = vadd.f32 %v5749, %v7651
        %v7653 = vpop.f32.mrf.mxu0
        %7654 = vdwg.mxu0
        %7655 = vmatpush.bf16.msra.mxu0 %v6817
        %7656 = vmatpush.bf16.msra.mxu0 %v6805
        %7657 = vmatpush.bf16.msra.mxu0 %v6793
        %7658 = vmatpush.bf16.msra.mxu0 %v6781
        %7659 = vmatpush.bf16.msra.mxu0 %v6769
        %7660 = vmatpush.bf16.msra.mxu0 %v6757
        %7661 = vmatpush.bf16.msra.mxu0 %v6745
        %7662 = vmatpush.bf16.msra.mxu0 %v6733
        %7663 = vmatmul.bf16.gmra.mxu0 %v5444
        %v7664 = vpop.f32.mrf.mxu0
        %v7665 = vadd.f32 %v7647, %v7664
        %v7666 = vpop.f32.mrf.mxu0
        %v7667 = vadd.f32 %v7649, %v7666
        %7668 = vmatmul.bf16.gmra.mxu0 %v5447
        %v7669 = vpop.f32.mrf.mxu0
        %v7670 = vadd.f32 %v7652, %v7669
        %v7671 = vpop.f32.mrf.mxu0
        %7672 = vdwg.mxu0
        %7673 = vmatpush.bf16.msra.mxu0 %v6913
        %7674 = vmatpush.bf16.msra.mxu0 %v6901
        %7675 = vmatpush.bf16.msra.mxu0 %v6889
        %7676 = vmatpush.bf16.msra.mxu0 %v6877
        %7677 = vmatpush.bf16.msra.mxu0 %v6865
        %7678 = vmatpush.bf16.msra.mxu0 %v6853
        %7679 = vmatpush.bf16.msra.mxu0 %v6841
        %7680 = vmatpush.bf16.msra.mxu0 %v6829
        %7681 = vmatmul.bf16.gmra.mxu0 %v5445
        %v7682 = vpop.f32.mrf.mxu0
        %v7683 = vadd.f32 %v7665, %v7682
        %v7684 = vpop.f32.mrf.mxu0
        %v7685 = vadd.f32 %v7667, %v7684
        %7686 = vmatmul.bf16.gmra.mxu0 %v5448
        %v7687 = vpop.f32.mrf.mxu0
        %v7688 = vadd.f32 %v7670, %v7687
        %v7689 = vpop.f32.mrf.mxu0
        %7690 = vdwg.mxu0
        %7691 = vmatpush.bf16.msra.mxu0 %v6722
        %7692 = vmatpush.bf16.msra.mxu0 %v6710
        %7693 = vmatpush.bf16.msra.mxu0 %v6698
        %7694 = vmatpush.bf16.msra.mxu0 %v6686
        %7695 = vmatpush.bf16.msra.mxu0 %v6674
        %7696 = vmatpush.bf16.msra.mxu0 %v6662
        %7697 = vmatpush.bf16.msra.mxu0 %v6650
        %7698 = vmatpush.bf16.msra.mxu0 %v6638
        %7699 = vmatmul.bf16.gmra.mxu0 %v5443
        %v7700 = vpop.f32.mrf.mxu0
        %v7701 = vadd.f32 %v5750, %v7700
        %v7702 = vpop.f32.mrf.mxu0
        %v7703 = vadd.f32 %v5750, %v7702
        %7704 = vmatmul.bf16.gmra.mxu0 %v5446
        %v7705 = vpop.f32.mrf.mxu0
        %v7706 = vadd.f32 %v5750, %v7705
        %v7707 = vpop.f32.mrf.mxu0
        %7708 = vdwg.mxu0
        %7709 = vmatpush.bf16.msra.mxu0 %v6818
        %7710 = vmatpush.bf16.msra.mxu0 %v6806
        %7711 = vmatpush.bf16.msra.mxu0 %v6794
        %7712 = vmatpush.bf16.msra.mxu0 %v6782
        %7713 = vmatpush.bf16.msra.mxu0 %v6770
        %7714 = vmatpush.bf16.msra.mxu0 %v6758
        %7715 = vmatpush.bf16.msra.mxu0 %v6746
        %7716 = vmatpush.bf16.msra.mxu0 %v6734
        %7717 = vmatmul.bf16.gmra.mxu0 %v5444
        %v7718 = vpop.f32.mrf.mxu0
        %v7719 = vadd.f32 %v7701, %v7718
        %v7720 = vpop.f32.mrf.mxu0
        %v7721 = vadd.f32 %v7703, %v7720
        %7722 = vmatmul.bf16.gmra.mxu0 %v5447
        %v7723 = vpop.f32.mrf.mxu0
        %v7724 = vadd.f32 %v7706, %v7723
        %v7725 = vpop.f32.mrf.mxu0
        %7726 = vdwg.mxu0
        %7727 = vmatpush.bf16.msra.mxu0 %v6914
        %7728 = vmatpush.bf16.msra.mxu0 %v6902
        %7729 = vmatpush.bf16.msra.mxu0 %v6890
        %7730 = vmatpush.bf16.msra.mxu0 %v6878
        %7731 = vmatpush.bf16.msra.mxu0 %v6866
        %7732 = vmatpush.bf16.msra.mxu0 %v6854
        %7733 = vmatpush.bf16.msra.mxu0 %v6842
        %7734 = vmatpush.bf16.msra.mxu0 %v6830
        %7735 = vmatmul.bf16.gmra.mxu0 %v5445
        %v7736 = vpop.f32.mrf.mxu0
        %v7737 = vadd.f32 %v7719, %v7736
        %v7738 = vpop.f32.mrf.mxu0
        %v7739 = vadd.f32 %v7721, %v7738
        %7740 = vmatmul.bf16.gmra.mxu0 %v5448
        %v7741 = vpop.f32.mrf.mxu0
        %v7742 = vadd.f32 %v7724, %v7741
        %v7743 = vpop.f32.mrf.mxu0
        %7744 = vdwg.mxu0
        %7745 = vmatpush.bf16.msra.mxu0 %v6723
        %7746 = vmatpush.bf16.msra.mxu0 %v6711
        %7747 = vmatpush.bf16.msra.mxu0 %v6699
        %7748 = vmatpush.bf16.msra.mxu0 %v6687
        %7749 = vmatpush.bf16.msra.mxu0 %v6675
        %7750 = vmatpush.bf16.msra.mxu0 %v6663
        %7751 = vmatpush.bf16.msra.mxu0 %v6651
        %7752 = vmatpush.bf16.msra.mxu0 %v6639
        %7753 = vmatmul.bf16.gmra.mxu0 %v5443
        %v7754 = vpop.f32.mrf.mxu0
        %v7755 = vadd.f32 %v5751, %v7754
        %v7756 = vpop.f32.mrf.mxu0
        %v7757 = vadd.f32 %v5751, %v7756
        %7758 = vmatmul.bf16.gmra.mxu0 %v5446
        %v7759 = vpop.f32.mrf.mxu0
        %v7760 = vadd.f32 %v5751, %v7759
        %v7761 = vpop.f32.mrf.mxu0
        %7762 = vdwg.mxu0
        %7763 = vmatpush.bf16.msra.mxu0 %v6819
        %7764 = vmatpush.bf16.msra.mxu0 %v6807
        %7765 = vmatpush.bf16.msra.mxu0 %v6795
        %7766 = vmatpush.bf16.msra.mxu0 %v6783
        %7767 = vmatpush.bf16.msra.mxu0 %v6771
        %7768 = vmatpush.bf16.msra.mxu0 %v6759
        %7769 = vmatpush.bf16.msra.mxu0 %v6747
        %7770 = vmatpush.bf16.msra.mxu0 %v6735
        %7771 = vmatmul.bf16.gmra.mxu0 %v5444
        %v7772 = vpop.f32.mrf.mxu0
        %v7773 = vadd.f32 %v7755, %v7772
        %v7774 = vpop.f32.mrf.mxu0
        %v7775 = vadd.f32 %v7757, %v7774
        %7776 = vmatmul.bf16.gmra.mxu0 %v5447
        %v7777 = vpop.f32.mrf.mxu0
        %v7778 = vadd.f32 %v7760, %v7777
        %v7779 = vpop.f32.mrf.mxu0
        %7780 = vdwg.mxu0
        %7781 = vmatpush.bf16.msra.mxu0 %v6915
        %7782 = vmatpush.bf16.msra.mxu0 %v6903
        %7783 = vmatpush.bf16.msra.mxu0 %v6891
        %7784 = vmatpush.bf16.msra.mxu0 %v6879
        %7785 = vmatpush.bf16.msra.mxu0 %v6867
        %7786 = vmatpush.bf16.msra.mxu0 %v6855
        %7787 = vmatpush.bf16.msra.mxu0 %v6843
        %7788 = vmatpush.bf16.msra.mxu0 %v6831
        %7789 = vmatmul.bf16.gmra.mxu0 %v5445
        %v7790 = vpop.f32.mrf.mxu0
        %v7791 = vadd.f32 %v7773, %v7790
        %v7792 = vpop.f32.mrf.mxu0
        %v7793 = vadd.f32 %v7775, %v7792
        %7794 = vmatmul.bf16.gmra.mxu0 %v5448
        %v7795 = vpop.f32.mrf.mxu0
        %v7796 = vadd.f32 %v7778, %v7795
        %v7797 = vpop.f32.mrf.mxu0
        %7798 = vdwg.mxu0
        %7799 = vmatpush.bf16.msra.mxu0 %v6724
        %7800 = vmatpush.bf16.msra.mxu0 %v6712
        %7801 = vmatpush.bf16.msra.mxu0 %v6700
        %7802 = vmatpush.bf16.msra.mxu0 %v6688
        %7803 = vmatpush.bf16.msra.mxu0 %v6676
        %7804 = vmatpush.bf16.msra.mxu0 %v6664
        %7805 = vmatpush.bf16.msra.mxu0 %v6652
        %7806 = vmatpush.bf16.msra.mxu0 %v6640
        %7807 = vmatmul.bf16.gmra.mxu0 %v5443
        %v7808 = vpop.f32.mrf.mxu0
        %v7809 = vadd.f32 %v5752, %v7808
        %v7810 = vpop.f32.mrf.mxu0
        %v7811 = vadd.f32 %v5752, %v7810
        %7812 = vmatmul.bf16.gmra.mxu0 %v5446
        %v7813 = vpop.f32.mrf.mxu0
        %v7814 = vadd.f32 %v5752, %v7813
        %v7815 = vpop.f32.mrf.mxu0
        %7816 = vdwg.mxu0
        %7817 = vmatpush.bf16.msra.mxu0 %v6820
        %7818 = vmatpush.bf16.msra.mxu0 %v6808
        %7819 = vmatpush.bf16.msra.mxu0 %v6796
        %7820 = vmatpush.bf16.msra.mxu0 %v6784
        %7821 = vmatpush.bf16.msra.mxu0 %v6772
        %7822 = vmatpush.bf16.msra.mxu0 %v6760
        %7823 = vmatpush.bf16.msra.mxu0 %v6748
        %7824 = vmatpush.bf16.msra.mxu0 %v6736
        %7825 = vmatmul.bf16.gmra.mxu0 %v5444
        %v7826 = vpop.f32.mrf.mxu0
        %v7827 = vadd.f32 %v7809, %v7826
        %v7828 = vpop.f32.mrf.mxu0
        %v7829 = vadd.f32 %v7811, %v7828
        %7830 = vmatmul.bf16.gmra.mxu0 %v5447
        %v7831 = vpop.f32.mrf.mxu0
        %v7832 = vadd.f32 %v7814, %v7831
        %v7833 = vpop.f32.mrf.mxu0
        %7834 = vdwg.mxu0
        %7835 = vmatpush.bf16.msra.mxu0 %v6916
        %7836 = vmatpush.bf16.msra.mxu0 %v6904
        %7837 = vmatpush.bf16.msra.mxu0 %v6892
        %7838 = vmatpush.bf16.msra.mxu0 %v6880
        %7839 = vmatpush.bf16.msra.mxu0 %v6868
        %7840 = vmatpush.bf16.msra.mxu0 %v6856
        %7841 = vmatpush.bf16.msra.mxu0 %v6844
        %7842 = vmatpush.bf16.msra.mxu0 %v6832
        %7843 = vmatmul.bf16.gmra.mxu0 %v5445
        %v7844 = vpop.f32.mrf.mxu0
        %v7845 = vadd.f32 %v7827, %v7844
        %v7846 = vpop.f32.mrf.mxu0
        %v7847 = vadd.f32 %v7829, %v7846
        %7848 = vmatmul.bf16.gmra.mxu0 %v5448
        %v7849 = vpop.f32.mrf.mxu0
        %v7850 = vadd.f32 %v7832, %v7849
        %v7851 = vpop.f32.mrf.mxu0
        %7852 = vdwg.mxu0
        %v7853 = vmul.f32 %v7251, %v7251
        %v7854 = vmul.f32 %v7305, %v7305
        %v7855 = vmul.f32 %v7359, %v7359
        %v7856 = vmul.f32 %v7413, %v7413
        %v7857 = vmul.f32 %v7467, %v7467
        %v7858 = vmul.f32 %v7521, %v7521
        %v7859 = vmul.f32 %v7575, %v7575
        %v7860 = vmul.f32 %v7629, %v7629
        %v7861 = vmul.f32 %v7683, %v7683
        %v7862 = vmul.f32 %v7737, %v7737
        %v7863 = vmul.f32 %v7791, %v7791
        %v7864 = vmul.f32 %v7845, %v7845
        %v7865 = vmul.f32 %v7253, %v7253
        %v7866 = vmul.f32 %v7307, %v7307
        %v7867 = vmul.f32 %v7361, %v7361
        %v7868 = vmul.f32 %v7415, %v7415
        %v7869 = vmul.f32 %v7469, %v7469
        %v7870 = vmul.f32 %v7523, %v7523
        %v7871 = vmul.f32 %v7577, %v7577
        %v7872 = vmul.f32 %v7631, %v7631
        %v7873 = vmul.f32 %v7685, %v7685
        %v7874 = vmul.f32 %v7739, %v7739
        %v7875 = vmul.f32 %v7793, %v7793
        %v7876 = vmul.f32 %v7847, %v7847
        %v7877 = vmul.f32 %v7256, %v7256
        %v7878 = vmul.f32 %v7310, %v7310
        %v7879 = vmul.f32 %v7364, %v7364
        %v7880 = vmul.f32 %v7418, %v7418
        %v7881 = vmul.f32 %v7472, %v7472
        %v7882 = vmul.f32 %v7526, %v7526
        %v7883 = vmul.f32 %v7580, %v7580
        %v7884 = vmul.f32 %v7634, %v7634
        %v7885 = vmul.f32 %v7688, %v7688
        %v7886 = vmul.f32 %v7742, %v7742
        %v7887 = vmul.f32 %v7796, %v7796
        %v7888 = vmul.f32 %v7850, %v7850
        %v7889 = vmul.f32 %v7251, %v7853
        %v7890 = vmul.f32 %v7305, %v7854
        %v7891 = vmul.f32 %v7359, %v7855
        %v7892 = vmul.f32 %v7413, %v7856
        %v7893 = vmul.f32 %v7467, %v7857
        %v7894 = vmul.f32 %v7521, %v7858
        %v7895 = vmul.f32 %v7575, %v7859
        %v7896 = vmul.f32 %v7629, %v7860
        %v7897 = vmul.f32 %v7683, %v7861
        %v7898 = vmul.f32 %v7737, %v7862
        %v7899 = vmul.f32 %v7791, %v7863
        %v7900 = vmul.f32 %v7845, %v7864
        %v7901 = vmul.f32 %v7253, %v7865
        %v7902 = vmul.f32 %v7307, %v7866
        %v7903 = vmul.f32 %v7361, %v7867
        %v7904 = vmul.f32 %v7415, %v7868
        %v7905 = vmul.f32 %v7469, %v7869
        %v7906 = vmul.f32 %v7523, %v7870
        %v7907 = vmul.f32 %v7577, %v7871
        %v7908 = vmul.f32 %v7631, %v7872
        %v7909 = vmul.f32 %v7685, %v7873
        %v7910 = vmul.f32 %v7739, %v7874
        %v7911 = vmul.f32 %v7793, %v7875
        %v7912 = vmul.f32 %v7847, %v7876
        %v7913 = vmul.f32 %v7256, %v7877
        %v7914 = vmul.f32 %v7310, %v7878
        %v7915 = vmul.f32 %v7364, %v7879
        %v7916 = vmul.f32 %v7418, %v7880
        %v7917 = vmul.f32 %v7472, %v7881
        %v7918 = vmul.f32 %v7526, %v7882
        %v7919 = vmul.f32 %v7580, %v7883
        %v7920 = vmul.f32 %v7634, %v7884
        %v7921 = vmul.f32 %v7688, %v7885
        %v7922 = vmul.f32 %v7742, %v7886
        %v7923 = vmul.f32 %v7796, %v7887
        %v7924 = vmul.f32 %v7850, %v7888
        %v7925 = vmul.f32 %v7889, 0.044715
        %v7926 = vmul.f32 %v7890, 0.044715
        %v7927 = vmul.f32 %v7891, 0.044715
        %v7928 = vmul.f32 %v7892, 0.044715
        %v7929 = vmul.f32 %v7893, 0.044715
        %v7930 = vmul.f32 %v7894, 0.044715
        %v7931 = vmul.f32 %v7895, 0.044715
        %v7932 = vmul.f32 %v7896, 0.044715
        %v7933 = vmul.f32 %v7897, 0.044715
        %v7934 = vmul.f32 %v7898, 0.044715
        %v7935 = vmul.f32 %v7899, 0.044715
        %v7936 = vmul.f32 %v7900, 0.044715
        %v7937 = vmul.f32 %v7901, 0.044715
        %v7938 = vmul.f32 %v7902, 0.044715
        %v7939 = vmul.f32 %v7903, 0.044715
        %v7940 = vmul.f32 %v7904, 0.044715
        %v7941 = vmul.f32 %v7905, 0.044715
        %v7942 = vmul.f32 %v7906, 0.044715
        %v7943 = vmul.f32 %v7907, 0.044715
        %v7944 = vmul.f32 %v7908, 0.044715
        %v7945 = vmul.f32 %v7909, 0.044715
        %v7946 = vmul.f32 %v7910, 0.044715
        %v7947 = vmul.f32 %v7911, 0.044715
        %v7948 = vmul.f32 %v7912, 0.044715
        %v7949 = vmul.f32 %v7913, 0.044715
        %v7950 = vmul.f32 %v7914, 0.044715
        %v7951 = vmul.f32 %v7915, 0.044715
        %v7952 = vmul.f32 %v7916, 0.044715
        %v7953 = vmul.f32 %v7917, 0.044715
        %v7954 = vmul.f32 %v7918, 0.044715
        %v7955 = vmul.f32 %v7919, 0.044715
        %v7956 = vmul.f32 %v7920, 0.044715
        %v7957 = vmul.f32 %v7921, 0.044715
        %v7958 = vmul.f32 %v7922, 0.044715
        %v7959 = vmul.f32 %v7923, 0.044715
        %v7960 = vmul.f32 %v7924, 0.044715
        %v7961 = vadd.f32 %v7251, %v7925
        %v7962 = vadd.f32 %v7305, %v7926
        %v7963 = vadd.f32 %v7359, %v7927
        %v7964 = vadd.f32 %v7413, %v7928
        %v7965 = vadd.f32 %v7467, %v7929
        %v7966 = vadd.f32 %v7521, %v7930
        %v7967 = vadd.f32 %v7575, %v7931
        %v7968 = vadd.f32 %v7629, %v7932
        %v7969 = vadd.f32 %v7683, %v7933
        %v7970 = vadd.f32 %v7737, %v7934
        %v7971 = vadd.f32 %v7791, %v7935
        %v7972 = vadd.f32 %v7845, %v7936
        %v7973 = vadd.f32 %v7253, %v7937
        %v7974 = vadd.f32 %v7307, %v7938
        %v7975 = vadd.f32 %v7361, %v7939
        %v7976 = vadd.f32 %v7415, %v7940
        %v7977 = vadd.f32 %v7469, %v7941
        %v7978 = vadd.f32 %v7523, %v7942
        %v7979 = vadd.f32 %v7577, %v7943
        %v7980 = vadd.f32 %v7631, %v7944
        %v7981 = vadd.f32 %v7685, %v7945
        %v7982 = vadd.f32 %v7739, %v7946
        %v7983 = vadd.f32 %v7793, %v7947
        %v7984 = vadd.f32 %v7847, %v7948
        %v7985 = vadd.f32 %v7256, %v7949
        %v7986 = vadd.f32 %v7310, %v7950
        %v7987 = vadd.f32 %v7364, %v7951
        %v7988 = vadd.f32 %v7418, %v7952
        %v7989 = vadd.f32 %v7472, %v7953
        %v7990 = vadd.f32 %v7526, %v7954
        %v7991 = vadd.f32 %v7580, %v7955
        %v7992 = vadd.f32 %v7634, %v7956
        %v7993 = vadd.f32 %v7688, %v7957
        %v7994 = vadd.f32 %v7742, %v7958
        %v7995 = vadd.f32 %v7796, %v7959
        %v7996 = vadd.f32 %v7850, %v7960
        %v7997 = vmul.f32 %v7961, 0.7978846
        %v7998 = vmul.f32 %v7962, 0.7978846
        %v7999 = vmul.f32 %v7963, 0.7978846
        %v8000 = vmul.f32 %v7964, 0.7978846
        %v8001 = vmul.f32 %v7965, 0.7978846
        %v8002 = vmul.f32 %v7966, 0.7978846
        %v8003 = vmul.f32 %v7967, 0.7978846
        %v8004 = vmul.f32 %v7968, 0.7978846
        %v8005 = vmul.f32 %v7969, 0.7978846
        %v8006 = vmul.f32 %v7970, 0.7978846
        %v8007 = vmul.f32 %v7971, 0.7978846
        %v8008 = vmul.f32 %v7972, 0.7978846
        %v8009 = vmul.f32 %v7973, 0.7978846
        %v8010 = vmul.f32 %v7974, 0.7978846
        %v8011 = vmul.f32 %v7975, 0.7978846
        %v8012 = vmul.f32 %v7976, 0.7978846
        %v8013 = vmul.f32 %v7977, 0.7978846
        %v8014 = vmul.f32 %v7978, 0.7978846
        %v8015 = vmul.f32 %v7979, 0.7978846
        %v8016 = vmul.f32 %v7980, 0.7978846
        %v8017 = vmul.f32 %v7981, 0.7978846
        %v8018 = vmul.f32 %v7982, 0.7978846
        %v8019 = vmul.f32 %v7983, 0.7978846
        %v8020 = vmul.f32 %v7984, 0.7978846
        %v8021 = vmul.f32 %v7985, 0.7978846
        %v8022 = vmul.f32 %v7986, 0.7978846
        %v8023 = vmul.f32 %v7987, 0.7978846
        %v8024 = vmul.f32 %v7988, 0.7978846
        %v8025 = vmul.f32 %v7989, 0.7978846
        %v8026 = vmul.f32 %v7990, 0.7978846
        %v8027 = vmul.f32 %v7991, 0.7978846
        %v8028 = vmul.f32 %v7992, 0.7978846
        %v8029 = vmul.f32 %v7993, 0.7978846
        %v8030 = vmul.f32 %v7994, 0.7978846
        %v8031 = vmul.f32 %v7995, 0.7978846
        %v8032 = vmul.f32 %v7996, 0.7978846
        %v8033 = vtanh.pop %v7997
        %v8034 = vtanh.pop %v7998
        %v8035 = vtanh.pop %v7999
        %v8036 = vtanh.pop %v8000
        %v8037 = vtanh.pop %v8001
        %v8038 = vtanh.pop %v8002
        %v8039 = vtanh.pop %v8003
        %v8040 = vtanh.pop %v8004
        %v8041 = vtanh.pop %v8005
        %v8042 = vtanh.pop %v8006
        %v8043 = vtanh.pop %v8007
        %v8044 = vtanh.pop %v8008
        %v8045 = vtanh.pop %v8009
        %v8046 = vtanh.pop %v8010
        %v8047 = vtanh.pop %v8011
        %v8048 = vtanh.pop %v8012
        %v8049 = vtanh.pop %v8013
        %v8050 = vtanh.pop %v8014
        %v8051 = vtanh.pop %v8015
        %v8052 = vtanh.pop %v8016
        %v8053 = vtanh.pop %v8017
        %v8054 = vtanh.pop %v8018
        %v8055 = vtanh.pop %v8019
        %v8056 = vtanh.pop %v8020
        %v8057 = vtanh.pop %v8021
        %v8058 = vtanh.pop %v8022
        %v8059 = vtanh.pop %v8023
        %v8060 = vtanh.pop %v8024
        %v8061 = vtanh.pop %v8025
        %v8062 = vtanh.pop %v8026
        %v8063 = vtanh.pop %v8027
        %v8064 = vtanh.pop %v8028
        %v8065 = vtanh.pop %v8029
        %v8066 = vtanh.pop %v8030
        %v8067 = vtanh.pop %v8031
        %v8068 = vtanh.pop %v8032
        %v8069 = vadd.f32 %v8033, 1.0
        %v8070 = vadd.f32 %v8034, 1.0
        %v8071 = vadd.f32 %v8035, 1.0
        %v8072 = vadd.f32 %v8036, 1.0
        %v8073 = vadd.f32 %v8037, 1.0
        %v8074 = vadd.f32 %v8038, 1.0
        %v8075 = vadd.f32 %v8039, 1.0
        %v8076 = vadd.f32 %v8040, 1.0
        %v8077 = vadd.f32 %v8041, 1.0
        %v8078 = vadd.f32 %v8042, 1.0
        %v8079 = vadd.f32 %v8043, 1.0
        %v8080 = vadd.f32 %v8044, 1.0
        %v8081 = vadd.f32 %v8045, 1.0
        %v8082 = vadd.f32 %v8046, 1.0
        %v8083 = vadd.f32 %v8047, 1.0
        %v8084 = vadd.f32 %v8048, 1.0
        %v8085 = vadd.f32 %v8049, 1.0
        %v8086 = vadd.f32 %v8050, 1.0
        %v8087 = vadd.f32 %v8051, 1.0
        %v8088 = vadd.f32 %v8052, 1.0
        %v8089 = vadd.f32 %v8053, 1.0
        %v8090 = vadd.f32 %v8054, 1.0
        %v8091 = vadd.f32 %v8055, 1.0
        %v8092 = vadd.f32 %v8056, 1.0
        %v8093 = vadd.f32 %v8057, 1.0
        %v8094 = vadd.f32 %v8058, 1.0
        %v8095 = vadd.f32 %v8059, 1.0
        %v8096 = vadd.f32 %v8060, 1.0
        %v8097 = vadd.f32 %v8061, 1.0
        %v8098 = vadd.f32 %v8062, 1.0
        %v8099 = vadd.f32 %v8063, 1.0
        %v8100 = vadd.f32 %v8064, 1.0
        %v8101 = vadd.f32 %v8065, 1.0
        %v8102 = vadd.f32 %v8066, 1.0
        %v8103 = vadd.f32 %v8067, 1.0
        %v8104 = vadd.f32 %v8068, 1.0
        %v8105 = vmul.f32 %v8069, 0.5
        %v8106 = vmul.f32 %v8070, 0.5
        %v8107 = vmul.f32 %v8071, 0.5
        %v8108 = vmul.f32 %v8072, 0.5
        %v8109 = vmul.f32 %v8073, 0.5
        %v8110 = vmul.f32 %v8074, 0.5
        %v8111 = vmul.f32 %v8075, 0.5
        %v8112 = vmul.f32 %v8076, 0.5
        %v8113 = vmul.f32 %v8077, 0.5
        %v8114 = vmul.f32 %v8078, 0.5
        %v8115 = vmul.f32 %v8079, 0.5
        %v8116 = vmul.f32 %v8080, 0.5
        %v8117 = vmul.f32 %v8081, 0.5
        %v8118 = vmul.f32 %v8082, 0.5
        %v8119 = vmul.f32 %v8083, 0.5
        %v8120 = vmul.f32 %v8084, 0.5
        %v8121 = vmul.f32 %v8085, 0.5
        %v8122 = vmul.f32 %v8086, 0.5
        %v8123 = vmul.f32 %v8087, 0.5
        %v8124 = vmul.f32 %v8088, 0.5
        %v8125 = vmul.f32 %v8089, 0.5
        %v8126 = vmul.f32 %v8090, 0.5
        %v8127 = vmul.f32 %v8091, 0.5
        %v8128 = vmul.f32 %v8092, 0.5
        %v8129 = vmul.f32 %v8093, 0.5
        %v8130 = vmul.f32 %v8094, 0.5
        %v8131 = vmul.f32 %v8095, 0.5
        %v8132 = vmul.f32 %v8096, 0.5
        %v8133 = vmul.f32 %v8097, 0.5
        %v8134 = vmul.f32 %v8098, 0.5
        %v8135 = vmul.f32 %v8099, 0.5
        %v8136 = vmul.f32 %v8100, 0.5
        %v8137 = vmul.f32 %v8101, 0.5
        %v8138 = vmul.f32 %v8102, 0.5
        %v8139 = vmul.f32 %v8103, 0.5
        %v8140 = vmul.f32 %v8104, 0.5
        %v8141 = vmul.f32 %v7251, %v8105
        %v8142 = vmul.f32 %v7305, %v8106
        %v8143 = vmul.f32 %v7359, %v8107
        %v8144 = vmul.f32 %v7413, %v8108
        %v8145 = vmul.f32 %v7467, %v8109
        %v8146 = vmul.f32 %v7521, %v8110
        %v8147 = vmul.f32 %v7575, %v8111
        %v8148 = vmul.f32 %v7629, %v8112
        %v8149 = vmul.f32 %v7683, %v8113
        %v8150 = vmul.f32 %v7737, %v8114
        %v8151 = vmul.f32 %v7791, %v8115
        %v8152 = vmul.f32 %v7845, %v8116
        %v8153 = vmul.f32 %v7253, %v8117
        %v8154 = vmul.f32 %v7307, %v8118
        %v8155 = vmul.f32 %v7361, %v8119
        %v8156 = vmul.f32 %v7415, %v8120
        %v8157 = vmul.f32 %v7469, %v8121
        %v8158 = vmul.f32 %v7523, %v8122
        %v8159 = vmul.f32 %v7577, %v8123
        %v8160 = vmul.f32 %v7631, %v8124
        %v8161 = vmul.f32 %v7685, %v8125
        %v8162 = vmul.f32 %v7739, %v8126
        %v8163 = vmul.f32 %v7793, %v8127
        %v8164 = vmul.f32 %v7847, %v8128
        %v8165 = vmul.f32 %v7256, %v8129
        %v8166 = vmul.f32 %v7310, %v8130
        %v8167 = vmul.f32 %v7364, %v8131
        %v8168 = vmul.f32 %v7418, %v8132
        %v8169 = vmul.f32 %v7472, %v8133
        %v8170 = vmul.f32 %v7526, %v8134
        %v8171 = vmul.f32 %v7580, %v8135
        %v8172 = vmul.f32 %v7634, %v8136
        %v8173 = vmul.f32 %v7688, %v8137
        %v8174 = vmul.f32 %v7742, %v8138
        %v8175 = vmul.f32 %v7796, %v8139
        %v8176 = vmul.f32 %v7850, %v8140
        %v8177 = vpack.c.bf16 %v8153, %v8141
        %v8178 = vpack.c.bf16 %v8154, %v8142
        %v8179 = vpack.c.bf16 %v8155, %v8143
        %v8180 = vpack.c.bf16 %v8156, %v8144
        %v8181 = vpack.c.bf16 %v8157, %v8145
        %v8182 = vpack.c.bf16 %v8158, %v8146
        %v8183 = vpack.c.bf16 %v8159, %v8147
        %v8184 = vpack.c.bf16 %v8160, %v8148
        %v8185 = vpack.c.bf16 %v8161, %v8149
        %v8186 = vpack.c.bf16 %v8162, %v8150
        %v8187 = vpack.c.bf16 %v8163, %v8151
        %v8188 = vpack.c.bf16 %v8164, %v8152
        %v8189 = vpack.c.bf16 %v8165, %v8165
        %v8190 = vpack.c.bf16 %v8166, %v8166
        %v8191 = vpack.c.bf16 %v8167, %v8167
        %v8192 = vpack.c.bf16 %v8168, %v8168
        %v8193 = vpack.c.bf16 %v8169, %v8169
        %v8194 = vpack.c.bf16 %v8170, %v8170
        %v8195 = vpack.c.bf16 %v8171, %v8171
        %v8196 = vpack.c.bf16 %v8172, %v8172
        %v8197 = vpack.c.bf16 %v8173, %v8173
        %v8198 = vpack.c.bf16 %v8174, %v8174
        %v8199 = vpack.c.bf16 %v8175, %v8175
        %v8200 = vpack.c.bf16 %v8176, %v8176
        %v8201 = vld [vmem:[%s1096] sm:$0xff]
        %v8202 = vld [vmem:[%s1096 + $0x8] sm:$0xf]
        %v8203 = vld [vmem:[%s1096 + $0xc] sm:$0xff]
        %v8204 = vld [vmem:[%s1096 + $0x14] sm:$0xf]
        %v8205 = vld [vmem:[%s1096 + $0x18] sm:$0xff]
        %v8206 = vld [vmem:[%s1096 + $0x20] sm:$0xf]
        %v8207 = vld [vmem:[%s1096 + $0x24] sm:$0xff]
        %v8208 = vld [vmem:[%s1096 + $0x2c] sm:$0xf]
        %v8209 = vld [vmem:[%s1096 + $0x30] sm:$0xff]
        %v8210 = vld [vmem:[%s1096 + $0x38] sm:$0xf]
        %v8211 = vld [vmem:[%s1096 + $0x3c] sm:$0xff]
        %v8212 = vld [vmem:[%s1096 + $0x44] sm:$0xf]
        %v8213 = vld [vmem:[%s1096 + $0x48] sm:$0xff]
        %v8214 = vld [vmem:[%s1096 + $0x50] sm:$0xf]
        %v8215 = vld [vmem:[%s1096 + $0x54] sm:$0xff]
        %v8216 = vld [vmem:[%s1096 + $0x5c] sm:$0xf]
        %v8217 = vld [vmem:[%s1096 + $0x60] sm:$0xff]
        %v8218 = vld [vmem:[%s1096 + $0x68] sm:$0xf]
        %v8219 = vld [vmem:[%s1096 + $0x6c] sm:$0xff]
        %v8220 = vld [vmem:[%s1096 + $0x74] sm:$0xf]
        %v8221 = vld [vmem:[%s1096 + $0x78] sm:$0xff]
        %v8222 = vld [vmem:[%s1096 + $0x80] sm:$0xf]
        %v8223 = vld [vmem:[%s1096 + $0x84] sm:$0xff]
        %v8224 = vld [vmem:[%s1096 + $0x8c] sm:$0xf]
        %v8225 = vld [vmem:[%s1096 + $0x90] sm:$0xff]
        %v8226 = vld [vmem:[%s1096 + $0x98] sm:$0xf]
        %v8227 = vld [vmem:[%s1096 + $0x9c] sm:$0xff]
        %v8228 = vld [vmem:[%s1096 + $0xa4] sm:$0xf]
        %v8229 = vld [vmem:[%s1096 + $0xa8] sm:$0xff]
        %v8230 = vld [vmem:[%s1096 + $0xb0] sm:$0xf]
        %v8231 = vld [vmem:[%s1096 + $0xb4] sm:$0xff]
        %v8232 = vld [vmem:[%s1096 + $0xbc] sm:$0xf]
        %v8233 = vld [vmem:[%s1096 + $0xc0] sm:$0xff]
        %v8234 = vld [vmem:[%s1096 + $0xc8] sm:$0xf]
        %v8235 = vld [vmem:[%s1096 + $0xcc] sm:$0xff]
        %v8236 = vld [vmem:[%s1096 + $0xd4] sm:$0xf]
        %v8237 = vld [vmem:[%s1096 + $0xd8] sm:$0xff]
        %v8238 = vld [vmem:[%s1096 + $0xe0] sm:$0xf]
        %v8239 = vld [vmem:[%s1096 + $0xe4] sm:$0xff]
        %v8240 = vld [vmem:[%s1096 + $0xec] sm:$0xf]
        %v8241 = vld [vmem:[%s1096 + $0xf0] sm:$0xff]
        %v8242 = vld [vmem:[%s1096 + $0xf8] sm:$0xf]
        %v8243 = vld [vmem:[%s1096 + $0xfc] sm:$0xff]
        %v8244 = vld [vmem:[%s1096 + $0x104] sm:$0xf]
        %v8245 = vld [vmem:[%s1096 + $0x108] sm:$0xff]
        %v8246 = vld [vmem:[%s1096 + $0x110] sm:$0xf]
        %v8247 = vld [vmem:[%s1096 + $0x114] sm:$0xff]
        %v8248 = vld [vmem:[%s1096 + $0x11c] sm:$0xf]
        %v8249 = vld [vmem:[%s1096 + $0x120] sm:$0xff]
        %v8250 = vld [vmem:[%s1096 + $0x128] sm:$0xf]
        %v8251 = vld [vmem:[%s1096 + $0x12c] sm:$0xff]
        %v8252 = vld [vmem:[%s1096 + $0x134] sm:$0xf]
        %v8253 = vld [vmem:[%s1096 + $0x138] sm:$0xff]
        %v8254 = vld [vmem:[%s1096 + $0x140] sm:$0xf]
        %v8255 = vld [vmem:[%s1096 + $0x144] sm:$0xff]
        %v8256 = vld [vmem:[%s1096 + $0x14c] sm:$0xf]
        %v8257 = vld [vmem:[%s1096 + $0x150] sm:$0xff]
        %v8258 = vld [vmem:[%s1096 + $0x158] sm:$0xf]
        %v8259 = vld [vmem:[%s1096 + $0x15c] sm:$0xff]
        %v8260 = vld [vmem:[%s1096 + $0x164] sm:$0xf]
        %v8261 = vld [vmem:[%s1096 + $0x168] sm:$0xff]
        %v8262 = vld [vmem:[%s1096 + $0x170] sm:$0xf]
        %v8263 = vld [vmem:[%s1096 + $0x174] sm:$0xff]
        %v8264 = vld [vmem:[%s1096 + $0x17c] sm:$0xf]
        %v8265 = vld [vmem:[%s1096 + $0x180] sm:$0xff]
        %v8266 = vld [vmem:[%s1096 + $0x188] sm:$0xf]
        %v8267 = vld [vmem:[%s1096 + $0x18c] sm:$0xff]
        %v8268 = vld [vmem:[%s1096 + $0x194] sm:$0xf]
        %v8269 = vld [vmem:[%s1096 + $0x198] sm:$0xff]
        %v8270 = vld [vmem:[%s1096 + $0x1a0] sm:$0xf]
        %v8271 = vld [vmem:[%s1096 + $0x1a4] sm:$0xff]
        %v8272 = vld [vmem:[%s1096 + $0x1ac] sm:$0xf]
        %v8273 = vld [vmem:[%s1096 + $0x1b0] sm:$0xff]
        %v8274 = vld [vmem:[%s1096 + $0x1b8] sm:$0xf]
        %v8275 = vld [vmem:[%s1096 + $0x1bc] sm:$0xff]
        %v8276 = vld [vmem:[%s1096 + $0x1c4] sm:$0xf]
        %v8277 = vld [vmem:[%s1096 + $0x1c8] sm:$0xff]
        %v8278 = vld [vmem:[%s1096 + $0x1d0] sm:$0xf]
        %v8279 = vld [vmem:[%s1096 + $0x1d4] sm:$0xff]
        %v8280 = vld [vmem:[%s1096 + $0x1dc] sm:$0xf]
        %v8281 = vld [vmem:[%s1096 + $0x1e0] sm:$0xff]
        %v8282 = vld [vmem:[%s1096 + $0x1e8] sm:$0xf]
        %v8283 = vld [vmem:[%s1096 + $0x1ec] sm:$0xff]
        %v8284 = vld [vmem:[%s1096 + $0x1f4] sm:$0xf]
        %v8285 = vld [vmem:[%s1096 + $0x1f8] sm:$0xff]
        %v8286 = vld [vmem:[%s1096 + $0x200] sm:$0xf]
        %v8287 = vld [vmem:[%s1096 + $0x204] sm:$0xff]
        %v8288 = vld [vmem:[%s1096 + $0x20c] sm:$0xf]
        %v8289 = vld [vmem:[%s1096 + $0x210] sm:$0xff]
        %v8290 = vld [vmem:[%s1096 + $0x218] sm:$0xf]
        %v8291 = vld [vmem:[%s1096 + $0x21c] sm:$0xff]
        %v8292 = vld [vmem:[%s1096 + $0x224] sm:$0xf]
        %v8293 = vld [vmem:[%s1096 + $0x228] sm:$0xff]
        %v8294 = vld [vmem:[%s1096 + $0x230] sm:$0xf]
        %v8295 = vld [vmem:[%s1096 + $0x234] sm:$0xff]
        %v8296 = vld [vmem:[%s1096 + $0x23c] sm:$0xf]
        %v8297 = vld [vmem:[%s1096 + $0x240] sm:$0xff]
        %v8298 = vld [vmem:[%s1096 + $0x248] sm:$0xf]
        %v8299 = vld [vmem:[%s1096 + $0x24c] sm:$0xff]
        %v8300 = vld [vmem:[%s1096 + $0x254] sm:$0xf]
        %v8301 = vld [vmem:[%s1096 + $0x258] sm:$0xff]
        %v8302 = vld [vmem:[%s1096 + $0x260] sm:$0xf]
        %v8303 = vld [vmem:[%s1096 + $0x264] sm:$0xff]
        %v8304 = vld [vmem:[%s1096 + $0x26c] sm:$0xf]
        %v8305 = vld [vmem:[%s1096 + $0x270] sm:$0xff]
        %v8306 = vld [vmem:[%s1096 + $0x278] sm:$0xf]
        %v8307 = vld [vmem:[%s1096 + $0x27c] sm:$0xff]
        %v8308 = vld [vmem:[%s1096 + $0x284] sm:$0xf]
        %v8309 = vld [vmem:[%s1096 + $0x288] sm:$0xff]
        %v8310 = vld [vmem:[%s1096 + $0x290] sm:$0xf]
        %v8311 = vld [vmem:[%s1096 + $0x294] sm:$0xff]
        %v8312 = vld [vmem:[%s1096 + $0x29c] sm:$0xf]
        %v8313 = vld [vmem:[%s1096 + $0x2a0] sm:$0xff]
        %v8314 = vld [vmem:[%s1096 + $0x2a8] sm:$0xf]
        %v8315 = vld [vmem:[%s1096 + $0x2ac] sm:$0xff]
        %v8316 = vld [vmem:[%s1096 + $0x2b4] sm:$0xf]
        %v8317 = vld [vmem:[%s1096 + $0x2b8] sm:$0xff]
        %v8318 = vld [vmem:[%s1096 + $0x2c0] sm:$0xf]
        %v8319 = vld [vmem:[%s1096 + $0x2c4] sm:$0xff]
        %v8320 = vld [vmem:[%s1096 + $0x2cc] sm:$0xf]
        %v8321 = vld [vmem:[%s1096 + $0x2d0] sm:$0xff]
        %v8322 = vld [vmem:[%s1096 + $0x2d8] sm:$0xf]
        %v8323 = vld [vmem:[%s1096 + $0x2dc] sm:$0xff]
        %v8324 = vld [vmem:[%s1096 + $0x2e4] sm:$0xf]
        %v8325 = vld [vmem:[%s1096 + $0x2e8] sm:$0xff]
        %v8326 = vld [vmem:[%s1096 + $0x2f0] sm:$0xf]
        %v8327 = vld [vmem:[%s1096 + $0x2f4] sm:$0xff]
        %v8328 = vld [vmem:[%s1096 + $0x2fc] sm:$0xf]
        %v8329 = vld [vmem:[%s1096 + $0x300] sm:$0xff]
        %v8330 = vld [vmem:[%s1096 + $0x308] sm:$0xf]
        %v8331 = vld [vmem:[%s1096 + $0x30c] sm:$0xff]
        %v8332 = vld [vmem:[%s1096 + $0x314] sm:$0xf]
        %v8333 = vld [vmem:[%s1096 + $0x318] sm:$0xff]
        %v8334 = vld [vmem:[%s1096 + $0x320] sm:$0xf]
        %v8335 = vld [vmem:[%s1096 + $0x324] sm:$0xff]
        %v8336 = vld [vmem:[%s1096 + $0x32c] sm:$0xf]
        %v8337 = vld [vmem:[%s1096 + $0x330] sm:$0xff]
        %v8338 = vld [vmem:[%s1096 + $0x338] sm:$0xf]
        %v8339 = vld [vmem:[%s1096 + $0x33c] sm:$0xff]
        %v8340 = vld [vmem:[%s1096 + $0x344] sm:$0xf]
        %v8341 = vld [vmem:[%s1096 + $0x348] sm:$0xff]
        %v8342 = vld [vmem:[%s1096 + $0x350] sm:$0xf]
        %v8343 = vld [vmem:[%s1096 + $0x354] sm:$0xff]
        %v8344 = vld [vmem:[%s1096 + $0x35c] sm:$0xf]
        %v8345 = vld [vmem:[%s1096 + $0x360] sm:$0xff]
        %v8346 = vld [vmem:[%s1096 + $0x368] sm:$0xf]
        %v8347 = vld [vmem:[%s1096 + $0x36c] sm:$0xff]
        %v8348 = vld [vmem:[%s1096 + $0x374] sm:$0xf]
        %v8349 = vld [vmem:[%s1096 + $0x378] sm:$0xff]
        %v8350 = vld [vmem:[%s1096 + $0x380] sm:$0xf]
        %v8351 = vld [vmem:[%s1096 + $0x384] sm:$0xff]
        %v8352 = vld [vmem:[%s1096 + $0x38c] sm:$0xf]
        %v8353 = vld [vmem:[%s1096 + $0x390] sm:$0xff]
        %v8354 = vld [vmem:[%s1096 + $0x398] sm:$0xf]
        %v8355 = vld [vmem:[%s1096 + $0x39c] sm:$0xff]
        %v8356 = vld [vmem:[%s1096 + $0x3a4] sm:$0xf]
        %v8357 = vld [vmem:[%s1096 + $0x3a8] sm:$0xff]
        %v8358 = vld [vmem:[%s1096 + $0x3b0] sm:$0xf]
        %v8359 = vld [vmem:[%s1096 + $0x3b4] sm:$0xff]
        %v8360 = vld [vmem:[%s1096 + $0x3bc] sm:$0xf]
        %v8361 = vld [vmem:[%s1096 + $0x3c0] sm:$0xff]
        %v8362 = vld [vmem:[%s1096 + $0x3c8] sm:$0xf]
        %v8363 = vld [vmem:[%s1096 + $0x3cc] sm:$0xff]
        %v8364 = vld [vmem:[%s1096 + $0x3d4] sm:$0xf]
        %v8365 = vld [vmem:[%s1096 + $0x3d8] sm:$0xff]
        %v8366 = vld [vmem:[%s1096 + $0x3e0] sm:$0xf]
        %v8367 = vld [vmem:[%s1096 + $0x3e4] sm:$0xff]
        %v8368 = vld [vmem:[%s1096 + $0x3ec] sm:$0xf]
        %v8369 = vld [vmem:[%s1096 + $0x3f0] sm:$0xff]
        %v8370 = vld [vmem:[%s1096 + $0x3f8] sm:$0xf]
        %v8371 = vld [vmem:[%s1096 + $0x3fc] sm:$0xff]
        %v8372 = vld [vmem:[%s1096 + $0x404] sm:$0xf]
        %v8373 = vld [vmem:[%s1096 + $0x408] sm:$0xff]
        %v8374 = vld [vmem:[%s1096 + $0x410] sm:$0xf]
        %v8375 = vld [vmem:[%s1096 + $0x414] sm:$0xff]
        %v8376 = vld [vmem:[%s1096 + $0x41c] sm:$0xf]
        %v8377 = vld [vmem:[%s1096 + $0x420] sm:$0xff]
        %v8378 = vld [vmem:[%s1096 + $0x428] sm:$0xf]
        %v8379 = vld [vmem:[%s1096 + $0x42c] sm:$0xff]
        %v8380 = vld [vmem:[%s1096 + $0x434] sm:$0xf]
        %v8381 = vld [vmem:[%s1096 + $0x438] sm:$0xff]
        %v8382 = vld [vmem:[%s1096 + $0x440] sm:$0xf]
        %v8383 = vld [vmem:[%s1096 + $0x444] sm:$0xff]
        %v8384 = vld [vmem:[%s1096 + $0x44c] sm:$0xf]
        %v8385 = vld [vmem:[%s1096 + $0x450] sm:$0xff]
        %v8386 = vld [vmem:[%s1096 + $0x458] sm:$0xf]
        %v8387 = vld [vmem:[%s1096 + $0x45c] sm:$0xff]
        %v8388 = vld [vmem:[%s1096 + $0x464] sm:$0xf]
        %v8389 = vld [vmem:[%s1096 + $0x468] sm:$0xff]
        %v8390 = vld [vmem:[%s1096 + $0x470] sm:$0xf]
        %v8391 = vld [vmem:[%s1096 + $0x474] sm:$0xff]
        %v8392 = vld [vmem:[%s1096 + $0x47c] sm:$0xf]
        %v8393 = vld [vmem:[%s1096 + $0x480] sm:$0xff]
        %v8394 = vld [vmem:[%s1096 + $0x488] sm:$0xf]
        %v8395 = vld [vmem:[%s1096 + $0x48c] sm:$0xff]
        %v8396 = vld [vmem:[%s1096 + $0x494] sm:$0xf]
        %v8397 = vld [vmem:[%s1096 + $0x498] sm:$0xff]
        %v8398 = vld [vmem:[%s1096 + $0x4a0] sm:$0xf]
        %v8399 = vld [vmem:[%s1096 + $0x4a4] sm:$0xff]
        %v8400 = vld [vmem:[%s1096 + $0x4ac] sm:$0xf]
        %v8401 = vld [vmem:[%s1096 + $0x4b0] sm:$0xff]
        %v8402 = vld [vmem:[%s1096 + $0x4b8] sm:$0xf]
        %v8403 = vld [vmem:[%s1096 + $0x4bc] sm:$0xff]
        %v8404 = vld [vmem:[%s1096 + $0x4c4] sm:$0xf]
        %v8405 = vld [vmem:[%s1096 + $0x4c8] sm:$0xff]
        %v8406 = vld [vmem:[%s1096 + $0x4d0] sm:$0xf]
        %v8407 = vld [vmem:[%s1096 + $0x4d4] sm:$0xff]
        %v8408 = vld [vmem:[%s1096 + $0x4dc] sm:$0xf]
        %v8409 = vld [vmem:[%s1096 + $0x4e0] sm:$0xff]
        %v8410 = vld [vmem:[%s1096 + $0x4e8] sm:$0xf]
        %v8411 = vld [vmem:[%s1096 + $0x4ec] sm:$0xff]
        %v8412 = vld [vmem:[%s1096 + $0x4f4] sm:$0xf]
        %v8413 = vld [vmem:[%s1096 + $0x4f8] sm:$0xff]
        %v8414 = vld [vmem:[%s1096 + $0x500] sm:$0xf]
        %v8415 = vld [vmem:[%s1096 + $0x504] sm:$0xff]
        %v8416 = vld [vmem:[%s1096 + $0x50c] sm:$0xf]
        %v8417 = vld [vmem:[%s1096 + $0x510] sm:$0xff]
        %v8418 = vld [vmem:[%s1096 + $0x518] sm:$0xf]
        %v8419 = vld [vmem:[%s1096 + $0x51c] sm:$0xff]
        %v8420 = vld [vmem:[%s1096 + $0x524] sm:$0xf]
        %v8421 = vld [vmem:[%s1096 + $0x528] sm:$0xff]
        %v8422 = vld [vmem:[%s1096 + $0x530] sm:$0xf]
        %v8423 = vld [vmem:[%s1096 + $0x534] sm:$0xff]
        %v8424 = vld [vmem:[%s1096 + $0x53c] sm:$0xf]
        %v8425 = vld [vmem:[%s1096 + $0x540] sm:$0xff]
        %v8426 = vld [vmem:[%s1096 + $0x548] sm:$0xf]
        %v8427 = vld [vmem:[%s1096 + $0x54c] sm:$0xff]
        %v8428 = vld [vmem:[%s1096 + $0x554] sm:$0xf]
        %v8429 = vld [vmem:[%s1096 + $0x558] sm:$0xff]
        %v8430 = vld [vmem:[%s1096 + $0x560] sm:$0xf]
        %v8431 = vld [vmem:[%s1096 + $0x564] sm:$0xff]
        %v8432 = vld [vmem:[%s1096 + $0x56c] sm:$0xf]
        %v8433 = vld [vmem:[%s1096 + $0x570] sm:$0xff]
        %v8434 = vld [vmem:[%s1096 + $0x578] sm:$0xf]
        %v8435 = vld [vmem:[%s1096 + $0x57c] sm:$0xff]
        %v8436 = vld [vmem:[%s1096 + $0x584] sm:$0xf]
        %v8437 = vld [vmem:[%s1096 + $0x588] sm:$0xff]
        %v8438 = vld [vmem:[%s1096 + $0x590] sm:$0xf]
        %v8439 = vld [vmem:[%s1096 + $0x594] sm:$0xff]
        %v8440 = vld [vmem:[%s1096 + $0x59c] sm:$0xf]
        %v8441 = vld [vmem:[%s1096 + $0x5a0] sm:$0xff]
        %v8442 = vld [vmem:[%s1096 + $0x5a8] sm:$0xf]
        %v8443 = vld [vmem:[%s1096 + $0x5ac] sm:$0xff]
        %v8444 = vld [vmem:[%s1096 + $0x5b4] sm:$0xf]
        %v8445 = vld [vmem:[%s1096 + $0x5b8] sm:$0xff]
        %v8446 = vld [vmem:[%s1096 + $0x5c0] sm:$0xf]
        %v8447 = vld [vmem:[%s1096 + $0x5c4] sm:$0xff]
        %v8448 = vld [vmem:[%s1096 + $0x5cc] sm:$0xf]
        %v8449 = vld [vmem:[%s1096 + $0x5d0] sm:$0xff]
        %v8450 = vld [vmem:[%s1096 + $0x5d8] sm:$0xf]
        %v8451 = vld [vmem:[%s1096 + $0x5dc] sm:$0xff]
        %v8452 = vld [vmem:[%s1096 + $0x5e4] sm:$0xf]
        %v8453 = vld [vmem:[%s1096 + $0x5e8] sm:$0xff]
        %v8454 = vld [vmem:[%s1096 + $0x5f0] sm:$0xf]
        %v8455 = vld [vmem:[%s1096 + $0x5f4] sm:$0xff]
        %v8456 = vld [vmem:[%s1096 + $0x5fc] sm:$0xf]
        %v8457 = vld [vmem:[%s1096 + $0x600] sm:$0xff]
        %v8458 = vld [vmem:[%s1096 + $0x608] sm:$0xf]
        %v8459 = vld [vmem:[%s1096 + $0x60c] sm:$0xff]
        %v8460 = vld [vmem:[%s1096 + $0x614] sm:$0xf]
        %v8461 = vld [vmem:[%s1096 + $0x618] sm:$0xff]
        %v8462 = vld [vmem:[%s1096 + $0x620] sm:$0xf]
        %v8463 = vld [vmem:[%s1096 + $0x624] sm:$0xff]
        %v8464 = vld [vmem:[%s1096 + $0x62c] sm:$0xf]
        %v8465 = vld [vmem:[%s1096 + $0x630] sm:$0xff]
        %v8466 = vld [vmem:[%s1096 + $0x638] sm:$0xf]
        %v8467 = vld [vmem:[%s1096 + $0x63c] sm:$0xff]
        %v8468 = vld [vmem:[%s1096 + $0x644] sm:$0xf]
        %v8469 = vld [vmem:[%s1096 + $0x648] sm:$0xff]
        %v8470 = vld [vmem:[%s1096 + $0x650] sm:$0xf]
        %v8471 = vld [vmem:[%s1096 + $0x654] sm:$0xff]
        %v8472 = vld [vmem:[%s1096 + $0x65c] sm:$0xf]
        %v8473 = vld [vmem:[%s1096 + $0x660] sm:$0xff]
        %v8474 = vld [vmem:[%s1096 + $0x668] sm:$0xf]
        %v8475 = vld [vmem:[%s1096 + $0x66c] sm:$0xff]
        %v8476 = vld [vmem:[%s1096 + $0x674] sm:$0xf]
        %v8477 = vld [vmem:[%s1096 + $0x678] sm:$0xff]
        %v8478 = vld [vmem:[%s1096 + $0x680] sm:$0xf]
        %v8479 = vld [vmem:[%s1096 + $0x684] sm:$0xff]
        %v8480 = vld [vmem:[%s1096 + $0x68c] sm:$0xf]
        %v8481 = vld [vmem:[%s1096 + $0x690] sm:$0xff]
        %v8482 = vld [vmem:[%s1096 + $0x698] sm:$0xf]
        %v8483 = vld [vmem:[%s1096 + $0x69c] sm:$0xff]
        %v8484 = vld [vmem:[%s1096 + $0x6a4] sm:$0xf]
        %v8485 = vld [vmem:[%s1096 + $0x6a8] sm:$0xff]
        %v8486 = vld [vmem:[%s1096 + $0x6b0] sm:$0xf]
        %v8487 = vld [vmem:[%s1096 + $0x6b4] sm:$0xff]
        %v8488 = vld [vmem:[%s1096 + $0x6bc] sm:$0xf]
        %v8489 = vld [vmem:[%s1096 + $0x6c0] sm:$0xff]
        %v8490 = vld [vmem:[%s1096 + $0x6c8] sm:$0xf]
        %v8491 = vld [vmem:[%s1096 + $0x6cc] sm:$0xff]
        %v8492 = vld [vmem:[%s1096 + $0x6d4] sm:$0xf]
        %v8493 = vld [vmem:[%s1096 + $0x6d8] sm:$0xff]
        %v8494 = vld [vmem:[%s1096 + $0x6e0] sm:$0xf]
        %v8495 = vld [vmem:[%s1096 + $0x6e4] sm:$0xff]
        %v8496 = vld [vmem:[%s1096 + $0x6ec] sm:$0xf]
        %v8497 = vld [vmem:[%s1096 + $0x6f0] sm:$0xff]
        %v8498 = vld [vmem:[%s1096 + $0x6f8] sm:$0xf]
        %v8499 = vld [vmem:[%s1096 + $0x6fc] sm:$0xff]
        %v8500 = vld [vmem:[%s1096 + $0x704] sm:$0xf]
        %v8501 = vld [vmem:[%s1096 + $0x708] sm:$0xff]
        %v8502 = vld [vmem:[%s1096 + $0x710] sm:$0xf]
        %v8503 = vld [vmem:[%s1096 + $0x714] sm:$0xff]
        %v8504 = vld [vmem:[%s1096 + $0x71c] sm:$0xf]
        %v8505 = vld [vmem:[%s1096 + $0x720] sm:$0xff]
        %v8506 = vld [vmem:[%s1096 + $0x728] sm:$0xf]
        %v8507 = vld [vmem:[%s1096 + $0x72c] sm:$0xff]
        %v8508 = vld [vmem:[%s1096 + $0x734] sm:$0xf]
        %v8509 = vld [vmem:[%s1096 + $0x738] sm:$0xff]
        %v8510 = vld [vmem:[%s1096 + $0x740] sm:$0xf]
        %v8511 = vld [vmem:[%s1096 + $0x744] sm:$0xff]
        %v8512 = vld [vmem:[%s1096 + $0x74c] sm:$0xf]
        %v8513 = vld [vmem:[%s1096 + $0x750] sm:$0xff]
        %v8514 = vld [vmem:[%s1096 + $0x758] sm:$0xf]
        %v8515 = vld [vmem:[%s1096 + $0x75c] sm:$0xff]
        %v8516 = vld [vmem:[%s1096 + $0x764] sm:$0xf]
        %v8517 = vld [vmem:[%s1096 + $0x768] sm:$0xff]
        %v8518 = vld [vmem:[%s1096 + $0x770] sm:$0xf]
        %v8519 = vld [vmem:[%s1096 + $0x774] sm:$0xff]
        %v8520 = vld [vmem:[%s1096 + $0x77c] sm:$0xf]
        %v8521 = vld [vmem:[%s1096 + $0x780] sm:$0xff]
        %v8522 = vld [vmem:[%s1096 + $0x788] sm:$0xf]
        %v8523 = vld [vmem:[%s1096 + $0x78c] sm:$0xff]
        %v8524 = vld [vmem:[%s1096 + $0x794] sm:$0xf]
        %v8525 = vld [vmem:[%s1096 + $0x798] sm:$0xff]
        %v8526 = vld [vmem:[%s1096 + $0x7a0] sm:$0xf]
        %v8527 = vld [vmem:[%s1096 + $0x7a4] sm:$0xff]
        %v8528 = vld [vmem:[%s1096 + $0x7ac] sm:$0xf]
        %v8529 = vld [vmem:[%s1096 + $0x7b0] sm:$0xff]
        %v8530 = vld [vmem:[%s1096 + $0x7b8] sm:$0xf]
        %v8531 = vld [vmem:[%s1096 + $0x7bc] sm:$0xff]
        %v8532 = vld [vmem:[%s1096 + $0x7c4] sm:$0xf]
        %v8533 = vld [vmem:[%s1096 + $0x7c8] sm:$0xff]
        %v8534 = vld [vmem:[%s1096 + $0x7d0] sm:$0xf]
        %v8535 = vld [vmem:[%s1096 + $0x7d4] sm:$0xff]
        %v8536 = vld [vmem:[%s1096 + $0x7dc] sm:$0xf]
        %v8537 = vld [vmem:[%s1096 + $0x7e0] sm:$0xff]
        %v8538 = vld [vmem:[%s1096 + $0x7e8] sm:$0xf]
        %v8539 = vld [vmem:[%s1096 + $0x7ec] sm:$0xff]
        %v8540 = vld [vmem:[%s1096 + $0x7f4] sm:$0xf]
        %v8541 = vld [vmem:[%s1096 + $0x7f8] sm:$0xff]
        %v8542 = vld [vmem:[%s1096 + $0x800] sm:$0xf]
        %v8543 = vld [vmem:[%s1096 + $0x804] sm:$0xff]
        %v8544 = vld [vmem:[%s1096 + $0x80c] sm:$0xf]
        %v8545 = vld [vmem:[%s1096 + $0x810] sm:$0xff]
        %v8546 = vld [vmem:[%s1096 + $0x818] sm:$0xf]
        %v8547 = vld [vmem:[%s1096 + $0x81c] sm:$0xff]
        %v8548 = vld [vmem:[%s1096 + $0x824] sm:$0xf]
        %v8549 = vld [vmem:[%s1096 + $0x828] sm:$0xff]
        %v8550 = vld [vmem:[%s1096 + $0x830] sm:$0xf]
        %v8551 = vld [vmem:[%s1096 + $0x834] sm:$0xff]
        %v8552 = vld [vmem:[%s1096 + $0x83c] sm:$0xf]
        %v8553 = vld [vmem:[%s1096 + $0x840] sm:$0xff]
        %v8554 = vld [vmem:[%s1096 + $0x848] sm:$0xf]
        %v8555 = vld [vmem:[%s1096 + $0x84c] sm:$0xff]
        %v8556 = vld [vmem:[%s1096 + $0x854] sm:$0xf]
        %v8557 = vld [vmem:[%s1096 + $0x858] sm:$0xff]
        %v8558 = vld [vmem:[%s1096 + $0x860] sm:$0xf]
        %v8559 = vld [vmem:[%s1096 + $0x864] sm:$0xff]
        %v8560 = vld [vmem:[%s1096 + $0x86c] sm:$0xf]
        %v8561 = vld [vmem:[%s1096 + $0x870] sm:$0xff]
        %v8562 = vld [vmem:[%s1096 + $0x878] sm:$0xf]
        %v8563 = vld [vmem:[%s1096 + $0x87c] sm:$0xff]
        %v8564 = vld [vmem:[%s1096 + $0x884] sm:$0xf]
        %v8565 = vld [vmem:[%s1096 + $0x888] sm:$0xff]
        %v8566 = vld [vmem:[%s1096 + $0x890] sm:$0xf]
        %v8567 = vld [vmem:[%s1096 + $0x894] sm:$0xff]
        %v8568 = vld [vmem:[%s1096 + $0x89c] sm:$0xf]
        %v8569 = vld [vmem:[%s1096 + $0x8a0] sm:$0xff]
        %v8570 = vld [vmem:[%s1096 + $0x8a8] sm:$0xf]
        %v8571 = vld [vmem:[%s1096 + $0x8ac] sm:$0xff]
        %v8572 = vld [vmem:[%s1096 + $0x8b4] sm:$0xf]
        %v8573 = vld [vmem:[%s1096 + $0x8b8] sm:$0xff]
        %v8574 = vld [vmem:[%s1096 + $0x8c0] sm:$0xf]
        %v8575 = vld [vmem:[%s1096 + $0x8c4] sm:$0xff]
        %v8576 = vld [vmem:[%s1096 + $0x8cc] sm:$0xf]
        %v8577 = vld [vmem:[%s1096 + $0x8d0] sm:$0xff]
        %v8578 = vld [vmem:[%s1096 + $0x8d8] sm:$0xf]
        %v8579 = vld [vmem:[%s1096 + $0x8dc] sm:$0xff]
        %v8580 = vld [vmem:[%s1096 + $0x8e4] sm:$0xf]
        %v8581 = vld [vmem:[%s1096 + $0x8e8] sm:$0xff]
        %v8582 = vld [vmem:[%s1096 + $0x8f0] sm:$0xf]
        %v8583 = vld [vmem:[%s1096 + $0x8f4] sm:$0xff]
        %v8584 = vld [vmem:[%s1096 + $0x8fc] sm:$0xf]
        %v8585 = vld [vmem:[%s1106] sm:$0x7]
        %v8587 = vperm.slane %v8585, 0
        %v8588 = vperm.slane %v8585, 1
        %v8589 = vperm.slane %v8585, 2
        %v8977 = vunpack.c.l.b16 %v8201
        %v8978 = vunpack.c.h.b16 %v8201
        %v8979 = vunpack.c.l.b16 %v8202
        %v8980 = vunpack.c.l.b16 %v8203
        %v8981 = vunpack.c.h.b16 %v8203
        %v8982 = vunpack.c.l.b16 %v8204
        %v8983 = vunpack.c.l.b16 %v8205
        %v8984 = vunpack.c.h.b16 %v8205
        %v8985 = vunpack.c.l.b16 %v8206
        %v8986 = vunpack.c.l.b16 %v8207
        %v8987 = vunpack.c.h.b16 %v8207
        %v8988 = vunpack.c.l.b16 %v8208
        %v8989 = vunpack.c.l.b16 %v8209
        %v8990 = vunpack.c.h.b16 %v8209
        %v8991 = vunpack.c.l.b16 %v8210
        %v8992 = vunpack.c.l.b16 %v8211
        %v8993 = vunpack.c.h.b16 %v8211
        %v8994 = vunpack.c.l.b16 %v8212
        %v8995 = vunpack.c.l.b16 %v8213
        %v8996 = vunpack.c.h.b16 %v8213
        %v8997 = vunpack.c.l.b16 %v8214
        %v8998 = vunpack.c.l.b16 %v8215
        %v8999 = vunpack.c.h.b16 %v8215
        %v9000 = vunpack.c.l.b16 %v8216
        %v9001 = vunpack.c.l.b16 %v8217
        %v9002 = vunpack.c.h.b16 %v8217
        %v9003 = vunpack.c.l.b16 %v8218
        %v9004 = vunpack.c.l.b16 %v8219
        %v9005 = vunpack.c.h.b16 %v8219
        %v9006 = vunpack.c.l.b16 %v8220
        %v9007 = vunpack.c.l.b16 %v8221
        %v9008 = vunpack.c.h.b16 %v8221
        %v9009 = vunpack.c.l.b16 %v8222
        %v9010 = vunpack.c.l.b16 %v8223
        %v9011 = vunpack.c.h.b16 %v8223
        %v9012 = vunpack.c.l.b16 %v8224
        %v9013 = vunpack.c.l.b16 %v8225
        %v9014 = vunpack.c.h.b16 %v8225
        %v9015 = vunpack.c.l.b16 %v8226
        %v9016 = vunpack.c.l.b16 %v8227
        %v9017 = vunpack.c.h.b16 %v8227
        %v9018 = vunpack.c.l.b16 %v8228
        %v9019 = vunpack.c.l.b16 %v8229
        %v9020 = vunpack.c.h.b16 %v8229
        %v9021 = vunpack.c.l.b16 %v8230
        %v9022 = vunpack.c.l.b16 %v8231
        %v9023 = vunpack.c.h.b16 %v8231
        %v9024 = vunpack.c.l.b16 %v8232
        %v9025 = vunpack.c.l.b16 %v8233
        %v9026 = vunpack.c.h.b16 %v8233
        %v9027 = vunpack.c.l.b16 %v8234
        %v9028 = vunpack.c.l.b16 %v8235
        %v9029 = vunpack.c.h.b16 %v8235
        %v9030 = vunpack.c.l.b16 %v8236
        %v9031 = vunpack.c.l.b16 %v8237
        %v9032 = vunpack.c.h.b16 %v8237
        %v9033 = vunpack.c.l.b16 %v8238
        %v9034 = vunpack.c.l.b16 %v8239
        %v9035 = vunpack.c.h.b16 %v8239
        %v9036 = vunpack.c.l.b16 %v8240
        %v9037 = vunpack.c.l.b16 %v8241
        %v9038 = vunpack.c.h.b16 %v8241
        %v9039 = vunpack.c.l.b16 %v8242
        %v9040 = vunpack.c.l.b16 %v8243
        %v9041 = vunpack.c.h.b16 %v8243
        %v9042 = vunpack.c.l.b16 %v8244
        %v9043 = vunpack.c.l.b16 %v8245
        %v9044 = vunpack.c.h.b16 %v8245
        %v9045 = vunpack.c.l.b16 %v8246
        %v9046 = vunpack.c.l.b16 %v8247
        %v9047 = vunpack.c.h.b16 %v8247
        %v9048 = vunpack.c.l.b16 %v8248
        %v9049 = vunpack.c.l.b16 %v8249
        %v9050 = vunpack.c.h.b16 %v8249
        %v9051 = vunpack.c.l.b16 %v8250
        %v9052 = vunpack.c.l.b16 %v8251
        %v9053 = vunpack.c.h.b16 %v8251
        %v9054 = vunpack.c.l.b16 %v8252
        %v9055 = vunpack.c.l.b16 %v8253
        %v9056 = vunpack.c.h.b16 %v8253
        %v9057 = vunpack.c.l.b16 %v8254
        %v9058 = vunpack.c.l.b16 %v8255
        %v9059 = vunpack.c.h.b16 %v8255
        %v9060 = vunpack.c.l.b16 %v8256
        %v9061 = vunpack.c.l.b16 %v8257
        %v9062 = vunpack.c.h.b16 %v8257
        %v9063 = vunpack.c.l.b16 %v8258
        %v9064 = vunpack.c.l.b16 %v8259
        %v9065 = vunpack.c.h.b16 %v8259
        %v9066 = vunpack.c.l.b16 %v8260
        %v9067 = vunpack.c.l.b16 %v8261
        %v9068 = vunpack.c.h.b16 %v8261
        %v9069 = vunpack.c.l.b16 %v8262
        %v9070 = vunpack.c.l.b16 %v8263
        %v9071 = vunpack.c.h.b16 %v8263
        %v9072 = vunpack.c.l.b16 %v8264
        %v9073 = vunpack.c.l.b16 %v8265
        %v9074 = vunpack.c.h.b16 %v8265
        %v9075 = vunpack.c.l.b16 %v8266
        %v9076 = vunpack.c.l.b16 %v8267
        %v9077 = vunpack.c.h.b16 %v8267
        %v9078 = vunpack.c.l.b16 %v8268
        %v9079 = vunpack.c.l.b16 %v8269
        %v9080 = vunpack.c.h.b16 %v8269
        %v9081 = vunpack.c.l.b16 %v8270
        %v9082 = vunpack.c.l.b16 %v8271
        %v9083 = vunpack.c.h.b16 %v8271
        %v9084 = vunpack.c.l.b16 %v8272
        %v9085 = vunpack.c.l.b16 %v8273
        %v9086 = vunpack.c.h.b16 %v8273
        %v9087 = vunpack.c.l.b16 %v8274
        %v9088 = vunpack.c.l.b16 %v8275
        %v9089 = vunpack.c.h.b16 %v8275
        %v9090 = vunpack.c.l.b16 %v8276
        %v9091 = vunpack.c.l.b16 %v8277
        %v9092 = vunpack.c.h.b16 %v8277
        %v9093 = vunpack.c.l.b16 %v8278
        %v9094 = vunpack.c.l.b16 %v8279
        %v9095 = vunpack.c.h.b16 %v8279
        %v9096 = vunpack.c.l.b16 %v8280
        %v9097 = vunpack.c.l.b16 %v8281
        %v9098 = vunpack.c.h.b16 %v8281
        %v9099 = vunpack.c.l.b16 %v8282
        %v9100 = vunpack.c.l.b16 %v8283
        %v9101 = vunpack.c.h.b16 %v8283
        %v9102 = vunpack.c.l.b16 %v8284
        %v9103 = vunpack.c.l.b16 %v8285
        %v9104 = vunpack.c.h.b16 %v8285
        %v9105 = vunpack.c.l.b16 %v8286
        %v9106 = vunpack.c.l.b16 %v8287
        %v9107 = vunpack.c.h.b16 %v8287
        %v9108 = vunpack.c.l.b16 %v8288
        %v9109 = vunpack.c.l.b16 %v8289
        %v9110 = vunpack.c.h.b16 %v8289
        %v9111 = vunpack.c.l.b16 %v8290
        %v9112 = vunpack.c.l.b16 %v8291
        %v9113 = vunpack.c.h.b16 %v8291
        %v9114 = vunpack.c.l.b16 %v8292
        %v9115 = vunpack.c.l.b16 %v8293
        %v9116 = vunpack.c.h.b16 %v8293
        %v9117 = vunpack.c.l.b16 %v8294
        %v9118 = vunpack.c.l.b16 %v8295
        %v9119 = vunpack.c.h.b16 %v8295
        %v9120 = vunpack.c.l.b16 %v8296
        %v9121 = vunpack.c.l.b16 %v8297
        %v9122 = vunpack.c.h.b16 %v8297
        %v9123 = vunpack.c.l.b16 %v8298
        %v9124 = vunpack.c.l.b16 %v8299
        %v9125 = vunpack.c.h.b16 %v8299
        %v9126 = vunpack.c.l.b16 %v8300
        %v9127 = vunpack.c.l.b16 %v8301
        %v9128 = vunpack.c.h.b16 %v8301
        %v9129 = vunpack.c.l.b16 %v8302
        %v9130 = vunpack.c.l.b16 %v8303
        %v9131 = vunpack.c.h.b16 %v8303
        %v9132 = vunpack.c.l.b16 %v8304
        %v9133 = vunpack.c.l.b16 %v8305
        %v9134 = vunpack.c.h.b16 %v8305
        %v9135 = vunpack.c.l.b16 %v8306
        %v9136 = vunpack.c.l.b16 %v8307
        %v9137 = vunpack.c.h.b16 %v8307
        %v9138 = vunpack.c.l.b16 %v8308
        %v9139 = vunpack.c.l.b16 %v8309
        %v9140 = vunpack.c.h.b16 %v8309
        %v9141 = vunpack.c.l.b16 %v8310
        %v9142 = vunpack.c.l.b16 %v8311
        %v9143 = vunpack.c.h.b16 %v8311
        %v9144 = vunpack.c.l.b16 %v8312
        %v9145 = vunpack.c.l.b16 %v8313
        %v9146 = vunpack.c.h.b16 %v8313
        %v9147 = vunpack.c.l.b16 %v8314
        %v9148 = vunpack.c.l.b16 %v8315
        %v9149 = vunpack.c.h.b16 %v8315
        %v9150 = vunpack.c.l.b16 %v8316
        %v9151 = vunpack.c.l.b16 %v8317
        %v9152 = vunpack.c.h.b16 %v8317
        %v9153 = vunpack.c.l.b16 %v8318
        %v9154 = vunpack.c.l.b16 %v8319
        %v9155 = vunpack.c.h.b16 %v8319
        %v9156 = vunpack.c.l.b16 %v8320
        %v9157 = vunpack.c.l.b16 %v8321
        %v9158 = vunpack.c.h.b16 %v8321
        %v9159 = vunpack.c.l.b16 %v8322
        %v9160 = vunpack.c.l.b16 %v8323
        %v9161 = vunpack.c.h.b16 %v8323
        %v9162 = vunpack.c.l.b16 %v8324
        %v9163 = vunpack.c.l.b16 %v8325
        %v9164 = vunpack.c.h.b16 %v8325
        %v9165 = vunpack.c.l.b16 %v8326
        %v9166 = vunpack.c.l.b16 %v8327
        %v9167 = vunpack.c.h.b16 %v8327
        %v9168 = vunpack.c.l.b16 %v8328
        %v9169 = vunpack.c.l.b16 %v8329
        %v9170 = vunpack.c.h.b16 %v8329
        %v9171 = vunpack.c.l.b16 %v8330
        %v9172 = vunpack.c.l.b16 %v8331
        %v9173 = vunpack.c.h.b16 %v8331
        %v9174 = vunpack.c.l.b16 %v8332
        %v9175 = vunpack.c.l.b16 %v8333
        %v9176 = vunpack.c.h.b16 %v8333
        %v9177 = vunpack.c.l.b16 %v8334
        %v9178 = vunpack.c.l.b16 %v8335
        %v9179 = vunpack.c.h.b16 %v8335
        %v9180 = vunpack.c.l.b16 %v8336
        %v9181 = vunpack.c.l.b16 %v8337
        %v9182 = vunpack.c.h.b16 %v8337
        %v9183 = vunpack.c.l.b16 %v8338
        %v9184 = vunpack.c.l.b16 %v8339
        %v9185 = vunpack.c.h.b16 %v8339
        %v9186 = vunpack.c.l.b16 %v8340
        %v9187 = vunpack.c.l.b16 %v8341
        %v9188 = vunpack.c.h.b16 %v8341
        %v9189 = vunpack.c.l.b16 %v8342
        %v9190 = vunpack.c.l.b16 %v8343
        %v9191 = vunpack.c.h.b16 %v8343
        %v9192 = vunpack.c.l.b16 %v8344
        %v9193 = vunpack.c.l.b16 %v8345
        %v9194 = vunpack.c.h.b16 %v8345
        %v9195 = vunpack.c.l.b16 %v8346
        %v9196 = vunpack.c.l.b16 %v8347
        %v9197 = vunpack.c.h.b16 %v8347
        %v9198 = vunpack.c.l.b16 %v8348
        %v9199 = vunpack.c.l.b16 %v8349
        %v9200 = vunpack.c.h.b16 %v8349
        %v9201 = vunpack.c.l.b16 %v8350
        %v9202 = vunpack.c.l.b16 %v8351
        %v9203 = vunpack.c.h.b16 %v8351
        %v9204 = vunpack.c.l.b16 %v8352
        %v9205 = vunpack.c.l.b16 %v8353
        %v9206 = vunpack.c.h.b16 %v8353
        %v9207 = vunpack.c.l.b16 %v8354
        %v9208 = vunpack.c.l.b16 %v8355
        %v9209 = vunpack.c.h.b16 %v8355
        %v9210 = vunpack.c.l.b16 %v8356
        %v9211 = vunpack.c.l.b16 %v8357
        %v9212 = vunpack.c.h.b16 %v8357
        %v9213 = vunpack.c.l.b16 %v8358
        %v9214 = vunpack.c.l.b16 %v8359
        %v9215 = vunpack.c.h.b16 %v8359
        %v9216 = vunpack.c.l.b16 %v8360
        %v9217 = vunpack.c.l.b16 %v8361
        %v9218 = vunpack.c.h.b16 %v8361
        %v9219 = vunpack.c.l.b16 %v8362
        %v9220 = vunpack.c.l.b16 %v8363
        %v9221 = vunpack.c.h.b16 %v8363
        %v9222 = vunpack.c.l.b16 %v8364
        %v9223 = vunpack.c.l.b16 %v8365
        %v9224 = vunpack.c.h.b16 %v8365
        %v9225 = vunpack.c.l.b16 %v8366
        %v9226 = vunpack.c.l.b16 %v8367
        %v9227 = vunpack.c.h.b16 %v8367
        %v9228 = vunpack.c.l.b16 %v8368
        %v9229 = vunpack.c.l.b16 %v8369
        %v9230 = vunpack.c.h.b16 %v8369
        %v9231 = vunpack.c.l.b16 %v8370
        %v9232 = vunpack.c.l.b16 %v8371
        %v9233 = vunpack.c.h.b16 %v8371
        %v9234 = vunpack.c.l.b16 %v8372
        %v9235 = vunpack.c.l.b16 %v8373
        %v9236 = vunpack.c.h.b16 %v8373
        %v9237 = vunpack.c.l.b16 %v8374
        %v9238 = vunpack.c.l.b16 %v8375
        %v9239 = vunpack.c.h.b16 %v8375
        %v9240 = vunpack.c.l.b16 %v8376
        %v9241 = vunpack.c.l.b16 %v8377
        %v9242 = vunpack.c.h.b16 %v8377
        %v9243 = vunpack.c.l.b16 %v8378
        %v9244 = vunpack.c.l.b16 %v8379
        %v9245 = vunpack.c.h.b16 %v8379
        %v9246 = vunpack.c.l.b16 %v8380
        %v9247 = vunpack.c.l.b16 %v8381
        %v9248 = vunpack.c.h.b16 %v8381
        %v9249 = vunpack.c.l.b16 %v8382
        %v9250 = vunpack.c.l.b16 %v8383
        %v9251 = vunpack.c.h.b16 %v8383
        %v9252 = vunpack.c.l.b16 %v8384
        %v9253 = vunpack.c.l.b16 %v8385
        %v9254 = vunpack.c.h.b16 %v8385
        %v9255 = vunpack.c.l.b16 %v8386
        %v9256 = vunpack.c.l.b16 %v8387
        %v9257 = vunpack.c.h.b16 %v8387
        %v9258 = vunpack.c.l.b16 %v8388
        %v9259 = vunpack.c.l.b16 %v8389
        %v9260 = vunpack.c.h.b16 %v8389
        %v9261 = vunpack.c.l.b16 %v8390
        %v9262 = vunpack.c.l.b16 %v8391
        %v9263 = vunpack.c.h.b16 %v8391
        %v9264 = vunpack.c.l.b16 %v8392
        %v9265 = vunpack.c.l.b16 %v8393
        %v9266 = vunpack.c.h.b16 %v8393
        %v9267 = vunpack.c.l.b16 %v8394
        %v9268 = vunpack.c.l.b16 %v8395
        %v9269 = vunpack.c.h.b16 %v8395
        %v9270 = vunpack.c.l.b16 %v8396
        %v9271 = vunpack.c.l.b16 %v8397
        %v9272 = vunpack.c.h.b16 %v8397
        %v9273 = vunpack.c.l.b16 %v8398
        %v9274 = vunpack.c.l.b16 %v8399
        %v9275 = vunpack.c.h.b16 %v8399
        %v9276 = vunpack.c.l.b16 %v8400
        %v9277 = vunpack.c.l.b16 %v8401
        %v9278 = vunpack.c.h.b16 %v8401
        %v9279 = vunpack.c.l.b16 %v8402
        %v9280 = vunpack.c.l.b16 %v8403
        %v9281 = vunpack.c.h.b16 %v8403
        %v9282 = vunpack.c.l.b16 %v8404
        %v9283 = vunpack.c.l.b16 %v8405
        %v9284 = vunpack.c.h.b16 %v8405
        %v9285 = vunpack.c.l.b16 %v8406
        %v9286 = vunpack.c.l.b16 %v8407
        %v9287 = vunpack.c.h.b16 %v8407
        %v9288 = vunpack.c.l.b16 %v8408
        %v9289 = vunpack.c.l.b16 %v8409
        %v9290 = vunpack.c.h.b16 %v8409
        %v9291 = vunpack.c.l.b16 %v8410
        %v9292 = vunpack.c.l.b16 %v8411
        %v9293 = vunpack.c.h.b16 %v8411
        %v9294 = vunpack.c.l.b16 %v8412
        %v9295 = vunpack.c.l.b16 %v8413
        %v9296 = vunpack.c.h.b16 %v8413
        %v9297 = vunpack.c.l.b16 %v8414
        %v9298 = vunpack.c.l.b16 %v8415
        %v9299 = vunpack.c.h.b16 %v8415
        %v9300 = vunpack.c.l.b16 %v8416
        %v9301 = vunpack.c.l.b16 %v8417
        %v9302 = vunpack.c.h.b16 %v8417
        %v9303 = vunpack.c.l.b16 %v8418
        %v9304 = vunpack.c.l.b16 %v8419
        %v9305 = vunpack.c.h.b16 %v8419
        %v9306 = vunpack.c.l.b16 %v8420
        %v9307 = vunpack.c.l.b16 %v8421
        %v9308 = vunpack.c.h.b16 %v8421
        %v9309 = vunpack.c.l.b16 %v8422
        %v9310 = vunpack.c.l.b16 %v8423
        %v9311 = vunpack.c.h.b16 %v8423
        %v9312 = vunpack.c.l.b16 %v8424
        %v9313 = vunpack.c.l.b16 %v8425
        %v9314 = vunpack.c.h.b16 %v8425
        %v9315 = vunpack.c.l.b16 %v8426
        %v9316 = vunpack.c.l.b16 %v8427
        %v9317 = vunpack.c.h.b16 %v8427
        %v9318 = vunpack.c.l.b16 %v8428
        %v9319 = vunpack.c.l.b16 %v8429
        %v9320 = vunpack.c.h.b16 %v8429
        %v9321 = vunpack.c.l.b16 %v8430
        %v9322 = vunpack.c.l.b16 %v8431
        %v9323 = vunpack.c.h.b16 %v8431
        %v9324 = vunpack.c.l.b16 %v8432
        %v9325 = vunpack.c.l.b16 %v8433
        %v9326 = vunpack.c.h.b16 %v8433
        %v9327 = vunpack.c.l.b16 %v8434
        %v9328 = vunpack.c.l.b16 %v8435
        %v9329 = vunpack.c.h.b16 %v8435
        %v9330 = vunpack.c.l.b16 %v8436
        %v9331 = vunpack.c.l.b16 %v8437
        %v9332 = vunpack.c.h.b16 %v8437
        %v9333 = vunpack.c.l.b16 %v8438
        %v9334 = vunpack.c.l.b16 %v8439
        %v9335 = vunpack.c.h.b16 %v8439
        %v9336 = vunpack.c.l.b16 %v8440
        %v9337 = vunpack.c.l.b16 %v8441
        %v9338 = vunpack.c.h.b16 %v8441
        %v9339 = vunpack.c.l.b16 %v8442
        %v9340 = vunpack.c.l.b16 %v8443
        %v9341 = vunpack.c.h.b16 %v8443
        %v9342 = vunpack.c.l.b16 %v8444
        %v9343 = vunpack.c.l.b16 %v8445
        %v9344 = vunpack.c.h.b16 %v8445
        %v9345 = vunpack.c.l.b16 %v8446
        %v9346 = vunpack.c.l.b16 %v8447
        %v9347 = vunpack.c.h.b16 %v8447
        %v9348 = vunpack.c.l.b16 %v8448
        %v9349 = vunpack.c.l.b16 %v8449
        %v9350 = vunpack.c.h.b16 %v8449
        %v9351 = vunpack.c.l.b16 %v8450
        %v9352 = vunpack.c.l.b16 %v8451
        %v9353 = vunpack.c.h.b16 %v8451
        %v9354 = vunpack.c.l.b16 %v8452
        %v9355 = vunpack.c.l.b16 %v8453
        %v9356 = vunpack.c.h.b16 %v8453
        %v9357 = vunpack.c.l.b16 %v8454
        %v9358 = vunpack.c.l.b16 %v8455
        %v9359 = vunpack.c.h.b16 %v8455
        %v9360 = vunpack.c.l.b16 %v8456
        %v9361 = vunpack.c.l.b16 %v8457
        %v9362 = vunpack.c.h.b16 %v8457
        %v9363 = vunpack.c.l.b16 %v8458
        %v9364 = vunpack.c.l.b16 %v8459
        %v9365 = vunpack.c.h.b16 %v8459
        %v9366 = vunpack.c.l.b16 %v8460
        %v9367 = vunpack.c.l.b16 %v8461
        %v9368 = vunpack.c.h.b16 %v8461
        %v9369 = vunpack.c.l.b16 %v8462
        %v9370 = vunpack.c.l.b16 %v8463
        %v9371 = vunpack.c.h.b16 %v8463
        %v9372 = vunpack.c.l.b16 %v8464
        %v9373 = vunpack.c.l.b16 %v8465
        %v9374 = vunpack.c.h.b16 %v8465
        %v9375 = vunpack.c.l.b16 %v8466
        %v9376 = vunpack.c.l.b16 %v8467
        %v9377 = vunpack.c.h.b16 %v8467
        %v9378 = vunpack.c.l.b16 %v8468
        %v9379 = vunpack.c.l.b16 %v8469
        %v9380 = vunpack.c.h.b16 %v8469
        %v9381 = vunpack.c.l.b16 %v8470
        %v9382 = vunpack.c.l.b16 %v8471
        %v9383 = vunpack.c.h.b16 %v8471
        %v9384 = vunpack.c.l.b16 %v8472
        %v9385 = vunpack.c.l.b16 %v8473
        %v9386 = vunpack.c.h.b16 %v8473
        %v9387 = vunpack.c.l.b16 %v8474
        %v9388 = vunpack.c.l.b16 %v8475
        %v9389 = vunpack.c.h.b16 %v8475
        %v9390 = vunpack.c.l.b16 %v8476
        %v9391 = vunpack.c.l.b16 %v8477
        %v9392 = vunpack.c.h.b16 %v8477
        %v9393 = vunpack.c.l.b16 %v8478
        %v9394 = vunpack.c.l.b16 %v8479
        %v9395 = vunpack.c.h.b16 %v8479
        %v9396 = vunpack.c.l.b16 %v8480
        %v9397 = vunpack.c.l.b16 %v8481
        %v9398 = vunpack.c.h.b16 %v8481
        %v9399 = vunpack.c.l.b16 %v8482
        %v9400 = vunpack.c.l.b16 %v8483
        %v9401 = vunpack.c.h.b16 %v8483
        %v9402 = vunpack.c.l.b16 %v8484
        %v9403 = vunpack.c.l.b16 %v8485
        %v9404 = vunpack.c.h.b16 %v8485
        %v9405 = vunpack.c.l.b16 %v8486
        %v9406 = vunpack.c.l.b16 %v8487
        %v9407 = vunpack.c.h.b16 %v8487
        %v9408 = vunpack.c.l.b16 %v8488
        %v9409 = vunpack.c.l.b16 %v8489
        %v9410 = vunpack.c.h.b16 %v8489
        %v9411 = vunpack.c.l.b16 %v8490
        %v9412 = vunpack.c.l.b16 %v8491
        %v9413 = vunpack.c.h.b16 %v8491
        %v9414 = vunpack.c.l.b16 %v8492
        %v9415 = vunpack.c.l.b16 %v8493
        %v9416 = vunpack.c.h.b16 %v8493
        %v9417 = vunpack.c.l.b16 %v8494
        %v9418 = vunpack.c.l.b16 %v8495
        %v9419 = vunpack.c.h.b16 %v8495
        %v9420 = vunpack.c.l.b16 %v8496
        %v9421 = vunpack.c.l.b16 %v8497
        %v9422 = vunpack.c.h.b16 %v8497
        %v9423 = vunpack.c.l.b16 %v8498
        %v9424 = vunpack.c.l.b16 %v8499
        %v9425 = vunpack.c.h.b16 %v8499
        %v9426 = vunpack.c.l.b16 %v8500
        %v9427 = vunpack.c.l.b16 %v8501
        %v9428 = vunpack.c.h.b16 %v8501
        %v9429 = vunpack.c.l.b16 %v8502
        %v9430 = vunpack.c.l.b16 %v8503
        %v9431 = vunpack.c.h.b16 %v8503
        %v9432 = vunpack.c.l.b16 %v8504
        %v9433 = vunpack.c.l.b16 %v8505
        %v9434 = vunpack.c.h.b16 %v8505
        %v9435 = vunpack.c.l.b16 %v8506
        %v9436 = vunpack.c.l.b16 %v8507
        %v9437 = vunpack.c.h.b16 %v8507
        %v9438 = vunpack.c.l.b16 %v8508
        %v9439 = vunpack.c.l.b16 %v8509
        %v9440 = vunpack.c.h.b16 %v8509
        %v9441 = vunpack.c.l.b16 %v8510
        %v9442 = vunpack.c.l.b16 %v8511
        %v9443 = vunpack.c.h.b16 %v8511
        %v9444 = vunpack.c.l.b16 %v8512
        %v9445 = vunpack.c.l.b16 %v8513
        %v9446 = vunpack.c.h.b16 %v8513
        %v9447 = vunpack.c.l.b16 %v8514
        %v9448 = vunpack.c.l.b16 %v8515
        %v9449 = vunpack.c.h.b16 %v8515
        %v9450 = vunpack.c.l.b16 %v8516
        %v9451 = vunpack.c.l.b16 %v8517
        %v9452 = vunpack.c.h.b16 %v8517
        %v9453 = vunpack.c.l.b16 %v8518
        %v9454 = vunpack.c.l.b16 %v8519
        %v9455 = vunpack.c.h.b16 %v8519
        %v9456 = vunpack.c.l.b16 %v8520
        %v9457 = vunpack.c.l.b16 %v8521
        %v9458 = vunpack.c.h.b16 %v8521
        %v9459 = vunpack.c.l.b16 %v8522
        %v9460 = vunpack.c.l.b16 %v8523
        %v9461 = vunpack.c.h.b16 %v8523
        %v9462 = vunpack.c.l.b16 %v8524
        %v9463 = vunpack.c.l.b16 %v8525
        %v9464 = vunpack.c.h.b16 %v8525
        %v9465 = vunpack.c.l.b16 %v8526
        %v9466 = vunpack.c.l.b16 %v8527
        %v9467 = vunpack.c.h.b16 %v8527
        %v9468 = vunpack.c.l.b16 %v8528
        %v9469 = vunpack.c.l.b16 %v8529
        %v9470 = vunpack.c.h.b16 %v8529
        %v9471 = vunpack.c.l.b16 %v8530
        %v9472 = vunpack.c.l.b16 %v8531
        %v9473 = vunpack.c.h.b16 %v8531
        %v9474 = vunpack.c.l.b16 %v8532
        %v9475 = vunpack.c.l.b16 %v8533
        %v9476 = vunpack.c.h.b16 %v8533
        %v9477 = vunpack.c.l.b16 %v8534
        %v9478 = vunpack.c.l.b16 %v8535
        %v9479 = vunpack.c.h.b16 %v8535
        %v9480 = vunpack.c.l.b16 %v8536
        %v9481 = vunpack.c.l.b16 %v8537
        %v9482 = vunpack.c.h.b16 %v8537
        %v9483 = vunpack.c.l.b16 %v8538
        %v9484 = vunpack.c.l.b16 %v8539
        %v9485 = vunpack.c.h.b16 %v8539
        %v9486 = vunpack.c.l.b16 %v8540
        %v9487 = vunpack.c.l.b16 %v8541
        %v9488 = vunpack.c.h.b16 %v8541
        %v9489 = vunpack.c.l.b16 %v8542
        %v9490 = vunpack.c.l.b16 %v8543
        %v9491 = vunpack.c.h.b16 %v8543
        %v9492 = vunpack.c.l.b16 %v8544
        %v9493 = vunpack.c.l.b16 %v8545
        %v9494 = vunpack.c.h.b16 %v8545
        %v9495 = vunpack.c.l.b16 %v8546
        %v9496 = vunpack.c.l.b16 %v8547
        %v9497 = vunpack.c.h.b16 %v8547
        %v9498 = vunpack.c.l.b16 %v8548
        %v9499 = vunpack.c.l.b16 %v8549
        %v9500 = vunpack.c.h.b16 %v8549
        %v9501 = vunpack.c.l.b16 %v8550
        %v9502 = vunpack.c.l.b16 %v8551
        %v9503 = vunpack.c.h.b16 %v8551
        %v9504 = vunpack.c.l.b16 %v8552
        %v9505 = vunpack.c.l.b16 %v8553
        %v9506 = vunpack.c.h.b16 %v8553
        %v9507 = vunpack.c.l.b16 %v8554
        %v9508 = vunpack.c.l.b16 %v8555
        %v9509 = vunpack.c.h.b16 %v8555
        %v9510 = vunpack.c.l.b16 %v8556
        %v9511 = vunpack.c.l.b16 %v8557
        %v9512 = vunpack.c.h.b16 %v8557
        %v9513 = vunpack.c.l.b16 %v8558
        %v9514 = vunpack.c.l.b16 %v8559
        %v9515 = vunpack.c.h.b16 %v8559
        %v9516 = vunpack.c.l.b16 %v8560
        %v9517 = vunpack.c.l.b16 %v8561
        %v9518 = vunpack.c.h.b16 %v8561
        %v9519 = vunpack.c.l.b16 %v8562
        %v9520 = vunpack.c.l.b16 %v8563
        %v9521 = vunpack.c.h.b16 %v8563
        %v9522 = vunpack.c.l.b16 %v8564
        %v9523 = vunpack.c.l.b16 %v8565
        %v9524 = vunpack.c.h.b16 %v8565
        %v9525 = vunpack.c.l.b16 %v8566
        %v9526 = vunpack.c.l.b16 %v8567
        %v9527 = vunpack.c.h.b16 %v8567
        %v9528 = vunpack.c.l.b16 %v8568
        %v9529 = vunpack.c.l.b16 %v8569
        %v9530 = vunpack.c.h.b16 %v8569
        %v9531 = vunpack.c.l.b16 %v8570
        %v9532 = vunpack.c.l.b16 %v8571
        %v9533 = vunpack.c.h.b16 %v8571
        %v9534 = vunpack.c.l.b16 %v8572
        %v9535 = vunpack.c.l.b16 %v8573
        %v9536 = vunpack.c.h.b16 %v8573
        %v9537 = vunpack.c.l.b16 %v8574
        %v9538 = vunpack.c.l.b16 %v8575
        %v9539 = vunpack.c.h.b16 %v8575
        %v9540 = vunpack.c.l.b16 %v8576
        %v9541 = vunpack.c.l.b16 %v8577
        %v9542 = vunpack.c.h.b16 %v8577
        %v9543 = vunpack.c.l.b16 %v8578
        %v9544 = vunpack.c.l.b16 %v8579
        %v9545 = vunpack.c.h.b16 %v8579
        %v9546 = vunpack.c.l.b16 %v8580
        %v9547 = vunpack.c.l.b16 %v8581
        %v9548 = vunpack.c.h.b16 %v8581
        %v9549 = vunpack.c.l.b16 %v8582
        %v9550 = vunpack.c.l.b16 %v8583
        %v9551 = vunpack.c.h.b16 %v8583
        %v9552 = vunpack.c.l.b16 %v8584
        %v9553 = vpack.c.b16 %v8980, %v8977
        %v9554 = vpack.c.b16 %v8981, %v8978
        %v9555 = vpack.c.b16 %v8982, %v8979
        %v9556 = vpack.c.b16 %v8986, %v8983
        %v9557 = vpack.c.b16 %v8987, %v8984
        %v9558 = vpack.c.b16 %v8988, %v8985
        %v9559 = vpack.c.b16 %v8992, %v8989
        %v9560 = vpack.c.b16 %v8993, %v8990
        %v9561 = vpack.c.b16 %v8994, %v8991
        %v9562 = vpack.c.b16 %v8998, %v8995
        %v9563 = vpack.c.b16 %v8999, %v8996
        %v9564 = vpack.c.b16 %v9000, %v8997
        %v9565 = vpack.c.b16 %v9004, %v9001
        %v9566 = vpack.c.b16 %v9005, %v9002
        %v9567 = vpack.c.b16 %v9006, %v9003
        %v9568 = vpack.c.b16 %v9010, %v9007
        %v9569 = vpack.c.b16 %v9011, %v9008
        %v9570 = vpack.c.b16 %v9012, %v9009
        %v9571 = vpack.c.b16 %v9016, %v9013
        %v9572 = vpack.c.b16 %v9017, %v9014
        %v9573 = vpack.c.b16 %v9018, %v9015
        %v9574 = vpack.c.b16 %v9022, %v9019
        %v9575 = vpack.c.b16 %v9023, %v9020
        %v9576 = vpack.c.b16 %v9024, %v9021
        %v9577 = vpack.c.b16 %v9028, %v9025
        %v9578 = vpack.c.b16 %v9029, %v9026
        %v9579 = vpack.c.b16 %v9030, %v9027
        %v9580 = vpack.c.b16 %v9034, %v9031
        %v9581 = vpack.c.b16 %v9035, %v9032
        %v9582 = vpack.c.b16 %v9036, %v9033
        %v9583 = vpack.c.b16 %v9040, %v9037
        %v9584 = vpack.c.b16 %v9041, %v9038
        %v9585 = vpack.c.b16 %v9042, %v9039
        %v9586 = vpack.c.b16 %v9046, %v9043
        %v9587 = vpack.c.b16 %v9047, %v9044
        %v9588 = vpack.c.b16 %v9048, %v9045
        %v9589 = vpack.c.b16 %v9052, %v9049
        %v9590 = vpack.c.b16 %v9053, %v9050
        %v9591 = vpack.c.b16 %v9054, %v9051
        %v9592 = vpack.c.b16 %v9058, %v9055
        %v9593 = vpack.c.b16 %v9059, %v9056
        %v9594 = vpack.c.b16 %v9060, %v9057
        %v9595 = vpack.c.b16 %v9064, %v9061
        %v9596 = vpack.c.b16 %v9065, %v9062
        %v9597 = vpack.c.b16 %v9066, %v9063
        %v9598 = vpack.c.b16 %v9070, %v9067
        %v9599 = vpack.c.b16 %v9071, %v9068
        %v9600 = vpack.c.b16 %v9072, %v9069
        %v9601 = vpack.c.b16 %v9076, %v9073
        %v9602 = vpack.c.b16 %v9077, %v9074
        %v9603 = vpack.c.b16 %v9078, %v9075
        %v9604 = vpack.c.b16 %v9082, %v9079
        %v9605 = vpack.c.b16 %v9083, %v9080
        %v9606 = vpack.c.b16 %v9084, %v9081
        %v9607 = vpack.c.b16 %v9088, %v9085
        %v9608 = vpack.c.b16 %v9089, %v9086
        %v9609 = vpack.c.b16 %v9090, %v9087
        %v9610 = vpack.c.b16 %v9094, %v9091
        %v9611 = vpack.c.b16 %v9095, %v9092
        %v9612 = vpack.c.b16 %v9096, %v9093
        %v9613 = vpack.c.b16 %v9100, %v9097
        %v9614 = vpack.c.b16 %v9101, %v9098
        %v9615 = vpack.c.b16 %v9102, %v9099
        %v9616 = vpack.c.b16 %v9106, %v9103
        %v9617 = vpack.c.b16 %v9107, %v9104
        %v9618 = vpack.c.b16 %v9108, %v9105
        %v9619 = vpack.c.b16 %v9112, %v9109
        %v9620 = vpack.c.b16 %v9113, %v9110
        %v9621 = vpack.c.b16 %v9114, %v9111
        %v9622 = vpack.c.b16 %v9118, %v9115
        %v9623 = vpack.c.b16 %v9119, %v9116
        %v9624 = vpack.c.b16 %v9120, %v9117
        %v9625 = vpack.c.b16 %v9124, %v9121
        %v9626 = vpack.c.b16 %v9125, %v9122
        %v9627 = vpack.c.b16 %v9126, %v9123
        %v9628 = vpack.c.b16 %v9130, %v9127
        %v9629 = vpack.c.b16 %v9131, %v9128
        %v9630 = vpack.c.b16 %v9132, %v9129
        %v9631 = vpack.c.b16 %v9136, %v9133
        %v9632 = vpack.c.b16 %v9137, %v9134
        %v9633 = vpack.c.b16 %v9138, %v9135
        %v9634 = vpack.c.b16 %v9142, %v9139
        %v9635 = vpack.c.b16 %v9143, %v9140
        %v9636 = vpack.c.b16 %v9144, %v9141
        %v9637 = vpack.c.b16 %v9148, %v9145
        %v9638 = vpack.c.b16 %v9149, %v9146
        %v9639 = vpack.c.b16 %v9150, %v9147
        %v9640 = vpack.c.b16 %v9154, %v9151
        %v9641 = vpack.c.b16 %v9155, %v9152
        %v9642 = vpack.c.b16 %v9156, %v9153
        %v9643 = vpack.c.b16 %v9160, %v9157
        %v9644 = vpack.c.b16 %v9161, %v9158
        %v9645 = vpack.c.b16 %v9162, %v9159
        %v9646 = vpack.c.b16 %v9166, %v9163
        %v9647 = vpack.c.b16 %v9167, %v9164
        %v9648 = vpack.c.b16 %v9168, %v9165
        %v9649 = vpack.c.b16 %v9172, %v9169
        %v9650 = vpack.c.b16 %v9173, %v9170
        %v9651 = vpack.c.b16 %v9174, %v9171
        %v9652 = vpack.c.b16 %v9178, %v9175
        %v9653 = vpack.c.b16 %v9179, %v9176
        %v9654 = vpack.c.b16 %v9180, %v9177
        %v9655 = vpack.c.b16 %v9184, %v9181
        %v9656 = vpack.c.b16 %v9185, %v9182
        %v9657 = vpack.c.b16 %v9186, %v9183
        %v9658 = vpack.c.b16 %v9190, %v9187
        %v9659 = vpack.c.b16 %v9191, %v9188
        %v9660 = vpack.c.b16 %v9192, %v9189
        %v9661 = vpack.c.b16 %v9196, %v9193
        %v9662 = vpack.c.b16 %v9197, %v9194
        %v9663 = vpack.c.b16 %v9198, %v9195
        %v9664 = vpack.c.b16 %v9202, %v9199
        %v9665 = vpack.c.b16 %v9203, %v9200
        %v9666 = vpack.c.b16 %v9204, %v9201
        %v9667 = vpack.c.b16 %v9208, %v9205
        %v9668 = vpack.c.b16 %v9209, %v9206
        %v9669 = vpack.c.b16 %v9210, %v9207
        %v9670 = vpack.c.b16 %v9214, %v9211
        %v9671 = vpack.c.b16 %v9215, %v9212
        %v9672 = vpack.c.b16 %v9216, %v9213
        %v9673 = vpack.c.b16 %v9220, %v9217
        %v9674 = vpack.c.b16 %v9221, %v9218
        %v9675 = vpack.c.b16 %v9222, %v9219
        %v9676 = vpack.c.b16 %v9226, %v9223
        %v9677 = vpack.c.b16 %v9227, %v9224
        %v9678 = vpack.c.b16 %v9228, %v9225
        %v9679 = vpack.c.b16 %v9232, %v9229
        %v9680 = vpack.c.b16 %v9233, %v9230
        %v9681 = vpack.c.b16 %v9234, %v9231
        %v9682 = vpack.c.b16 %v9238, %v9235
        %v9683 = vpack.c.b16 %v9239, %v9236
        %v9684 = vpack.c.b16 %v9240, %v9237
        %v9685 = vpack.c.b16 %v9244, %v9241
        %v9686 = vpack.c.b16 %v9245, %v9242
        %v9687 = vpack.c.b16 %v9246, %v9243
        %v9688 = vpack.c.b16 %v9250, %v9247
        %v9689 = vpack.c.b16 %v9251, %v9248
        %v9690 = vpack.c.b16 %v9252, %v9249
        %v9691 = vpack.c.b16 %v9256, %v9253
        %v9692 = vpack.c.b16 %v9257, %v9254
        %v9693 = vpack.c.b16 %v9258, %v9255
        %v9694 = vpack.c.b16 %v9262, %v9259
        %v9695 = vpack.c.b16 %v9263, %v9260
        %v9696 = vpack.c.b16 %v9264, %v9261
        %v9697 = vpack.c.b16 %v9268, %v9265
        %v9698 = vpack.c.b16 %v9269, %v9266
        %v9699 = vpack.c.b16 %v9270, %v9267
        %v9700 = vpack.c.b16 %v9274, %v9271
        %v9701 = vpack.c.b16 %v9275, %v9272
        %v9702 = vpack.c.b16 %v9276, %v9273
        %v9703 = vpack.c.b16 %v9280, %v9277
        %v9704 = vpack.c.b16 %v9281, %v9278
        %v9705 = vpack.c.b16 %v9282, %v9279
        %v9706 = vpack.c.b16 %v9286, %v9283
        %v9707 = vpack.c.b16 %v9287, %v9284
        %v9708 = vpack.c.b16 %v9288, %v9285
        %v9709 = vpack.c.b16 %v9292, %v9289
        %v9710 = vpack.c.b16 %v9293, %v9290
        %v9711 = vpack.c.b16 %v9294, %v9291
        %v9712 = vpack.c.b16 %v9298, %v9295
        %v9713 = vpack.c.b16 %v9299, %v9296
        %v9714 = vpack.c.b16 %v9300, %v9297
        %v9715 = vpack.c.b16 %v9304, %v9301
        %v9716 = vpack.c.b16 %v9305, %v9302
        %v9717 = vpack.c.b16 %v9306, %v9303
        %v9718 = vpack.c.b16 %v9310, %v9307
        %v9719 = vpack.c.b16 %v9311, %v9308
        %v9720 = vpack.c.b16 %v9312, %v9309
        %v9721 = vpack.c.b16 %v9316, %v9313
        %v9722 = vpack.c.b16 %v9317, %v9314
        %v9723 = vpack.c.b16 %v9318, %v9315
        %v9724 = vpack.c.b16 %v9322, %v9319
        %v9725 = vpack.c.b16 %v9323, %v9320
        %v9726 = vpack.c.b16 %v9324, %v9321
        %v9727 = vpack.c.b16 %v9328, %v9325
        %v9728 = vpack.c.b16 %v9329, %v9326
        %v9729 = vpack.c.b16 %v9330, %v9327
        %v9730 = vpack.c.b16 %v9334, %v9331
        %v9731 = vpack.c.b16 %v9335, %v9332
        %v9732 = vpack.c.b16 %v9336, %v9333
        %v9733 = vpack.c.b16 %v9340, %v9337
        %v9734 = vpack.c.b16 %v9341, %v9338
        %v9735 = vpack.c.b16 %v9342, %v9339
        %v9736 = vpack.c.b16 %v9346, %v9343
        %v9737 = vpack.c.b16 %v9347, %v9344
        %v9738 = vpack.c.b16 %v9348, %v9345
        %v9739 = vpack.c.b16 %v9352, %v9349
        %v9740 = vpack.c.b16 %v9353, %v9350
        %v9741 = vpack.c.b16 %v9354, %v9351
        %v9742 = vpack.c.b16 %v9358, %v9355
        %v9743 = vpack.c.b16 %v9359, %v9356
        %v9744 = vpack.c.b16 %v9360, %v9357
        %v9745 = vpack.c.b16 %v9364, %v9361
        %v9746 = vpack.c.b16 %v9365, %v9362
        %v9747 = vpack.c.b16 %v9366, %v9363
        %v9748 = vpack.c.b16 %v9370, %v9367
        %v9749 = vpack.c.b16 %v9371, %v9368
        %v9750 = vpack.c.b16 %v9372, %v9369
        %v9751 = vpack.c.b16 %v9376, %v9373
        %v9752 = vpack.c.b16 %v9377, %v9374
        %v9753 = vpack.c.b16 %v9378, %v9375
        %v9754 = vpack.c.b16 %v9382, %v9379
        %v9755 = vpack.c.b16 %v9383, %v9380
        %v9756 = vpack.c.b16 %v9384, %v9381
        %v9757 = vpack.c.b16 %v9388, %v9385
        %v9758 = vpack.c.b16 %v9389, %v9386
        %v9759 = vpack.c.b16 %v9390, %v9387
        %v9760 = vpack.c.b16 %v9394, %v9391
        %v9761 = vpack.c.b16 %v9395, %v9392
        %v9762 = vpack.c.b16 %v9396, %v9393
        %v9763 = vpack.c.b16 %v9400, %v9397
        %v9764 = vpack.c.b16 %v9401, %v9398
        %v9765 = vpack.c.b16 %v9402, %v9399
        %v9766 = vpack.c.b16 %v9406, %v9403
        %v9767 = vpack.c.b16 %v9407, %v9404
        %v9768 = vpack.c.b16 %v9408, %v9405
        %v9769 = vpack.c.b16 %v9412, %v9409
        %v9770 = vpack.c.b16 %v9413, %v9410
        %v9771 = vpack.c.b16 %v9414, %v9411
        %v9772 = vpack.c.b16 %v9418, %v9415
        %v9773 = vpack.c.b16 %v9419, %v9416
        %v9774 = vpack.c.b16 %v9420, %v9417
        %v9775 = vpack.c.b16 %v9424, %v9421
        %v9776 = vpack.c.b16 %v9425, %v9422
        %v9777 = vpack.c.b16 %v9426, %v9423
        %v9778 = vpack.c.b16 %v9430, %v9427
        %v9779 = vpack.c.b16 %v9431, %v9428
        %v9780 = vpack.c.b16 %v9432, %v9429
        %v9781 = vpack.c.b16 %v9436, %v9433
        %v9782 = vpack.c.b16 %v9437, %v9434
        %v9783 = vpack.c.b16 %v9438, %v9435
        %v9784 = vpack.c.b16 %v9442, %v9439
        %v9785 = vpack.c.b16 %v9443, %v9440
        %v9786 = vpack.c.b16 %v9444, %v9441
        %v9787 = vpack.c.b16 %v9448, %v9445
        %v9788 = vpack.c.b16 %v9449, %v9446
        %v9789 = vpack.c.b16 %v9450, %v9447
        %v9790 = vpack.c.b16 %v9454, %v9451
        %v9791 = vpack.c.b16 %v9455, %v9452
        %v9792 = vpack.c.b16 %v9456, %v9453
        %v9793 = vpack.c.b16 %v9460, %v9457
        %v9794 = vpack.c.b16 %v9461, %v9458
        %v9795 = vpack.c.b16 %v9462, %v9459
        %v9796 = vpack.c.b16 %v9466, %v9463
        %v9797 = vpack.c.b16 %v9467, %v9464
        %v9798 = vpack.c.b16 %v9468, %v9465
        %v9799 = vpack.c.b16 %v9472, %v9469
        %v9800 = vpack.c.b16 %v9473, %v9470
        %v9801 = vpack.c.b16 %v9474, %v9471
        %v9802 = vpack.c.b16 %v9478, %v9475
        %v9803 = vpack.c.b16 %v9479, %v9476
        %v9804 = vpack.c.b16 %v9480, %v9477
        %v9805 = vpack.c.b16 %v9484, %v9481
        %v9806 = vpack.c.b16 %v9485, %v9482
        %v9807 = vpack.c.b16 %v9486, %v9483
        %v9808 = vpack.c.b16 %v9490, %v9487
        %v9809 = vpack.c.b16 %v9491, %v9488
        %v9810 = vpack.c.b16 %v9492, %v9489
        %v9811 = vpack.c.b16 %v9496, %v9493
        %v9812 = vpack.c.b16 %v9497, %v9494
        %v9813 = vpack.c.b16 %v9498, %v9495
        %v9814 = vpack.c.b16 %v9502, %v9499
        %v9815 = vpack.c.b16 %v9503, %v9500
        %v9816 = vpack.c.b16 %v9504, %v9501
        %v9817 = vpack.c.b16 %v9508, %v9505
        %v9818 = vpack.c.b16 %v9509, %v9506
        %v9819 = vpack.c.b16 %v9510, %v9507
        %v9820 = vpack.c.b16 %v9514, %v9511
        %v9821 = vpack.c.b16 %v9515, %v9512
        %v9822 = vpack.c.b16 %v9516, %v9513
        %v9823 = vpack.c.b16 %v9520, %v9517
        %v9824 = vpack.c.b16 %v9521, %v9518
        %v9825 = vpack.c.b16 %v9522, %v9519
        %v9826 = vpack.c.b16 %v9526, %v9523
        %v9827 = vpack.c.b16 %v9527, %v9524
        %v9828 = vpack.c.b16 %v9528, %v9525
        %v9829 = vpack.c.b16 %v9532, %v9529
        %v9830 = vpack.c.b16 %v9533, %v9530
        %v9831 = vpack.c.b16 %v9534, %v9531
        %v9832 = vpack.c.b16 %v9538, %v9535
        %v9833 = vpack.c.b16 %v9539, %v9536
        %v9834 = vpack.c.b16 %v9540, %v9537
        %v9835 = vpack.c.b16 %v9544, %v9541
        %v9836 = vpack.c.b16 %v9545, %v9542
        %v9837 = vpack.c.b16 %v9546, %v9543
        %v9838 = vpack.c.b16 %v9550, %v9547
        %v9839 = vpack.c.b16 %v9551, %v9548
        %v9840 = vpack.c.b16 %v9552, %v9549
        %10129 = vmatpush.bf16.msra.mxu0 %v9574
        %10130 = vmatpush.bf16.msra.mxu0 %v9571
        %10131 = vmatpush.bf16.msra.mxu0 %v9568
        %10132 = vmatpush.bf16.msra.mxu0 %v9565
        %10133 = vmatpush.bf16.msra.mxu0 %v9562
        %10134 = vmatpush.bf16.msra.mxu0 %v9559
        %10135 = vmatpush.bf16.msra.mxu0 %v9556
        %10136 = vmatpush.bf16.msra.mxu0 %v9553
        %10137 = vmatmul.bf16.gmra.mxu0 %v8177
        %v10138 = vpop.f32.mrf.mxu0
        %v10139 = vadd.f32 %v8587, %v10138
        %v10140 = vpop.f32.mrf.mxu0
        %v10141 = vadd.f32 %v8587, %v10140
        %10142 = vmatmul.bf16.gmra.mxu0 %v8189
        %v10143 = vpop.f32.mrf.mxu0
        %v10144 = vadd.f32 %v8587, %v10143
        %v10145 = vpop.f32.mrf.mxu0
        %10146 = vdwg.mxu0
        %10147 = vmatpush.bf16.msra.mxu0 %v9598
        %10148 = vmatpush.bf16.msra.mxu0 %v9595
        %10149 = vmatpush.bf16.msra.mxu0 %v9592
        %10150 = vmatpush.bf16.msra.mxu0 %v9589
        %10151 = vmatpush.bf16.msra.mxu0 %v9586
        %10152 = vmatpush.bf16.msra.mxu0 %v9583
        %10153 = vmatpush.bf16.msra.mxu0 %v9580
        %10154 = vmatpush.bf16.msra.mxu0 %v9577
        %10155 = vmatmul.bf16.gmra.mxu0 %v8178
        %v10156 = vpop.f32.mrf.mxu0
        %v10157 = vadd.f32 %v10139, %v10156
        %v10158 = vpop.f32.mrf.mxu0
        %v10159 = vadd.f32 %v10141, %v10158
        %10160 = vmatmul.bf16.gmra.mxu0 %v8190
        %v10161 = vpop.f32.mrf.mxu0
        %v10162 = vadd.f32 %v10144, %v10161
        %v10163 = vpop.f32.mrf.mxu0
        %10164 = vdwg.mxu0
        %10165 = vmatpush.bf16.msra.mxu0 %v9622
        %10166 = vmatpush.bf16.msra.mxu0 %v9619
        %10167 = vmatpush.bf16.msra.mxu0 %v9616
        %10168 = vmatpush.bf16.msra.mxu0 %v9613
        %10169 = vmatpush.bf16.msra.mxu0 %v9610
        %10170 = vmatpush.bf16.msra.mxu0 %v9607
        %10171 = vmatpush.bf16.msra.mxu0 %v9604
        %10172 = vmatpush.bf16.msra.mxu0 %v9601
        %10173 = vmatmul.bf16.gmra.mxu0 %v8179
        %v10174 = vpop.f32.mrf.mxu0
        %v10175 = vadd.f32 %v10157, %v10174
        %v10176 = vpop.f32.mrf.mxu0
        %v10177 = vadd.f32 %v10159, %v10176
        %10178 = vmatmul.bf16.gmra.mxu0 %v8191
        %v10179 = vpop.f32.mrf.mxu0
        %v10180 = vadd.f32 %v10162, %v10179
        %v10181 = vpop.f32.mrf.mxu0
        %10182 = vdwg.mxu0
        %10183 = vmatpush.bf16.msra.mxu0 %v9646
        %10184 = vmatpush.bf16.msra.mxu0 %v9643
        %10185 = vmatpush.bf16.msra.mxu0 %v9640
        %10186 = vmatpush.bf16.msra.mxu0 %v9637
        %10187 = vmatpush.bf16.msra.mxu0 %v9634
        %10188 = vmatpush.bf16.msra.mxu0 %v9631
        %10189 = vmatpush.bf16.msra.mxu0 %v9628
        %10190 = vmatpush.bf16.msra.mxu0 %v9625
        %10191 = vmatmul.bf16.gmra.mxu0 %v8180
        %v10192 = vpop.f32.mrf.mxu0
        %v10193 = vadd.f32 %v10175, %v10192
        %v10194 = vpop.f32.mrf.mxu0
        %v10195 = vadd.f32 %v10177, %v10194
        %10196 = vmatmul.bf16.gmra.mxu0 %v8192
        %v10197 = vpop.f32.mrf.mxu0
        %v10198 = vadd.f32 %v10180, %v10197
        %v10199 = vpop.f32.mrf.mxu0
        %10200 = vdwg.mxu0
        %10201 = vmatpush.bf16.msra.mxu0 %v9670
        %10202 = vmatpush.bf16.msra.mxu0 %v9667
        %10203 = vmatpush.bf16.msra.mxu0 %v9664
        %10204 = vmatpush.bf16.msra.mxu0 %v9661
        %10205 = vmatpush.bf16.msra.mxu0 %v9658
        %10206 = vmatpush.bf16.msra.mxu0 %v9655
        %10207 = vmatpush.bf16.msra.mxu0 %v9652
        %10208 = vmatpush.bf16.msra.mxu0 %v9649
        %10209 = vmatmul.bf16.gmra.mxu0 %v8181
        %v10210 = vpop.f32.mrf.mxu0
        %v10211 = vadd.f32 %v10193, %v10210
        %v10212 = vpop.f32.mrf.mxu0
        %v10213 = vadd.f32 %v10195, %v10212
        %10214 = vmatmul.bf16.gmra.mxu0 %v8193
        %v10215 = vpop.f32.mrf.mxu0
        %v10216 = vadd.f32 %v10198, %v10215
        %v10217 = vpop.f32.mrf.mxu0
        %10218 = vdwg.mxu0
        %10219 = vmatpush.bf16.msra.mxu0 %v9694
        %10220 = vmatpush.bf16.msra.mxu0 %v9691
        %10221 = vmatpush.bf16.msra.mxu0 %v9688
        %10222 = vmatpush.bf16.msra.mxu0 %v9685
        %10223 = vmatpush.bf16.msra.mxu0 %v9682
        %10224 = vmatpush.bf16.msra.mxu0 %v9679
        %10225 = vmatpush.bf16.msra.mxu0 %v9676
        %10226 = vmatpush.bf16.msra.mxu0 %v9673
        %10227 = vmatmul.bf16.gmra.mxu0 %v8182
        %v10228 = vpop.f32.mrf.mxu0
        %v10229 = vadd.f32 %v10211, %v10228
        %v10230 = vpop.f32.mrf.mxu0
        %v10231 = vadd.f32 %v10213, %v10230
        %10232 = vmatmul.bf16.gmra.mxu0 %v8194
        %v10233 = vpop.f32.mrf.mxu0
        %v10234 = vadd.f32 %v10216, %v10233
        %v10235 = vpop.f32.mrf.mxu0
        %10236 = vdwg.mxu0
        %10237 = vmatpush.bf16.msra.mxu0 %v9718
        %10238 = vmatpush.bf16.msra.mxu0 %v9715
        %10239 = vmatpush.bf16.msra.mxu0 %v9712
        %10240 = vmatpush.bf16.msra.mxu0 %v9709
        %10241 = vmatpush.bf16.msra.mxu0 %v9706
        %10242 = vmatpush.bf16.msra.mxu0 %v9703
        %10243 = vmatpush.bf16.msra.mxu0 %v9700
        %10244 = vmatpush.bf16.msra.mxu0 %v9697
        %10245 = vmatmul.bf16.gmra.mxu0 %v8183
        %v10246 = vpop.f32.mrf.mxu0
        %v10247 = vadd.f32 %v10229, %v10246
        %v10248 = vpop.f32.mrf.mxu0
        %v10249 = vadd.f32 %v10231, %v10248
        %10250 = vmatmul.bf16.gmra.mxu0 %v8195
        %v10251 = vpop.f32.mrf.mxu0
        %v10252 = vadd.f32 %v10234, %v10251
        %v10253 = vpop.f32.mrf.mxu0
        %10254 = vdwg.mxu0
        %10255 = vmatpush.bf16.msra.mxu0 %v9742
        %10256 = vmatpush.bf16.msra.mxu0 %v9739
        %10257 = vmatpush.bf16.msra.mxu0 %v9736
        %10258 = vmatpush.bf16.msra.mxu0 %v9733
        %10259 = vmatpush.bf16.msra.mxu0 %v9730
        %10260 = vmatpush.bf16.msra.mxu0 %v9727
        %10261 = vmatpush.bf16.msra.mxu0 %v9724
        %10262 = vmatpush.bf16.msra.mxu0 %v9721
        %10263 = vmatmul.bf16.gmra.mxu0 %v8184
        %v10264 = vpop.f32.mrf.mxu0
        %v10265 = vadd.f32 %v10247, %v10264
        %v10266 = vpop.f32.mrf.mxu0
        %v10267 = vadd.f32 %v10249, %v10266
        %10268 = vmatmul.bf16.gmra.mxu0 %v8196
        %v10269 = vpop.f32.mrf.mxu0
        %v10270 = vadd.f32 %v10252, %v10269
        %v10271 = vpop.f32.mrf.mxu0
        %10272 = vdwg.mxu0
        %10273 = vmatpush.bf16.msra.mxu0 %v9766
        %10274 = vmatpush.bf16.msra.mxu0 %v9763
        %10275 = vmatpush.bf16.msra.mxu0 %v9760
        %10276 = vmatpush.bf16.msra.mxu0 %v9757
        %10277 = vmatpush.bf16.msra.mxu0 %v9754
        %10278 = vmatpush.bf16.msra.mxu0 %v9751
        %10279 = vmatpush.bf16.msra.mxu0 %v9748
        %10280 = vmatpush.bf16.msra.mxu0 %v9745
        %10281 = vmatmul.bf16.gmra.mxu0 %v8185
        %v10282 = vpop.f32.mrf.mxu0
        %v10283 = vadd.f32 %v10265, %v10282
        %v10284 = vpop.f32.mrf.mxu0
        %v10285 = vadd.f32 %v10267, %v10284
        %10286 = vmatmul.bf16.gmra.mxu0 %v8197
        %v10287 = vpop.f32.mrf.mxu0
        %v10288 = vadd.f32 %v10270, %v10287
        %v10289 = vpop.f32.mrf.mxu0
        %10290 = vdwg.mxu0
        %10291 = vmatpush.bf16.msra.mxu0 %v9790
        %10292 = vmatpush.bf16.msra.mxu0 %v9787
        %10293 = vmatpush.bf16.msra.mxu0 %v9784
        %10294 = vmatpush.bf16.msra.mxu0 %v9781
        %10295 = vmatpush.bf16.msra.mxu0 %v9778
        %10296 = vmatpush.bf16.msra.mxu0 %v9775
        %10297 = vmatpush.bf16.msra.mxu0 %v9772
        %10298 = vmatpush.bf16.msra.mxu0 %v9769
        %10299 = vmatmul.bf16.gmra.mxu0 %v8186
        %v10300 = vpop.f32.mrf.mxu0
        %v10301 = vadd.f32 %v10283, %v10300
        %v10302 = vpop.f32.mrf.mxu0
        %v10303 = vadd.f32 %v10285, %v10302
        %10304 = vmatmul.bf16.gmra.mxu0 %v8198
        %v10305 = vpop.f32.mrf.mxu0
        %v10306 = vadd.f32 %v10288, %v10305
        %v10307 = vpop.f32.mrf.mxu0
        %10308 = vdwg.mxu0
        %10309 = vmatpush.bf16.msra.mxu0 %v9814
        %10310 = vmatpush.bf16.msra.mxu0 %v9811
        %10311 = vmatpush.bf16.msra.mxu0 %v9808
        %10312 = vmatpush.bf16.msra.mxu0 %v9805
        %10313 = vmatpush.bf16.msra.mxu0 %v9802
        %10314 = vmatpush.bf16.msra.mxu0 %v9799
        %10315 = vmatpush.bf16.msra.mxu0 %v9796
        %10316 = vmatpush.bf16.msra.mxu0 %v9793
        %10317 = vmatmul.bf16.gmra.mxu0 %v8187
        %v10318 = vpop.f32.mrf.mxu0
        %v10319 = vadd.f32 %v10301, %v10318
        %v10320 = vpop.f32.mrf.mxu0
        %v10321 = vadd.f32 %v10303, %v10320
        %10322 = vmatmul.bf16.gmra.mxu0 %v8199
        %v10323 = vpop.f32.mrf.mxu0
        %v10324 = vadd.f32 %v10306, %v10323
        %v10325 = vpop.f32.mrf.mxu0
        %10326 = vdwg.mxu0
        %10327 = vmatpush.bf16.msra.mxu0 %v9838
        %10328 = vmatpush.bf16.msra.mxu0 %v9835
        %10329 = vmatpush.bf16.msra.mxu0 %v9832
        %10330 = vmatpush.bf16.msra.mxu0 %v9829
        %10331 = vmatpush.bf16.msra.mxu0 %v9826
        %10332 = vmatpush.bf16.msra.mxu0 %v9823
        %10333 = vmatpush.bf16.msra.mxu0 %v9820
        %10334 = vmatpush.bf16.msra.mxu0 %v9817
        %10335 = vmatmul.bf16.gmra.mxu0 %v8188
        %v10336 = vpop.f32.mrf.mxu0
        %v10337 = vadd.f32 %v10319, %v10336
        %v10338 = vpop.f32.mrf.mxu0
        %v10339 = vadd.f32 %v10321, %v10338
        %10340 = vmatmul.bf16.gmra.mxu0 %v8200
        %v10341 = vpop.f32.mrf.mxu0
        %v10342 = vadd.f32 %v10324, %v10341
        %v10343 = vpop.f32.mrf.mxu0
        %10344 = vdwg.mxu0
        %10345 = vmatpush.bf16.msra.mxu0 %v9575
        %10346 = vmatpush.bf16.msra.mxu0 %v9572
        %10347 = vmatpush.bf16.msra.mxu0 %v9569
        %10348 = vmatpush.bf16.msra.mxu0 %v9566
        %10349 = vmatpush.bf16.msra.mxu0 %v9563
        %10350 = vmatpush.bf16.msra.mxu0 %v9560
        %10351 = vmatpush.bf16.msra.mxu0 %v9557
        %10352 = vmatpush.bf16.msra.mxu0 %v9554
        %10353 = vmatmul.bf16.gmra.mxu0 %v8177
        %v10354 = vpop.f32.mrf.mxu0
        %v10355 = vadd.f32 %v8588, %v10354
        %v10356 = vpop.f32.mrf.mxu0
        %v10357 = vadd.f32 %v8588, %v10356
        %10358 = vmatmul.bf16.gmra.mxu0 %v8189
        %v10359 = vpop.f32.mrf.mxu0
        %v10360 = vadd.f32 %v8588, %v10359
        %v10361 = vpop.f32.mrf.mxu0
        %10362 = vdwg.mxu0
        %10363 = vmatpush.bf16.msra.mxu0 %v9599
        %10364 = vmatpush.bf16.msra.mxu0 %v9596
        %10365 = vmatpush.bf16.msra.mxu0 %v9593
        %10366 = vmatpush.bf16.msra.mxu0 %v9590
        %10367 = vmatpush.bf16.msra.mxu0 %v9587
        %10368 = vmatpush.bf16.msra.mxu0 %v9584
        %10369 = vmatpush.bf16.msra.mxu0 %v9581
        %10370 = vmatpush.bf16.msra.mxu0 %v9578
        %10371 = vmatmul.bf16.gmra.mxu0 %v8178
        %v10372 = vpop.f32.mrf.mxu0
        %v10373 = vadd.f32 %v10355, %v10372
        %v10374 = vpop.f32.mrf.mxu0
        %v10375 = vadd.f32 %v10357, %v10374
        %10376 = vmatmul.bf16.gmra.mxu0 %v8190
        %v10377 = vpop.f32.mrf.mxu0
        %v10378 = vadd.f32 %v10360, %v10377
        %v10379 = vpop.f32.mrf.mxu0
        %10380 = vdwg.mxu0
        %10381 = vmatpush.bf16.msra.mxu0 %v9623
        %10382 = vmatpush.bf16.msra.mxu0 %v9620
        %10383 = vmatpush.bf16.msra.mxu0 %v9617
        %10384 = vmatpush.bf16.msra.mxu0 %v9614
        %10385 = vmatpush.bf16.msra.mxu0 %v9611
        %10386 = vmatpush.bf16.msra.mxu0 %v9608
        %10387 = vmatpush.bf16.msra.mxu0 %v9605
        %10388 = vmatpush.bf16.msra.mxu0 %v9602
        %10389 = vmatmul.bf16.gmra.mxu0 %v8179
        %v10390 = vpop.f32.mrf.mxu0
        %v10391 = vadd.f32 %v10373, %v10390
        %v10392 = vpop.f32.mrf.mxu0
        %v10393 = vadd.f32 %v10375, %v10392
        %10394 = vmatmul.bf16.gmra.mxu0 %v8191
        %v10395 = vpop.f32.mrf.mxu0
        %v10396 = vadd.f32 %v10378, %v10395
        %v10397 = vpop.f32.mrf.mxu0
        %10398 = vdwg.mxu0
        %10399 = vmatpush.bf16.msra.mxu0 %v9647
        %10400 = vmatpush.bf16.msra.mxu0 %v9644
        %10401 = vmatpush.bf16.msra.mxu0 %v9641
        %10402 = vmatpush.bf16.msra.mxu0 %v9638
        %10403 = vmatpush.bf16.msra.mxu0 %v9635
        %10404 = vmatpush.bf16.msra.mxu0 %v9632
        %10405 = vmatpush.bf16.msra.mxu0 %v9629
        %10406 = vmatpush.bf16.msra.mxu0 %v9626
        %10407 = vmatmul.bf16.gmra.mxu0 %v8180
        %v10408 = vpop.f32.mrf.mxu0
        %v10409 = vadd.f32 %v10391, %v10408
        %v10410 = vpop.f32.mrf.mxu0
        %v10411 = vadd.f32 %v10393, %v10410
        %10412 = vmatmul.bf16.gmra.mxu0 %v8192
        %v10413 = vpop.f32.mrf.mxu0
        %v10414 = vadd.f32 %v10396, %v10413
        %v10415 = vpop.f32.mrf.mxu0
        %10416 = vdwg.mxu0
        %10417 = vmatpush.bf16.msra.mxu0 %v9671
        %10418 = vmatpush.bf16.msra.mxu0 %v9668
        %10419 = vmatpush.bf16.msra.mxu0 %v9665
        %10420 = vmatpush.bf16.msra.mxu0 %v9662
        %10421 = vmatpush.bf16.msra.mxu0 %v9659
        %10422 = vmatpush.bf16.msra.mxu0 %v9656
        %10423 = vmatpush.bf16.msra.mxu0 %v9653
        %10424 = vmatpush.bf16.msra.mxu0 %v9650
        %10425 = vmatmul.bf16.gmra.mxu0 %v8181
        %v10426 = vpop.f32.mrf.mxu0
        %v10427 = vadd.f32 %v10409, %v10426
        %v10428 = vpop.f32.mrf.mxu0
        %v10429 = vadd.f32 %v10411, %v10428
        %10430 = vmatmul.bf16.gmra.mxu0 %v8193
        %v10431 = vpop.f32.mrf.mxu0
        %v10432 = vadd.f32 %v10414, %v10431
        %v10433 = vpop.f32.mrf.mxu0
        %10434 = vdwg.mxu0
        %10435 = vmatpush.bf16.msra.mxu0 %v9695
        %10436 = vmatpush.bf16.msra.mxu0 %v9692
        %10437 = vmatpush.bf16.msra.mxu0 %v9689
        %10438 = vmatpush.bf16.msra.mxu0 %v9686
        %10439 = vmatpush.bf16.msra.mxu0 %v9683
        %10440 = vmatpush.bf16.msra.mxu0 %v9680
        %10441 = vmatpush.bf16.msra.mxu0 %v9677
        %10442 = vmatpush.bf16.msra.mxu0 %v9674
        %10443 = vmatmul.bf16.gmra.mxu0 %v8182
        %v10444 = vpop.f32.mrf.mxu0
        %v10445 = vadd.f32 %v10427, %v10444
        %v10446 = vpop.f32.mrf.mxu0
        %v10447 = vadd.f32 %v10429, %v10446
        %10448 = vmatmul.bf16.gmra.mxu0 %v8194
        %v10449 = vpop.f32.mrf.mxu0
        %v10450 = vadd.f32 %v10432, %v10449
        %v10451 = vpop.f32.mrf.mxu0
        %10452 = vdwg.mxu0
        %10453 = vmatpush.bf16.msra.mxu0 %v9719
        %10454 = vmatpush.bf16.msra.mxu0 %v9716
        %10455 = vmatpush.bf16.msra.mxu0 %v9713
        %10456 = vmatpush.bf16.msra.mxu0 %v9710
        %10457 = vmatpush.bf16.msra.mxu0 %v9707
        %10458 = vmatpush.bf16.msra.mxu0 %v9704
        %10459 = vmatpush.bf16.msra.mxu0 %v9701
        %10460 = vmatpush.bf16.msra.mxu0 %v9698
        %10461 = vmatmul.bf16.gmra.mxu0 %v8183
        %v10462 = vpop.f32.mrf.mxu0
        %v10463 = vadd.f32 %v10445, %v10462
        %v10464 = vpop.f32.mrf.mxu0
        %v10465 = vadd.f32 %v10447, %v10464
        %10466 = vmatmul.bf16.gmra.mxu0 %v8195
        %v10467 = vpop.f32.mrf.mxu0
        %v10468 = vadd.f32 %v10450, %v10467
        %v10469 = vpop.f32.mrf.mxu0
        %10470 = vdwg.mxu0
        %10471 = vmatpush.bf16.msra.mxu0 %v9743
        %10472 = vmatpush.bf16.msra.mxu0 %v9740
        %10473 = vmatpush.bf16.msra.mxu0 %v9737
        %10474 = vmatpush.bf16.msra.mxu0 %v9734
        %10475 = vmatpush.bf16.msra.mxu0 %v9731
        %10476 = vmatpush.bf16.msra.mxu0 %v9728
        %10477 = vmatpush.bf16.msra.mxu0 %v9725
        %10478 = vmatpush.bf16.msra.mxu0 %v9722
        %10479 = vmatmul.bf16.gmra.mxu0 %v8184
        %v10480 = vpop.f32.mrf.mxu0
        %v10481 = vadd.f32 %v10463, %v10480
        %v10482 = vpop.f32.mrf.mxu0
        %v10483 = vadd.f32 %v10465, %v10482
        %10484 = vmatmul.bf16.gmra.mxu0 %v8196
        %v10485 = vpop.f32.mrf.mxu0
        %v10486 = vadd.f32 %v10468, %v10485
        %v10487 = vpop.f32.mrf.mxu0
        %10488 = vdwg.mxu0
        %10489 = vmatpush.bf16.msra.mxu0 %v9767
        %10490 = vmatpush.bf16.msra.mxu0 %v9764
        %10491 = vmatpush.bf16.msra.mxu0 %v9761
        %10492 = vmatpush.bf16.msra.mxu0 %v9758
        %10493 = vmatpush.bf16.msra.mxu0 %v9755
        %10494 = vmatpush.bf16.msra.mxu0 %v9752
        %10495 = vmatpush.bf16.msra.mxu0 %v9749
        %10496 = vmatpush.bf16.msra.mxu0 %v9746
        %10497 = vmatmul.bf16.gmra.mxu0 %v8185
        %v10498 = vpop.f32.mrf.mxu0
        %v10499 = vadd.f32 %v10481, %v10498
        %v10500 = vpop.f32.mrf.mxu0
        %v10501 = vadd.f32 %v10483, %v10500
        %10502 = vmatmul.bf16.gmra.mxu0 %v8197
        %v10503 = vpop.f32.mrf.mxu0
        %v10504 = vadd.f32 %v10486, %v10503
        %v10505 = vpop.f32.mrf.mxu0
        %10506 = vdwg.mxu0
        %10507 = vmatpush.bf16.msra.mxu0 %v9791
        %10508 = vmatpush.bf16.msra.mxu0 %v9788
        %10509 = vmatpush.bf16.msra.mxu0 %v9785
        %10510 = vmatpush.bf16.msra.mxu0 %v9782
        %10511 = vmatpush.bf16.msra.mxu0 %v9779
        %10512 = vmatpush.bf16.msra.mxu0 %v9776
        %10513 = vmatpush.bf16.msra.mxu0 %v9773
        %10514 = vmatpush.bf16.msra.mxu0 %v9770
        %10515 = vmatmul.bf16.gmra.mxu0 %v8186
        %v10516 = vpop.f32.mrf.mxu0
        %v10517 = vadd.f32 %v10499, %v10516
        %v10518 = vpop.f32.mrf.mxu0
        %v10519 = vadd.f32 %v10501, %v10518
        %10520 = vmatmul.bf16.gmra.mxu0 %v8198
        %v10521 = vpop.f32.mrf.mxu0
        %v10522 = vadd.f32 %v10504, %v10521
        %v10523 = vpop.f32.mrf.mxu0
        %10524 = vdwg.mxu0
        %10525 = vmatpush.bf16.msra.mxu0 %v9815
        %10526 = vmatpush.bf16.msra.mxu0 %v9812
        %10527 = vmatpush.bf16.msra.mxu0 %v9809
        %10528 = vmatpush.bf16.msra.mxu0 %v9806
        %10529 = vmatpush.bf16.msra.mxu0 %v9803
        %10530 = vmatpush.bf16.msra.mxu0 %v9800
        %10531 = vmatpush.bf16.msra.mxu0 %v9797
        %10532 = vmatpush.bf16.msra.mxu0 %v9794
        %10533 = vmatmul.bf16.gmra.mxu0 %v8187
        %v10534 = vpop.f32.mrf.mxu0
        %v10535 = vadd.f32 %v10517, %v10534
        %v10536 = vpop.f32.mrf.mxu0
        %v10537 = vadd.f32 %v10519, %v10536
        %10538 = vmatmul.bf16.gmra.mxu0 %v8199
        %v10539 = vpop.f32.mrf.mxu0
        %v10540 = vadd.f32 %v10522, %v10539
        %v10541 = vpop.f32.mrf.mxu0
        %10542 = vdwg.mxu0
        %10543 = vmatpush.bf16.msra.mxu0 %v9839
        %10544 = vmatpush.bf16.msra.mxu0 %v9836
        %10545 = vmatpush.bf16.msra.mxu0 %v9833
        %10546 = vmatpush.bf16.msra.mxu0 %v9830
        %10547 = vmatpush.bf16.msra.mxu0 %v9827
        %10548 = vmatpush.bf16.msra.mxu0 %v9824
        %10549 = vmatpush.bf16.msra.mxu0 %v9821
        %10550 = vmatpush.bf16.msra.mxu0 %v9818
        %10551 = vmatmul.bf16.gmra.mxu0 %v8188
        %v10552 = vpop.f32.mrf.mxu0
        %v10553 = vadd.f32 %v10535, %v10552
        %v10554 = vpop.f32.mrf.mxu0
        %v10555 = vadd.f32 %v10537, %v10554
        %10556 = vmatmul.bf16.gmra.mxu0 %v8200
        %v10557 = vpop.f32.mrf.mxu0
        %v10558 = vadd.f32 %v10540, %v10557
        %v10559 = vpop.f32.mrf.mxu0
        %10560 = vdwg.mxu0
        %10561 = vmatpush.bf16.msra.mxu0 %v9576
        %10562 = vmatpush.bf16.msra.mxu0 %v9573
        %10563 = vmatpush.bf16.msra.mxu0 %v9570
        %10564 = vmatpush.bf16.msra.mxu0 %v9567
        %10565 = vmatpush.bf16.msra.mxu0 %v9564
        %10566 = vmatpush.bf16.msra.mxu0 %v9561
        %10567 = vmatpush.bf16.msra.mxu0 %v9558
        %10568 = vmatpush.bf16.msra.mxu0 %v9555
        %10569 = vmatmul.bf16.gmra.mxu0 %v8177
        %v10570 = vpop.f32.mrf.mxu0
        %v10571 = vadd.f32 %v8589, %v10570
        %v10572 = vpop.f32.mrf.mxu0
        %v10573 = vadd.f32 %v8589, %v10572
        %10574 = vmatmul.bf16.gmra.mxu0 %v8189
        %v10575 = vpop.f32.mrf.mxu0
        %v10576 = vadd.f32 %v8589, %v10575
        %v10577 = vpop.f32.mrf.mxu0
        %10578 = vdwg.mxu0
        %10579 = vmatpush.bf16.msra.mxu0 %v9600
        %10580 = vmatpush.bf16.msra.mxu0 %v9597
        %10581 = vmatpush.bf16.msra.mxu0 %v9594
        %10582 = vmatpush.bf16.msra.mxu0 %v9591
        %10583 = vmatpush.bf16.msra.mxu0 %v9588
        %10584 = vmatpush.bf16.msra.mxu0 %v9585
        %10585 = vmatpush.bf16.msra.mxu0 %v9582
        %10586 = vmatpush.bf16.msra.mxu0 %v9579
        %10587 = vmatmul.bf16.gmra.mxu0 %v8178
        %v10588 = vpop.f32.mrf.mxu0
        %v10589 = vadd.f32 %v10571, %v10588
        %v10590 = vpop.f32.mrf.mxu0
        %v10591 = vadd.f32 %v10573, %v10590
        %10592 = vmatmul.bf16.gmra.mxu0 %v8190
        %v10593 = vpop.f32.mrf.mxu0
        %v10594 = vadd.f32 %v10576, %v10593
        %v10595 = vpop.f32.mrf.mxu0
        %10596 = vdwg.mxu0
        %10597 = vmatpush.bf16.msra.mxu0 %v9624
        %10598 = vmatpush.bf16.msra.mxu0 %v9621
        %10599 = vmatpush.bf16.msra.mxu0 %v9618
        %10600 = vmatpush.bf16.msra.mxu0 %v9615
        %10601 = vmatpush.bf16.msra.mxu0 %v9612
        %10602 = vmatpush.bf16.msra.mxu0 %v9609
        %10603 = vmatpush.bf16.msra.mxu0 %v9606
        %10604 = vmatpush.bf16.msra.mxu0 %v9603
        %10605 = vmatmul.bf16.gmra.mxu0 %v8179
        %v10606 = vpop.f32.mrf.mxu0
        %v10607 = vadd.f32 %v10589, %v10606
        %v10608 = vpop.f32.mrf.mxu0
        %v10609 = vadd.f32 %v10591, %v10608
        %10610 = vmatmul.bf16.gmra.mxu0 %v8191
        %v10611 = vpop.f32.mrf.mxu0
        %v10612 = vadd.f32 %v10594, %v10611
        %v10613 = vpop.f32.mrf.mxu0
        %10614 = vdwg.mxu0
        %10615 = vmatpush.bf16.msra.mxu0 %v9648
        %10616 = vmatpush.bf16.msra.mxu0 %v9645
        %10617 = vmatpush.bf16.msra.mxu0 %v9642
        %10618 = vmatpush.bf16.msra.mxu0 %v9639
        %10619 = vmatpush.bf16.msra.mxu0 %v9636
        %10620 = vmatpush.bf16.msra.mxu0 %v9633
        %10621 = vmatpush.bf16.msra.mxu0 %v9630
        %10622 = vmatpush.bf16.msra.mxu0 %v9627
        %10623 = vmatmul.bf16.gmra.mxu0 %v8180
        %v10624 = vpop.f32.mrf.mxu0
        %v10625 = vadd.f32 %v10607, %v10624
        %v10626 = vpop.f32.mrf.mxu0
        %v10627 = vadd.f32 %v10609, %v10626
        %10628 = vmatmul.bf16.gmra.mxu0 %v8192
        %v10629 = vpop.f32.mrf.mxu0
        %v10630 = vadd.f32 %v10612, %v10629
        %v10631 = vpop.f32.mrf.mxu0
        %10632 = vdwg.mxu0
        %10633 = vmatpush.bf16.msra.mxu0 %v9672
        %10634 = vmatpush.bf16.msra.mxu0 %v9669
        %10635 = vmatpush.bf16.msra.mxu0 %v9666
        %10636 = vmatpush.bf16.msra.mxu0 %v9663
        %10637 = vmatpush.bf16.msra.mxu0 %v9660
        %10638 = vmatpush.bf16.msra.mxu0 %v9657
        %10639 = vmatpush.bf16.msra.mxu0 %v9654
        %10640 = vmatpush.bf16.msra.mxu0 %v9651
        %10641 = vmatmul.bf16.gmra.mxu0 %v8181
        %v10642 = vpop.f32.mrf.mxu0
        %v10643 = vadd.f32 %v10625, %v10642
        %v10644 = vpop.f32.mrf.mxu0
        %v10645 = vadd.f32 %v10627, %v10644
        %10646 = vmatmul.bf16.gmra.mxu0 %v8193
        %v10647 = vpop.f32.mrf.mxu0
        %v10648 = vadd.f32 %v10630, %v10647
        %v10649 = vpop.f32.mrf.mxu0
        %10650 = vdwg.mxu0
        %10651 = vmatpush.bf16.msra.mxu0 %v9696
        %10652 = vmatpush.bf16.msra.mxu0 %v9693
        %10653 = vmatpush.bf16.msra.mxu0 %v9690
        %10654 = vmatpush.bf16.msra.mxu0 %v9687
        %10655 = vmatpush.bf16.msra.mxu0 %v9684
        %10656 = vmatpush.bf16.msra.mxu0 %v9681
        %10657 = vmatpush.bf16.msra.mxu0 %v9678
        %10658 = vmatpush.bf16.msra.mxu0 %v9675
        %10659 = vmatmul.bf16.gmra.mxu0 %v8182
        %v10660 = vpop.f32.mrf.mxu0
        %v10661 = vadd.f32 %v10643, %v10660
        %v10662 = vpop.f32.mrf.mxu0
        %v10663 = vadd.f32 %v10645, %v10662
        %10664 = vmatmul.bf16.gmra.mxu0 %v8194
        %v10665 = vpop.f32.mrf.mxu0
        %v10666 = vadd.f32 %v10648, %v10665
        %v10667 = vpop.f32.mrf.mxu0
        %10668 = vdwg.mxu0
        %10669 = vmatpush.bf16.msra.mxu0 %v9720
        %10670 = vmatpush.bf16.msra.mxu0 %v9717
        %10671 = vmatpush.bf16.msra.mxu0 %v9714
        %10672 = vmatpush.bf16.msra.mxu0 %v9711
        %10673 = vmatpush.bf16.msra.mxu0 %v9708
        %10674 = vmatpush.bf16.msra.mxu0 %v9705
        %10675 = vmatpush.bf16.msra.mxu0 %v9702
        %10676 = vmatpush.bf16.msra.mxu0 %v9699
        %10677 = vmatmul.bf16.gmra.mxu0 %v8183
        %v10678 = vpop.f32.mrf.mxu0
        %v10679 = vadd.f32 %v10661, %v10678
        %v10680 = vpop.f32.mrf.mxu0
        %v10681 = vadd.f32 %v10663, %v10680
        %10682 = vmatmul.bf16.gmra.mxu0 %v8195
        %v10683 = vpop.f32.mrf.mxu0
        %v10684 = vadd.f32 %v10666, %v10683
        %v10685 = vpop.f32.mrf.mxu0
        %10686 = vdwg.mxu0
        %10687 = vmatpush.bf16.msra.mxu0 %v9744
        %10688 = vmatpush.bf16.msra.mxu0 %v9741
        %10689 = vmatpush.bf16.msra.mxu0 %v9738
        %10690 = vmatpush.bf16.msra.mxu0 %v9735
        %10691 = vmatpush.bf16.msra.mxu0 %v9732
        %10692 = vmatpush.bf16.msra.mxu0 %v9729
        %10693 = vmatpush.bf16.msra.mxu0 %v9726
        %10694 = vmatpush.bf16.msra.mxu0 %v9723
        %10695 = vmatmul.bf16.gmra.mxu0 %v8184
        %v10696 = vpop.f32.mrf.mxu0
        %v10697 = vadd.f32 %v10679, %v10696
        %v10698 = vpop.f32.mrf.mxu0
        %v10699 = vadd.f32 %v10681, %v10698
        %10700 = vmatmul.bf16.gmra.mxu0 %v8196
        %v10701 = vpop.f32.mrf.mxu0
        %v10702 = vadd.f32 %v10684, %v10701
        %v10703 = vpop.f32.mrf.mxu0
        %10704 = vdwg.mxu0
        %10705 = vmatpush.bf16.msra.mxu0 %v9768
        %10706 = vmatpush.bf16.msra.mxu0 %v9765
        %10707 = vmatpush.bf16.msra.mxu0 %v9762
        %10708 = vmatpush.bf16.msra.mxu0 %v9759
        %10709 = vmatpush.bf16.msra.mxu0 %v9756
        %10710 = vmatpush.bf16.msra.mxu0 %v9753
        %10711 = vmatpush.bf16.msra.mxu0 %v9750
        %10712 = vmatpush.bf16.msra.mxu0 %v9747
        %10713 = vmatmul.bf16.gmra.mxu0 %v8185
        %v10714 = vpop.f32.mrf.mxu0
        %v10715 = vadd.f32 %v10697, %v10714
        %v10716 = vpop.f32.mrf.mxu0
        %v10717 = vadd.f32 %v10699, %v10716
        %10718 = vmatmul.bf16.gmra.mxu0 %v8197
        %v10719 = vpop.f32.mrf.mxu0
        %v10720 = vadd.f32 %v10702, %v10719
        %v10721 = vpop.f32.mrf.mxu0
        %10722 = vdwg.mxu0
        %10723 = vmatpush.bf16.msra.mxu0 %v9792
        %10724 = vmatpush.bf16.msra.mxu0 %v9789
        %10725 = vmatpush.bf16.msra.mxu0 %v9786
        %10726 = vmatpush.bf16.msra.mxu0 %v9783
        %10727 = vmatpush.bf16.msra.mxu0 %v9780
        %10728 = vmatpush.bf16.msra.mxu0 %v9777
        %10729 = vmatpush.bf16.msra.mxu0 %v9774
        %10730 = vmatpush.bf16.msra.mxu0 %v9771
        %10731 = vmatmul.bf16.gmra.mxu0 %v8186
        %v10732 = vpop.f32.mrf.mxu0
        %v10733 = vadd.f32 %v10715, %v10732
        %v10734 = vpop.f32.mrf.mxu0
        %v10735 = vadd.f32 %v10717, %v10734
        %10736 = vmatmul.bf16.gmra.mxu0 %v8198
        %v10737 = vpop.f32.mrf.mxu0
        %v10738 = vadd.f32 %v10720, %v10737
        %v10739 = vpop.f32.mrf.mxu0
        %10740 = vdwg.mxu0
        %10741 = vmatpush.bf16.msra.mxu0 %v9816
        %10742 = vmatpush.bf16.msra.mxu0 %v9813
        %10743 = vmatpush.bf16.msra.mxu0 %v9810
        %10744 = vmatpush.bf16.msra.mxu0 %v9807
        %10745 = vmatpush.bf16.msra.mxu0 %v9804
        %10746 = vmatpush.bf16.msra.mxu0 %v9801
        %10747 = vmatpush.bf16.msra.mxu0 %v9798
        %10748 = vmatpush.bf16.msra.mxu0 %v9795
        %10749 = vmatmul.bf16.gmra.mxu0 %v8187
        %v10750 = vpop.f32.mrf.mxu0
        %v10751 = vadd.f32 %v10733, %v10750
        %v10752 = vpop.f32.mrf.mxu0
        %v10753 = vadd.f32 %v10735, %v10752
        %10754 = vmatmul.bf16.gmra.mxu0 %v8199
        %v10755 = vpop.f32.mrf.mxu0
        %v10756 = vadd.f32 %v10738, %v10755
        %v10757 = vpop.f32.mrf.mxu0
        %10758 = vdwg.mxu0
        %10759 = vmatpush.bf16.msra.mxu0 %v9840
        %10760 = vmatpush.bf16.msra.mxu0 %v9837
        %10761 = vmatpush.bf16.msra.mxu0 %v9834
        %10762 = vmatpush.bf16.msra.mxu0 %v9831
        %10763 = vmatpush.bf16.msra.mxu0 %v9828
        %10764 = vmatpush.bf16.msra.mxu0 %v9825
        %10765 = vmatpush.bf16.msra.mxu0 %v9822
        %10766 = vmatpush.bf16.msra.mxu0 %v9819
        %10767 = vmatmul.bf16.gmra.mxu0 %v8188
        %v10768 = vpop.f32.mrf.mxu0
        %v10769 = vadd.f32 %v10751, %v10768
        %v10770 = vpop.f32.mrf.mxu0
        %v10771 = vadd.f32 %v10753, %v10770
        %10772 = vmatmul.bf16.gmra.mxu0 %v8200
        %v10773 = vpop.f32.mrf.mxu0
        %v10774 = vadd.f32 %v10756, %v10773
        %v10775 = vpop.f32.mrf.mxu0
        %10776 = vdwg.mxu0
        %v10777 = vld [vmem:[%s1116] sm:$0x7]
        %v10779 = vperm.slane %v10777, 0
        %v10780 = vperm.slane %v10777, 1
        %v10781 = vperm.slane %v10777, 2
        %v10785 = vmul.f32 %v10337, %v10779
        %v10786 = vmul.f32 %v10553, %v10780
        %v10787 = vmul.f32 %v10769, %v10781
        %v10788 = vmul.f32 %v10339, %v10779
        %v10789 = vmul.f32 %v10555, %v10780
        %v10790 = vmul.f32 %v10771, %v10781
        %v10791 = vmul.f32 %v10342, %v10779
        %v10792 = vmul.f32 %v10558, %v10780
        %v10793 = vmul.f32 %v10774, %v10781
        %v10794 = vadd.f32 %v5310, %v10785
        %v10795 = vadd.f32 %v5311, %v10786
        %v10796 = vadd.f32 %v5312, %v10787
        %v10797 = vadd.f32 %v5313, %v10788
        %v10798 = vadd.f32 %v5314, %v10789
        %v10799 = vadd.f32 %v5315, %v10790
        %v10800 = vadd.f32 %v5316, %v10791
        %v10801 = vadd.f32 %v5317, %v10792
        %v10802 = vadd.f32 %v5318, %v10793
        %10803 = vst [vmem:[#allocation2] sm:$0xff] %v10794
        %10804 = vst [vmem:[#allocation2 + $0x8] sm:$0xff] %v10795
        %10805 = vst [vmem:[#allocation2 + $0x10] sm:$0xff] %v10796
        %10806 = vst [vmem:[#allocation2 + $0x18] sm:$0xff] %v10797
        %10807 = vst [vmem:[#allocation2 + $0x20] sm:$0xff] %v10798
        %10808 = vst [vmem:[#allocation2 + $0x28] sm:$0xff] %v10799
        %10809 = vst [vmem:[#allocation2 + $0x30] sm:$0xff] %v10800
        %10810 = vst [vmem:[#allocation2 + $0x38] sm:$0xff] %v10801
        %10811 = vst [vmem:[#allocation2 + $0x40] sm:$0xff] %v10802
        %p10812 = scmp.eq.s32.totalorder %s44, 1
        // Predicated region
        $region185: #{tpu_custom_call.1} parent=99 // pred_check
          %p10813 = pneg %p10812
        $region186: #{tpu_custom_call.1} parent=99 // pred_check_branch
          %10815 = sbr.rel (%p10813) target = $region188
        $region187: #{tpu_custom_call.1} parent=99 // pred_region
          %vm10816 = vcmask 1040384
          %v10817 = vsel %vm10816, %v10794, 0.0
          %v10818 = vsel %vm10816, %v10795, 0.0
          %v10819 = vadd.f32 %v10817, %v10818
          %v10820 = vsel %vm10816, %v10796, 0.0
          %v10821 = vadd.f32 %v10819, %v10820
          %10822 = vadd.xlane.f32.xlu0 %v10821
          %v10823 = vpop.xlane.xlu0 %10822
          %v10824 = vmul.f32 %v10823, %v1472
          %v10825 = vsub.f32 %v10794, %v10824
          %v10826 = vsub.f32 %v10795, %v10824
          %v10827 = vsub.f32 %v10796, %v10824
          %v10828 = vmul.f32 %v10825, %v10825
          %v10829 = vmul.f32 %v10826, %v10826
          %v10830 = vmul.f32 %v10827, %v10827
          %v10831 = vsel %vm10816, %v10828, 0.0
          %v10832 = vsel %vm10816, %v10829, 0.0
          %v10833 = vadd.f32 %v10831, %v10832
          %v10834 = vsel %vm10816, %v10830, 0.0
          %v10835 = vadd.f32 %v10833, %v10834
          %10836 = vadd.xlane.f32.xlu0 %v10835
          %v10837 = vpop.xlane.xlu0 %10836
          %v10838 = vmul.f32 %v10837, %v1472
          %v10839 = vadd.f32 %v10838, 1e-06
          %v10840 = vrsqrt.pop %v10839
          %v10841 = vmul.f32 %v10840, %v10839
          %v10842 = vmul.f32 %v10841, %v10840
          %v10843 = vmul.f32 0.5, %v10842
          %v10844 = vsub.f32 1.5, %v10843
          %v10845 = vmul.f32 %v10840, %v10844
          %vm10846 = vweird.f32 %v10839
          %vm10847 = vweird.f32 %v10840
          %vm10848 = vmor %vm10846, %vm10847
          %v10849 = vsel %vm10848, %v10840, %v10845
          %v10850 = vmul.f32 %v10825, %v10849
          %v10851 = vmul.f32 %v10826, %v10849
          %v10852 = vmul.f32 %v10827, %v10849
          %v10853 = vld [vmem:[#allocation25] sm:$0x7]
          %v10855 = vperm.slane %v10853, 0
          %v10856 = vperm.slane %v10853, 1
          %v10857 = vperm.slane %v10853, 2
          %v10861 = vmul.f32 %v10850, %v10855
          %v10862 = vmul.f32 %v10851, %v10856
          %v10863 = vmul.f32 %v10852, %v10857
          %v10864 = vld [vmem:[#allocation26] sm:$0x7]
          %v10866 = vperm.slane %v10864, 0
          %v10867 = vperm.slane %v10864, 1
          %v10868 = vperm.slane %v10864, 2
          %v10872 = vadd.f32 %v10861, %v10866
          %v10873 = vadd.f32 %v10862, %v10867
          %v10874 = vadd.f32 %v10863, %v10868
          %v10878 = vrot.slane %v10873, 7
          %v10879 = vrot.slane %v10874, 6
          %v10880 = vsel %vm10816, %v10872, %v10878
          %vm10881 = vcmask 1041408
          %v10882 = vsel %vm10881, %v10880, %v10879
          %v10884 = vlaneseq
          %vm10885 = vcmp.ge.s32.totalorder %v10884, 0
          %vm10886 = vcmp.lt.s32.totalorder %v10884, 384
          %vm10887 = vmand %vm10885, %vm10886
          %10888 = vst.msk [vmem:[%s1253] sm:$0x7] %vm10887, %v10882
        $region188: #{tpu_custom_call.1} parent=99 // pred_fallthru
          _
        %s10889 = sand.u32 %s554, 1
        %s10890 = scalar_lea.sflag [#allocation5], %s10889
        %s10891 = sand.u32 %s554, 1
        %s10892 = smul.addr %s10891, 3
        %s10893 = scalar_lea.vmem [#allocation27], %s10892
        // Predicated region
        $region189: #{tpu_custom_call.1} parent=99 // pred_check
          %p10894 = pneg %p564
        $region190: #{tpu_custom_call.1} parent=99 // pred_check_branch
          %10896 = sbr.rel (%p10894) target = $region192
        $region191: #{tpu_custom_call.1} parent=99 // pred_region
          %10898 = vsyncadd %s10890, 0
          %s10899 = smul.addr %s43, 3
          %s10900 = scalar_lea.hbm %s20, %s10899
          %s10902 = sshll.u32 %s10893, 4
          %s10903 = int_to_ptr.vmem [resolvable:$true] %s10902
          %s10904 = sshll.u32 %s10900, 4
          %s10905 = int_to_ptr.hbm [resolvable:$true] %s10904
          %10907 = dma.vmem_to_hbm [thread:$0]  %s10903, 48, %s10905, %s10890
        $region192: #{tpu_custom_call.1} parent=99 // pred_fallthru
          _
      $region100: #{tpu_custom_call.1} parent=5 // pred_fallthru
        _
      %p10908 = scmp.le.s32.totalorder 2, %s34
      // Predicated region
      $region193: #{tpu_custom_call.1} parent=5 // pred_check
        %p10909 = pneg %p10908
      $region194: #{tpu_custom_call.1} parent=5 // pred_check_branch
        %10911 = sbr.rel (%p10909) target = $region196
      $region195: #{tpu_custom_call.1} parent=5 // pred_region
        %s10912 = ssub.s32 %s34, 2
        // Predicated region
        $region197: #{tpu_custom_call.1} parent=195 // pred_check
          %p10913 = pneg %p570
        $region198: #{tpu_custom_call.1} parent=195 // pred_check_branch
          %10915 = sbr.rel (%p10913) target = $region200
        $region199: #{tpu_custom_call.1} parent=195 // pred_region
          %s10916 = sand.u32 %s555, 1
          %s10917 = scalar_lea.sflag [#allocation5], %s10916
          %s10918 = sand.u32 %s555, 1
          %s10919 = smul.addr %s10918, 3
          %s10920 = scalar_lea.vmem [#allocation27], %s10919
          %10922 = dma.done %s10917, 48
        $region200: #{tpu_custom_call.1} parent=195 // pred_fallthru
          _
      $region196: #{tpu_custom_call.1} parent=5 // pred_fallthru
        _
    $region6: #{tpu_custom_call.1} parent=1 // loop_footer
      %s38 = sadd.s32 1, %s34
    $region7: #{tpu_custom_call.1} parent=1 // loop_footer_branch
      %33 = sbr.rel target = $region3
    $region8: #{tpu_custom_call.1} parent=1 // loop_exit
      _
    %10923 = vsyncpa [#allocation4], 1
    %s10924 = scalar_lea.sflag [#allocation4], 1
    %10925 = vsyncpa %s10924, 1
    %10926 = vsyncpa [#allocation7], 1
    %10927 = vsyncpa [#allocation10], 1
    %10928 = vsyncpa [#allocation5], 1
    %s10929 = scalar_lea.sflag [#allocation5], 1
    %10930 = vsyncpa %s10929, 1

</llo_original>
